<compile_context>
chip_gen: v6e
topology: v6e:2x2x1
jax: 0.10.0
libtpu: 0.0.40
codegen_flags: <defaults>
</compile_context>

<pallas_src>
import jax
import jax.numpy as jnp
from jax import lax
from jax.experimental import pallas as pl
from jax.experimental.pallas import tpu as pltpu


# ----------------------------- padding helpers -------------------------------
def _round_up(x, m):
    return (x + m - 1) // m * m


def _pad_axis(x, axis, new_size):
    pad = [(0, 0)] * x.ndim
    pad[axis] = (0, new_size - x.shape[axis])
    return jnp.pad(x, pad)


def _pad_gates(w, H, Hp):
    """(..., 3H) -> (..., 3Hp), keeping the PyTorch [r|z|n] blocks in their
    padded slots (zero-fill)."""
    lead = w.shape[:-1]
    w3 = w.reshape(lead + (3, H))
    w3 = _pad_axis(w3, w3.ndim - 1, Hp)
    return w3.reshape(lead + (3 * Hp,))


# ------------------------------- GRU kernel ----------------------------------
def gru_decoder_kernel(emb_ref, ctx_ref, h0_ref,
                       wih0e_ref, wih0c_ref, whh0_ref, bias0_ref, bhh0n_ref,
                       wih1_ref, whh1_ref, bias1_ref, bhh1n_ref,
                       seq_ref, hout_ref,
                       gi_ref):
    TB, Hp = seq_ref.shape
    Bp = ctx_ref.shape[0]
    T = TB // Bp
    f32 = jnp.float32

    # ---- hoisted, non-recurrent work ---------------------------------------
    # Layer-0 input gates for every timestep: one big MXU matmul, stored
    # WITHOUT the time-constant context/bias contribution (added per step,
    # off the recurrent chain) -> no second (TB, 3Hp) temporary / broadcast.
    gi_ref[...] = jnp.dot(emb_ref[...], wih0e_ref[...],
                          preferred_element_type=f32).astype(gi_ref.dtype)

    # Context contribution + (b_ih0 + b_hh0[r,z]) folded once.   (Bp, 3Hp)
    ctx_gates = (jnp.dot(ctx_ref[...].astype(wih0c_ref.dtype), wih0c_ref[...],
                         preferred_element_type=f32)
                 + bias0_ref[...])
    # Broadcasts hoisted out of the loop (JAX does not CSE broadcast_in_dim).
    bias1_b = jnp.broadcast_to(bias1_ref[...], (Bp, 3 * Hp))    # b_ih1+b_hh1[r,z]
    bhh0n_b = jnp.broadcast_to(bhh0n_ref[...], (Bp, Hp))        # b_hh0[n]
    bhh1n_b = jnp.broadcast_to(bhh1n_ref[...], (Bp, Hp))        # b_hh1[n]

    def _row(t):
        r = t * Bp
        return r if isinstance(r, int) else pl.multiple_of(r, Bp)

    def _gates(gi, gh, bhn_b, h):
        r = jax.nn.sigmoid(gi[:, 0:Hp] + gh[:, 0:Hp])
        z = jax.nn.sigmoid(gi[:, Hp:2 * Hp] + gh[:, Hp:2 * Hp])
        n = jnp.tanh(gi[:, 2 * Hp:3 * Hp] + r * (gh[:, 2 * Hp:3 * Hp] + bhn_b))
        return n + z * (h - n)                      # == (1 - z) * n + z * h

    def l0_step(t, h0):
        gi = gi_ref[pl.ds(_row(t), Bp), :].astype(f32) + ctx_gates
        gh = jnp.dot(h0.astype(whh0_ref.dtype), whh0_ref[...],
                     preferred_element_type=f32)
        return _gates(gi, gh, bhh0n_b, h0)

    def l1_step(t, x, h1):
        gi = jnp.dot(x.astype(wih1_ref.dtype), wih1_ref[...],
                     preferred_element_type=f32) + bias1_b
        gh = jnp.dot(h1.astype(whh1_ref.dtype), whh1_ref[...],
                     preferred_element_type=f32)
        h1_new = _gates(gi, gh, bhh1n_b, h1)
        seq_ref[pl.ds(_row(t), Bp), :] = h1_new.astype(seq_ref.dtype)
        return h1_new

    # ---- skew-fused recurrence ---------------------------------------------
    # Iteration i runs layer-1 step i and layer-0 step i+1; both only depend
    # on the previous iteration's carries, so their dependency chains overlap.
    h0 = l0_step(0, h0_ref[0])
    h1 = h0_ref[1]

    def fused(i, carry):
        h0, h1 = carry
        h1_new = l1_step(i, h0, h1)          # consumes h0_i
        h0_new = l0_step(i + 1, h0)          # produces h0_{i+1}
        return (h0_new, h1_new)

    trip = T - 1
    unroll = True if trip <= 16 else 8       # partial unroll for long T
    h0, h1 = lax.fori_loop(0, trip, fused, (h0, h1), unroll=unroll)
    h1 = l1_step(T - 1, h0, h1)

    hout_ref[0] = h0
    hout_ref[1] = h1


# ------------------------------ dense kernel ---------------------------------
def dense_kernel(x_ref, w_ref, b_ref, o_ref):
    o_ref[...] = (jnp.dot(x_ref[...], w_ref[...],
                          preferred_element_type=jnp.float32)
                  + b_ref[...]).astype(o_ref.dtype)


# ---------------------------- vmem limit helper -------------------------------
def _vmem_limit(est_bytes):
    limit = max(32 << 20, min(100 << 20, int(est_bytes * 1.5) + (8 << 20)))
    try:  # clamp to physical VMEM (64 MiB on v7x, 128 MiB on v5e/v6e)
        phys = pltpu.get_tpu_info().vmem_capacity_bytes
        limit = min(limit, int(phys * 0.9))
    except Exception:
        limit = min(limit, 56 << 20)          # conservative if query unavailable
    return limit


# -------------------------------- wrapper ------------------------------------
def seq2seq_decoder_forward(X_tokens, state, params, *, compute_dtype=jnp.float32):
    """Pallas implementation of Seq2SeqDecoder.forward(X, state).

    compute_dtype controls the operand dtype of the big matmuls AND (if bf16)
    the recurrent matmul operands / gi scratch; accumulation and the stored
    hidden state always stay float32.  bf16 exceeds a 1e-4 tolerance vs. the
    f32 reference -- use a looser tolerance when validating that path.
    """
    emb_w = params["embedding"]                       # (V, E)
    L, B, H = state.shape
    T = X_tokens.shape[1]
    V, E = emb_w.shape
    assert L == 2
    f32 = jnp.float32

    Bp = _round_up(B, 8)        # sublane-aligned batch
    Hp = _round_up(H, 128)      # lane-aligned hidden -> gate slices at 128-lane steps
    Vp = _round_up(V, 128)      # lane-dense logits stores
    Ep = _round_up(E, 128)
    TB = T * Bp

    # ---- pad / split weights (zero padding is exactly preserved by the GRU) -
    w_ih0 = params["w_ih0"]                           # (E+H, 3H)
    wih0e = _pad_axis(_pad_gates(w_ih0[:E], H, Hp), 0, Ep).astype(compute_dtype)
    wih0c = _pad_axis(_pad_gates(w_ih0[E:], H, Hp), 0, Hp).astype(compute_dtype)
    whh0 = _pad_axis(_pad_gates(params["w_hh0"], H, Hp), 0, Hp).astype(compute_dtype)
    wih1 = _pad_axis(_pad_gates(params["w_ih1"], H, Hp), 0, Hp).astype(compute_dtype)
    whh1 = _pad_axis(_pad_gates(params["w_hh1"], H, Hp), 0, Hp).astype(compute_dtype)

    bih0 = _pad_gates(params["b_ih0"], H, Hp).astype(f32)
    bhh0 = _pad_gates(params["b_hh0"], H, Hp).astype(f32)
    bih1 = _pad_gates(params["b_ih1"], H, Hp).astype(f32)
    bhh1 = _pad_gates(params["b_hh1"], H, Hp).astype(f32)
    # Fold the r/z parts of b_hh into the hoisted input-gate bias; keep the
    # n part separate (PyTorch applies it inside r * (...)).
    zeros_n = jnp.zeros((1, Hp), f32)
    bias0 = bih0 + jnp.concatenate([bhh0[:, :2 * Hp], zeros_n], axis=1)
    bhh0n = bhh0[:, 2 * Hp:]
    bias1 = bih1 + jnp.concatenate([bhh1[:, :2 * Hp], zeros_n], axis=1)
    bhh1n = bhh1[:, 2 * Hp:]

    w_d = _pad_axis(_pad_axis(params["w_dense"], 0, Hp), 1, Vp).astype(compute_dtype)
    b_d = _pad_axis(params["b_dense"], 1, Vp).astype(f32)

    state_p = _pad_axis(_pad_axis(state.astype(f32), 1, Bp), 2, Hp)   # (L, Bp, Hp)
    Xp = _pad_axis(X_tokens, 0, Bp)                                   # (Bp, T)

    # Layout glue (stays in XLA): embedding gather + time-major flatten.
    emb_w_p = _pad_axis(emb_w, 1, Ep).astype(compute_dtype)
    emb_flat = jnp.take(emb_w_p, Xp.T, axis=0).reshape(TB, Ep)        # rows = t*Bp + b
    context = state_p[-1]                                             # (Bp, Hp)

    # ---- GRU pallas_call ----------------------------------------------------
    cbytes = jnp.dtype(compute_dtype).itemsize
    est = (TB * Ep * cbytes                      # emb_flat
           + TB * 3 * Hp * cbytes                # gi scratch
           + TB * Hp * cbytes                    # layer-1 sequence output
           + (Ep + 4 * Hp) * 3 * Hp * cbytes     # gate weight matrices
           + 2 * L * Bp * Hp * 4                 # state in/out
           + 2 * Bp * Hp * 4)                    # context + biases
    gru_vmem_limit = _vmem_limit(est)

    vmem = pl.BlockSpec(memory_space=pltpu.MemorySpace.VMEM)
    gru_inputs = (emb_flat, context, state_p,
                  wih0e, wih0c, whh0, bias0, bhh0n,
                  wih1, whh1, bias1, bhh1n)

    seq1, new_state_p = pl.pallas_call(
        gru_decoder_kernel,
        out_shape=(jax.ShapeDtypeStruct((TB, Hp), compute_dtype),   # layer-1 sequence
                   jax.ShapeDtypeStruct((L, Bp, Hp), f32)),         # new state
        in_specs=[vmem] * len(gru_inputs),
        out_specs=(vmem, vmem),
        scratch_shapes=[pltpu.VMEM((TB, 3 * Hp), compute_dtype)],   # gi (layer-0)
        compiler_params=pltpu.CompilerParams(vmem_limit_bytes=gru_vmem_limit),
    )(*gru_inputs)

    # Transpose the small H-wide sequence (not the V-wide logits) so the dense
    # kernel writes logits directly in batch-major (B, T, V) order.
    seq1_bt = jnp.transpose(seq1.reshape(T, Bp, Hp), (1, 0, 2)).reshape(TB, Hp)

    # ---- dense projection ---------------------------------------------------
    tm = min(TB, 512)           # row tile (multiple of 8)
    tn = min(Vp, 512)           # lane-dense vocab tile (multiple of 128)
    # Grid order: vocab outer, rows inner -> the (Hp, tn) weight block stays
    # VMEM-resident across all row tiles (one HBM pass over W).
    logits_flat = pl.pallas_call(
        dense_kernel,
        out_shape=jax.ShapeDtypeStruct((TB, Vp), f32),
        grid_spec=pltpu.PrefetchScalarGridSpec(
            num_scalar_prefetch=0,
            grid=(pl.cdiv(Vp, tn), pl.cdiv(TB, tm)),
            in_specs=[pl.BlockSpec((tm, Hp), lambda j, i: (i, 0)),
                      pl.BlockSpec((Hp, tn), lambda j, i: (0, j)),
                      pl.BlockSpec((1, tn), lambda j, i: (0, j))],
            out_specs=pl.BlockSpec((tm, tn), lambda j, i: (i, j))),
        compiler_params=pltpu.CompilerParams(
            dimension_semantics=("parallel", "parallel"),
            vmem_limit_bytes=32 * 1024 * 1024),
    )(seq1_bt, w_d, b_d)

    out = logits_flat.reshape(Bp, T, Vp)[:B, :, :V]     # already (B, T, V)
    new_state = new_state_p[:, :B, :H]
    return out, new_state


# ---------------- pure-JAX reference (for correctness check) ----------------
def _gru_cell_ref(x, h, w_ih, w_hh, b_ih, b_hh):
    H = h.shape[-1]
    gi = x @ w_ih + b_ih
    gh = h @ w_hh + b_hh
    r = jax.nn.sigmoid(gi[:, :H] + gh[:, :H])
    z = jax.nn.sigmoid(gi[:, H:2 * H] + gh[:, H:2 * H])
    n = jnp.tanh(gi[:, 2 * H:] + r * gh[:, 2 * H:])
    return (1.0 - z) * n + z * h


def reference_forward(X_tokens, state, params):
    emb_w = params["embedding"]
    L, B, H = state.shape
    T = X_tokens.shape[1]
    emb = jnp.take(emb_w, X_tokens, axis=0)
    x_tm = jnp.transpose(emb, (1, 0, 2))
    context = jnp.broadcast_to(state[-1][None, :, :], (T, B, H))
    x = jnp.concatenate([x_tm, context], axis=-1).astype(jnp.float32)

    layer_params = [(params["w_ih0"], params["w_hh0"], params["b_ih0"], params["b_hh0"]),
                    (params["w_ih1"], params["w_hh1"], params["b_ih1"], params["b_hh1"])]
    new_states = []
    for l, (w_ih, w_hh, b_ih, b_hh) in enumerate(layer_params):
        def step(h, x_t):
            h_new = _gru_cell_ref(x_t, h, w_ih, w_hh, b_ih, b_hh)
            return h_new, h_new
        h_last, x = lax.scan(step, state[l], x)
        new_states.append(h_last)
    logits = x @ params["w_dense"] + params["b_dense"]
    return jnp.transpose(logits, (1, 0, 2)), jnp.stack(new_states, axis=0)


if __name__ == "__main__":
    vocab_size, embed_size, num_hiddens, num_layers = 32, 16, 32, 2
    B, T = 4, 8
    H = num_hiddens

    key = jax.random.PRNGKey(0)
    ks = jax.random.split(key, 14)
    s = 1.0 / jnp.sqrt(jnp.float32(num_hiddens))

    params = {
        "embedding": jax.random.normal(ks[0], (vocab_size, embed_size), jnp.float32),
        # layer 0: input size = embed_size + num_hiddens
        "w_ih0": jax.random.uniform(ks[1], (embed_size + H, 3 * H), jnp.float32, -s, s),
        "w_hh0": jax.random.uniform(ks[2], (H, 3 * H), jnp.float32, -s, s),
        "b_ih0": jax.random.uniform(ks[3], (1, 3 * H), jnp.float32, -s, s),
        "b_hh0": jax.random.uniform(ks[4], (1, 3 * H), jnp.float32, -s, s),
        # layer 1: input size = num_hiddens
        "w_ih1": jax.random.uniform(ks[5], (H, 3 * H), jnp.float32, -s, s),
        "w_hh1": jax.random.uniform(ks[6], (H, 3 * H), jnp.float32, -s, s),
        "b_ih1": jax.random.uniform(ks[7], (1, 3 * H), jnp.float32, -s, s),
        "b_hh1": jax.random.uniform(ks[8], (1, 3 * H), jnp.float32, -s, s),
        # dense: num_hiddens -> vocab_size
        "w_dense": jax.random.uniform(ks[9], (H, vocab_size), jnp.float32, -s, s),
        "b_dense": jax.random.uniform(ks[10], (1, vocab_size), jnp.float32, -s, s),
    }

    X = jax.random.randint(ks[11], (B, T), 0, vocab_size, dtype=jnp.int32)
    # init_state(enc_outputs) = enc hidden state: (num_layers, batch, num_hiddens)
    state = 0.1 * jax.random.normal(ks[12], (num_layers, B, H), jnp.float32)

    out, new_state = seq2seq_decoder_forward(X, state, params)
    jax.block_until_ready((out, new_state))

    ref_out, ref_state = reference_forward(X, state, params)
    assert out.shape == (B, T, vocab_size), out.shape
    assert new_state.shape == (num_layers, B, H), new_state.shape
    assert jnp.allclose(out, ref_out, atol=1e-4, rtol=1e-4), "output mismatch"
    assert jnp.allclose(new_state, ref_state, atol=1e-4, rtol=1e-4), "state mismatch"

    print("KERNEL_OK")
</pallas_src>

<mosaic_0001>
module attributes {stable_mosaic.version = 11 : i64} {
  func.func @gru_decoder_kernel(%arg0: memref<64x128xf32, #tpu.memory_space<vmem>>, %arg1: memref<8x128xf32, #tpu.memory_space<vmem>>, %arg2: memref<2x8x128xf32, #tpu.memory_space<vmem>>, %arg3: memref<128x384xf32, #tpu.memory_space<vmem>>, %arg4: memref<128x384xf32, #tpu.memory_space<vmem>>, %arg5: memref<128x384xf32, #tpu.memory_space<vmem>>, %arg6: memref<1x384xf32, #tpu.memory_space<vmem>>, %arg7: memref<1x128xf32, #tpu.memory_space<vmem>>, %arg8: memref<128x384xf32, #tpu.memory_space<vmem>>, %arg9: memref<128x384xf32, #tpu.memory_space<vmem>>, %arg10: memref<1x384xf32, #tpu.memory_space<vmem>>, %arg11: memref<1x128xf32, #tpu.memory_space<vmem>>, %arg12: memref<64x128xf32, #tpu.memory_space<vmem>>, %arg13: memref<2x8x128xf32, #tpu.memory_space<vmem>>, %arg14: memref<64x384xf32, #tpu.memory_space<vmem>>) attributes {dimension_semantics = [], scalar_prefetch = 0 : i64, scratch_operands = 1 : i64, tpu.core_type = #tpu.core_type<tc>} {
    %c0 = arith.constant 0 : index
    %c0_0 = arith.constant 0 : index
    %0 = vector.load %arg0[%c0, %c0_0] : memref<64x128xf32, #tpu.memory_space<vmem>>, vector<64x128xf32>
    %c0_1 = arith.constant 0 : index
    %c0_2 = arith.constant 0 : index
    %1 = vector.load %arg3[%c0_1, %c0_2] : memref<128x384xf32, #tpu.memory_space<vmem>>, vector<128x384xf32>
    %cst = arith.constant dense<0.000000e+00> : vector<64x384xf32>
    %2 = tpu.matmul %0, %1, %cst {dimension_numbers = #tpu.dot_dimension_numbers<[1], [0], [0], [1], [0, 0, 1, 1], [], []>} : vector<64x128xf32>, vector<128x384xf32>, vector<64x384xf32> -> vector<64x384xf32>
    %c0_3 = arith.constant 0 : index
    %c0_4 = arith.constant 0 : index
    %3 = vector.load %arg14[%c0_3, %c0_4] : memref<64x384xf32, #tpu.memory_space<vmem>>, vector<64x384xf32>
    tpu.vector_store %arg14[%c0_3, %c0_4], %2 {strides = array<i32>} : memref<64x384xf32, #tpu.memory_space<vmem>>, vector<64x384xf32>,
    %c0_5 = arith.constant 0 : index
    %c0_6 = arith.constant 0 : index
    %4 = vector.load %arg1[%c0_5, %c0_6] : memref<8x128xf32, #tpu.memory_space<vmem>>, vector<8x128xf32>
    %c0_7 = arith.constant 0 : index
    %c0_8 = arith.constant 0 : index
    %5 = vector.load %arg4[%c0_7, %c0_8] : memref<128x384xf32, #tpu.memory_space<vmem>>, vector<128x384xf32>
    %cst_9 = arith.constant dense<0.000000e+00> : vector<8x384xf32>
    %6 = tpu.matmul %4, %5, %cst_9 {dimension_numbers = #tpu.dot_dimension_numbers<[1], [0], [0], [1], [0, 0, 1, 1], [], []>} : vector<8x128xf32>, vector<128x384xf32>, vector<8x384xf32> -> vector<8x384xf32>
    %c0_10 = arith.constant 0 : index
    %c0_11 = arith.constant 0 : index
    %7 = vector.load %arg6[%c0_10, %c0_11] : memref<1x384xf32, #tpu.memory_space<vmem>>, vector<1x384xf32>
    %8 = vector.broadcast %7 : vector<1x384xf32> to vector<8x384xf32>
    %9 = arith.addf %6, %8 : vector<8x384xf32>
    %c0_12 = arith.constant 0 : index
    %c0_13 = arith.constant 0 : index
    %10 = vector.load %arg10[%c0_12, %c0_13] : memref<1x384xf32, #tpu.memory_space<vmem>>, vector<1x384xf32>
    %11 = vector.shape_cast %10 : vector<1x384xf32> to vector<1x384xf32>
    %12 = vector.broadcast %11 : vector<1x384xf32> to vector<8x384xf32>
    %c0_14 = arith.constant 0 : index
    %c0_15 = arith.constant 0 : index
    %13 = vector.load %arg7[%c0_14, %c0_15] : memref<1x128xf32, #tpu.memory_space<vmem>>, vector<1x128xf32>
    %14 = vector.shape_cast %13 : vector<1x128xf32> to vector<1x128xf32>
    %15 = vector.broadcast %14 : vector<1x128xf32> to vector<8x128xf32>
    %c0_16 = arith.constant 0 : index
    %c0_17 = arith.constant 0 : index
    %16 = vector.load %arg11[%c0_16, %c0_17] : memref<1x128xf32, #tpu.memory_space<vmem>>, vector<1x128xf32>
    %17 = vector.shape_cast %16 : vector<1x128xf32> to vector<1x128xf32>
    %18 = vector.broadcast %17 : vector<1x128xf32> to vector<8x128xf32>
    %c0_18 = arith.constant 0 : index
    %c0_19 = arith.constant 0 : index
    %c0_20 = arith.constant 0 : index
    %19 = vector.load %arg2[%c0_18, %c0_19, %c0_20] : memref<2x8x128xf32, #tpu.memory_space<vmem>>, vector<1x8x128xf32>
    %20 = vector.shape_cast %19 : vector<1x8x128xf32> to vector<8x128xf32>
    %c0_21 = arith.constant 0 : index
    %c0_22 = arith.constant 0 : index
    %21 = vector.load %arg14[%c0_21, %c0_22] : memref<64x384xf32, #tpu.memory_space<vmem>>, vector<8x384xf32>
    %22 = arith.addf %21, %9 : vector<8x384xf32>
    %c0_23 = arith.constant 0 : index
    %c0_24 = arith.constant 0 : index
    %23 = vector.load %arg5[%c0_23, %c0_24] : memref<128x384xf32, #tpu.memory_space<vmem>>, vector<128x384xf32>
    %cst_25 = arith.constant dense<0.000000e+00> : vector<8x384xf32>
    %24 = tpu.matmul %20, %23, %cst_25 {dimension_numbers = #tpu.dot_dimension_numbers<[1], [0], [0], [1], [0, 0, 1, 1], [], []>} : vector<8x128xf32>, vector<128x384xf32>, vector<8x384xf32> -> vector<8x384xf32>
    %25 = vector.extract_strided_slice %22 {offsets = [0, 0], sizes = [8, 128], strides = [1, 1]} : vector<8x384xf32> to vector<8x128xf32>
    %26 = vector.extract_strided_slice %24 {offsets = [0, 0], sizes = [8, 128], strides = [1, 1]} : vector<8x384xf32> to vector<8x128xf32>
    %27 = arith.addf %25, %26 : vector<8x128xf32>
    %28 = arith.negf %27 : vector<8x128xf32>
    %29 = math.exp %28 : vector<8x128xf32>
    %cst_26 = arith.constant 1.000000e+00 : f32
    %30 = vector.broadcast %cst_26 : f32 to vector<8x128xf32>
    %31 = arith.addf %30, %29 : vector<8x128xf32>
    %32 = arith.divf %30, %31 : vector<8x128xf32>
    %33 = vector.extract_strided_slice %22 {offsets = [0, 128], sizes = [8, 128], strides = [1, 1]} : vector<8x384xf32> to vector<8x128xf32>
    %34 = vector.extract_strided_slice %24 {offsets = [0, 128], sizes = [8, 128], strides = [1, 1]} : vector<8x384xf32> to vector<8x128xf32>
    %35 = arith.addf %33, %34 : vector<8x128xf32>
    %36 = arith.negf %35 : vector<8x128xf32>
    %37 = math.exp %36 : vector<8x128xf32>
    %cst_27 = arith.constant 1.000000e+00 : f32
    %38 = vector.broadcast %cst_27 : f32 to vector<8x128xf32>
    %39 = arith.addf %38, %37 : vector<8x128xf32>
    %40 = arith.divf %38, %39 : vector<8x128xf32>
    %41 = vector.extract_strided_slice %22 {offsets = [0, 256], sizes = [8, 128], strides = [1, 1]} : vector<8x384xf32> to vector<8x128xf32>
    %42 = vector.extract_strided_slice %24 {offsets = [0, 256], sizes = [8, 128], strides = [1, 1]} : vector<8x384xf32> to vector<8x128xf32>
    %43 = arith.addf %42, %15 : vector<8x128xf32>
    %44 = arith.mulf %32, %43 : vector<8x128xf32>
    %45 = arith.addf %41, %44 : vector<8x128xf32>
    %46 = math.tanh %45 : vector<8x128xf32>
    %47 = arith.subf %20, %46 : vector<8x128xf32>
    %48 = arith.mulf %40, %47 : vector<8x128xf32>
    %49 = arith.addf %46, %48 : vector<8x128xf32>
    %c1 = arith.constant 1 : index
    %c0_28 = arith.constant 0 : index
    %c0_29 = arith.constant 0 : index
    %50 = vector.load %arg2[%c1, %c0_28, %c0_29] : memref<2x8x128xf32, #tpu.memory_space<vmem>>, vector<1x8x128xf32>
    %51 = vector.shape_cast %50 : vector<1x8x128xf32> to vector<8x128xf32>
    %c0_i32 = arith.constant 0 : i32
    %c0_30 = arith.constant 0 : index
    %c0_31 = arith.constant 0 : index
    %52 = vector.load %arg8[%c0_30, %c0_31] : memref<128x384xf32, #tpu.memory_space<vmem>>, vector<128x384xf32>
    %cst_32 = arith.constant dense<0.000000e+00> : vector<8x384xf32>
    %53 = tpu.matmul %49, %52, %cst_32 {dimension_numbers = #tpu.dot_dimension_numbers<[1], [0], [0], [1], [0, 0, 1, 1], [], []>} : vector<8x128xf32>, vector<128x384xf32>, vector<8x384xf32> -> vector<8x384xf32>
    %54 = arith.addf %53, %12 : vector<8x384xf32>
    %c0_33 = arith.constant 0 : index
    %c0_34 = arith.constant 0 : index
    %55 = vector.load %arg9[%c0_33, %c0_34] : memref<128x384xf32, #tpu.memory_space<vmem>>, vector<128x384xf32>
    %cst_35 = arith.constant dense<0.000000e+00> : vector<8x384xf32>
    %56 = tpu.matmul %51, %55, %cst_35 {dimension_numbers = #tpu.dot_dimension_numbers<[1], [0], [0], [1], [0, 0, 1, 1], [], []>} : vector<8x128xf32>, vector<128x384xf32>, vector<8x384xf32> -> vector<8x384xf32>
    %57 = vector.extract_strided_slice %54 {offsets = [0, 0], sizes = [8, 128], strides = [1, 1]} : vector<8x384xf32> to vector<8x128xf32>
    %58 = vector.extract_strided_slice %56 {offsets = [0, 0], sizes = [8, 128], strides = [1, 1]} : vector<8x384xf32> to vector<8x128xf32>
    %59 = arith.addf %57, %58 : vector<8x128xf32>
    %60 = arith.negf %59 : vector<8x128xf32>
    %61 = math.exp %60 : vector<8x128xf32>
    %cst_36 = arith.constant 1.000000e+00 : f32
    %62 = vector.broadcast %cst_36 : f32 to vector<8x128xf32>
    %63 = arith.addf %62, %61 : vector<8x128xf32>
    %64 = arith.divf %62, %63 : vector<8x128xf32>
    %65 = vector.extract_strided_slice %54 {offsets = [0, 128], sizes = [8, 128], strides = [1, 1]} : vector<8x384xf32> to vector<8x128xf32>
    %66 = vector.extract_strided_slice %56 {offsets = [0, 128], sizes = [8, 128], strides = [1, 1]} : vector<8x384xf32> to vector<8x128xf32>
    %67 = arith.addf %65, %66 : vector<8x128xf32>
    %68 = arith.negf %67 : vector<8x128xf32>
    %69 = math.exp %68 : vector<8x128xf32>
    %cst_37 = arith.constant 1.000000e+00 : f32
    %70 = vector.broadcast %cst_37 : f32 to vector<8x128xf32>
    %71 = arith.addf %70, %69 : vector<8x128xf32>
    %72 = arith.divf %70, %71 : vector<8x128xf32>
    %73 = vector.extract_strided_slice %54 {offsets = [0, 256], sizes = [8, 128], strides = [1, 1]} : vector<8x384xf32> to vector<8x128xf32>
    %74 = vector.extract_strided_slice %56 {offsets = [0, 256], sizes = [8, 128], strides = [1, 1]} : vector<8x384xf32> to vector<8x128xf32>
    %75 = arith.addf %74, %18 : vector<8x128xf32>
    %76 = arith.mulf %64, %75 : vector<8x128xf32>
    %77 = arith.addf %73, %76 : vector<8x128xf32>
    %78 = math.tanh %77 : vector<8x128xf32>
    %79 = arith.subf %51, %78 : vector<8x128xf32>
    %80 = arith.mulf %72, %79 : vector<8x128xf32>
    %81 = arith.addf %78, %80 : vector<8x128xf32>
    %c8_i32 = arith.constant 8 : i32
    %82 = arith.muli %c0_i32, %c8_i32 : i32
    %83 = tpu.assume_multiple %82, 8 : i32
    %84 = arith.index_cast %83 : i32 to index
    %c0_38 = arith.constant 0 : index
    %85 = vector.load %arg12[%84, %c0_38] : memref<64x128xf32, #tpu.memory_space<vmem>>, vector<8x128xf32>
    tpu.vector_store %arg12[%84, %c0_38], %81 {strides = array<i32>} : memref<64x128xf32, #tpu.memory_space<vmem>>, vector<8x128xf32>,
    %c1_i32 = arith.constant 1 : i32
    %86 = arith.addi %c0_i32, %c1_i32 : i32
    %c8_i32_39 = arith.constant 8 : i32
    %87 = arith.muli %86, %c8_i32_39 : i32
    %88 = tpu.assume_multiple %87, 8 : i32
    %89 = arith.index_cast %88 : i32 to index
    %c0_40 = arith.constant 0 : index
    %90 = vector.load %arg14[%89, %c0_40] : memref<64x384xf32, #tpu.memory_space<vmem>>, vector<8x384xf32>
    %91 = arith.addf %90, %9 : vector<8x384xf32>
    %c0_41 = arith.constant 0 : index
    %c0_42 = arith.constant 0 : index
    %92 = vector.load %arg5[%c0_41, %c0_42] : memref<128x384xf32, #tpu.memory_space<vmem>>, vector<128x384xf32>
    %cst_43 = arith.constant dense<0.000000e+00> : vector<8x384xf32>
    %93 = tpu.matmul %49, %92, %cst_43 {dimension_numbers = #tpu.dot_dimension_numbers<[1], [0], [0], [1], [0, 0, 1, 1], [], []>} : vector<8x128xf32>, vector<128x384xf32>, vector<8x384xf32> -> vector<8x384xf32>
    %94 = vector.extract_strided_slice %91 {offsets = [0, 0], sizes = [8, 128], strides = [1, 1]} : vector<8x384xf32> to vector<8x128xf32>
    %95 = vector.extract_strided_slice %93 {offsets = [0, 0], sizes = [8, 128], strides = [1, 1]} : vector<8x384xf32> to vector<8x128xf32>
    %96 = arith.addf %94, %95 : vector<8x128xf32>
    %97 = arith.negf %96 : vector<8x128xf32>
    %98 = math.exp %97 : vector<8x128xf32>
    %cst_44 = arith.constant 1.000000e+00 : f32
    %99 = vector.broadcast %cst_44 : f32 to vector<8x128xf32>
    %100 = arith.addf %99, %98 : vector<8x128xf32>
    %101 = arith.divf %99, %100 : vector<8x128xf32>
    %102 = vector.extract_strided_slice %91 {offsets = [0, 128], sizes = [8, 128], strides = [1, 1]} : vector<8x384xf32> to vector<8x128xf32>
    %103 = vector.extract_strided_slice %93 {offsets = [0, 128], sizes = [8, 128], strides = [1, 1]} : vector<8x384xf32> to vector<8x128xf32>
    %104 = arith.addf %102, %103 : vector<8x128xf32>
    %105 = arith.negf %104 : vector<8x128xf32>
    %106 = math.exp %105 : vector<8x128xf32>
    %cst_45 = arith.constant 1.000000e+00 : f32
    %107 = vector.broadcast %cst_45 : f32 to vector<8x128xf32>
    %108 = arith.addf %107, %106 : vector<8x128xf32>
    %109 = arith.divf %107, %108 : vector<8x128xf32>
    %110 = vector.extract_strided_slice %91 {offsets = [0, 256], sizes = [8, 128], strides = [1, 1]} : vector<8x384xf32> to vector<8x128xf32>
    %111 = vector.extract_strided_slice %93 {offsets = [0, 256], sizes = [8, 128], strides = [1, 1]} : vector<8x384xf32> to vector<8x128xf32>
    %112 = arith.addf %111, %15 : vector<8x128xf32>
    %113 = arith.mulf %101, %112 : vector<8x128xf32>
    %114 = arith.addf %110, %113 : vector<8x128xf32>
    %115 = math.tanh %114 : vector<8x128xf32>
    %116 = arith.subf %49, %115 : vector<8x128xf32>
    %117 = arith.mulf %109, %116 : vector<8x128xf32>
    %118 = arith.addf %115, %117 : vector<8x128xf32>
    %c1_i32_46 = arith.constant 1 : i32
    %c0_47 = arith.constant 0 : index
    %c0_48 = arith.constant 0 : index
    %119 = vector.load %arg8[%c0_47, %c0_48] : memref<128x384xf32, #tpu.memory_space<vmem>>, vector<128x384xf32>
    %cst_49 = arith.constant dense<0.000000e+00> : vector<8x384xf32>
    %120 = tpu.matmul %118, %119, %cst_49 {dimension_numbers = #tpu.dot_dimension_numbers<[1], [0], [0], [1], [0, 0, 1, 1], [], []>} : vector<8x128xf32>, vector<128x384xf32>, vector<8x384xf32> -> vector<8x384xf32>
    %121 = arith.addf %120, %12 : vector<8x384xf32>
    %c0_50 = arith.constant 0 : index
    %c0_51 = arith.constant 0 : index
    %122 = vector.load %arg9[%c0_50, %c0_51] : memref<128x384xf32, #tpu.memory_space<vmem>>, vector<128x384xf32>
    %cst_52 = arith.constant dense<0.000000e+00> : vector<8x384xf32>
    %123 = tpu.matmul %81, %122, %cst_52 {dimension_numbers = #tpu.dot_dimension_numbers<[1], [0], [0], [1], [0, 0, 1, 1], [], []>} : vector<8x128xf32>, vector<128x384xf32>, vector<8x384xf32> -> vector<8x384xf32>
    %124 = vector.extract_strided_slice %121 {offsets = [0, 0], sizes = [8, 128], strides = [1, 1]} : vector<8x384xf32> to vector<8x128xf32>
    %125 = vector.extract_strided_slice %123 {offsets = [0, 0], sizes = [8, 128], strides = [1, 1]} : vector<8x384xf32> to vector<8x128xf32>
    %126 = arith.addf %124, %125 : vector<8x128xf32>
    %127 = arith.negf %126 : vector<8x128xf32>
    %128 = math.exp %127 : vector<8x128xf32>
    %cst_53 = arith.constant 1.000000e+00 : f32
    %129 = vector.broadcast %cst_53 : f32 to vector<8x128xf32>
    %130 = arith.addf %129, %128 : vector<8x128xf32>
    %131 = arith.divf %129, %130 : vector<8x128xf32>
    %132 = vector.extract_strided_slice %121 {offsets = [0, 128], sizes = [8, 128], strides = [1, 1]} : vector<8x384xf32> to vector<8x128xf32>
    %133 = vector.extract_strided_slice %123 {offsets = [0, 128], sizes = [8, 128], strides = [1, 1]} : vector<8x384xf32> to vector<8x128xf32>
    %134 = arith.addf %132, %133 : vector<8x128xf32>
    %135 = arith.negf %134 : vector<8x128xf32>
    %136 = math.exp %135 : vector<8x128xf32>
    %cst_54 = arith.constant 1.000000e+00 : f32
    %137 = vector.broadcast %cst_54 : f32 to vector<8x128xf32>
    %138 = arith.addf %137, %136 : vector<8x128xf32>
    %139 = arith.divf %137, %138 : vector<8x128xf32>
    %140 = vector.extract_strided_slice %121 {offsets = [0, 256], sizes = [8, 128], strides = [1, 1]} : vector<8x384xf32> to vector<8x128xf32>
    %141 = vector.extract_strided_slice %123 {offsets = [0, 256], sizes = [8, 128], strides = [1, 1]} : vector<8x384xf32> to vector<8x128xf32>
    %142 = arith.addf %141, %18 : vector<8x128xf32>
    %143 = arith.mulf %131, %142 : vector<8x128xf32>
    %144 = arith.addf %140, %143 : vector<8x128xf32>
    %145 = math.tanh %144 : vector<8x128xf32>
    %146 = arith.subf %81, %145 : vector<8x128xf32>
    %147 = arith.mulf %139, %146 : vector<8x128xf32>
    %148 = arith.addf %145, %147 : vector<8x128xf32>
    %c8_i32_55 = arith.constant 8 : i32
    %149 = arith.muli %c1_i32_46, %c8_i32_55 : i32
    %150 = tpu.assume_multiple %149, 8 : i32
    %151 = arith.index_cast %150 : i32 to index
    %c0_56 = arith.constant 0 : index
    %152 = vector.load %arg12[%151, %c0_56] : memref<64x128xf32, #tpu.memory_space<vmem>>, vector<8x128xf32>
    tpu.vector_store %arg12[%151, %c0_56], %148 {strides = array<i32>} : memref<64x128xf32, #tpu.memory_space<vmem>>, vector<8x128xf32>,
    %c1_i32_57 = arith.constant 1 : i32
    %153 = arith.addi %c1_i32_46, %c1_i32_57 : i32
    %c8_i32_58 = arith.constant 8 : i32
    %154 = arith.muli %153, %c8_i32_58 : i32
    %155 = tpu.assume_multiple %154, 8 : i32
    %156 = arith.index_cast %155 : i32 to index
    %c0_59 = arith.constant 0 : index
    %157 = vector.load %arg14[%156, %c0_59] : memref<64x384xf32, #tpu.memory_space<vmem>>, vector<8x384xf32>
    %158 = arith.addf %157, %9 : vector<8x384xf32>
    %c0_60 = arith.constant 0 : index
    %c0_61 = arith.constant 0 : index
    %159 = vector.load %arg5[%c0_60, %c0_61] : memref<128x384xf32, #tpu.memory_space<vmem>>, vector<128x384xf32>
    %cst_62 = arith.constant dense<0.000000e+00> : vector<8x384xf32>
    %160 = tpu.matmul %118, %159, %cst_62 {dimension_numbers = #tpu.dot_dimension_numbers<[1], [0], [0], [1], [0, 0, 1, 1], [], []>} : vector<8x128xf32>, vector<128x384xf32>, vector<8x384xf32> -> vector<8x384xf32>
    %161 = vector.extract_strided_slice %158 {offsets = [0, 0], sizes = [8, 128], strides = [1, 1]} : vector<8x384xf32> to vector<8x128xf32>
    %162 = vector.extract_strided_slice %160 {offsets = [0, 0], sizes = [8, 128], strides = [1, 1]} : vector<8x384xf32> to vector<8x128xf32>
    %163 = arith.addf %161, %162 : vector<8x128xf32>
    %164 = arith.negf %163 : vector<8x128xf32>
    %165 = math.exp %164 : vector<8x128xf32>
    %cst_63 = arith.constant 1.000000e+00 : f32
    %166 = vector.broadcast %cst_63 : f32 to vector<8x128xf32>
    %167 = arith.addf %166, %165 : vector<8x128xf32>
    %168 = arith.divf %166, %167 : vector<8x128xf32>
    %169 = vector.extract_strided_slice %158 {offsets = [0, 128], sizes = [8, 128], strides = [1, 1]} : vector<8x384xf32> to vector<8x128xf32>
    %170 = vector.extract_strided_slice %160 {offsets = [0, 128], sizes = [8, 128], strides = [1, 1]} : vector<8x384xf32> to vector<8x128xf32>
    %171 = arith.addf %169, %170 : vector<8x128xf32>
    %172 = arith.negf %171 : vector<8x128xf32>
    %173 = math.exp %172 : vector<8x128xf32>
    %cst_64 = arith.constant 1.000000e+00 : f32
    %174 = vector.broadcast %cst_64 : f32 to vector<8x128xf32>
    %175 = arith.addf %174, %173 : vector<8x128xf32>
    %176 = arith.divf %174, %175 : vector<8x128xf32>
    %177 = vector.extract_strided_slice %158 {offsets = [0, 256], sizes = [8, 128], strides = [1, 1]} : vector<8x384xf32> to vector<8x128xf32>
    %178 = vector.extract_strided_slice %160 {offsets = [0, 256], sizes = [8, 128], strides = [1, 1]} : vector<8x384xf32> to vector<8x128xf32>
    %179 = arith.addf %178, %15 : vector<8x128xf32>
    %180 = arith.mulf %168, %179 : vector<8x128xf32>
    %181 = arith.addf %177, %180 : vector<8x128xf32>
    %182 = math.tanh %181 : vector<8x128xf32>
    %183 = arith.subf %118, %182 : vector<8x128xf32>
    %184 = arith.mulf %176, %183 : vector<8x128xf32>
    %185 = arith.addf %182, %184 : vector<8x128xf32>
    %c2_i32 = arith.constant 2 : i32
    %c0_65 = arith.constant 0 : index
    %c0_66 = arith.constant 0 : index
    %186 = vector.load %arg8[%c0_65, %c0_66] : memref<128x384xf32, #tpu.memory_space<vmem>>, vector<128x384xf32>
    %cst_67 = arith.constant dense<0.000000e+00> : vector<8x384xf32>
    %187 = tpu.matmul %185, %186, %cst_67 {dimension_numbers = #tpu.dot_dimension_numbers<[1], [0], [0], [1], [0, 0, 1, 1], [], []>} : vector<8x128xf32>, vector<128x384xf32>, vector<8x384xf32> -> vector<8x384xf32>
    %188 = arith.addf %187, %12 : vector<8x384xf32>
    %c0_68 = arith.constant 0 : index
    %c0_69 = arith.constant 0 : index
    %189 = vector.load %arg9[%c0_68, %c0_69] : memref<128x384xf32, #tpu.memory_space<vmem>>, vector<128x384xf32>
    %cst_70 = arith.constant dense<0.000000e+00> : vector<8x384xf32>
    %190 = tpu.matmul %148, %189, %cst_70 {dimension_numbers = #tpu.dot_dimension_numbers<[1], [0], [0], [1], [0, 0, 1, 1], [], []>} : vector<8x128xf32>, vector<128x384xf32>, vector<8x384xf32> -> vector<8x384xf32>
    %191 = vector.extract_strided_slice %188 {offsets = [0, 0], sizes = [8, 128], strides = [1, 1]} : vector<8x384xf32> to vector<8x128xf32>
    %192 = vector.extract_strided_slice %190 {offsets = [0, 0], sizes = [8, 128], strides = [1, 1]} : vector<8x384xf32> to vector<8x128xf32>
    %193 = arith.addf %191, %192 : vector<8x128xf32>
    %194 = arith.negf %193 : vector<8x128xf32>
    %195 = math.exp %194 : vector<8x128xf32>
    %cst_71 = arith.constant 1.000000e+00 : f32
    %196 = vector.broadcast %cst_71 : f32 to vector<8x128xf32>
    %197 = arith.addf %196, %195 : vector<8x128xf32>
    %198 = arith.divf %196, %197 : vector<8x128xf32>
    %199 = vector.extract_strided_slice %188 {offsets = [0, 128], sizes = [8, 128], strides = [1, 1]} : vector<8x384xf32> to vector<8x128xf32>
    %200 = vector.extract_strided_slice %190 {offsets = [0, 128], sizes = [8, 128], strides = [1, 1]} : vector<8x384xf32> to vector<8x128xf32>
    %201 = arith.addf %199, %200 : vector<8x128xf32>
    %202 = arith.negf %201 : vector<8x128xf32>
    %203 = math.exp %202 : vector<8x128xf32>
    %cst_72 = arith.constant 1.000000e+00 : f32
    %204 = vector.broadcast %cst_72 : f32 to vector<8x128xf32>
    %205 = arith.addf %204, %203 : vector<8x128xf32>
    %206 = arith.divf %204, %205 : vector<8x128xf32>
    %207 = vector.extract_strided_slice %188 {offsets = [0, 256], sizes = [8, 128], strides = [1, 1]} : vector<8x384xf32> to vector<8x128xf32>
    %208 = vector.extract_strided_slice %190 {offsets = [0, 256], sizes = [8, 128], strides = [1, 1]} : vector<8x384xf32> to vector<8x128xf32>
    %209 = arith.addf %208, %18 : vector<8x128xf32>
    %210 = arith.mulf %198, %209 : vector<8x128xf32>
    %211 = arith.addf %207, %210 : vector<8x128xf32>
    %212 = math.tanh %211 : vector<8x128xf32>
    %213 = arith.subf %148, %212 : vector<8x128xf32>
    %214 = arith.mulf %206, %213 : vector<8x128xf32>
    %215 = arith.addf %212, %214 : vector<8x128xf32>
    %c8_i32_73 = arith.constant 8 : i32
    %216 = arith.muli %c2_i32, %c8_i32_73 : i32
    %217 = tpu.assume_multiple %216, 8 : i32
    %218 = arith.index_cast %217 : i32 to index
    %c0_74 = arith.constant 0 : index
    %219 = vector.load %arg12[%218, %c0_74] : memref<64x128xf32, #tpu.memory_space<vmem>>, vector<8x128xf32>
    tpu.vector_store %arg12[%218, %c0_74], %215 {strides = array<i32>} : memref<64x128xf32, #tpu.memory_space<vmem>>, vector<8x128xf32>,
    %c1_i32_75 = arith.constant 1 : i32
    %220 = arith.addi %c2_i32, %c1_i32_75 : i32
    %c8_i32_76 = arith.constant 8 : i32
    %221 = arith.muli %220, %c8_i32_76 : i32
    %222 = tpu.assume_multiple %221, 8 : i32
    %223 = arith.index_cast %222 : i32 to index
    %c0_77 = arith.constant 0 : index
    %224 = vector.load %arg14[%223, %c0_77] : memref<64x384xf32, #tpu.memory_space<vmem>>, vector<8x384xf32>
    %225 = arith.addf %224, %9 : vector<8x384xf32>
    %c0_78 = arith.constant 0 : index
    %c0_79 = arith.constant 0 : index
    %226 = vector.load %arg5[%c0_78, %c0_79] : memref<128x384xf32, #tpu.memory_space<vmem>>, vector<128x384xf32>
    %cst_80 = arith.constant dense<0.000000e+00> : vector<8x384xf32>
    %227 = tpu.matmul %185, %226, %cst_80 {dimension_numbers = #tpu.dot_dimension_numbers<[1], [0], [0], [1], [0, 0, 1, 1], [], []>} : vector<8x128xf32>, vector<128x384xf32>, vector<8x384xf32> -> vector<8x384xf32>
    %228 = vector.extract_strided_slice %225 {offsets = [0, 0], sizes = [8, 128], strides = [1, 1]} : vector<8x384xf32> to vector<8x128xf32>
    %229 = vector.extract_strided_slice %227 {offsets = [0, 0], sizes = [8, 128], strides = [1, 1]} : vector<8x384xf32> to vector<8x128xf32>
    %230 = arith.addf %228, %229 : vector<8x128xf32>
    %231 = arith.negf %230 : vector<8x128xf32>
    %232 = math.exp %231 : vector<8x128xf32>
    %cst_81 = arith.constant 1.000000e+00 : f32
    %233 = vector.broadcast %cst_81 : f32 to vector<8x128xf32>
    %234 = arith.addf %233, %232 : vector<8x128xf32>
    %235 = arith.divf %233, %234 : vector<8x128xf32>
    %236 = vector.extract_strided_slice %225 {offsets = [0, 128], sizes = [8, 128], strides = [1, 1]} : vector<8x384xf32> to vector<8x128xf32>
    %237 = vector.extract_strided_slice %227 {offsets = [0, 128], sizes = [8, 128], strides = [1, 1]} : vector<8x384xf32> to vector<8x128xf32>
    %238 = arith.addf %236, %237 : vector<8x128xf32>
    %239 = arith.negf %238 : vector<8x128xf32>
    %240 = math.exp %239 : vector<8x128xf32>
    %cst_82 = arith.constant 1.000000e+00 : f32
    %241 = vector.broadcast %cst_82 : f32 to vector<8x128xf32>
    %242 = arith.addf %241, %240 : vector<8x128xf32>
    %243 = arith.divf %241, %242 : vector<8x128xf32>
    %244 = vector.extract_strided_slice %225 {offsets = [0, 256], sizes = [8, 128], strides = [1, 1]} : vector<8x384xf32> to vector<8x128xf32>
    %245 = vector.extract_strided_slice %227 {offsets = [0, 256], sizes = [8, 128], strides = [1, 1]} : vector<8x384xf32> to vector<8x128xf32>
    %246 = arith.addf %245, %15 : vector<8x128xf32>
    %247 = arith.mulf %235, %246 : vector<8x128xf32>
    %248 = arith.addf %244, %247 : vector<8x128xf32>
    %249 = math.tanh %248 : vector<8x128xf32>
    %250 = arith.subf %185, %249 : vector<8x128xf32>
    %251 = arith.mulf %243, %250 : vector<8x128xf32>
    %252 = arith.addf %249, %251 : vector<8x128xf32>
    %c3_i32 = arith.constant 3 : i32
    %c0_83 = arith.constant 0 : index
    %c0_84 = arith.constant 0 : index
    %253 = vector.load %arg8[%c0_83, %c0_84] : memref<128x384xf32, #tpu.memory_space<vmem>>, vector<128x384xf32>
    %cst_85 = arith.constant dense<0.000000e+00> : vector<8x384xf32>
    %254 = tpu.matmul %252, %253, %cst_85 {dimension_numbers = #tpu.dot_dimension_numbers<[1], [0], [0], [1], [0, 0, 1, 1], [], []>} : vector<8x128xf32>, vector<128x384xf32>, vector<8x384xf32> -> vector<8x384xf32>
    %255 = arith.addf %254, %12 : vector<8x384xf32>
    %c0_86 = arith.constant 0 : index
    %c0_87 = arith.constant 0 : index
    %256 = vector.load %arg9[%c0_86, %c0_87] : memref<128x384xf32, #tpu.memory_space<vmem>>, vector<128x384xf32>
    %cst_88 = arith.constant dense<0.000000e+00> : vector<8x384xf32>
    %257 = tpu.matmul %215, %256, %cst_88 {dimension_numbers = #tpu.dot_dimension_numbers<[1], [0], [0], [1], [0, 0, 1, 1], [], []>} : vector<8x128xf32>, vector<128x384xf32>, vector<8x384xf32> -> vector<8x384xf32>
    %258 = vector.extract_strided_slice %255 {offsets = [0, 0], sizes = [8, 128], strides = [1, 1]} : vector<8x384xf32> to vector<8x128xf32>
    %259 = vector.extract_strided_slice %257 {offsets = [0, 0], sizes = [8, 128], strides = [1, 1]} : vector<8x384xf32> to vector<8x128xf32>
    %260 = arith.addf %258, %259 : vector<8x128xf32>
    %261 = arith.negf %260 : vector<8x128xf32>
    %262 = math.exp %261 : vector<8x128xf32>
    %cst_89 = arith.constant 1.000000e+00 : f32
    %263 = vector.broadcast %cst_89 : f32 to vector<8x128xf32>
    %264 = arith.addf %263, %262 : vector<8x128xf32>
    %265 = arith.divf %263, %264 : vector<8x128xf32>
    %266 = vector.extract_strided_slice %255 {offsets = [0, 128], sizes = [8, 128], strides = [1, 1]} : vector<8x384xf32> to vector<8x128xf32>
    %267 = vector.extract_strided_slice %257 {offsets = [0, 128], sizes = [8, 128], strides = [1, 1]} : vector<8x384xf32> to vector<8x128xf32>
    %268 = arith.addf %266, %267 : vector<8x128xf32>
    %269 = arith.negf %268 : vector<8x128xf32>
    %270 = math.exp %269 : vector<8x128xf32>
    %cst_90 = arith.constant 1.000000e+00 : f32
    %271 = vector.broadcast %cst_90 : f32 to vector<8x128xf32>
    %272 = arith.addf %271, %270 : vector<8x128xf32>
    %273 = arith.divf %271, %272 : vector<8x128xf32>
    %274 = vector.extract_strided_slice %255 {offsets = [0, 256], sizes = [8, 128], strides = [1, 1]} : vector<8x384xf32> to vector<8x128xf32>
    %275 = vector.extract_strided_slice %257 {offsets = [0, 256], sizes = [8, 128], strides = [1, 1]} : vector<8x384xf32> to vector<8x128xf32>
    %276 = arith.addf %275, %18 : vector<8x128xf32>
    %277 = arith.mulf %265, %276 : vector<8x128xf32>
    %278 = arith.addf %274, %277 : vector<8x128xf32>
    %279 = math.tanh %278 : vector<8x128xf32>
    %280 = arith.subf %215, %279 : vector<8x128xf32>
    %281 = arith.mulf %273, %280 : vector<8x128xf32>
    %282 = arith.addf %279, %281 : vector<8x128xf32>
    %c8_i32_91 = arith.constant 8 : i32
    %283 = arith.muli %c3_i32, %c8_i32_91 : i32
    %284 = tpu.assume_multiple %283, 8 : i32
    %285 = arith.index_cast %284 : i32 to index
    %c0_92 = arith.constant 0 : index
    %286 = vector.load %arg12[%285, %c0_92] : memref<64x128xf32, #tpu.memory_space<vmem>>, vector<8x128xf32>
    tpu.vector_store %arg12[%285, %c0_92], %282 {strides = array<i32>} : memref<64x128xf32, #tpu.memory_space<vmem>>, vector<8x128xf32>,
    %c1_i32_93 = arith.constant 1 : i32
    %287 = arith.addi %c3_i32, %c1_i32_93 : i32
    %c8_i32_94 = arith.constant 8 : i32
    %288 = arith.muli %287, %c8_i32_94 : i32
    %289 = tpu.assume_multiple %288, 8 : i32
    %290 = arith.index_cast %289 : i32 to index
    %c0_95 = arith.constant 0 : index
    %291 = vector.load %arg14[%290, %c0_95] : memref<64x384xf32, #tpu.memory_space<vmem>>, vector<8x384xf32>
    %292 = arith.addf %291, %9 : vector<8x384xf32>
    %c0_96 = arith.constant 0 : index
    %c0_97 = arith.constant 0 : index
    %293 = vector.load %arg5[%c0_96, %c0_97] : memref<128x384xf32, #tpu.memory_space<vmem>>, vector<128x384xf32>
    %cst_98 = arith.constant dense<0.000000e+00> : vector<8x384xf32>
    %294 = tpu.matmul %252, %293, %cst_98 {dimension_numbers = #tpu.dot_dimension_numbers<[1], [0], [0], [1], [0, 0, 1, 1], [], []>} : vector<8x128xf32>, vector<128x384xf32>, vector<8x384xf32> -> vector<8x384xf32>
    %295 = vector.extract_strided_slice %292 {offsets = [0, 0], sizes = [8, 128], strides = [1, 1]} : vector<8x384xf32> to vector<8x128xf32>
    %296 = vector.extract_strided_slice %294 {offsets = [0, 0], sizes = [8, 128], strides = [1, 1]} : vector<8x384xf32> to vector<8x128xf32>
    %297 = arith.addf %295, %296 : vector<8x128xf32>
    %298 = arith.negf %297 : vector<8x128xf32>
    %299 = math.exp %298 : vector<8x128xf32>
    %cst_99 = arith.constant 1.000000e+00 : f32
    %300 = vector.broadcast %cst_99 : f32 to vector<8x128xf32>
    %301 = arith.addf %300, %299 : vector<8x128xf32>
    %302 = arith.divf %300, %301 : vector<8x128xf32>
    %303 = vector.extract_strided_slice %292 {offsets = [0, 128], sizes = [8, 128], strides = [1, 1]} : vector<8x384xf32> to vector<8x128xf32>
    %304 = vector.extract_strided_slice %294 {offsets = [0, 128], sizes = [8, 128], strides = [1, 1]} : vector<8x384xf32> to vector<8x128xf32>
    %305 = arith.addf %303, %304 : vector<8x128xf32>
    %306 = arith.negf %305 : vector<8x128xf32>
    %307 = math.exp %306 : vector<8x128xf32>
    %cst_100 = arith.constant 1.000000e+00 : f32
    %308 = vector.broadcast %cst_100 : f32 to vector<8x128xf32>
    %309 = arith.addf %308, %307 : vector<8x128xf32>
    %310 = arith.divf %308, %309 : vector<8x128xf32>
    %311 = vector.extract_strided_slice %292 {offsets = [0, 256], sizes = [8, 128], strides = [1, 1]} : vector<8x384xf32> to vector<8x128xf32>
    %312 = vector.extract_strided_slice %294 {offsets = [0, 256], sizes = [8, 128], strides = [1, 1]} : vector<8x384xf32> to vector<8x128xf32>
    %313 = arith.addf %312, %15 : vector<8x128xf32>
    %314 = arith.mulf %302, %313 : vector<8x128xf32>
    %315 = arith.addf %311, %314 : vector<8x128xf32>
    %316 = math.tanh %315 : vector<8x128xf32>
    %317 = arith.subf %252, %316 : vector<8x128xf32>
    %318 = arith.mulf %310, %317 : vector<8x128xf32>
    %319 = arith.addf %316, %318 : vector<8x128xf32>
    %c4_i32 = arith.constant 4 : i32
    %c0_101 = arith.constant 0 : index
    %c0_102 = arith.constant 0 : index
    %320 = vector.load %arg8[%c0_101, %c0_102] : memref<128x384xf32, #tpu.memory_space<vmem>>, vector<128x384xf32>
    %cst_103 = arith.constant dense<0.000000e+00> : vector<8x384xf32>
    %321 = tpu.matmul %319, %320, %cst_103 {dimension_numbers = #tpu.dot_dimension_numbers<[1], [0], [0], [1], [0, 0, 1, 1], [], []>} : vector<8x128xf32>, vector<128x384xf32>, vector<8x384xf32> -> vector<8x384xf32>
    %322 = arith.addf %321, %12 : vector<8x384xf32>
    %c0_104 = arith.constant 0 : index
    %c0_105 = arith.constant 0 : index
    %323 = vector.load %arg9[%c0_104, %c0_105] : memref<128x384xf32, #tpu.memory_space<vmem>>, vector<128x384xf32>
    %cst_106 = arith.constant dense<0.000000e+00> : vector<8x384xf32>
    %324 = tpu.matmul %282, %323, %cst_106 {dimension_numbers = #tpu.dot_dimension_numbers<[1], [0], [0], [1], [0, 0, 1, 1], [], []>} : vector<8x128xf32>, vector<128x384xf32>, vector<8x384xf32> -> vector<8x384xf32>
    %325 = vector.extract_strided_slice %322 {offsets = [0, 0], sizes = [8, 128], strides = [1, 1]} : vector<8x384xf32> to vector<8x128xf32>
    %326 = vector.extract_strided_slice %324 {offsets = [0, 0], sizes = [8, 128], strides = [1, 1]} : vector<8x384xf32> to vector<8x128xf32>
    %327 = arith.addf %325, %326 : vector<8x128xf32>
    %328 = arith.negf %327 : vector<8x128xf32>
    %329 = math.exp %328 : vector<8x128xf32>
    %cst_107 = arith.constant 1.000000e+00 : f32
    %330 = vector.broadcast %cst_107 : f32 to vector<8x128xf32>
    %331 = arith.addf %330, %329 : vector<8x128xf32>
    %332 = arith.divf %330, %331 : vector<8x128xf32>
    %333 = vector.extract_strided_slice %322 {offsets = [0, 128], sizes = [8, 128], strides = [1, 1]} : vector<8x384xf32> to vector<8x128xf32>
    %334 = vector.extract_strided_slice %324 {offsets = [0, 128], sizes = [8, 128], strides = [1, 1]} : vector<8x384xf32> to vector<8x128xf32>
    %335 = arith.addf %333, %334 : vector<8x128xf32>
    %336 = arith.negf %335 : vector<8x128xf32>
    %337 = math.exp %336 : vector<8x128xf32>
    %cst_108 = arith.constant 1.000000e+00 : f32
    %338 = vector.broadcast %cst_108 : f32 to vector<8x128xf32>
    %339 = arith.addf %338, %337 : vector<8x128xf32>
    %340 = arith.divf %338, %339 : vector<8x128xf32>
    %341 = vector.extract_strided_slice %322 {offsets = [0, 256], sizes = [8, 128], strides = [1, 1]} : vector<8x384xf32> to vector<8x128xf32>
    %342 = vector.extract_strided_slice %324 {offsets = [0, 256], sizes = [8, 128], strides = [1, 1]} : vector<8x384xf32> to vector<8x128xf32>
    %343 = arith.addf %342, %18 : vector<8x128xf32>
    %344 = arith.mulf %332, %343 : vector<8x128xf32>
    %345 = arith.addf %341, %344 : vector<8x128xf32>
    %346 = math.tanh %345 : vector<8x128xf32>
    %347 = arith.subf %282, %346 : vector<8x128xf32>
    %348 = arith.mulf %340, %347 : vector<8x128xf32>
    %349 = arith.addf %346, %348 : vector<8x128xf32>
    %c8_i32_109 = arith.constant 8 : i32
    %350 = arith.muli %c4_i32, %c8_i32_109 : i32
    %351 = tpu.assume_multiple %350, 8 : i32
    %352 = arith.index_cast %351 : i32 to index
    %c0_110 = arith.constant 0 : index
    %353 = vector.load %arg12[%352, %c0_110] : memref<64x128xf32, #tpu.memory_space<vmem>>, vector<8x128xf32>
    tpu.vector_store %arg12[%352, %c0_110], %349 {strides = array<i32>} : memref<64x128xf32, #tpu.memory_space<vmem>>, vector<8x128xf32>,
    %c1_i32_111 = arith.constant 1 : i32
    %354 = arith.addi %c4_i32, %c1_i32_111 : i32
    %c8_i32_112 = arith.constant 8 : i32
    %355 = arith.muli %354, %c8_i32_112 : i32
    %356 = tpu.assume_multiple %355, 8 : i32
    %357 = arith.index_cast %356 : i32 to index
    %c0_113 = arith.constant 0 : index
    %358 = vector.load %arg14[%357, %c0_113] : memref<64x384xf32, #tpu.memory_space<vmem>>, vector<8x384xf32>
    %359 = arith.addf %358, %9 : vector<8x384xf32>
    %c0_114 = arith.constant 0 : index
    %c0_115 = arith.constant 0 : index
    %360 = vector.load %arg5[%c0_114, %c0_115] : memref<128x384xf32, #tpu.memory_space<vmem>>, vector<128x384xf32>
    %cst_116 = arith.constant dense<0.000000e+00> : vector<8x384xf32>
    %361 = tpu.matmul %319, %360, %cst_116 {dimension_numbers = #tpu.dot_dimension_numbers<[1], [0], [0], [1], [0, 0, 1, 1], [], []>} : vector<8x128xf32>, vector<128x384xf32>, vector<8x384xf32> -> vector<8x384xf32>
    %362 = vector.extract_strided_slice %359 {offsets = [0, 0], sizes = [8, 128], strides = [1, 1]} : vector<8x384xf32> to vector<8x128xf32>
    %363 = vector.extract_strided_slice %361 {offsets = [0, 0], sizes = [8, 128], strides = [1, 1]} : vector<8x384xf32> to vector<8x128xf32>
    %364 = arith.addf %362, %363 : vector<8x128xf32>
    %365 = arith.negf %364 : vector<8x128xf32>
    %366 = math.exp %365 : vector<8x128xf32>
    %cst_117 = arith.constant 1.000000e+00 : f32
    %367 = vector.broadcast %cst_117 : f32 to vector<8x128xf32>
    %368 = arith.addf %367, %366 : vector<8x128xf32>
    %369 = arith.divf %367, %368 : vector<8x128xf32>
    %370 = vector.extract_strided_slice %359 {offsets = [0, 128], sizes = [8, 128], strides = [1, 1]} : vector<8x384xf32> to vector<8x128xf32>
    %371 = vector.extract_strided_slice %361 {offsets = [0, 128], sizes = [8, 128], strides = [1, 1]} : vector<8x384xf32> to vector<8x128xf32>
    %372 = arith.addf %370, %371 : vector<8x128xf32>
    %373 = arith.negf %372 : vector<8x128xf32>
    %374 = math.exp %373 : vector<8x128xf32>
    %cst_118 = arith.constant 1.000000e+00 : f32
    %375 = vector.broadcast %cst_118 : f32 to vector<8x128xf32>
    %376 = arith.addf %375, %374 : vector<8x128xf32>
    %377 = arith.divf %375, %376 : vector<8x128xf32>
    %378 = vector.extract_strided_slice %359 {offsets = [0, 256], sizes = [8, 128], strides = [1, 1]} : vector<8x384xf32> to vector<8x128xf32>
    %379 = vector.extract_strided_slice %361 {offsets = [0, 256], sizes = [8, 128], strides = [1, 1]} : vector<8x384xf32> to vector<8x128xf32>
    %380 = arith.addf %379, %15 : vector<8x128xf32>
    %381 = arith.mulf %369, %380 : vector<8x128xf32>
    %382 = arith.addf %378, %381 : vector<8x128xf32>
    %383 = math.tanh %382 : vector<8x128xf32>
    %384 = arith.subf %319, %383 : vector<8x128xf32>
    %385 = arith.mulf %377, %384 : vector<8x128xf32>
    %386 = arith.addf %383, %385 : vector<8x128xf32>
    %c5_i32 = arith.constant 5 : i32
    %c0_119 = arith.constant 0 : index
    %c0_120 = arith.constant 0 : index
    %387 = vector.load %arg8[%c0_119, %c0_120] : memref<128x384xf32, #tpu.memory_space<vmem>>, vector<128x384xf32>
    %cst_121 = arith.constant dense<0.000000e+00> : vector<8x384xf32>
    %388 = tpu.matmul %386, %387, %cst_121 {dimension_numbers = #tpu.dot_dimension_numbers<[1], [0], [0], [1], [0, 0, 1, 1], [], []>} : vector<8x128xf32>, vector<128x384xf32>, vector<8x384xf32> -> vector<8x384xf32>
    %389 = arith.addf %388, %12 : vector<8x384xf32>
    %c0_122 = arith.constant 0 : index
    %c0_123 = arith.constant 0 : index
    %390 = vector.load %arg9[%c0_122, %c0_123] : memref<128x384xf32, #tpu.memory_space<vmem>>, vector<128x384xf32>
    %cst_124 = arith.constant dense<0.000000e+00> : vector<8x384xf32>
    %391 = tpu.matmul %349, %390, %cst_124 {dimension_numbers = #tpu.dot_dimension_numbers<[1], [0], [0], [1], [0, 0, 1, 1], [], []>} : vector<8x128xf32>, vector<128x384xf32>, vector<8x384xf32> -> vector<8x384xf32>
    %392 = vector.extract_strided_slice %389 {offsets = [0, 0], sizes = [8, 128], strides = [1, 1]} : vector<8x384xf32> to vector<8x128xf32>
    %393 = vector.extract_strided_slice %391 {offsets = [0, 0], sizes = [8, 128], strides = [1, 1]} : vector<8x384xf32> to vector<8x128xf32>
    %394 = arith.addf %392, %393 : vector<8x128xf32>
    %395 = arith.negf %394 : vector<8x128xf32>
    %396 = math.exp %395 : vector<8x128xf32>
    %cst_125 = arith.constant 1.000000e+00 : f32
    %397 = vector.broadcast %cst_125 : f32 to vector<8x128xf32>
    %398 = arith.addf %397, %396 : vector<8x128xf32>
    %399 = arith.divf %397, %398 : vector<8x128xf32>
    %400 = vector.extract_strided_slice %389 {offsets = [0, 128], sizes = [8, 128], strides = [1, 1]} : vector<8x384xf32> to vector<8x128xf32>
    %401 = vector.extract_strided_slice %391 {offsets = [0, 128], sizes = [8, 128], strides = [1, 1]} : vector<8x384xf32> to vector<8x128xf32>
    %402 = arith.addf %400, %401 : vector<8x128xf32>
    %403 = arith.negf %402 : vector<8x128xf32>
    %404 = math.exp %403 : vector<8x128xf32>
    %cst_126 = arith.constant 1.000000e+00 : f32
    %405 = vector.broadcast %cst_126 : f32 to vector<8x128xf32>
    %406 = arith.addf %405, %404 : vector<8x128xf32>
    %407 = arith.divf %405, %406 : vector<8x128xf32>
    %408 = vector.extract_strided_slice %389 {offsets = [0, 256], sizes = [8, 128], strides = [1, 1]} : vector<8x384xf32> to vector<8x128xf32>
    %409 = vector.extract_strided_slice %391 {offsets = [0, 256], sizes = [8, 128], strides = [1, 1]} : vector<8x384xf32> to vector<8x128xf32>
    %410 = arith.addf %409, %18 : vector<8x128xf32>
    %411 = arith.mulf %399, %410 : vector<8x128xf32>
    %412 = arith.addf %408, %411 : vector<8x128xf32>
    %413 = math.tanh %412 : vector<8x128xf32>
    %414 = arith.subf %349, %413 : vector<8x128xf32>
    %415 = arith.mulf %407, %414 : vector<8x128xf32>
    %416 = arith.addf %413, %415 : vector<8x128xf32>
    %c8_i32_127 = arith.constant 8 : i32
    %417 = arith.muli %c5_i32, %c8_i32_127 : i32
    %418 = tpu.assume_multiple %417, 8 : i32
    %419 = arith.index_cast %418 : i32 to index
    %c0_128 = arith.constant 0 : index
    %420 = vector.load %arg12[%419, %c0_128] : memref<64x128xf32, #tpu.memory_space<vmem>>, vector<8x128xf32>
    tpu.vector_store %arg12[%419, %c0_128], %416 {strides = array<i32>} : memref<64x128xf32, #tpu.memory_space<vmem>>, vector<8x128xf32>,
    %c1_i32_129 = arith.constant 1 : i32
    %421 = arith.addi %c5_i32, %c1_i32_129 : i32
    %c8_i32_130 = arith.constant 8 : i32
    %422 = arith.muli %421, %c8_i32_130 : i32
    %423 = tpu.assume_multiple %422, 8 : i32
    %424 = arith.index_cast %423 : i32 to index
    %c0_131 = arith.constant 0 : index
    %425 = vector.load %arg14[%424, %c0_131] : memref<64x384xf32, #tpu.memory_space<vmem>>, vector<8x384xf32>
    %426 = arith.addf %425, %9 : vector<8x384xf32>
    %c0_132 = arith.constant 0 : index
    %c0_133 = arith.constant 0 : index
    %427 = vector.load %arg5[%c0_132, %c0_133] : memref<128x384xf32, #tpu.memory_space<vmem>>, vector<128x384xf32>
    %cst_134 = arith.constant dense<0.000000e+00> : vector<8x384xf32>
    %428 = tpu.matmul %386, %427, %cst_134 {dimension_numbers = #tpu.dot_dimension_numbers<[1], [0], [0], [1], [0, 0, 1, 1], [], []>} : vector<8x128xf32>, vector<128x384xf32>, vector<8x384xf32> -> vector<8x384xf32>
    %429 = vector.extract_strided_slice %426 {offsets = [0, 0], sizes = [8, 128], strides = [1, 1]} : vector<8x384xf32> to vector<8x128xf32>
    %430 = vector.extract_strided_slice %428 {offsets = [0, 0], sizes = [8, 128], strides = [1, 1]} : vector<8x384xf32> to vector<8x128xf32>
    %431 = arith.addf %429, %430 : vector<8x128xf32>
    %432 = arith.negf %431 : vector<8x128xf32>
    %433 = math.exp %432 : vector<8x128xf32>
    %cst_135 = arith.constant 1.000000e+00 : f32
    %434 = vector.broadcast %cst_135 : f32 to vector<8x128xf32>
    %435 = arith.addf %434, %433 : vector<8x128xf32>
    %436 = arith.divf %434, %435 : vector<8x128xf32>
    %437 = vector.extract_strided_slice %426 {offsets = [0, 128], sizes = [8, 128], strides = [1, 1]} : vector<8x384xf32> to vector<8x128xf32>
    %438 = vector.extract_strided_slice %428 {offsets = [0, 128], sizes = [8, 128], strides = [1, 1]} : vector<8x384xf32> to vector<8x128xf32>
    %439 = arith.addf %437, %438 : vector<8x128xf32>
    %440 = arith.negf %439 : vector<8x128xf32>
    %441 = math.exp %440 : vector<8x128xf32>
    %cst_136 = arith.constant 1.000000e+00 : f32
    %442 = vector.broadcast %cst_136 : f32 to vector<8x128xf32>
    %443 = arith.addf %442, %441 : vector<8x128xf32>
    %444 = arith.divf %442, %443 : vector<8x128xf32>
    %445 = vector.extract_strided_slice %426 {offsets = [0, 256], sizes = [8, 128], strides = [1, 1]} : vector<8x384xf32> to vector<8x128xf32>
    %446 = vector.extract_strided_slice %428 {offsets = [0, 256], sizes = [8, 128], strides = [1, 1]} : vector<8x384xf32> to vector<8x128xf32>
    %447 = arith.addf %446, %15 : vector<8x128xf32>
    %448 = arith.mulf %436, %447 : vector<8x128xf32>
    %449 = arith.addf %445, %448 : vector<8x128xf32>
    %450 = math.tanh %449 : vector<8x128xf32>
    %451 = arith.subf %386, %450 : vector<8x128xf32>
    %452 = arith.mulf %444, %451 : vector<8x128xf32>
    %453 = arith.addf %450, %452 : vector<8x128xf32>
    %c6_i32 = arith.constant 6 : i32
    %c0_137 = arith.constant 0 : index
    %c0_138 = arith.constant 0 : index
    %454 = vector.load %arg8[%c0_137, %c0_138] : memref<128x384xf32, #tpu.memory_space<vmem>>, vector<128x384xf32>
    %cst_139 = arith.constant dense<0.000000e+00> : vector<8x384xf32>
    %455 = tpu.matmul %453, %454, %cst_139 {dimension_numbers = #tpu.dot_dimension_numbers<[1], [0], [0], [1], [0, 0, 1, 1], [], []>} : vector<8x128xf32>, vector<128x384xf32>, vector<8x384xf32> -> vector<8x384xf32>
    %456 = arith.addf %455, %12 : vector<8x384xf32>
    %c0_140 = arith.constant 0 : index
    %c0_141 = arith.constant 0 : index
    %457 = vector.load %arg9[%c0_140, %c0_141] : memref<128x384xf32, #tpu.memory_space<vmem>>, vector<128x384xf32>
    %cst_142 = arith.constant dense<0.000000e+00> : vector<8x384xf32>
    %458 = tpu.matmul %416, %457, %cst_142 {dimension_numbers = #tpu.dot_dimension_numbers<[1], [0], [0], [1], [0, 0, 1, 1], [], []>} : vector<8x128xf32>, vector<128x384xf32>, vector<8x384xf32> -> vector<8x384xf32>
    %459 = vector.extract_strided_slice %456 {offsets = [0, 0], sizes = [8, 128], strides = [1, 1]} : vector<8x384xf32> to vector<8x128xf32>
    %460 = vector.extract_strided_slice %458 {offsets = [0, 0], sizes = [8, 128], strides = [1, 1]} : vector<8x384xf32> to vector<8x128xf32>
    %461 = arith.addf %459, %460 : vector<8x128xf32>
    %462 = arith.negf %461 : vector<8x128xf32>
    %463 = math.exp %462 : vector<8x128xf32>
    %cst_143 = arith.constant 1.000000e+00 : f32
    %464 = vector.broadcast %cst_143 : f32 to vector<8x128xf32>
    %465 = arith.addf %464, %463 : vector<8x128xf32>
    %466 = arith.divf %464, %465 : vector<8x128xf32>
    %467 = vector.extract_strided_slice %456 {offsets = [0, 128], sizes = [8, 128], strides = [1, 1]} : vector<8x384xf32> to vector<8x128xf32>
    %468 = vector.extract_strided_slice %458 {offsets = [0, 128], sizes = [8, 128], strides = [1, 1]} : vector<8x384xf32> to vector<8x128xf32>
    %469 = arith.addf %467, %468 : vector<8x128xf32>
    %470 = arith.negf %469 : vector<8x128xf32>
    %471 = math.exp %470 : vector<8x128xf32>
    %cst_144 = arith.constant 1.000000e+00 : f32
    %472 = vector.broadcast %cst_144 : f32 to vector<8x128xf32>
    %473 = arith.addf %472, %471 : vector<8x128xf32>
    %474 = arith.divf %472, %473 : vector<8x128xf32>
    %475 = vector.extract_strided_slice %456 {offsets = [0, 256], sizes = [8, 128], strides = [1, 1]} : vector<8x384xf32> to vector<8x128xf32>
    %476 = vector.extract_strided_slice %458 {offsets = [0, 256], sizes = [8, 128], strides = [1, 1]} : vector<8x384xf32> to vector<8x128xf32>
    %477 = arith.addf %476, %18 : vector<8x128xf32>
    %478 = arith.mulf %466, %477 : vector<8x128xf32>
    %479 = arith.addf %475, %478 : vector<8x128xf32>
    %480 = math.tanh %479 : vector<8x128xf32>
    %481 = arith.subf %416, %480 : vector<8x128xf32>
    %482 = arith.mulf %474, %481 : vector<8x128xf32>
    %483 = arith.addf %480, %482 : vector<8x128xf32>
    %c8_i32_145 = arith.constant 8 : i32
    %484 = arith.muli %c6_i32, %c8_i32_145 : i32
    %485 = tpu.assume_multiple %484, 8 : i32
    %486 = arith.index_cast %485 : i32 to index
    %c0_146 = arith.constant 0 : index
    %487 = vector.load %arg12[%486, %c0_146] : memref<64x128xf32, #tpu.memory_space<vmem>>, vector<8x128xf32>
    tpu.vector_store %arg12[%486, %c0_146], %483 {strides = array<i32>} : memref<64x128xf32, #tpu.memory_space<vmem>>, vector<8x128xf32>,
    %c1_i32_147 = arith.constant 1 : i32
    %488 = arith.addi %c6_i32, %c1_i32_147 : i32
    %c8_i32_148 = arith.constant 8 : i32
    %489 = arith.muli %488, %c8_i32_148 : i32
    %490 = tpu.assume_multiple %489, 8 : i32
    %491 = arith.index_cast %490 : i32 to index
    %c0_149 = arith.constant 0 : index
    %492 = vector.load %arg14[%491, %c0_149] : memref<64x384xf32, #tpu.memory_space<vmem>>, vector<8x384xf32>
    %493 = arith.addf %492, %9 : vector<8x384xf32>
    %c0_150 = arith.constant 0 : index
    %c0_151 = arith.constant 0 : index
    %494 = vector.load %arg5[%c0_150, %c0_151] : memref<128x384xf32, #tpu.memory_space<vmem>>, vector<128x384xf32>
    %cst_152 = arith.constant dense<0.000000e+00> : vector<8x384xf32>
    %495 = tpu.matmul %453, %494, %cst_152 {dimension_numbers = #tpu.dot_dimension_numbers<[1], [0], [0], [1], [0, 0, 1, 1], [], []>} : vector<8x128xf32>, vector<128x384xf32>, vector<8x384xf32> -> vector<8x384xf32>
    %496 = vector.extract_strided_slice %493 {offsets = [0, 0], sizes = [8, 128], strides = [1, 1]} : vector<8x384xf32> to vector<8x128xf32>
    %497 = vector.extract_strided_slice %495 {offsets = [0, 0], sizes = [8, 128], strides = [1, 1]} : vector<8x384xf32> to vector<8x128xf32>
    %498 = arith.addf %496, %497 : vector<8x128xf32>
    %499 = arith.negf %498 : vector<8x128xf32>
    %500 = math.exp %499 : vector<8x128xf32>
    %cst_153 = arith.constant 1.000000e+00 : f32
    %501 = vector.broadcast %cst_153 : f32 to vector<8x128xf32>
    %502 = arith.addf %501, %500 : vector<8x128xf32>
    %503 = arith.divf %501, %502 : vector<8x128xf32>
    %504 = vector.extract_strided_slice %493 {offsets = [0, 128], sizes = [8, 128], strides = [1, 1]} : vector<8x384xf32> to vector<8x128xf32>
    %505 = vector.extract_strided_slice %495 {offsets = [0, 128], sizes = [8, 128], strides = [1, 1]} : vector<8x384xf32> to vector<8x128xf32>
    %506 = arith.addf %504, %505 : vector<8x128xf32>
    %507 = arith.negf %506 : vector<8x128xf32>
    %508 = math.exp %507 : vector<8x128xf32>
    %cst_154 = arith.constant 1.000000e+00 : f32
    %509 = vector.broadcast %cst_154 : f32 to vector<8x128xf32>
    %510 = arith.addf %509, %508 : vector<8x128xf32>
    %511 = arith.divf %509, %510 : vector<8x128xf32>
    %512 = vector.extract_strided_slice %493 {offsets = [0, 256], sizes = [8, 128], strides = [1, 1]} : vector<8x384xf32> to vector<8x128xf32>
    %513 = vector.extract_strided_slice %495 {offsets = [0, 256], sizes = [8, 128], strides = [1, 1]} : vector<8x384xf32> to vector<8x128xf32>
    %514 = arith.addf %513, %15 : vector<8x128xf32>
    %515 = arith.mulf %503, %514 : vector<8x128xf32>
    %516 = arith.addf %512, %515 : vector<8x128xf32>
    %517 = math.tanh %516 : vector<8x128xf32>
    %518 = arith.subf %453, %517 : vector<8x128xf32>
    %519 = arith.mulf %511, %518 : vector<8x128xf32>
    %520 = arith.addf %517, %519 : vector<8x128xf32>
    %c7_i32 = arith.constant 7 : i32
    %c0_155 = arith.constant 0 : index
    %c0_156 = arith.constant 0 : index
    %521 = vector.load %arg8[%c0_155, %c0_156] : memref<128x384xf32, #tpu.memory_space<vmem>>, vector<128x384xf32>
    %cst_157 = arith.constant dense<0.000000e+00> : vector<8x384xf32>
    %522 = tpu.matmul %520, %521, %cst_157 {dimension_numbers = #tpu.dot_dimension_numbers<[1], [0], [0], [1], [0, 0, 1, 1], [], []>} : vector<8x128xf32>, vector<128x384xf32>, vector<8x384xf32> -> vector<8x384xf32>
    %523 = arith.addf %522, %12 : vector<8x384xf32>
    %c0_158 = arith.constant 0 : index
    %c0_159 = arith.constant 0 : index
    %524 = vector.load %arg9[%c0_158, %c0_159] : memref<128x384xf32, #tpu.memory_space<vmem>>, vector<128x384xf32>
    %cst_160 = arith.constant dense<0.000000e+00> : vector<8x384xf32>
    %525 = tpu.matmul %483, %524, %cst_160 {dimension_numbers = #tpu.dot_dimension_numbers<[1], [0], [0], [1], [0, 0, 1, 1], [], []>} : vector<8x128xf32>, vector<128x384xf32>, vector<8x384xf32> -> vector<8x384xf32>
    %526 = vector.extract_strided_slice %523 {offsets = [0, 0], sizes = [8, 128], strides = [1, 1]} : vector<8x384xf32> to vector<8x128xf32>
    %527 = vector.extract_strided_slice %525 {offsets = [0, 0], sizes = [8, 128], strides = [1, 1]} : vector<8x384xf32> to vector<8x128xf32>
    %528 = arith.addf %526, %527 : vector<8x128xf32>
    %529 = arith.negf %528 : vector<8x128xf32>
    %530 = math.exp %529 : vector<8x128xf32>
    %cst_161 = arith.constant 1.000000e+00 : f32
    %531 = vector.broadcast %cst_161 : f32 to vector<8x128xf32>
    %532 = arith.addf %531, %530 : vector<8x128xf32>
    %533 = arith.divf %531, %532 : vector<8x128xf32>
    %534 = vector.extract_strided_slice %523 {offsets = [0, 128], sizes = [8, 128], strides = [1, 1]} : vector<8x384xf32> to vector<8x128xf32>
    %535 = vector.extract_strided_slice %525 {offsets = [0, 128], sizes = [8, 128], strides = [1, 1]} : vector<8x384xf32> to vector<8x128xf32>
    %536 = arith.addf %534, %535 : vector<8x128xf32>
    %537 = arith.negf %536 : vector<8x128xf32>
    %538 = math.exp %537 : vector<8x128xf32>
    %cst_162 = arith.constant 1.000000e+00 : f32
    %539 = vector.broadcast %cst_162 : f32 to vector<8x128xf32>
    %540 = arith.addf %539, %538 : vector<8x128xf32>
    %541 = arith.divf %539, %540 : vector<8x128xf32>
    %542 = vector.extract_strided_slice %523 {offsets = [0, 256], sizes = [8, 128], strides = [1, 1]} : vector<8x384xf32> to vector<8x128xf32>
    %543 = vector.extract_strided_slice %525 {offsets = [0, 256], sizes = [8, 128], strides = [1, 1]} : vector<8x384xf32> to vector<8x128xf32>
    %544 = arith.addf %543, %18 : vector<8x128xf32>
    %545 = arith.mulf %533, %544 : vector<8x128xf32>
    %546 = arith.addf %542, %545 : vector<8x128xf32>
    %547 = math.tanh %546 : vector<8x128xf32>
    %548 = arith.subf %483, %547 : vector<8x128xf32>
    %549 = arith.mulf %541, %548 : vector<8x128xf32>
    %550 = arith.addf %547, %549 : vector<8x128xf32>
    %c56 = arith.constant 56 : index
    %c0_163 = arith.constant 0 : index
    %551 = vector.load %arg12[%c56, %c0_163] : memref<64x128xf32, #tpu.memory_space<vmem>>, vector<8x128xf32>
    tpu.vector_store %arg12[%c56, %c0_163], %550 {strides = array<i32>} : memref<64x128xf32, #tpu.memory_space<vmem>>, vector<8x128xf32>,
    %c0_164 = arith.constant 0 : index
    %c0_165 = arith.constant 0 : index
    %c0_166 = arith.constant 0 : index
    %552 = vector.load %arg13[%c0_164, %c0_165, %c0_166] : memref<2x8x128xf32, #tpu.memory_space<vmem>>, vector<1x8x128xf32>
    %553 = vector.shape_cast %552 : vector<1x8x128xf32> to vector<8x128xf32>
    %554 = vector.shape_cast %520 : vector<8x128xf32> to vector<1x8x128xf32>
    tpu.vector_store %arg13[%c0_164, %c0_165, %c0_166], %554 {strides = array<i32>} : memref<2x8x128xf32, #tpu.memory_space<vmem>>, vector<1x8x128xf32>,
    %c1_167 = arith.constant 1 : index
    %c0_168 = arith.constant 0 : index
    %c0_169 = arith.constant 0 : index
    %555 = vector.load %arg13[%c1_167, %c0_168, %c0_169] : memref<2x8x128xf32, #tpu.memory_space<vmem>>, vector<1x8x128xf32>
    %556 = vector.shape_cast %555 : vector<1x8x128xf32> to vector<8x128xf32>
    %557 = vector.shape_cast %550 : vector<8x128xf32> to vector<1x8x128xf32>
    tpu.vector_store %arg13[%c1_167, %c0_168, %c0_169], %557 {strides = array<i32>} : memref<2x8x128xf32, #tpu.memory_space<vmem>>, vector<1x8x128xf32>,
    return
  }
}

</mosaic_0001>

<llo_original>
// kernel: tpu_custom_call.1
$region0: #{tpu_custom_call.1}
  #allocation0 [shape = 'u32[]', space=smem, size = 0x4, offset = 0x4, fixed_abs, tag = 'smem constant byte address 0x4 - core index']
  #allocation1 [shape = 'u32[144,128]{1,0:T(1,128)}', space=vmem, size = 0x12000, scoped, tag = 'internal scratch']
  #allocation2 [shape = 'f32[64,384]{1,0:T(8,128)}', space=vmem, size = 0x18000, scoped, tag = 'scratch operand']
  %s0 = inlined_call_operand.hbm [shape: f32[64,128], index: 0, kind: input, shape index: {}]
  %s1 = inlined_call_operand.hbm [shape: f32[8,128], index: 1, kind: input, shape index: {}]
  %s2 = inlined_call_operand.hbm [shape: f32[2,8,128], index: 2, kind: input, shape index: {}]
  %s3 = inlined_call_operand.hbm [shape: f32[128,384], index: 3, kind: input, shape index: {}]
  %s4 = inlined_call_operand.hbm [shape: f32[128,384], index: 4, kind: input, shape index: {}]
  %s5 = inlined_call_operand.hbm [shape: f32[128,384], index: 5, kind: input, shape index: {}]
  %s6 = inlined_call_operand.vmem [shape: f32[1,384], index: 6, kind: input, shape index: {}]
  %s7 = inlined_call_operand.vmem [shape: f32[1,128], index: 7, kind: input, shape index: {}]
  %s8 = inlined_call_operand.hbm [shape: f32[128,384], index: 8, kind: input, shape index: {}]
  %s9 = inlined_call_operand.hbm [shape: f32[128,384], index: 9, kind: input, shape index: {}]
  %s10 = inlined_call_operand.vmem [shape: f32[1,384], index: 10, kind: input, shape index: {}]
  %s11 = inlined_call_operand.vmem [shape: f32[1,128], index: 11, kind: input, shape index: {}]
  %s12 = inlined_call_operand.hbm [shape: f32[64,128], index: 12, kind: output, shape index: {0}]
  %s13 = inlined_call_operand.hbm [shape: f32[2,8,128], index: 13, kind: output, shape index: {1}]
  %14 = xla_tuple %s12, %s13
  %s15 = sld [smem:[#allocation0]]
  $region98: #{tpu_custom_call.1} parent=0
    _
  %s17 = ssub.s32 1, %s15
  %s18 = scalar_select 0, %s17, %s15
  $region1: #{tpu_custom_call.1} parent=0
    #allocation3 [shape = 'u8[32768]{0}', space=vmem, size = 0x8000, scoped, tag = 'input window, operand 0, single buffered']
    #allocation4 [shape = 's32[1]{0}', space=sflag, size = 0x4, scoped, tag = 'scoped memory for tpu_custom_call.1']
    #allocation5 [shape = 's32[1]{0}', space=sflag, size = 0x4, scoped, tag = 'scoped memory for tpu_custom_call.1']
    #allocation6 [shape = 'u8[4096]{0}', space=vmem, size = 0x1000, scoped, tag = 'input window, operand 1, single buffered']
    #allocation7 [shape = 's32[1]{0}', space=sflag, size = 0x4, scoped, tag = 'scoped memory for tpu_custom_call.1']
    #allocation8 [shape = 'u8[8192]{0}', space=vmem, size = 0x2000, scoped, tag = 'input window, operand 2, single buffered']
    #allocation9 [shape = 'u8[196608]{0}', space=vmem, size = 0x30000, scoped, tag = 'input window, operand 3, single buffered']
    #allocation10 [shape = 's32[1]{0}', space=sflag, size = 0x4, scoped, tag = 'scoped memory for tpu_custom_call.1']
    #allocation11 [shape = 'u8[196608]{0}', space=vmem, size = 0x30000, scoped, tag = 'input window, operand 4, single buffered']
    #allocation12 [shape = 'u8[196608]{0}', space=vmem, size = 0x30000, scoped, tag = 'input window, operand 5, single buffered']
    #allocation13 [shape = 's32[1]{0}', space=sflag, size = 0x4, scoped, tag = 'scoped memory for tpu_custom_call.1']
    #allocation14 [shape = 'u8[196608]{0}', space=vmem, size = 0x30000, scoped, tag = 'input window, operand 8, single buffered']
    #allocation15 [shape = 'u8[196608]{0}', space=vmem, size = 0x30000, scoped, tag = 'input window, operand 9, single buffered']
    #allocation16 [shape = 's32[1]{0}', space=sflag, size = 0x4, scoped, tag = 'scoped memory for tpu_custom_call.1']
    #allocation17 [shape = 'u8[32768]{0}', space=vmem, size = 0x8000, scoped, tag = 'output window, operand 0, single buffered']
    #allocation18 [shape = 'u8[8192]{0}', space=vmem, size = 0x2000, scoped, tag = 'output window, operand 1, single buffered']
    #allocation19 [shape = 's32[1]{0}', space=sflag, size = 0x4, scoped, tag = 'scoped memory for tpu_custom_call.1']
    %19 = vsyncpa [#allocation4], 0
    %20 = vsyncpa [#allocation7], 0
    %21 = vsyncpa [#allocation10], 0
    %22 = vsyncpa [#allocation13], 0
    %23 = vsyncpa [#allocation16], 0
    %24 = vsyncpa [#allocation5], 0
    %25 = vsyncpa [#allocation19], 0
    // Predicated region
    $region2: #{tpu_custom_call.1} parent=1 // pred_check
      _
    $region3: #{tpu_custom_call.1} parent=1 // pred_check_branch
      %27 = sbr.rel (0) target = $region5
    $region4: #{tpu_custom_call.1} parent=1 // pred_region
      %s29 = ssub.s32 1024, 1024
      %30 = vsyncadd [#allocation4], %s29
      %s31 = sshll.u32 [#allocation3], 4
      %s32 = int_to_ptr.vmem [resolvable:$true] %s31
      %37 = dma.hbm_to_vmem [thread:$0]  %s0, 1024, %s32, [#allocation4], 128, 128, 8
    $region5: #{tpu_custom_call.1} parent=1 // pred_fallthru
      _
    // Predicated region
    $region6: #{tpu_custom_call.1} parent=1 // pred_check
      _
    $region7: #{tpu_custom_call.1} parent=1 // pred_check_branch
      %39 = sbr.rel (0) target = $region9
    $region8: #{tpu_custom_call.1} parent=1 // pred_region
      %s41 = ssub.s32 128, 128
      %42 = vsyncadd [#allocation7], %s41
      %s44 = sshll.u32 [#allocation6], 4
      %s45 = int_to_ptr.vmem [resolvable:$true] %s44
      %47 = dma.hbm_to_vmem [thread:$0]  %s1, 128, %s45, [#allocation7]
    $region9: #{tpu_custom_call.1} parent=1 // pred_fallthru
      _
    // Predicated region
    $region10: #{tpu_custom_call.1} parent=1 // pred_check
      _
    $region11: #{tpu_custom_call.1} parent=1 // pred_check_branch
      %49 = sbr.rel (0) target = $region13
    $region12: #{tpu_custom_call.1} parent=1 // pred_region
      %s51 = ssub.s32 256, 256
      %52 = vsyncadd [#allocation7], %s51
      %s53 = sshll.u32 [#allocation8], 4
      %s54 = int_to_ptr.vmem [resolvable:$true] %s53
      %59 = dma.hbm_to_vmem [thread:$0]  %s2, 256, %s54, [#allocation7], 128, 128, 8
    $region13: #{tpu_custom_call.1} parent=1 // pred_fallthru
      _
    // Predicated region
    $region14: #{tpu_custom_call.1} parent=1 // pred_check
      _
    $region15: #{tpu_custom_call.1} parent=1 // pred_check_branch
      %61 = sbr.rel (0) target = $region17
    $region16: #{tpu_custom_call.1} parent=1 // pred_region
      %s63 = ssub.s32 6144, 6144
      %64 = vsyncadd [#allocation10], %s63
      %s65 = sshll.u32 [#allocation9], 4
      %s66 = int_to_ptr.vmem [resolvable:$true] %s65
      %71 = dma.hbm_to_vmem [thread:$0]  %s3, 6144, %s66, [#allocation10], 384, 384, 24
    $region17: #{tpu_custom_call.1} parent=1 // pred_fallthru
      _
    // Predicated region
    $region18: #{tpu_custom_call.1} parent=1 // pred_check
      _
    $region19: #{tpu_custom_call.1} parent=1 // pred_check_branch
      %73 = sbr.rel (0) target = $region21
    $region20: #{tpu_custom_call.1} parent=1 // pred_region
      %s75 = ssub.s32 6144, 6144
      %76 = vsyncadd [#allocation10], %s75
      %s77 = sshll.u32 [#allocation11], 4
      %s78 = int_to_ptr.vmem [resolvable:$true] %s77
      %83 = dma.hbm_to_vmem [thread:$0]  %s4, 6144, %s78, [#allocation10], 384, 384, 24
    $region21: #{tpu_custom_call.1} parent=1 // pred_fallthru
      _
    // Predicated region
    $region22: #{tpu_custom_call.1} parent=1 // pred_check
      _
    $region23: #{tpu_custom_call.1} parent=1 // pred_check_branch
      %85 = sbr.rel (0) target = $region25
    $region24: #{tpu_custom_call.1} parent=1 // pred_region
      %s87 = ssub.s32 6144, 6144
      %88 = vsyncadd [#allocation13], %s87
      %s89 = sshll.u32 [#allocation12], 4
      %s90 = int_to_ptr.vmem [resolvable:$true] %s89
      %95 = dma.hbm_to_vmem [thread:$0]  %s5, 6144, %s90, [#allocation13], 384, 384, 24
    $region25: #{tpu_custom_call.1} parent=1 // pred_fallthru
      _
    // Predicated region
    $region26: #{tpu_custom_call.1} parent=1 // pred_check
      _
    $region27: #{tpu_custom_call.1} parent=1 // pred_check_branch
      %97 = sbr.rel (0) target = $region29
    $region28: #{tpu_custom_call.1} parent=1 // pred_region
      _
    $region29: #{tpu_custom_call.1} parent=1 // pred_fallthru
      _
    // Predicated region
    $region30: #{tpu_custom_call.1} parent=1 // pred_check
      _
    $region31: #{tpu_custom_call.1} parent=1 // pred_check_branch
      %99 = sbr.rel (0) target = $region33
    $region32: #{tpu_custom_call.1} parent=1 // pred_region
      _
    $region33: #{tpu_custom_call.1} parent=1 // pred_fallthru
      _
    // Predicated region
    $region34: #{tpu_custom_call.1} parent=1 // pred_check
      _
    $region35: #{tpu_custom_call.1} parent=1 // pred_check_branch
      %101 = sbr.rel (0) target = $region37
    $region36: #{tpu_custom_call.1} parent=1 // pred_region
      %s103 = ssub.s32 6144, 6144
      %104 = vsyncadd [#allocation13], %s103
      %s105 = sshll.u32 [#allocation14], 4
      %s106 = int_to_ptr.vmem [resolvable:$true] %s105
      %111 = dma.hbm_to_vmem [thread:$0]  %s8, 6144, %s106, [#allocation13], 384, 384, 24
    $region37: #{tpu_custom_call.1} parent=1 // pred_fallthru
      _
    // Predicated region
    $region38: #{tpu_custom_call.1} parent=1 // pred_check
      _
    $region39: #{tpu_custom_call.1} parent=1 // pred_check_branch
      %113 = sbr.rel (0) target = $region41
    $region40: #{tpu_custom_call.1} parent=1 // pred_region
      %s115 = ssub.s32 6144, 6144
      %116 = vsyncadd [#allocation16], %s115
      %s117 = sshll.u32 [#allocation15], 4
      %s118 = int_to_ptr.vmem [resolvable:$true] %s117
      %123 = dma.hbm_to_vmem [thread:$0]  %s9, 6144, %s118, [#allocation16], 384, 384, 24
    $region41: #{tpu_custom_call.1} parent=1 // pred_fallthru
      _
    // Predicated region
    $region42: #{tpu_custom_call.1} parent=1 // pred_check
      _
    $region43: #{tpu_custom_call.1} parent=1 // pred_check_branch
      %125 = sbr.rel (0) target = $region45
    $region44: #{tpu_custom_call.1} parent=1 // pred_region
      _
    $region45: #{tpu_custom_call.1} parent=1 // pred_fallthru
      _
    // Predicated region
    $region46: #{tpu_custom_call.1} parent=1 // pred_check
      _
    $region47: #{tpu_custom_call.1} parent=1 // pred_check_branch
      %127 = sbr.rel (0) target = $region49
    $region48: #{tpu_custom_call.1} parent=1 // pred_region
      _
    $region49: #{tpu_custom_call.1} parent=1 // pred_fallthru
      _
    // Predicated region
    $region50: #{tpu_custom_call.1} parent=1 // pred_check
      _
    $region51: #{tpu_custom_call.1} parent=1 // pred_check_branch
      %129 = sbr.rel (0) target = $region53
    $region52: #{tpu_custom_call.1} parent=1 // pred_region
      %130 = dma.done [#allocation4], 1024
    $region53: #{tpu_custom_call.1} parent=1 // pred_fallthru
      _
    // Predicated region
    $region54: #{tpu_custom_call.1} parent=1 // pred_check
      _
    $region55: #{tpu_custom_call.1} parent=1 // pred_check_branch
      %132 = sbr.rel (0) target = $region57
    $region56: #{tpu_custom_call.1} parent=1 // pred_region
      %133 = dma.done [#allocation7], 128
    $region57: #{tpu_custom_call.1} parent=1 // pred_fallthru
      _
    // Predicated region
    $region58: #{tpu_custom_call.1} parent=1 // pred_check
      _
    $region59: #{tpu_custom_call.1} parent=1 // pred_check_branch
      %135 = sbr.rel (0) target = $region61
    $region60: #{tpu_custom_call.1} parent=1 // pred_region
      %136 = dma.done [#allocation7], 256
    $region61: #{tpu_custom_call.1} parent=1 // pred_fallthru
      _
    // Predicated region
    $region62: #{tpu_custom_call.1} parent=1 // pred_check
      _
    $region63: #{tpu_custom_call.1} parent=1 // pred_check_branch
      %138 = sbr.rel (0) target = $region65
    $region64: #{tpu_custom_call.1} parent=1 // pred_region
      %139 = dma.done [#allocation10], 6144
    $region65: #{tpu_custom_call.1} parent=1 // pred_fallthru
      _
    // Predicated region
    $region66: #{tpu_custom_call.1} parent=1 // pred_check
      _
    $region67: #{tpu_custom_call.1} parent=1 // pred_check_branch
      %141 = sbr.rel (0) target = $region69
    $region68: #{tpu_custom_call.1} parent=1 // pred_region
      %142 = dma.done [#allocation10], 6144
    $region69: #{tpu_custom_call.1} parent=1 // pred_fallthru
      _
    // Predicated region
    $region70: #{tpu_custom_call.1} parent=1 // pred_check
      _
    $region71: #{tpu_custom_call.1} parent=1 // pred_check_branch
      %144 = sbr.rel (0) target = $region73
    $region72: #{tpu_custom_call.1} parent=1 // pred_region
      %145 = dma.done [#allocation13], 6144
    $region73: #{tpu_custom_call.1} parent=1 // pred_fallthru
      _
    // Predicated region
    $region74: #{tpu_custom_call.1} parent=1 // pred_check
      _
    $region75: #{tpu_custom_call.1} parent=1 // pred_check_branch
      %147 = sbr.rel (0) target = $region77
    $region76: #{tpu_custom_call.1} parent=1 // pred_region
      %148 = dma.done [#allocation13], 6144
    $region77: #{tpu_custom_call.1} parent=1 // pred_fallthru
      _
    // Predicated region
    $region78: #{tpu_custom_call.1} parent=1 // pred_check
      _
    $region79: #{tpu_custom_call.1} parent=1 // pred_check_branch
      %150 = sbr.rel (0) target = $region81
    $region80: #{tpu_custom_call.1} parent=1 // pred_region
      %151 = dma.done [#allocation16], 6144
    $region81: #{tpu_custom_call.1} parent=1 // pred_fallthru
      _
    %v152 = vld [vmem:[#allocation3] sm:$0xff]
    %v153 = vld [vmem:[#allocation3 + $0x8] sm:$0xff]
    %v154 = vld [vmem:[#allocation3 + $0x10] sm:$0xff]
    %v155 = vld [vmem:[#allocation3 + $0x18] sm:$0xff]
    %v156 = vld [vmem:[#allocation3 + $0x20] sm:$0xff]
    %v157 = vld [vmem:[#allocation3 + $0x28] sm:$0xff]
    %v158 = vld [vmem:[#allocation3 + $0x30] sm:$0xff]
    %v159 = vld [vmem:[#allocation3 + $0x38] sm:$0xff]
    %v160 = vld [vmem:[#allocation9] sm:$0xff]
    %v161 = vld [vmem:[#allocation9 + $0x8] sm:$0xff]
    %v162 = vld [vmem:[#allocation9 + $0x10] sm:$0xff]
    %v163 = vld [vmem:[#allocation9 + $0x18] sm:$0xff]
    %v164 = vld [vmem:[#allocation9 + $0x20] sm:$0xff]
    %v165 = vld [vmem:[#allocation9 + $0x28] sm:$0xff]
    %v166 = vld [vmem:[#allocation9 + $0x30] sm:$0xff]
    %v167 = vld [vmem:[#allocation9 + $0x38] sm:$0xff]
    %v168 = vld [vmem:[#allocation9 + $0x40] sm:$0xff]
    %v169 = vld [vmem:[#allocation9 + $0x48] sm:$0xff]
    %v170 = vld [vmem:[#allocation9 + $0x50] sm:$0xff]
    %v171 = vld [vmem:[#allocation9 + $0x58] sm:$0xff]
    %v172 = vld [vmem:[#allocation9 + $0x60] sm:$0xff]
    %v173 = vld [vmem:[#allocation9 + $0x68] sm:$0xff]
    %v174 = vld [vmem:[#allocation9 + $0x70] sm:$0xff]
    %v175 = vld [vmem:[#allocation9 + $0x78] sm:$0xff]
    %v176 = vld [vmem:[#allocation9 + $0x80] sm:$0xff]
    %v177 = vld [vmem:[#allocation9 + $0x88] sm:$0xff]
    %v178 = vld [vmem:[#allocation9 + $0x90] sm:$0xff]
    %v179 = vld [vmem:[#allocation9 + $0x98] sm:$0xff]
    %v180 = vld [vmem:[#allocation9 + $0xa0] sm:$0xff]
    %v181 = vld [vmem:[#allocation9 + $0xa8] sm:$0xff]
    %v182 = vld [vmem:[#allocation9 + $0xb0] sm:$0xff]
    %v183 = vld [vmem:[#allocation9 + $0xb8] sm:$0xff]
    %v184 = vld [vmem:[#allocation9 + $0xc0] sm:$0xff]
    %v185 = vld [vmem:[#allocation9 + $0xc8] sm:$0xff]
    %v186 = vld [vmem:[#allocation9 + $0xd0] sm:$0xff]
    %v187 = vld [vmem:[#allocation9 + $0xd8] sm:$0xff]
    %v188 = vld [vmem:[#allocation9 + $0xe0] sm:$0xff]
    %v189 = vld [vmem:[#allocation9 + $0xe8] sm:$0xff]
    %v190 = vld [vmem:[#allocation9 + $0xf0] sm:$0xff]
    %v191 = vld [vmem:[#allocation9 + $0xf8] sm:$0xff]
    %v192 = vld [vmem:[#allocation9 + $0x100] sm:$0xff]
    %v193 = vld [vmem:[#allocation9 + $0x108] sm:$0xff]
    %v194 = vld [vmem:[#allocation9 + $0x110] sm:$0xff]
    %v195 = vld [vmem:[#allocation9 + $0x118] sm:$0xff]
    %v196 = vld [vmem:[#allocation9 + $0x120] sm:$0xff]
    %v197 = vld [vmem:[#allocation9 + $0x128] sm:$0xff]
    %v198 = vld [vmem:[#allocation9 + $0x130] sm:$0xff]
    %v199 = vld [vmem:[#allocation9 + $0x138] sm:$0xff]
    %v200 = vld [vmem:[#allocation9 + $0x140] sm:$0xff]
    %v201 = vld [vmem:[#allocation9 + $0x148] sm:$0xff]
    %v202 = vld [vmem:[#allocation9 + $0x150] sm:$0xff]
    %v203 = vld [vmem:[#allocation9 + $0x158] sm:$0xff]
    %v204 = vld [vmem:[#allocation9 + $0x160] sm:$0xff]
    %v205 = vld [vmem:[#allocation9 + $0x168] sm:$0xff]
    %v206 = vld [vmem:[#allocation9 + $0x170] sm:$0xff]
    %v207 = vld [vmem:[#allocation9 + $0x178] sm:$0xff]
    %208 = vmatprep.subr.mxu0 %v206
    %209 = vmatpush1.msra.mxu0 %v205
    %210 = vmatprep.subr.mxu0 %v203
    %211 = vmatpush1.msra.mxu0 %v202
    %212 = vmatprep.subr.mxu0 %v200
    %213 = vmatpush1.msra.mxu0 %v199
    %214 = vmatprep.subr.mxu0 %v197
    %215 = vmatpush1.msra.mxu0 %v196
    %216 = vmatprep.subr.mxu0 %v194
    %217 = vmatpush1.msra.mxu0 %v193
    %218 = vmatprep.subr.mxu0 %v191
    %219 = vmatpush1.msra.mxu0 %v190
    %220 = vmatprep.subr.mxu0 %v188
    %221 = vmatpush1.msra.mxu0 %v187
    %222 = vmatprep.subr.mxu0 %v185
    %223 = vmatpush1.msra.mxu0 %v184
    %224 = vmatprep.subr.mxu0 %v182
    %225 = vmatpush1.msra.mxu0 %v181
    %226 = vmatprep.subr.mxu0 %v179
    %227 = vmatpush1.msra.mxu0 %v178
    %228 = vmatprep.subr.mxu0 %v176
    %229 = vmatpush1.msra.mxu0 %v175
    %230 = vmatprep.subr.mxu0 %v173
    %231 = vmatpush1.msra.mxu0 %v172
    %232 = vmatprep.subr.mxu0 %v170
    %233 = vmatpush1.msra.mxu0 %v169
    %234 = vmatprep.subr.mxu0 %v167
    %235 = vmatpush1.msra.mxu0 %v166
    %236 = vmatprep.subr.mxu0 %v164
    %237 = vmatpush1.msra.mxu0 %v163
    %238 = vmatprep.subr.mxu0 %v161
    %239 = vmatpush1.msra.mxu0 %v160
    %240 = vmatprep.subr.mxu0 0.0
    %241 = vmatpush2.msra.mxu0 0.0
    %242 = vmatprep.subr.mxu0 0.0
    %243 = vmatpush2.msra.mxu0 0.0
    %244 = vmatprep.subr.mxu0 0.0
    %245 = vmatpush2.msra.mxu0 0.0
    %246 = vmatprep.subr.mxu0 0.0
    %247 = vmatpush2.msra.mxu0 0.0
    %248 = vmatprep.subr.mxu0 0.0
    %249 = vmatpush2.msra.mxu0 0.0
    %250 = vmatprep.subr.mxu0 0.0
    %251 = vmatpush2.msra.mxu0 0.0
    %252 = vmatprep.subr.mxu0 0.0
    %253 = vmatpush2.msra.mxu0 0.0
    %254 = vmatprep.subr.mxu0 0.0
    %255 = vmatpush2.msra.mxu0 0.0
    %256 = vmatprep.subr.mxu0 0.0
    %257 = vmatpush2.msra.mxu0 0.0
    %258 = vmatprep.subr.mxu0 0.0
    %259 = vmatpush2.msra.mxu0 0.0
    %260 = vmatprep.subr.mxu0 0.0
    %261 = vmatpush2.msra.mxu0 0.0
    %262 = vmatprep.subr.mxu0 0.0
    %263 = vmatpush2.msra.mxu0 0.0
    %264 = vmatprep.subr.mxu0 0.0
    %265 = vmatpush2.msra.mxu0 0.0
    %266 = vmatprep.subr.mxu0 0.0
    %267 = vmatpush2.msra.mxu0 0.0
    %268 = vmatprep.subr.mxu0 0.0
    %269 = vmatpush2.msra.mxu0 0.0
    %270 = vmatprep.subr.mxu0 0.0
    %271 = vmatpush2.msra.mxu0 0.0
    %272 = vmatprep.mubr.f32.mxu0 0.0
    %273 = vmatmul.mubr.f32.gmra.mxu0 %v152
    %v274 = vpop.f32.mrf.mxu0
    %v275 = vadd.f32 0.0, %v274
    %v276 = vpop.f32.mrf.mxu0
    %v277 = vadd.f32 0.0, %v276
    %278 = vmatprep.mubr.f32.mxu0 0.0
    %279 = vmatmul.mubr.f32.gmra.mxu0 %v153
    %v280 = vpop.f32.mrf.mxu0
    %v281 = vadd.f32 0.0, %v280
    %v282 = vpop.f32.mrf.mxu0
    %v283 = vadd.f32 0.0, %v282
    %284 = vmatprep.mubr.f32.mxu0 0.0
    %285 = vmatmul.mubr.f32.gmra.mxu0 %v154
    %v286 = vpop.f32.mrf.mxu0
    %v287 = vadd.f32 0.0, %v286
    %v288 = vpop.f32.mrf.mxu0
    %v289 = vadd.f32 0.0, %v288
    %290 = vmatprep.mubr.f32.mxu0 0.0
    %291 = vmatmul.mubr.f32.gmra.mxu0 %v155
    %v292 = vpop.f32.mrf.mxu0
    %v293 = vadd.f32 0.0, %v292
    %v294 = vpop.f32.mrf.mxu0
    %v295 = vadd.f32 0.0, %v294
    %296 = vmatprep.mubr.f32.mxu0 0.0
    %297 = vmatmul.mubr.f32.gmra.mxu0 %v156
    %v298 = vpop.f32.mrf.mxu0
    %v299 = vadd.f32 0.0, %v298
    %v300 = vpop.f32.mrf.mxu0
    %v301 = vadd.f32 0.0, %v300
    %302 = vmatprep.mubr.f32.mxu0 0.0
    %303 = vmatmul.mubr.f32.gmra.mxu0 %v157
    %v304 = vpop.f32.mrf.mxu0
    %v305 = vadd.f32 0.0, %v304
    %v306 = vpop.f32.mrf.mxu0
    %v307 = vadd.f32 0.0, %v306
    %308 = vmatprep.mubr.f32.mxu0 0.0
    %309 = vmatmul.mubr.f32.gmra.mxu0 %v158
    %v310 = vpop.f32.mrf.mxu0
    %v311 = vadd.f32 0.0, %v310
    %v312 = vpop.f32.mrf.mxu0
    %v313 = vadd.f32 0.0, %v312
    %314 = vmatprep.mubr.f32.mxu0 0.0
    %315 = vmatmul.mubr.f32.gmra.mxu0 %v159
    %v316 = vpop.f32.mrf.mxu0
    %v317 = vadd.f32 0.0, %v316
    %v318 = vpop.f32.mrf.mxu0
    %v319 = vadd.f32 0.0, %v318
    %320 = vdwg.mxu0
    %321 = vmatprep.subr.mxu0 0.0
    %322 = vmatpush1.msra.mxu0 %v207
    %323 = vmatprep.subr.mxu0 0.0
    %324 = vmatpush1.msra.mxu0 %v204
    %325 = vmatprep.subr.mxu0 0.0
    %326 = vmatpush1.msra.mxu0 %v201
    %327 = vmatprep.subr.mxu0 0.0
    %328 = vmatpush1.msra.mxu0 %v198
    %329 = vmatprep.subr.mxu0 0.0
    %330 = vmatpush1.msra.mxu0 %v195
    %331 = vmatprep.subr.mxu0 0.0
    %332 = vmatpush1.msra.mxu0 %v192
    %333 = vmatprep.subr.mxu0 0.0
    %334 = vmatpush1.msra.mxu0 %v189
    %335 = vmatprep.subr.mxu0 0.0
    %336 = vmatpush1.msra.mxu0 %v186
    %337 = vmatprep.subr.mxu0 0.0
    %338 = vmatpush1.msra.mxu0 %v183
    %339 = vmatprep.subr.mxu0 0.0
    %340 = vmatpush1.msra.mxu0 %v180
    %341 = vmatprep.subr.mxu0 0.0
    %342 = vmatpush1.msra.mxu0 %v177
    %343 = vmatprep.subr.mxu0 0.0
    %344 = vmatpush1.msra.mxu0 %v174
    %345 = vmatprep.subr.mxu0 0.0
    %346 = vmatpush1.msra.mxu0 %v171
    %347 = vmatprep.subr.mxu0 0.0
    %348 = vmatpush1.msra.mxu0 %v168
    %349 = vmatprep.subr.mxu0 0.0
    %350 = vmatpush1.msra.mxu0 %v165
    %351 = vmatprep.subr.mxu0 0.0
    %352 = vmatpush1.msra.mxu0 %v162
    %353 = vmatprep.subr.mxu0 0.0
    %354 = vmatpush2.msra.mxu0 0.0
    %355 = vmatprep.subr.mxu0 0.0
    %356 = vmatpush2.msra.mxu0 0.0
    %357 = vmatprep.subr.mxu0 0.0
    %358 = vmatpush2.msra.mxu0 0.0
    %359 = vmatprep.subr.mxu0 0.0
    %360 = vmatpush2.msra.mxu0 0.0
    %361 = vmatprep.subr.mxu0 0.0
    %362 = vmatpush2.msra.mxu0 0.0
    %363 = vmatprep.subr.mxu0 0.0
    %364 = vmatpush2.msra.mxu0 0.0
    %365 = vmatprep.subr.mxu0 0.0
    %366 = vmatpush2.msra.mxu0 0.0
    %367 = vmatprep.subr.mxu0 0.0
    %368 = vmatpush2.msra.mxu0 0.0
    %369 = vmatprep.subr.mxu0 0.0
    %370 = vmatpush2.msra.mxu0 0.0
    %371 = vmatprep.subr.mxu0 0.0
    %372 = vmatpush2.msra.mxu0 0.0
    %373 = vmatprep.subr.mxu0 0.0
    %374 = vmatpush2.msra.mxu0 0.0
    %375 = vmatprep.subr.mxu0 0.0
    %376 = vmatpush2.msra.mxu0 0.0
    %377 = vmatprep.subr.mxu0 0.0
    %378 = vmatpush2.msra.mxu0 0.0
    %379 = vmatprep.subr.mxu0 0.0
    %380 = vmatpush2.msra.mxu0 0.0
    %381 = vmatprep.subr.mxu0 0.0
    %382 = vmatpush2.msra.mxu0 0.0
    %383 = vmatprep.subr.mxu0 0.0
    %384 = vmatpush2.msra.mxu0 0.0
    %385 = vmatprep.mubr.f32.mxu0 0.0
    %386 = vmatmul.mubr.f32.gmra.mxu0 %v152
    %v387 = vpop.f32.mrf.mxu0
    %v388 = vadd.f32 0.0, %v387
    %v389 = vpop.f32.mrf.mxu0
    %390 = vmatprep.mubr.f32.mxu0 0.0
    %391 = vmatmul.mubr.f32.gmra.mxu0 %v153
    %v392 = vpop.f32.mrf.mxu0
    %v393 = vadd.f32 0.0, %v392
    %v394 = vpop.f32.mrf.mxu0
    %395 = vmatprep.mubr.f32.mxu0 0.0
    %396 = vmatmul.mubr.f32.gmra.mxu0 %v154
    %v397 = vpop.f32.mrf.mxu0
    %v398 = vadd.f32 0.0, %v397
    %v399 = vpop.f32.mrf.mxu0
    %400 = vmatprep.mubr.f32.mxu0 0.0
    %401 = vmatmul.mubr.f32.gmra.mxu0 %v155
    %v402 = vpop.f32.mrf.mxu0
    %v403 = vadd.f32 0.0, %v402
    %v404 = vpop.f32.mrf.mxu0
    %405 = vmatprep.mubr.f32.mxu0 0.0
    %406 = vmatmul.mubr.f32.gmra.mxu0 %v156
    %v407 = vpop.f32.mrf.mxu0
    %v408 = vadd.f32 0.0, %v407
    %v409 = vpop.f32.mrf.mxu0
    %410 = vmatprep.mubr.f32.mxu0 0.0
    %411 = vmatmul.mubr.f32.gmra.mxu0 %v157
    %v412 = vpop.f32.mrf.mxu0
    %v413 = vadd.f32 0.0, %v412
    %v414 = vpop.f32.mrf.mxu0
    %415 = vmatprep.mubr.f32.mxu0 0.0
    %416 = vmatmul.mubr.f32.gmra.mxu0 %v158
    %v417 = vpop.f32.mrf.mxu0
    %v418 = vadd.f32 0.0, %v417
    %v419 = vpop.f32.mrf.mxu0
    %420 = vmatprep.mubr.f32.mxu0 0.0
    %421 = vmatmul.mubr.f32.gmra.mxu0 %v159
    %v422 = vpop.f32.mrf.mxu0
    %v423 = vadd.f32 0.0, %v422
    %v424 = vpop.f32.mrf.mxu0
    %425 = vdwg.mxu0
    %426 = vst [vmem:[#allocation2] sm:$0xff] %v275
    %427 = vst [vmem:[#allocation2 + $0x8] sm:$0xff] %v277
    %428 = vst [vmem:[#allocation2 + $0x10] sm:$0xff] %v388
    %429 = vst [vmem:[#allocation2 + $0x18] sm:$0xff] %v281
    %430 = vst [vmem:[#allocation2 + $0x20] sm:$0xff] %v283
    %431 = vst [vmem:[#allocation2 + $0x28] sm:$0xff] %v393
    %432 = vst [vmem:[#allocation2 + $0x30] sm:$0xff] %v287
    %433 = vst [vmem:[#allocation2 + $0x38] sm:$0xff] %v289
    %434 = vst [vmem:[#allocation2 + $0x40] sm:$0xff] %v398
    %435 = vst [vmem:[#allocation2 + $0x48] sm:$0xff] %v293
    %436 = vst [vmem:[#allocation2 + $0x50] sm:$0xff] %v295
    %437 = vst [vmem:[#allocation2 + $0x58] sm:$0xff] %v403
    %438 = vst [vmem:[#allocation2 + $0x60] sm:$0xff] %v299
    %439 = vst [vmem:[#allocation2 + $0x68] sm:$0xff] %v301
    %440 = vst [vmem:[#allocation2 + $0x70] sm:$0xff] %v408
    %441 = vst [vmem:[#allocation2 + $0x78] sm:$0xff] %v305
    %442 = vst [vmem:[#allocation2 + $0x80] sm:$0xff] %v307
    %443 = vst [vmem:[#allocation2 + $0x88] sm:$0xff] %v413
    %444 = vst [vmem:[#allocation2 + $0x90] sm:$0xff] %v311
    %445 = vst [vmem:[#allocation2 + $0x98] sm:$0xff] %v313
    %446 = vst [vmem:[#allocation2 + $0xa0] sm:$0xff] %v418
    %447 = vst [vmem:[#allocation2 + $0xa8] sm:$0xff] %v317
    %448 = vst [vmem:[#allocation2 + $0xb0] sm:$0xff] %v319
    %449 = vst [vmem:[#allocation2 + $0xb8] sm:$0xff] %v423
    %v450 = vld [vmem:[#allocation6] sm:$0xff]
    %v451 = vld [vmem:[#allocation11] sm:$0xff]
    %v452 = vld [vmem:[#allocation11 + $0x8] sm:$0xff]
    %v453 = vld [vmem:[#allocation11 + $0x10] sm:$0xff]
    %v454 = vld [vmem:[#allocation11 + $0x18] sm:$0xff]
    %v455 = vld [vmem:[#allocation11 + $0x20] sm:$0xff]
    %v456 = vld [vmem:[#allocation11 + $0x28] sm:$0xff]
    %v457 = vld [vmem:[#allocation11 + $0x30] sm:$0xff]
    %v458 = vld [vmem:[#allocation11 + $0x38] sm:$0xff]
    %v459 = vld [vmem:[#allocation11 + $0x40] sm:$0xff]
    %v460 = vld [vmem:[#allocation11 + $0x48] sm:$0xff]
    %v461 = vld [vmem:[#allocation11 + $0x50] sm:$0xff]
    %v462 = vld [vmem:[#allocation11 + $0x58] sm:$0xff]
    %v463 = vld [vmem:[#allocation11 + $0x60] sm:$0xff]
    %v464 = vld [vmem:[#allocation11 + $0x68] sm:$0xff]
    %v465 = vld [vmem:[#allocation11 + $0x70] sm:$0xff]
    %v466 = vld [vmem:[#allocation11 + $0x78] sm:$0xff]
    %v467 = vld [vmem:[#allocation11 + $0x80] sm:$0xff]
    %v468 = vld [vmem:[#allocation11 + $0x88] sm:$0xff]
    %v469 = vld [vmem:[#allocation11 + $0x90] sm:$0xff]
    %v470 = vld [vmem:[#allocation11 + $0x98] sm:$0xff]
    %v471 = vld [vmem:[#allocation11 + $0xa0] sm:$0xff]
    %v472 = vld [vmem:[#allocation11 + $0xa8] sm:$0xff]
    %v473 = vld [vmem:[#allocation11 + $0xb0] sm:$0xff]
    %v474 = vld [vmem:[#allocation11 + $0xb8] sm:$0xff]
    %v475 = vld [vmem:[#allocation11 + $0xc0] sm:$0xff]
    %v476 = vld [vmem:[#allocation11 + $0xc8] sm:$0xff]
    %v477 = vld [vmem:[#allocation11 + $0xd0] sm:$0xff]
    %v478 = vld [vmem:[#allocation11 + $0xd8] sm:$0xff]
    %v479 = vld [vmem:[#allocation11 + $0xe0] sm:$0xff]
    %v480 = vld [vmem:[#allocation11 + $0xe8] sm:$0xff]
    %v481 = vld [vmem:[#allocation11 + $0xf0] sm:$0xff]
    %v482 = vld [vmem:[#allocation11 + $0xf8] sm:$0xff]
    %v483 = vld [vmem:[#allocation11 + $0x100] sm:$0xff]
    %v484 = vld [vmem:[#allocation11 + $0x108] sm:$0xff]
    %v485 = vld [vmem:[#allocation11 + $0x110] sm:$0xff]
    %v486 = vld [vmem:[#allocation11 + $0x118] sm:$0xff]
    %v487 = vld [vmem:[#allocation11 + $0x120] sm:$0xff]
    %v488 = vld [vmem:[#allocation11 + $0x128] sm:$0xff]
    %v489 = vld [vmem:[#allocation11 + $0x130] sm:$0xff]
    %v490 = vld [vmem:[#allocation11 + $0x138] sm:$0xff]
    %v491 = vld [vmem:[#allocation11 + $0x140] sm:$0xff]
    %v492 = vld [vmem:[#allocation11 + $0x148] sm:$0xff]
    %v493 = vld [vmem:[#allocation11 + $0x150] sm:$0xff]
    %v494 = vld [vmem:[#allocation11 + $0x158] sm:$0xff]
    %v495 = vld [vmem:[#allocation11 + $0x160] sm:$0xff]
    %v496 = vld [vmem:[#allocation11 + $0x168] sm:$0xff]
    %v497 = vld [vmem:[#allocation11 + $0x170] sm:$0xff]
    %v498 = vld [vmem:[#allocation11 + $0x178] sm:$0xff]
    %v499 = vld [vmem:[%s6] sm:$0x7]
    %v501 = vlaneseq
    %v502 = vshrl.u32 %v501, 7
    %v503 = vsub.s32 0, %v502
    %v504 = vrot.slane %v499, %v503
    %v505 = vlaneseq
    %v506 = vshrl.u32 %v505, 7
    %v507 = vsub.s32 1, %v506
    %v508 = vrot.slane %v499, %v507
    %v509 = vlaneseq
    %v510 = vshrl.u32 %v509, 7
    %v511 = vsub.s32 2, %v510
    %v512 = vrot.slane %v499, %v511
    %516 = vmatprep.subr.mxu0 %v497
    %517 = vmatpush1.msra.mxu0 %v496
    %518 = vmatprep.subr.mxu0 %v494
    %519 = vmatpush1.msra.mxu0 %v493
    %520 = vmatprep.subr.mxu0 %v491
    %521 = vmatpush1.msra.mxu0 %v490
    %522 = vmatprep.subr.mxu0 %v488
    %523 = vmatpush1.msra.mxu0 %v487
    %524 = vmatprep.subr.mxu0 %v485
    %525 = vmatpush1.msra.mxu0 %v484
    %526 = vmatprep.subr.mxu0 %v482
    %527 = vmatpush1.msra.mxu0 %v481
    %528 = vmatprep.subr.mxu0 %v479
    %529 = vmatpush1.msra.mxu0 %v478
    %530 = vmatprep.subr.mxu0 %v476
    %531 = vmatpush1.msra.mxu0 %v475
    %532 = vmatprep.subr.mxu0 %v473
    %533 = vmatpush1.msra.mxu0 %v472
    %534 = vmatprep.subr.mxu0 %v470
    %535 = vmatpush1.msra.mxu0 %v469
    %536 = vmatprep.subr.mxu0 %v467
    %537 = vmatpush1.msra.mxu0 %v466
    %538 = vmatprep.subr.mxu0 %v464
    %539 = vmatpush1.msra.mxu0 %v463
    %540 = vmatprep.subr.mxu0 %v461
    %541 = vmatpush1.msra.mxu0 %v460
    %542 = vmatprep.subr.mxu0 %v458
    %543 = vmatpush1.msra.mxu0 %v457
    %544 = vmatprep.subr.mxu0 %v455
    %545 = vmatpush1.msra.mxu0 %v454
    %546 = vmatprep.subr.mxu0 %v452
    %547 = vmatpush1.msra.mxu0 %v451
    %548 = vmatprep.subr.mxu0 0.0
    %549 = vmatpush2.msra.mxu0 0.0
    %550 = vmatprep.subr.mxu0 0.0
    %551 = vmatpush2.msra.mxu0 0.0
    %552 = vmatprep.subr.mxu0 0.0
    %553 = vmatpush2.msra.mxu0 0.0
    %554 = vmatprep.subr.mxu0 0.0
    %555 = vmatpush2.msra.mxu0 0.0
    %556 = vmatprep.subr.mxu0 0.0
    %557 = vmatpush2.msra.mxu0 0.0
    %558 = vmatprep.subr.mxu0 0.0
    %559 = vmatpush2.msra.mxu0 0.0
    %560 = vmatprep.subr.mxu0 0.0
    %561 = vmatpush2.msra.mxu0 0.0
    %562 = vmatprep.subr.mxu0 0.0
    %563 = vmatpush2.msra.mxu0 0.0
    %564 = vmatprep.subr.mxu0 0.0
    %565 = vmatpush2.msra.mxu0 0.0
    %566 = vmatprep.subr.mxu0 0.0
    %567 = vmatpush2.msra.mxu0 0.0
    %568 = vmatprep.subr.mxu0 0.0
    %569 = vmatpush2.msra.mxu0 0.0
    %570 = vmatprep.subr.mxu0 0.0
    %571 = vmatpush2.msra.mxu0 0.0
    %572 = vmatprep.subr.mxu0 0.0
    %573 = vmatpush2.msra.mxu0 0.0
    %574 = vmatprep.subr.mxu0 0.0
    %575 = vmatpush2.msra.mxu0 0.0
    %576 = vmatprep.subr.mxu0 0.0
    %577 = vmatpush2.msra.mxu0 0.0
    %578 = vmatprep.subr.mxu0 0.0
    %579 = vmatpush2.msra.mxu0 0.0
    %580 = vmatprep.mubr.f32.mxu0 0.0
    %581 = vmatmul.mubr.f32.gmra.mxu0 %v450
    %v582 = vpop.f32.mrf.mxu0
    %v583 = vadd.f32 %v504, %v582
    %v584 = vpop.f32.mrf.mxu0
    %v585 = vadd.f32 %v508, %v584
    %586 = vdwg.mxu0
    %587 = vmatprep.subr.mxu0 0.0
    %588 = vmatpush1.msra.mxu0 %v498
    %589 = vmatprep.subr.mxu0 0.0
    %590 = vmatpush1.msra.mxu0 %v495
    %591 = vmatprep.subr.mxu0 0.0
    %592 = vmatpush1.msra.mxu0 %v492
    %593 = vmatprep.subr.mxu0 0.0
    %594 = vmatpush1.msra.mxu0 %v489
    %595 = vmatprep.subr.mxu0 0.0
    %596 = vmatpush1.msra.mxu0 %v486
    %597 = vmatprep.subr.mxu0 0.0
    %598 = vmatpush1.msra.mxu0 %v483
    %599 = vmatprep.subr.mxu0 0.0
    %600 = vmatpush1.msra.mxu0 %v480
    %601 = vmatprep.subr.mxu0 0.0
    %602 = vmatpush1.msra.mxu0 %v477
    %603 = vmatprep.subr.mxu0 0.0
    %604 = vmatpush1.msra.mxu0 %v474
    %605 = vmatprep.subr.mxu0 0.0
    %606 = vmatpush1.msra.mxu0 %v471
    %607 = vmatprep.subr.mxu0 0.0
    %608 = vmatpush1.msra.mxu0 %v468
    %609 = vmatprep.subr.mxu0 0.0
    %610 = vmatpush1.msra.mxu0 %v465
    %611 = vmatprep.subr.mxu0 0.0
    %612 = vmatpush1.msra.mxu0 %v462
    %613 = vmatprep.subr.mxu0 0.0
    %614 = vmatpush1.msra.mxu0 %v459
    %615 = vmatprep.subr.mxu0 0.0
    %616 = vmatpush1.msra.mxu0 %v456
    %617 = vmatprep.subr.mxu0 0.0
    %618 = vmatpush1.msra.mxu0 %v453
    %619 = vmatprep.subr.mxu0 0.0
    %620 = vmatpush2.msra.mxu0 0.0
    %621 = vmatprep.subr.mxu0 0.0
    %622 = vmatpush2.msra.mxu0 0.0
    %623 = vmatprep.subr.mxu0 0.0
    %624 = vmatpush2.msra.mxu0 0.0
    %625 = vmatprep.subr.mxu0 0.0
    %626 = vmatpush2.msra.mxu0 0.0
    %627 = vmatprep.subr.mxu0 0.0
    %628 = vmatpush2.msra.mxu0 0.0
    %629 = vmatprep.subr.mxu0 0.0
    %630 = vmatpush2.msra.mxu0 0.0
    %631 = vmatprep.subr.mxu0 0.0
    %632 = vmatpush2.msra.mxu0 0.0
    %633 = vmatprep.subr.mxu0 0.0
    %634 = vmatpush2.msra.mxu0 0.0
    %635 = vmatprep.subr.mxu0 0.0
    %636 = vmatpush2.msra.mxu0 0.0
    %637 = vmatprep.subr.mxu0 0.0
    %638 = vmatpush2.msra.mxu0 0.0
    %639 = vmatprep.subr.mxu0 0.0
    %640 = vmatpush2.msra.mxu0 0.0
    %641 = vmatprep.subr.mxu0 0.0
    %642 = vmatpush2.msra.mxu0 0.0
    %643 = vmatprep.subr.mxu0 0.0
    %644 = vmatpush2.msra.mxu0 0.0
    %645 = vmatprep.subr.mxu0 0.0
    %646 = vmatpush2.msra.mxu0 0.0
    %647 = vmatprep.subr.mxu0 0.0
    %648 = vmatpush2.msra.mxu0 0.0
    %649 = vmatprep.subr.mxu0 0.0
    %650 = vmatpush2.msra.mxu0 0.0
    %651 = vmatprep.mubr.f32.mxu0 0.0
    %652 = vmatmul.mubr.f32.gmra.mxu0 %v450
    %v653 = vpop.f32.mrf.mxu0
    %v654 = vadd.f32 %v512, %v653
    %v655 = vpop.f32.mrf.mxu0
    %656 = vdwg.mxu0
    %v657 = vld [vmem:[%s10] sm:$0x7]
    %v659 = vlaneseq
    %v660 = vshrl.u32 %v659, 7
    %v661 = vsub.s32 0, %v660
    %v662 = vrot.slane %v657, %v661
    %v663 = vlaneseq
    %v664 = vshrl.u32 %v663, 7
    %v665 = vsub.s32 1, %v664
    %v666 = vrot.slane %v657, %v665
    %v667 = vlaneseq
    %v668 = vshrl.u32 %v667, 7
    %v669 = vsub.s32 2, %v668
    %v670 = vrot.slane %v657, %v669
    %v674 = vld [vmem:[%s7] sm:$0x1]
    %v676 = vlaneseq
    %v677 = vshrl.u32 %v676, 7
    %v678 = vsub.s32 0, %v677
    %v679 = vrot.slane %v674, %v678
    %v681 = vld [vmem:[%s11] sm:$0x1]
    %v683 = vlaneseq
    %v684 = vshrl.u32 %v683, 7
    %v685 = vsub.s32 0, %v684
    %v686 = vrot.slane %v681, %v685
    %v688 = vld [vmem:[#allocation8] sm:$0xff]
    %v689 = vld [vmem:[#allocation2] sm:$0xff]
    %v690 = vld [vmem:[#allocation2 + $0x8] sm:$0xff]
    %v691 = vld [vmem:[#allocation2 + $0x10] sm:$0xff]
    %v692 = vadd.f32 %v689, %v583
    %v693 = vadd.f32 %v690, %v585
    %v694 = vadd.f32 %v691, %v654
    %v695 = vld [vmem:[#allocation12] sm:$0xff]
    %v696 = vld [vmem:[#allocation12 + $0x8] sm:$0xff]
    %v697 = vld [vmem:[#allocation12 + $0x10] sm:$0xff]
    %v698 = vld [vmem:[#allocation12 + $0x18] sm:$0xff]
    %v699 = vld [vmem:[#allocation12 + $0x20] sm:$0xff]
    %v700 = vld [vmem:[#allocation12 + $0x28] sm:$0xff]
    %v701 = vld [vmem:[#allocation12 + $0x30] sm:$0xff]
    %v702 = vld [vmem:[#allocation12 + $0x38] sm:$0xff]
    %v703 = vld [vmem:[#allocation12 + $0x40] sm:$0xff]
    %v704 = vld [vmem:[#allocation12 + $0x48] sm:$0xff]
    %v705 = vld [vmem:[#allocation12 + $0x50] sm:$0xff]
    %v706 = vld [vmem:[#allocation12 + $0x58] sm:$0xff]
    %v707 = vld [vmem:[#allocation12 + $0x60] sm:$0xff]
    %v708 = vld [vmem:[#allocation12 + $0x68] sm:$0xff]
    %v709 = vld [vmem:[#allocation12 + $0x70] sm:$0xff]
    %v710 = vld [vmem:[#allocation12 + $0x78] sm:$0xff]
    %v711 = vld [vmem:[#allocation12 + $0x80] sm:$0xff]
    %v712 = vld [vmem:[#allocation12 + $0x88] sm:$0xff]
    %v713 = vld [vmem:[#allocation12 + $0x90] sm:$0xff]
    %v714 = vld [vmem:[#allocation12 + $0x98] sm:$0xff]
    %v715 = vld [vmem:[#allocation12 + $0xa0] sm:$0xff]
    %v716 = vld [vmem:[#allocation12 + $0xa8] sm:$0xff]
    %v717 = vld [vmem:[#allocation12 + $0xb0] sm:$0xff]
    %v718 = vld [vmem:[#allocation12 + $0xb8] sm:$0xff]
    %v719 = vld [vmem:[#allocation12 + $0xc0] sm:$0xff]
    %v720 = vld [vmem:[#allocation12 + $0xc8] sm:$0xff]
    %v721 = vld [vmem:[#allocation12 + $0xd0] sm:$0xff]
    %v722 = vld [vmem:[#allocation12 + $0xd8] sm:$0xff]
    %v723 = vld [vmem:[#allocation12 + $0xe0] sm:$0xff]
    %v724 = vld [vmem:[#allocation12 + $0xe8] sm:$0xff]
    %v725 = vld [vmem:[#allocation12 + $0xf0] sm:$0xff]
    %v726 = vld [vmem:[#allocation12 + $0xf8] sm:$0xff]
    %v727 = vld [vmem:[#allocation12 + $0x100] sm:$0xff]
    %v728 = vld [vmem:[#allocation12 + $0x108] sm:$0xff]
    %v729 = vld [vmem:[#allocation12 + $0x110] sm:$0xff]
    %v730 = vld [vmem:[#allocation12 + $0x118] sm:$0xff]
    %v731 = vld [vmem:[#allocation12 + $0x120] sm:$0xff]
    %v732 = vld [vmem:[#allocation12 + $0x128] sm:$0xff]
    %v733 = vld [vmem:[#allocation12 + $0x130] sm:$0xff]
    %v734 = vld [vmem:[#allocation12 + $0x138] sm:$0xff]
    %v735 = vld [vmem:[#allocation12 + $0x140] sm:$0xff]
    %v736 = vld [vmem:[#allocation12 + $0x148] sm:$0xff]
    %v737 = vld [vmem:[#allocation12 + $0x150] sm:$0xff]
    %v738 = vld [vmem:[#allocation12 + $0x158] sm:$0xff]
    %v739 = vld [vmem:[#allocation12 + $0x160] sm:$0xff]
    %v740 = vld [vmem:[#allocation12 + $0x168] sm:$0xff]
    %v741 = vld [vmem:[#allocation12 + $0x170] sm:$0xff]
    %v742 = vld [vmem:[#allocation12 + $0x178] sm:$0xff]
    %743 = vmatprep.subr.mxu0 %v741
    %744 = vmatpush1.msra.mxu0 %v740
    %745 = vmatprep.subr.mxu0 %v738
    %746 = vmatpush1.msra.mxu0 %v737
    %747 = vmatprep.subr.mxu0 %v735
    %748 = vmatpush1.msra.mxu0 %v734
    %749 = vmatprep.subr.mxu0 %v732
    %750 = vmatpush1.msra.mxu0 %v731
    %751 = vmatprep.subr.mxu0 %v729
    %752 = vmatpush1.msra.mxu0 %v728
    %753 = vmatprep.subr.mxu0 %v726
    %754 = vmatpush1.msra.mxu0 %v725
    %755 = vmatprep.subr.mxu0 %v723
    %756 = vmatpush1.msra.mxu0 %v722
    %757 = vmatprep.subr.mxu0 %v720
    %758 = vmatpush1.msra.mxu0 %v719
    %759 = vmatprep.subr.mxu0 %v717
    %760 = vmatpush1.msra.mxu0 %v716
    %761 = vmatprep.subr.mxu0 %v714
    %762 = vmatpush1.msra.mxu0 %v713
    %763 = vmatprep.subr.mxu0 %v711
    %764 = vmatpush1.msra.mxu0 %v710
    %765 = vmatprep.subr.mxu0 %v708
    %766 = vmatpush1.msra.mxu0 %v707
    %767 = vmatprep.subr.mxu0 %v705
    %768 = vmatpush1.msra.mxu0 %v704
    %769 = vmatprep.subr.mxu0 %v702
    %770 = vmatpush1.msra.mxu0 %v701
    %771 = vmatprep.subr.mxu0 %v699
    %772 = vmatpush1.msra.mxu0 %v698
    %773 = vmatprep.subr.mxu0 %v696
    %774 = vmatpush1.msra.mxu0 %v695
    %775 = vmatprep.subr.mxu0 0.0
    %776 = vmatpush2.msra.mxu0 0.0
    %777 = vmatprep.subr.mxu0 0.0
    %778 = vmatpush2.msra.mxu0 0.0
    %779 = vmatprep.subr.mxu0 0.0
    %780 = vmatpush2.msra.mxu0 0.0
    %781 = vmatprep.subr.mxu0 0.0
    %782 = vmatpush2.msra.mxu0 0.0
    %783 = vmatprep.subr.mxu0 0.0
    %784 = vmatpush2.msra.mxu0 0.0
    %785 = vmatprep.subr.mxu0 0.0
    %786 = vmatpush2.msra.mxu0 0.0
    %787 = vmatprep.subr.mxu0 0.0
    %788 = vmatpush2.msra.mxu0 0.0
    %789 = vmatprep.subr.mxu0 0.0
    %790 = vmatpush2.msra.mxu0 0.0
    %791 = vmatprep.subr.mxu0 0.0
    %792 = vmatpush2.msra.mxu0 0.0
    %793 = vmatprep.subr.mxu0 0.0
    %794 = vmatpush2.msra.mxu0 0.0
    %795 = vmatprep.subr.mxu0 0.0
    %796 = vmatpush2.msra.mxu0 0.0
    %797 = vmatprep.subr.mxu0 0.0
    %798 = vmatpush2.msra.mxu0 0.0
    %799 = vmatprep.subr.mxu0 0.0
    %800 = vmatpush2.msra.mxu0 0.0
    %801 = vmatprep.subr.mxu0 0.0
    %802 = vmatpush2.msra.mxu0 0.0
    %803 = vmatprep.subr.mxu0 0.0
    %804 = vmatpush2.msra.mxu0 0.0
    %805 = vmatprep.subr.mxu0 0.0
    %806 = vmatpush2.msra.mxu0 0.0
    %807 = vmatprep.mubr.f32.mxu0 0.0
    %808 = vmatmul.mubr.f32.gmra.mxu0 %v688
    %v809 = vpop.f32.mrf.mxu0
    %v810 = vadd.f32 0.0, %v809
    %v811 = vpop.f32.mrf.mxu0
    %v812 = vadd.f32 0.0, %v811
    %813 = vdwg.mxu0
    %814 = vmatprep.subr.mxu0 0.0
    %815 = vmatpush1.msra.mxu0 %v742
    %816 = vmatprep.subr.mxu0 0.0
    %817 = vmatpush1.msra.mxu0 %v739
    %818 = vmatprep.subr.mxu0 0.0
    %819 = vmatpush1.msra.mxu0 %v736
    %820 = vmatprep.subr.mxu0 0.0
    %821 = vmatpush1.msra.mxu0 %v733
    %822 = vmatprep.subr.mxu0 0.0
    %823 = vmatpush1.msra.mxu0 %v730
    %824 = vmatprep.subr.mxu0 0.0
    %825 = vmatpush1.msra.mxu0 %v727
    %826 = vmatprep.subr.mxu0 0.0
    %827 = vmatpush1.msra.mxu0 %v724
    %828 = vmatprep.subr.mxu0 0.0
    %829 = vmatpush1.msra.mxu0 %v721
    %830 = vmatprep.subr.mxu0 0.0
    %831 = vmatpush1.msra.mxu0 %v718
    %832 = vmatprep.subr.mxu0 0.0
    %833 = vmatpush1.msra.mxu0 %v715
    %834 = vmatprep.subr.mxu0 0.0
    %835 = vmatpush1.msra.mxu0 %v712
    %836 = vmatprep.subr.mxu0 0.0
    %837 = vmatpush1.msra.mxu0 %v709
    %838 = vmatprep.subr.mxu0 0.0
    %839 = vmatpush1.msra.mxu0 %v706
    %840 = vmatprep.subr.mxu0 0.0
    %841 = vmatpush1.msra.mxu0 %v703
    %842 = vmatprep.subr.mxu0 0.0
    %843 = vmatpush1.msra.mxu0 %v700
    %844 = vmatprep.subr.mxu0 0.0
    %845 = vmatpush1.msra.mxu0 %v697
    %846 = vmatprep.subr.mxu0 0.0
    %847 = vmatpush2.msra.mxu0 0.0
    %848 = vmatprep.subr.mxu0 0.0
    %849 = vmatpush2.msra.mxu0 0.0
    %850 = vmatprep.subr.mxu0 0.0
    %851 = vmatpush2.msra.mxu0 0.0
    %852 = vmatprep.subr.mxu0 0.0
    %853 = vmatpush2.msra.mxu0 0.0
    %854 = vmatprep.subr.mxu0 0.0
    %855 = vmatpush2.msra.mxu0 0.0
    %856 = vmatprep.subr.mxu0 0.0
    %857 = vmatpush2.msra.mxu0 0.0
    %858 = vmatprep.subr.mxu0 0.0
    %859 = vmatpush2.msra.mxu0 0.0
    %860 = vmatprep.subr.mxu0 0.0
    %861 = vmatpush2.msra.mxu0 0.0
    %862 = vmatprep.subr.mxu0 0.0
    %863 = vmatpush2.msra.mxu0 0.0
    %864 = vmatprep.subr.mxu0 0.0
    %865 = vmatpush2.msra.mxu0 0.0
    %866 = vmatprep.subr.mxu0 0.0
    %867 = vmatpush2.msra.mxu0 0.0
    %868 = vmatprep.subr.mxu0 0.0
    %869 = vmatpush2.msra.mxu0 0.0
    %870 = vmatprep.subr.mxu0 0.0
    %871 = vmatpush2.msra.mxu0 0.0
    %872 = vmatprep.subr.mxu0 0.0
    %873 = vmatpush2.msra.mxu0 0.0
    %874 = vmatprep.subr.mxu0 0.0
    %875 = vmatpush2.msra.mxu0 0.0
    %876 = vmatprep.subr.mxu0 0.0
    %877 = vmatpush2.msra.mxu0 0.0
    %878 = vmatprep.mubr.f32.mxu0 0.0
    %879 = vmatmul.mubr.f32.gmra.mxu0 %v688
    %v880 = vpop.f32.mrf.mxu0
    %v881 = vadd.f32 0.0, %v880
    %v882 = vpop.f32.mrf.mxu0
    %883 = vdwg.mxu0
    %v884 = vadd.f32 %v692, %v810
    %v885 = vxor.u32 %v884, 2147483648
    %v886 = vmul.f32 %v885, 1.442695
    %v887 = vpow.pop %v886
    %v888 = vadd.f32 %v887, 1.0
    %v889 = vrcp.pop %v888
    %v890 = vmul.f32 1.0, %v889
    %v891 = vadd.f32 %v693, %v812
    %v892 = vxor.u32 %v891, 2147483648
    %v893 = vmul.f32 %v892, 1.442695
    %v894 = vpow.pop %v893
    %v895 = vadd.f32 %v894, 1.0
    %v896 = vrcp.pop %v895
    %v897 = vmul.f32 1.0, %v896
    %v898 = vadd.f32 %v881, %v679
    %v899 = vmul.f32 %v890, %v898
    %v900 = vadd.f32 %v694, %v899
    %v901 = vtanh.pop %v900
    %v902 = vsub.f32 %v688, %v901
    %v903 = vmul.f32 %v897, %v902
    %v904 = vadd.f32 %v901, %v903
    %s905 = scalar_lea.vmem [#allocation8], 8
    %v906 = vld [vmem:[%s905] sm:$0xff]
    %v907 = vld [vmem:[#allocation14] sm:$0xff]
    %v908 = vld [vmem:[#allocation14 + $0x8] sm:$0xff]
    %v909 = vld [vmem:[#allocation14 + $0x10] sm:$0xff]
    %v910 = vld [vmem:[#allocation14 + $0x18] sm:$0xff]
    %v911 = vld [vmem:[#allocation14 + $0x20] sm:$0xff]
    %v912 = vld [vmem:[#allocation14 + $0x28] sm:$0xff]
    %v913 = vld [vmem:[#allocation14 + $0x30] sm:$0xff]
    %v914 = vld [vmem:[#allocation14 + $0x38] sm:$0xff]
    %v915 = vld [vmem:[#allocation14 + $0x40] sm:$0xff]
    %v916 = vld [vmem:[#allocation14 + $0x48] sm:$0xff]
    %v917 = vld [vmem:[#allocation14 + $0x50] sm:$0xff]
    %v918 = vld [vmem:[#allocation14 + $0x58] sm:$0xff]
    %v919 = vld [vmem:[#allocation14 + $0x60] sm:$0xff]
    %v920 = vld [vmem:[#allocation14 + $0x68] sm:$0xff]
    %v921 = vld [vmem:[#allocation14 + $0x70] sm:$0xff]
    %v922 = vld [vmem:[#allocation14 + $0x78] sm:$0xff]
    %v923 = vld [vmem:[#allocation14 + $0x80] sm:$0xff]
    %v924 = vld [vmem:[#allocation14 + $0x88] sm:$0xff]
    %v925 = vld [vmem:[#allocation14 + $0x90] sm:$0xff]
    %v926 = vld [vmem:[#allocation14 + $0x98] sm:$0xff]
    %v927 = vld [vmem:[#allocation14 + $0xa0] sm:$0xff]
    %v928 = vld [vmem:[#allocation14 + $0xa8] sm:$0xff]
    %v929 = vld [vmem:[#allocation14 + $0xb0] sm:$0xff]
    %v930 = vld [vmem:[#allocation14 + $0xb8] sm:$0xff]
    %v931 = vld [vmem:[#allocation14 + $0xc0] sm:$0xff]
    %v932 = vld [vmem:[#allocation14 + $0xc8] sm:$0xff]
    %v933 = vld [vmem:[#allocation14 + $0xd0] sm:$0xff]
    %v934 = vld [vmem:[#allocation14 + $0xd8] sm:$0xff]
    %v935 = vld [vmem:[#allocation14 + $0xe0] sm:$0xff]
    %v936 = vld [vmem:[#allocation14 + $0xe8] sm:$0xff]
    %v937 = vld [vmem:[#allocation14 + $0xf0] sm:$0xff]
    %v938 = vld [vmem:[#allocation14 + $0xf8] sm:$0xff]
    %v939 = vld [vmem:[#allocation14 + $0x100] sm:$0xff]
    %v940 = vld [vmem:[#allocation14 + $0x108] sm:$0xff]
    %v941 = vld [vmem:[#allocation14 + $0x110] sm:$0xff]
    %v942 = vld [vmem:[#allocation14 + $0x118] sm:$0xff]
    %v943 = vld [vmem:[#allocation14 + $0x120] sm:$0xff]
    %v944 = vld [vmem:[#allocation14 + $0x128] sm:$0xff]
    %v945 = vld [vmem:[#allocation14 + $0x130] sm:$0xff]
    %v946 = vld [vmem:[#allocation14 + $0x138] sm:$0xff]
    %v947 = vld [vmem:[#allocation14 + $0x140] sm:$0xff]
    %v948 = vld [vmem:[#allocation14 + $0x148] sm:$0xff]
    %v949 = vld [vmem:[#allocation14 + $0x150] sm:$0xff]
    %v950 = vld [vmem:[#allocation14 + $0x158] sm:$0xff]
    %v951 = vld [vmem:[#allocation14 + $0x160] sm:$0xff]
    %v952 = vld [vmem:[#allocation14 + $0x168] sm:$0xff]
    %v953 = vld [vmem:[#allocation14 + $0x170] sm:$0xff]
    %v954 = vld [vmem:[#allocation14 + $0x178] sm:$0xff]
    %955 = vmatprep.subr.mxu0 %v953
    %956 = vmatpush1.msra.mxu0 %v952
    %957 = vmatprep.subr.mxu0 %v950
    %958 = vmatpush1.msra.mxu0 %v949
    %959 = vmatprep.subr.mxu0 %v947
    %960 = vmatpush1.msra.mxu0 %v946
    %961 = vmatprep.subr.mxu0 %v944
    %962 = vmatpush1.msra.mxu0 %v943
    %963 = vmatprep.subr.mxu0 %v941
    %964 = vmatpush1.msra.mxu0 %v940
    %965 = vmatprep.subr.mxu0 %v938
    %966 = vmatpush1.msra.mxu0 %v937
    %967 = vmatprep.subr.mxu0 %v935
    %968 = vmatpush1.msra.mxu0 %v934
    %969 = vmatprep.subr.mxu0 %v932
    %970 = vmatpush1.msra.mxu0 %v931
    %971 = vmatprep.subr.mxu0 %v929
    %972 = vmatpush1.msra.mxu0 %v928
    %973 = vmatprep.subr.mxu0 %v926
    %974 = vmatpush1.msra.mxu0 %v925
    %975 = vmatprep.subr.mxu0 %v923
    %976 = vmatpush1.msra.mxu0 %v922
    %977 = vmatprep.subr.mxu0 %v920
    %978 = vmatpush1.msra.mxu0 %v919
    %979 = vmatprep.subr.mxu0 %v917
    %980 = vmatpush1.msra.mxu0 %v916
    %981 = vmatprep.subr.mxu0 %v914
    %982 = vmatpush1.msra.mxu0 %v913
    %983 = vmatprep.subr.mxu0 %v911
    %984 = vmatpush1.msra.mxu0 %v910
    %985 = vmatprep.subr.mxu0 %v908
    %986 = vmatpush1.msra.mxu0 %v907
    %987 = vmatprep.subr.mxu0 0.0
    %988 = vmatpush2.msra.mxu0 0.0
    %989 = vmatprep.subr.mxu0 0.0
    %990 = vmatpush2.msra.mxu0 0.0
    %991 = vmatprep.subr.mxu0 0.0
    %992 = vmatpush2.msra.mxu0 0.0
    %993 = vmatprep.subr.mxu0 0.0
    %994 = vmatpush2.msra.mxu0 0.0
    %995 = vmatprep.subr.mxu0 0.0
    %996 = vmatpush2.msra.mxu0 0.0
    %997 = vmatprep.subr.mxu0 0.0
    %998 = vmatpush2.msra.mxu0 0.0
    %999 = vmatprep.subr.mxu0 0.0
    %1000 = vmatpush2.msra.mxu0 0.0
    %1001 = vmatprep.subr.mxu0 0.0
    %1002 = vmatpush2.msra.mxu0 0.0
    %1003 = vmatprep.subr.mxu0 0.0
    %1004 = vmatpush2.msra.mxu0 0.0
    %1005 = vmatprep.subr.mxu0 0.0
    %1006 = vmatpush2.msra.mxu0 0.0
    %1007 = vmatprep.subr.mxu0 0.0
    %1008 = vmatpush2.msra.mxu0 0.0
    %1009 = vmatprep.subr.mxu0 0.0
    %1010 = vmatpush2.msra.mxu0 0.0
    %1011 = vmatprep.subr.mxu0 0.0
    %1012 = vmatpush2.msra.mxu0 0.0
    %1013 = vmatprep.subr.mxu0 0.0
    %1014 = vmatpush2.msra.mxu0 0.0
    %1015 = vmatprep.subr.mxu0 0.0
    %1016 = vmatpush2.msra.mxu0 0.0
    %1017 = vmatprep.subr.mxu0 0.0
    %1018 = vmatpush2.msra.mxu0 0.0
    %1019 = vmatprep.mubr.f32.mxu0 0.0
    %1020 = vmatmul.mubr.f32.gmra.mxu0 %v904
    %v1021 = vpop.f32.mrf.mxu0
    %v1022 = vadd.f32 %v662, %v1021
    %v1023 = vpop.f32.mrf.mxu0
    %v1024 = vadd.f32 %v666, %v1023
    %1025 = vdwg.mxu0
    %1026 = vmatprep.subr.mxu0 0.0
    %1027 = vmatpush1.msra.mxu0 %v954
    %1028 = vmatprep.subr.mxu0 0.0
    %1029 = vmatpush1.msra.mxu0 %v951
    %1030 = vmatprep.subr.mxu0 0.0
    %1031 = vmatpush1.msra.mxu0 %v948
    %1032 = vmatprep.subr.mxu0 0.0
    %1033 = vmatpush1.msra.mxu0 %v945
    %1034 = vmatprep.subr.mxu0 0.0
    %1035 = vmatpush1.msra.mxu0 %v942
    %1036 = vmatprep.subr.mxu0 0.0
    %1037 = vmatpush1.msra.mxu0 %v939
    %1038 = vmatprep.subr.mxu0 0.0
    %1039 = vmatpush1.msra.mxu0 %v936
    %1040 = vmatprep.subr.mxu0 0.0
    %1041 = vmatpush1.msra.mxu0 %v933
    %1042 = vmatprep.subr.mxu0 0.0
    %1043 = vmatpush1.msra.mxu0 %v930
    %1044 = vmatprep.subr.mxu0 0.0
    %1045 = vmatpush1.msra.mxu0 %v927
    %1046 = vmatprep.subr.mxu0 0.0
    %1047 = vmatpush1.msra.mxu0 %v924
    %1048 = vmatprep.subr.mxu0 0.0
    %1049 = vmatpush1.msra.mxu0 %v921
    %1050 = vmatprep.subr.mxu0 0.0
    %1051 = vmatpush1.msra.mxu0 %v918
    %1052 = vmatprep.subr.mxu0 0.0
    %1053 = vmatpush1.msra.mxu0 %v915
    %1054 = vmatprep.subr.mxu0 0.0
    %1055 = vmatpush1.msra.mxu0 %v912
    %1056 = vmatprep.subr.mxu0 0.0
    %1057 = vmatpush1.msra.mxu0 %v909
    %1058 = vmatprep.subr.mxu0 0.0
    %1059 = vmatpush2.msra.mxu0 0.0
    %1060 = vmatprep.subr.mxu0 0.0
    %1061 = vmatpush2.msra.mxu0 0.0
    %1062 = vmatprep.subr.mxu0 0.0
    %1063 = vmatpush2.msra.mxu0 0.0
    %1064 = vmatprep.subr.mxu0 0.0
    %1065 = vmatpush2.msra.mxu0 0.0
    %1066 = vmatprep.subr.mxu0 0.0
    %1067 = vmatpush2.msra.mxu0 0.0
    %1068 = vmatprep.subr.mxu0 0.0
    %1069 = vmatpush2.msra.mxu0 0.0
    %1070 = vmatprep.subr.mxu0 0.0
    %1071 = vmatpush2.msra.mxu0 0.0
    %1072 = vmatprep.subr.mxu0 0.0
    %1073 = vmatpush2.msra.mxu0 0.0
    %1074 = vmatprep.subr.mxu0 0.0
    %1075 = vmatpush2.msra.mxu0 0.0
    %1076 = vmatprep.subr.mxu0 0.0
    %1077 = vmatpush2.msra.mxu0 0.0
    %1078 = vmatprep.subr.mxu0 0.0
    %1079 = vmatpush2.msra.mxu0 0.0
    %1080 = vmatprep.subr.mxu0 0.0
    %1081 = vmatpush2.msra.mxu0 0.0
    %1082 = vmatprep.subr.mxu0 0.0
    %1083 = vmatpush2.msra.mxu0 0.0
    %1084 = vmatprep.subr.mxu0 0.0
    %1085 = vmatpush2.msra.mxu0 0.0
    %1086 = vmatprep.subr.mxu0 0.0
    %1087 = vmatpush2.msra.mxu0 0.0
    %1088 = vmatprep.subr.mxu0 0.0
    %1089 = vmatpush2.msra.mxu0 0.0
    %1090 = vmatprep.mubr.f32.mxu0 0.0
    %1091 = vmatmul.mubr.f32.gmra.mxu0 %v904
    %v1092 = vpop.f32.mrf.mxu0
    %v1093 = vadd.f32 %v670, %v1092
    %v1094 = vpop.f32.mrf.mxu0
    %1095 = vdwg.mxu0
    %v1096 = vld [vmem:[#allocation15] sm:$0xff]
    %v1097 = vld [vmem:[#allocation15 + $0x8] sm:$0xff]
    %v1098 = vld [vmem:[#allocation15 + $0x10] sm:$0xff]
    %v1099 = vld [vmem:[#allocation15 + $0x18] sm:$0xff]
    %v1100 = vld [vmem:[#allocation15 + $0x20] sm:$0xff]
    %v1101 = vld [vmem:[#allocation15 + $0x28] sm:$0xff]
    %v1102 = vld [vmem:[#allocation15 + $0x30] sm:$0xff]
    %v1103 = vld [vmem:[#allocation15 + $0x38] sm:$0xff]
    %v1104 = vld [vmem:[#allocation15 + $0x40] sm:$0xff]
    %v1105 = vld [vmem:[#allocation15 + $0x48] sm:$0xff]
    %v1106 = vld [vmem:[#allocation15 + $0x50] sm:$0xff]
    %v1107 = vld [vmem:[#allocation15 + $0x58] sm:$0xff]
    %v1108 = vld [vmem:[#allocation15 + $0x60] sm:$0xff]
    %v1109 = vld [vmem:[#allocation15 + $0x68] sm:$0xff]
    %v1110 = vld [vmem:[#allocation15 + $0x70] sm:$0xff]
    %v1111 = vld [vmem:[#allocation15 + $0x78] sm:$0xff]
    %v1112 = vld [vmem:[#allocation15 + $0x80] sm:$0xff]
    %v1113 = vld [vmem:[#allocation15 + $0x88] sm:$0xff]
    %v1114 = vld [vmem:[#allocation15 + $0x90] sm:$0xff]
    %v1115 = vld [vmem:[#allocation15 + $0x98] sm:$0xff]
    %v1116 = vld [vmem:[#allocation15 + $0xa0] sm:$0xff]
    %v1117 = vld [vmem:[#allocation15 + $0xa8] sm:$0xff]
    %v1118 = vld [vmem:[#allocation15 + $0xb0] sm:$0xff]
    %v1119 = vld [vmem:[#allocation15 + $0xb8] sm:$0xff]
    %v1120 = vld [vmem:[#allocation15 + $0xc0] sm:$0xff]
    %v1121 = vld [vmem:[#allocation15 + $0xc8] sm:$0xff]
    %v1122 = vld [vmem:[#allocation15 + $0xd0] sm:$0xff]
    %v1123 = vld [vmem:[#allocation15 + $0xd8] sm:$0xff]
    %v1124 = vld [vmem:[#allocation15 + $0xe0] sm:$0xff]
    %v1125 = vld [vmem:[#allocation15 + $0xe8] sm:$0xff]
    %v1126 = vld [vmem:[#allocation15 + $0xf0] sm:$0xff]
    %v1127 = vld [vmem:[#allocation15 + $0xf8] sm:$0xff]
    %v1128 = vld [vmem:[#allocation15 + $0x100] sm:$0xff]
    %v1129 = vld [vmem:[#allocation15 + $0x108] sm:$0xff]
    %v1130 = vld [vmem:[#allocation15 + $0x110] sm:$0xff]
    %v1131 = vld [vmem:[#allocation15 + $0x118] sm:$0xff]
    %v1132 = vld [vmem:[#allocation15 + $0x120] sm:$0xff]
    %v1133 = vld [vmem:[#allocation15 + $0x128] sm:$0xff]
    %v1134 = vld [vmem:[#allocation15 + $0x130] sm:$0xff]
    %v1135 = vld [vmem:[#allocation15 + $0x138] sm:$0xff]
    %v1136 = vld [vmem:[#allocation15 + $0x140] sm:$0xff]
    %v1137 = vld [vmem:[#allocation15 + $0x148] sm:$0xff]
    %v1138 = vld [vmem:[#allocation15 + $0x150] sm:$0xff]
    %v1139 = vld [vmem:[#allocation15 + $0x158] sm:$0xff]
    %v1140 = vld [vmem:[#allocation15 + $0x160] sm:$0xff]
    %v1141 = vld [vmem:[#allocation15 + $0x168] sm:$0xff]
    %v1142 = vld [vmem:[#allocation15 + $0x170] sm:$0xff]
    %v1143 = vld [vmem:[#allocation15 + $0x178] sm:$0xff]
    %1144 = vmatprep.subr.mxu0 %v1142
    %1145 = vmatpush1.msra.mxu0 %v1141
    %1146 = vmatprep.subr.mxu0 %v1139
    %1147 = vmatpush1.msra.mxu0 %v1138
    %1148 = vmatprep.subr.mxu0 %v1136
    %1149 = vmatpush1.msra.mxu0 %v1135
    %1150 = vmatprep.subr.mxu0 %v1133
    %1151 = vmatpush1.msra.mxu0 %v1132
    %1152 = vmatprep.subr.mxu0 %v1130
    %1153 = vmatpush1.msra.mxu0 %v1129
    %1154 = vmatprep.subr.mxu0 %v1127
    %1155 = vmatpush1.msra.mxu0 %v1126
    %1156 = vmatprep.subr.mxu0 %v1124
    %1157 = vmatpush1.msra.mxu0 %v1123
    %1158 = vmatprep.subr.mxu0 %v1121
    %1159 = vmatpush1.msra.mxu0 %v1120
    %1160 = vmatprep.subr.mxu0 %v1118
    %1161 = vmatpush1.msra.mxu0 %v1117
    %1162 = vmatprep.subr.mxu0 %v1115
    %1163 = vmatpush1.msra.mxu0 %v1114
    %1164 = vmatprep.subr.mxu0 %v1112
    %1165 = vmatpush1.msra.mxu0 %v1111
    %1166 = vmatprep.subr.mxu0 %v1109
    %1167 = vmatpush1.msra.mxu0 %v1108
    %1168 = vmatprep.subr.mxu0 %v1106
    %1169 = vmatpush1.msra.mxu0 %v1105
    %1170 = vmatprep.subr.mxu0 %v1103
    %1171 = vmatpush1.msra.mxu0 %v1102
    %1172 = vmatprep.subr.mxu0 %v1100
    %1173 = vmatpush1.msra.mxu0 %v1099
    %1174 = vmatprep.subr.mxu0 %v1097
    %1175 = vmatpush1.msra.mxu0 %v1096
    %1176 = vmatprep.subr.mxu0 0.0
    %1177 = vmatpush2.msra.mxu0 0.0
    %1178 = vmatprep.subr.mxu0 0.0
    %1179 = vmatpush2.msra.mxu0 0.0
    %1180 = vmatprep.subr.mxu0 0.0
    %1181 = vmatpush2.msra.mxu0 0.0
    %1182 = vmatprep.subr.mxu0 0.0
    %1183 = vmatpush2.msra.mxu0 0.0
    %1184 = vmatprep.subr.mxu0 0.0
    %1185 = vmatpush2.msra.mxu0 0.0
    %1186 = vmatprep.subr.mxu0 0.0
    %1187 = vmatpush2.msra.mxu0 0.0
    %1188 = vmatprep.subr.mxu0 0.0
    %1189 = vmatpush2.msra.mxu0 0.0
    %1190 = vmatprep.subr.mxu0 0.0
    %1191 = vmatpush2.msra.mxu0 0.0
    %1192 = vmatprep.subr.mxu0 0.0
    %1193 = vmatpush2.msra.mxu0 0.0
    %1194 = vmatprep.subr.mxu0 0.0
    %1195 = vmatpush2.msra.mxu0 0.0
    %1196 = vmatprep.subr.mxu0 0.0
    %1197 = vmatpush2.msra.mxu0 0.0
    %1198 = vmatprep.subr.mxu0 0.0
    %1199 = vmatpush2.msra.mxu0 0.0
    %1200 = vmatprep.subr.mxu0 0.0
    %1201 = vmatpush2.msra.mxu0 0.0
    %1202 = vmatprep.subr.mxu0 0.0
    %1203 = vmatpush2.msra.mxu0 0.0
    %1204 = vmatprep.subr.mxu0 0.0
    %1205 = vmatpush2.msra.mxu0 0.0
    %1206 = vmatprep.subr.mxu0 0.0
    %1207 = vmatpush2.msra.mxu0 0.0
    %1208 = vmatprep.mubr.f32.mxu0 0.0
    %1209 = vmatmul.mubr.f32.gmra.mxu0 %v906
    %v1210 = vpop.f32.mrf.mxu0
    %v1211 = vadd.f32 0.0, %v1210
    %v1212 = vpop.f32.mrf.mxu0
    %v1213 = vadd.f32 0.0, %v1212
    %1214 = vdwg.mxu0
    %1215 = vmatprep.subr.mxu0 0.0
    %1216 = vmatpush1.msra.mxu0 %v1143
    %1217 = vmatprep.subr.mxu0 0.0
    %1218 = vmatpush1.msra.mxu0 %v1140
    %1219 = vmatprep.subr.mxu0 0.0
    %1220 = vmatpush1.msra.mxu0 %v1137
    %1221 = vmatprep.subr.mxu0 0.0
    %1222 = vmatpush1.msra.mxu0 %v1134
    %1223 = vmatprep.subr.mxu0 0.0
    %1224 = vmatpush1.msra.mxu0 %v1131
    %1225 = vmatprep.subr.mxu0 0.0
    %1226 = vmatpush1.msra.mxu0 %v1128
    %1227 = vmatprep.subr.mxu0 0.0
    %1228 = vmatpush1.msra.mxu0 %v1125
    %1229 = vmatprep.subr.mxu0 0.0
    %1230 = vmatpush1.msra.mxu0 %v1122
    %1231 = vmatprep.subr.mxu0 0.0
    %1232 = vmatpush1.msra.mxu0 %v1119
    %1233 = vmatprep.subr.mxu0 0.0
    %1234 = vmatpush1.msra.mxu0 %v1116
    %1235 = vmatprep.subr.mxu0 0.0
    %1236 = vmatpush1.msra.mxu0 %v1113
    %1237 = vmatprep.subr.mxu0 0.0
    %1238 = vmatpush1.msra.mxu0 %v1110
    %1239 = vmatprep.subr.mxu0 0.0
    %1240 = vmatpush1.msra.mxu0 %v1107
    %1241 = vmatprep.subr.mxu0 0.0
    %1242 = vmatpush1.msra.mxu0 %v1104
    %1243 = vmatprep.subr.mxu0 0.0
    %1244 = vmatpush1.msra.mxu0 %v1101
    %1245 = vmatprep.subr.mxu0 0.0
    %1246 = vmatpush1.msra.mxu0 %v1098
    %1247 = vmatprep.subr.mxu0 0.0
    %1248 = vmatpush2.msra.mxu0 0.0
    %1249 = vmatprep.subr.mxu0 0.0
    %1250 = vmatpush2.msra.mxu0 0.0
    %1251 = vmatprep.subr.mxu0 0.0
    %1252 = vmatpush2.msra.mxu0 0.0
    %1253 = vmatprep.subr.mxu0 0.0
    %1254 = vmatpush2.msra.mxu0 0.0
    %1255 = vmatprep.subr.mxu0 0.0
    %1256 = vmatpush2.msra.mxu0 0.0
    %1257 = vmatprep.subr.mxu0 0.0
    %1258 = vmatpush2.msra.mxu0 0.0
    %1259 = vmatprep.subr.mxu0 0.0
    %1260 = vmatpush2.msra.mxu0 0.0
    %1261 = vmatprep.subr.mxu0 0.0
    %1262 = vmatpush2.msra.mxu0 0.0
    %1263 = vmatprep.subr.mxu0 0.0
    %1264 = vmatpush2.msra.mxu0 0.0
    %1265 = vmatprep.subr.mxu0 0.0
    %1266 = vmatpush2.msra.mxu0 0.0
    %1267 = vmatprep.subr.mxu0 0.0
    %1268 = vmatpush2.msra.mxu0 0.0
    %1269 = vmatprep.subr.mxu0 0.0
    %1270 = vmatpush2.msra.mxu0 0.0
    %1271 = vmatprep.subr.mxu0 0.0
    %1272 = vmatpush2.msra.mxu0 0.0
    %1273 = vmatprep.subr.mxu0 0.0
    %1274 = vmatpush2.msra.mxu0 0.0
    %1275 = vmatprep.subr.mxu0 0.0
    %1276 = vmatpush2.msra.mxu0 0.0
    %1277 = vmatprep.subr.mxu0 0.0
    %1278 = vmatpush2.msra.mxu0 0.0
    %1279 = vmatprep.mubr.f32.mxu0 0.0
    %1280 = vmatmul.mubr.f32.gmra.mxu0 %v906
    %v1281 = vpop.f32.mrf.mxu0
    %v1282 = vadd.f32 0.0, %v1281
    %v1283 = vpop.f32.mrf.mxu0
    %1284 = vdwg.mxu0
    %v1285 = vadd.f32 %v1022, %v1211
    %v1286 = vxor.u32 %v1285, 2147483648
    %v1287 = vmul.f32 %v1286, 1.442695
    %v1288 = vpow.pop %v1287
    %v1289 = vadd.f32 %v1288, 1.0
    %v1290 = vrcp.pop %v1289
    %v1291 = vmul.f32 1.0, %v1290
    %v1292 = vadd.f32 %v1024, %v1213
    %v1293 = vxor.u32 %v1292, 2147483648
    %v1294 = vmul.f32 %v1293, 1.442695
    %v1295 = vpow.pop %v1294
    %v1296 = vadd.f32 %v1295, 1.0
    %v1297 = vrcp.pop %v1296
    %v1298 = vmul.f32 1.0, %v1297
    %v1299 = vadd.f32 %v1282, %v686
    %v1300 = vmul.f32 %v1291, %v1299
    %v1301 = vadd.f32 %v1093, %v1300
    %v1302 = vtanh.pop %v1301
    %v1303 = vsub.f32 %v906, %v1302
    %v1304 = vmul.f32 %v1298, %v1303
    %v1305 = vadd.f32 %v1302, %v1304
    %1306 = vst [vmem:[#allocation17] sm:$0xff] %v1305
    %s1307 = smul.u32 1, 3
    %s1308 = smul.addr %s1307, 8
    %s1309 = scalar_lea.vmem [#allocation2], %s1308
    %v1310 = vld [vmem:[%s1309] sm:$0xff]
    %v1311 = vld [vmem:[%s1309 + $0x8] sm:$0xff]
    %v1312 = vld [vmem:[%s1309 + $0x10] sm:$0xff]
    %v1313 = vadd.f32 %v1310, %v583
    %v1314 = vadd.f32 %v1311, %v585
    %v1315 = vadd.f32 %v1312, %v654
    %v1316 = vld [vmem:[#allocation12] sm:$0xff]
    %v1317 = vld [vmem:[#allocation12 + $0x8] sm:$0xff]
    %v1318 = vld [vmem:[#allocation12 + $0x10] sm:$0xff]
    %v1319 = vld [vmem:[#allocation12 + $0x18] sm:$0xff]
    %v1320 = vld [vmem:[#allocation12 + $0x20] sm:$0xff]
    %v1321 = vld [vmem:[#allocation12 + $0x28] sm:$0xff]
    %v1322 = vld [vmem:[#allocation12 + $0x30] sm:$0xff]
    %v1323 = vld [vmem:[#allocation12 + $0x38] sm:$0xff]
    %v1324 = vld [vmem:[#allocation12 + $0x40] sm:$0xff]
    %v1325 = vld [vmem:[#allocation12 + $0x48] sm:$0xff]
    %v1326 = vld [vmem:[#allocation12 + $0x50] sm:$0xff]
    %v1327 = vld [vmem:[#allocation12 + $0x58] sm:$0xff]
    %v1328 = vld [vmem:[#allocation12 + $0x60] sm:$0xff]
    %v1329 = vld [vmem:[#allocation12 + $0x68] sm:$0xff]
    %v1330 = vld [vmem:[#allocation12 + $0x70] sm:$0xff]
    %v1331 = vld [vmem:[#allocation12 + $0x78] sm:$0xff]
    %v1332 = vld [vmem:[#allocation12 + $0x80] sm:$0xff]
    %v1333 = vld [vmem:[#allocation12 + $0x88] sm:$0xff]
    %v1334 = vld [vmem:[#allocation12 + $0x90] sm:$0xff]
    %v1335 = vld [vmem:[#allocation12 + $0x98] sm:$0xff]
    %v1336 = vld [vmem:[#allocation12 + $0xa0] sm:$0xff]
    %v1337 = vld [vmem:[#allocation12 + $0xa8] sm:$0xff]
    %v1338 = vld [vmem:[#allocation12 + $0xb0] sm:$0xff]
    %v1339 = vld [vmem:[#allocation12 + $0xb8] sm:$0xff]
    %v1340 = vld [vmem:[#allocation12 + $0xc0] sm:$0xff]
    %v1341 = vld [vmem:[#allocation12 + $0xc8] sm:$0xff]
    %v1342 = vld [vmem:[#allocation12 + $0xd0] sm:$0xff]
    %v1343 = vld [vmem:[#allocation12 + $0xd8] sm:$0xff]
    %v1344 = vld [vmem:[#allocation12 + $0xe0] sm:$0xff]
    %v1345 = vld [vmem:[#allocation12 + $0xe8] sm:$0xff]
    %v1346 = vld [vmem:[#allocation12 + $0xf0] sm:$0xff]
    %v1347 = vld [vmem:[#allocation12 + $0xf8] sm:$0xff]
    %v1348 = vld [vmem:[#allocation12 + $0x100] sm:$0xff]
    %v1349 = vld [vmem:[#allocation12 + $0x108] sm:$0xff]
    %v1350 = vld [vmem:[#allocation12 + $0x110] sm:$0xff]
    %v1351 = vld [vmem:[#allocation12 + $0x118] sm:$0xff]
    %v1352 = vld [vmem:[#allocation12 + $0x120] sm:$0xff]
    %v1353 = vld [vmem:[#allocation12 + $0x128] sm:$0xff]
    %v1354 = vld [vmem:[#allocation12 + $0x130] sm:$0xff]
    %v1355 = vld [vmem:[#allocation12 + $0x138] sm:$0xff]
    %v1356 = vld [vmem:[#allocation12 + $0x140] sm:$0xff]
    %v1357 = vld [vmem:[#allocation12 + $0x148] sm:$0xff]
    %v1358 = vld [vmem:[#allocation12 + $0x150] sm:$0xff]
    %v1359 = vld [vmem:[#allocation12 + $0x158] sm:$0xff]
    %v1360 = vld [vmem:[#allocation12 + $0x160] sm:$0xff]
    %v1361 = vld [vmem:[#allocation12 + $0x168] sm:$0xff]
    %v1362 = vld [vmem:[#allocation12 + $0x170] sm:$0xff]
    %v1363 = vld [vmem:[#allocation12 + $0x178] sm:$0xff]
    %1364 = vmatprep.subr.mxu0 %v1362
    %1365 = vmatpush1.msra.mxu0 %v1361
    %1366 = vmatprep.subr.mxu0 %v1359
    %1367 = vmatpush1.msra.mxu0 %v1358
    %1368 = vmatprep.subr.mxu0 %v1356
    %1369 = vmatpush1.msra.mxu0 %v1355
    %1370 = vmatprep.subr.mxu0 %v1353
    %1371 = vmatpush1.msra.mxu0 %v1352
    %1372 = vmatprep.subr.mxu0 %v1350
    %1373 = vmatpush1.msra.mxu0 %v1349
    %1374 = vmatprep.subr.mxu0 %v1347
    %1375 = vmatpush1.msra.mxu0 %v1346
    %1376 = vmatprep.subr.mxu0 %v1344
    %1377 = vmatpush1.msra.mxu0 %v1343
    %1378 = vmatprep.subr.mxu0 %v1341
    %1379 = vmatpush1.msra.mxu0 %v1340
    %1380 = vmatprep.subr.mxu0 %v1338
    %1381 = vmatpush1.msra.mxu0 %v1337
    %1382 = vmatprep.subr.mxu0 %v1335
    %1383 = vmatpush1.msra.mxu0 %v1334
    %1384 = vmatprep.subr.mxu0 %v1332
    %1385 = vmatpush1.msra.mxu0 %v1331
    %1386 = vmatprep.subr.mxu0 %v1329
    %1387 = vmatpush1.msra.mxu0 %v1328
    %1388 = vmatprep.subr.mxu0 %v1326
    %1389 = vmatpush1.msra.mxu0 %v1325
    %1390 = vmatprep.subr.mxu0 %v1323
    %1391 = vmatpush1.msra.mxu0 %v1322
    %1392 = vmatprep.subr.mxu0 %v1320
    %1393 = vmatpush1.msra.mxu0 %v1319
    %1394 = vmatprep.subr.mxu0 %v1317
    %1395 = vmatpush1.msra.mxu0 %v1316
    %1396 = vmatprep.subr.mxu0 0.0
    %1397 = vmatpush2.msra.mxu0 0.0
    %1398 = vmatprep.subr.mxu0 0.0
    %1399 = vmatpush2.msra.mxu0 0.0
    %1400 = vmatprep.subr.mxu0 0.0
    %1401 = vmatpush2.msra.mxu0 0.0
    %1402 = vmatprep.subr.mxu0 0.0
    %1403 = vmatpush2.msra.mxu0 0.0
    %1404 = vmatprep.subr.mxu0 0.0
    %1405 = vmatpush2.msra.mxu0 0.0
    %1406 = vmatprep.subr.mxu0 0.0
    %1407 = vmatpush2.msra.mxu0 0.0
    %1408 = vmatprep.subr.mxu0 0.0
    %1409 = vmatpush2.msra.mxu0 0.0
    %1410 = vmatprep.subr.mxu0 0.0
    %1411 = vmatpush2.msra.mxu0 0.0
    %1412 = vmatprep.subr.mxu0 0.0
    %1413 = vmatpush2.msra.mxu0 0.0
    %1414 = vmatprep.subr.mxu0 0.0
    %1415 = vmatpush2.msra.mxu0 0.0
    %1416 = vmatprep.subr.mxu0 0.0
    %1417 = vmatpush2.msra.mxu0 0.0
    %1418 = vmatprep.subr.mxu0 0.0
    %1419 = vmatpush2.msra.mxu0 0.0
    %1420 = vmatprep.subr.mxu0 0.0
    %1421 = vmatpush2.msra.mxu0 0.0
    %1422 = vmatprep.subr.mxu0 0.0
    %1423 = vmatpush2.msra.mxu0 0.0
    %1424 = vmatprep.subr.mxu0 0.0
    %1425 = vmatpush2.msra.mxu0 0.0
    %1426 = vmatprep.subr.mxu0 0.0
    %1427 = vmatpush2.msra.mxu0 0.0
    %1428 = vmatprep.mubr.f32.mxu0 0.0
    %1429 = vmatmul.mubr.f32.gmra.mxu0 %v904
    %v1430 = vpop.f32.mrf.mxu0
    %v1431 = vadd.f32 0.0, %v1430
    %v1432 = vpop.f32.mrf.mxu0
    %v1433 = vadd.f32 0.0, %v1432
    %1434 = vdwg.mxu0
    %1435 = vmatprep.subr.mxu0 0.0
    %1436 = vmatpush1.msra.mxu0 %v1363
    %1437 = vmatprep.subr.mxu0 0.0
    %1438 = vmatpush1.msra.mxu0 %v1360
    %1439 = vmatprep.subr.mxu0 0.0
    %1440 = vmatpush1.msra.mxu0 %v1357
    %1441 = vmatprep.subr.mxu0 0.0
    %1442 = vmatpush1.msra.mxu0 %v1354
    %1443 = vmatprep.subr.mxu0 0.0
    %1444 = vmatpush1.msra.mxu0 %v1351
    %1445 = vmatprep.subr.mxu0 0.0
    %1446 = vmatpush1.msra.mxu0 %v1348
    %1447 = vmatprep.subr.mxu0 0.0
    %1448 = vmatpush1.msra.mxu0 %v1345
    %1449 = vmatprep.subr.mxu0 0.0
    %1450 = vmatpush1.msra.mxu0 %v1342
    %1451 = vmatprep.subr.mxu0 0.0
    %1452 = vmatpush1.msra.mxu0 %v1339
    %1453 = vmatprep.subr.mxu0 0.0
    %1454 = vmatpush1.msra.mxu0 %v1336
    %1455 = vmatprep.subr.mxu0 0.0
    %1456 = vmatpush1.msra.mxu0 %v1333
    %1457 = vmatprep.subr.mxu0 0.0
    %1458 = vmatpush1.msra.mxu0 %v1330
    %1459 = vmatprep.subr.mxu0 0.0
    %1460 = vmatpush1.msra.mxu0 %v1327
    %1461 = vmatprep.subr.mxu0 0.0
    %1462 = vmatpush1.msra.mxu0 %v1324
    %1463 = vmatprep.subr.mxu0 0.0
    %1464 = vmatpush1.msra.mxu0 %v1321
    %1465 = vmatprep.subr.mxu0 0.0
    %1466 = vmatpush1.msra.mxu0 %v1318
    %1467 = vmatprep.subr.mxu0 0.0
    %1468 = vmatpush2.msra.mxu0 0.0
    %1469 = vmatprep.subr.mxu0 0.0
    %1470 = vmatpush2.msra.mxu0 0.0
    %1471 = vmatprep.subr.mxu0 0.0
    %1472 = vmatpush2.msra.mxu0 0.0
    %1473 = vmatprep.subr.mxu0 0.0
    %1474 = vmatpush2.msra.mxu0 0.0
    %1475 = vmatprep.subr.mxu0 0.0
    %1476 = vmatpush2.msra.mxu0 0.0
    %1477 = vmatprep.subr.mxu0 0.0
    %1478 = vmatpush2.msra.mxu0 0.0
    %1479 = vmatprep.subr.mxu0 0.0
    %1480 = vmatpush2.msra.mxu0 0.0
    %1481 = vmatprep.subr.mxu0 0.0
    %1482 = vmatpush2.msra.mxu0 0.0
    %1483 = vmatprep.subr.mxu0 0.0
    %1484 = vmatpush2.msra.mxu0 0.0
    %1485 = vmatprep.subr.mxu0 0.0
    %1486 = vmatpush2.msra.mxu0 0.0
    %1487 = vmatprep.subr.mxu0 0.0
    %1488 = vmatpush2.msra.mxu0 0.0
    %1489 = vmatprep.subr.mxu0 0.0
    %1490 = vmatpush2.msra.mxu0 0.0
    %1491 = vmatprep.subr.mxu0 0.0
    %1492 = vmatpush2.msra.mxu0 0.0
    %1493 = vmatprep.subr.mxu0 0.0
    %1494 = vmatpush2.msra.mxu0 0.0
    %1495 = vmatprep.subr.mxu0 0.0
    %1496 = vmatpush2.msra.mxu0 0.0
    %1497 = vmatprep.subr.mxu0 0.0
    %1498 = vmatpush2.msra.mxu0 0.0
    %1499 = vmatprep.mubr.f32.mxu0 0.0
    %1500 = vmatmul.mubr.f32.gmra.mxu0 %v904
    %v1501 = vpop.f32.mrf.mxu0
    %v1502 = vadd.f32 0.0, %v1501
    %v1503 = vpop.f32.mrf.mxu0
    %1504 = vdwg.mxu0
    %v1505 = vadd.f32 %v1313, %v1431
    %v1506 = vxor.u32 %v1505, 2147483648
    %v1507 = vmul.f32 %v1506, 1.442695
    %v1508 = vpow.pop %v1507
    %v1509 = vadd.f32 %v1508, 1.0
    %v1510 = vrcp.pop %v1509
    %v1511 = vmul.f32 1.0, %v1510
    %v1512 = vadd.f32 %v1314, %v1433
    %v1513 = vxor.u32 %v1512, 2147483648
    %v1514 = vmul.f32 %v1513, 1.442695
    %v1515 = vpow.pop %v1514
    %v1516 = vadd.f32 %v1515, 1.0
    %v1517 = vrcp.pop %v1516
    %v1518 = vmul.f32 1.0, %v1517
    %v1519 = vadd.f32 %v1502, %v679
    %v1520 = vmul.f32 %v1511, %v1519
    %v1521 = vadd.f32 %v1315, %v1520
    %v1522 = vtanh.pop %v1521
    %v1523 = vsub.f32 %v904, %v1522
    %v1524 = vmul.f32 %v1518, %v1523
    %v1525 = vadd.f32 %v1522, %v1524
    %v1526 = vld [vmem:[#allocation14] sm:$0xff]
    %v1527 = vld [vmem:[#allocation14 + $0x8] sm:$0xff]
    %v1528 = vld [vmem:[#allocation14 + $0x10] sm:$0xff]
    %v1529 = vld [vmem:[#allocation14 + $0x18] sm:$0xff]
    %v1530 = vld [vmem:[#allocation14 + $0x20] sm:$0xff]
    %v1531 = vld [vmem:[#allocation14 + $0x28] sm:$0xff]
    %v1532 = vld [vmem:[#allocation14 + $0x30] sm:$0xff]
    %v1533 = vld [vmem:[#allocation14 + $0x38] sm:$0xff]
    %v1534 = vld [vmem:[#allocation14 + $0x40] sm:$0xff]
    %v1535 = vld [vmem:[#allocation14 + $0x48] sm:$0xff]
    %v1536 = vld [vmem:[#allocation14 + $0x50] sm:$0xff]
    %v1537 = vld [vmem:[#allocation14 + $0x58] sm:$0xff]
    %v1538 = vld [vmem:[#allocation14 + $0x60] sm:$0xff]
    %v1539 = vld [vmem:[#allocation14 + $0x68] sm:$0xff]
    %v1540 = vld [vmem:[#allocation14 + $0x70] sm:$0xff]
    %v1541 = vld [vmem:[#allocation14 + $0x78] sm:$0xff]
    %v1542 = vld [vmem:[#allocation14 + $0x80] sm:$0xff]
    %v1543 = vld [vmem:[#allocation14 + $0x88] sm:$0xff]
    %v1544 = vld [vmem:[#allocation14 + $0x90] sm:$0xff]
    %v1545 = vld [vmem:[#allocation14 + $0x98] sm:$0xff]
    %v1546 = vld [vmem:[#allocation14 + $0xa0] sm:$0xff]
    %v1547 = vld [vmem:[#allocation14 + $0xa8] sm:$0xff]
    %v1548 = vld [vmem:[#allocation14 + $0xb0] sm:$0xff]
    %v1549 = vld [vmem:[#allocation14 + $0xb8] sm:$0xff]
    %v1550 = vld [vmem:[#allocation14 + $0xc0] sm:$0xff]
    %v1551 = vld [vmem:[#allocation14 + $0xc8] sm:$0xff]
    %v1552 = vld [vmem:[#allocation14 + $0xd0] sm:$0xff]
    %v1553 = vld [vmem:[#allocation14 + $0xd8] sm:$0xff]
    %v1554 = vld [vmem:[#allocation14 + $0xe0] sm:$0xff]
    %v1555 = vld [vmem:[#allocation14 + $0xe8] sm:$0xff]
    %v1556 = vld [vmem:[#allocation14 + $0xf0] sm:$0xff]
    %v1557 = vld [vmem:[#allocation14 + $0xf8] sm:$0xff]
    %v1558 = vld [vmem:[#allocation14 + $0x100] sm:$0xff]
    %v1559 = vld [vmem:[#allocation14 + $0x108] sm:$0xff]
    %v1560 = vld [vmem:[#allocation14 + $0x110] sm:$0xff]
    %v1561 = vld [vmem:[#allocation14 + $0x118] sm:$0xff]
    %v1562 = vld [vmem:[#allocation14 + $0x120] sm:$0xff]
    %v1563 = vld [vmem:[#allocation14 + $0x128] sm:$0xff]
    %v1564 = vld [vmem:[#allocation14 + $0x130] sm:$0xff]
    %v1565 = vld [vmem:[#allocation14 + $0x138] sm:$0xff]
    %v1566 = vld [vmem:[#allocation14 + $0x140] sm:$0xff]
    %v1567 = vld [vmem:[#allocation14 + $0x148] sm:$0xff]
    %v1568 = vld [vmem:[#allocation14 + $0x150] sm:$0xff]
    %v1569 = vld [vmem:[#allocation14 + $0x158] sm:$0xff]
    %v1570 = vld [vmem:[#allocation14 + $0x160] sm:$0xff]
    %v1571 = vld [vmem:[#allocation14 + $0x168] sm:$0xff]
    %v1572 = vld [vmem:[#allocation14 + $0x170] sm:$0xff]
    %v1573 = vld [vmem:[#allocation14 + $0x178] sm:$0xff]
    %1574 = vmatprep.subr.mxu0 %v1572
    %1575 = vmatpush1.msra.mxu0 %v1571
    %1576 = vmatprep.subr.mxu0 %v1569
    %1577 = vmatpush1.msra.mxu0 %v1568
    %1578 = vmatprep.subr.mxu0 %v1566
    %1579 = vmatpush1.msra.mxu0 %v1565
    %1580 = vmatprep.subr.mxu0 %v1563
    %1581 = vmatpush1.msra.mxu0 %v1562
    %1582 = vmatprep.subr.mxu0 %v1560
    %1583 = vmatpush1.msra.mxu0 %v1559
    %1584 = vmatprep.subr.mxu0 %v1557
    %1585 = vmatpush1.msra.mxu0 %v1556
    %1586 = vmatprep.subr.mxu0 %v1554
    %1587 = vmatpush1.msra.mxu0 %v1553
    %1588 = vmatprep.subr.mxu0 %v1551
    %1589 = vmatpush1.msra.mxu0 %v1550
    %1590 = vmatprep.subr.mxu0 %v1548
    %1591 = vmatpush1.msra.mxu0 %v1547
    %1592 = vmatprep.subr.mxu0 %v1545
    %1593 = vmatpush1.msra.mxu0 %v1544
    %1594 = vmatprep.subr.mxu0 %v1542
    %1595 = vmatpush1.msra.mxu0 %v1541
    %1596 = vmatprep.subr.mxu0 %v1539
    %1597 = vmatpush1.msra.mxu0 %v1538
    %1598 = vmatprep.subr.mxu0 %v1536
    %1599 = vmatpush1.msra.mxu0 %v1535
    %1600 = vmatprep.subr.mxu0 %v1533
    %1601 = vmatpush1.msra.mxu0 %v1532
    %1602 = vmatprep.subr.mxu0 %v1530
    %1603 = vmatpush1.msra.mxu0 %v1529
    %1604 = vmatprep.subr.mxu0 %v1527
    %1605 = vmatpush1.msra.mxu0 %v1526
    %1606 = vmatprep.subr.mxu0 0.0
    %1607 = vmatpush2.msra.mxu0 0.0
    %1608 = vmatprep.subr.mxu0 0.0
    %1609 = vmatpush2.msra.mxu0 0.0
    %1610 = vmatprep.subr.mxu0 0.0
    %1611 = vmatpush2.msra.mxu0 0.0
    %1612 = vmatprep.subr.mxu0 0.0
    %1613 = vmatpush2.msra.mxu0 0.0
    %1614 = vmatprep.subr.mxu0 0.0
    %1615 = vmatpush2.msra.mxu0 0.0
    %1616 = vmatprep.subr.mxu0 0.0
    %1617 = vmatpush2.msra.mxu0 0.0
    %1618 = vmatprep.subr.mxu0 0.0
    %1619 = vmatpush2.msra.mxu0 0.0
    %1620 = vmatprep.subr.mxu0 0.0
    %1621 = vmatpush2.msra.mxu0 0.0
    %1622 = vmatprep.subr.mxu0 0.0
    %1623 = vmatpush2.msra.mxu0 0.0
    %1624 = vmatprep.subr.mxu0 0.0
    %1625 = vmatpush2.msra.mxu0 0.0
    %1626 = vmatprep.subr.mxu0 0.0
    %1627 = vmatpush2.msra.mxu0 0.0
    %1628 = vmatprep.subr.mxu0 0.0
    %1629 = vmatpush2.msra.mxu0 0.0
    %1630 = vmatprep.subr.mxu0 0.0
    %1631 = vmatpush2.msra.mxu0 0.0
    %1632 = vmatprep.subr.mxu0 0.0
    %1633 = vmatpush2.msra.mxu0 0.0
    %1634 = vmatprep.subr.mxu0 0.0
    %1635 = vmatpush2.msra.mxu0 0.0
    %1636 = vmatprep.subr.mxu0 0.0
    %1637 = vmatpush2.msra.mxu0 0.0
    %1638 = vmatprep.mubr.f32.mxu0 0.0
    %1639 = vmatmul.mubr.f32.gmra.mxu0 %v1525
    %v1640 = vpop.f32.mrf.mxu0
    %v1641 = vadd.f32 %v662, %v1640
    %v1642 = vpop.f32.mrf.mxu0
    %v1643 = vadd.f32 %v666, %v1642
    %1644 = vdwg.mxu0
    %1645 = vmatprep.subr.mxu0 0.0
    %1646 = vmatpush1.msra.mxu0 %v1573
    %1647 = vmatprep.subr.mxu0 0.0
    %1648 = vmatpush1.msra.mxu0 %v1570
    %1649 = vmatprep.subr.mxu0 0.0
    %1650 = vmatpush1.msra.mxu0 %v1567
    %1651 = vmatprep.subr.mxu0 0.0
    %1652 = vmatpush1.msra.mxu0 %v1564
    %1653 = vmatprep.subr.mxu0 0.0
    %1654 = vmatpush1.msra.mxu0 %v1561
    %1655 = vmatprep.subr.mxu0 0.0
    %1656 = vmatpush1.msra.mxu0 %v1558
    %1657 = vmatprep.subr.mxu0 0.0
    %1658 = vmatpush1.msra.mxu0 %v1555
    %1659 = vmatprep.subr.mxu0 0.0
    %1660 = vmatpush1.msra.mxu0 %v1552
    %1661 = vmatprep.subr.mxu0 0.0
    %1662 = vmatpush1.msra.mxu0 %v1549
    %1663 = vmatprep.subr.mxu0 0.0
    %1664 = vmatpush1.msra.mxu0 %v1546
    %1665 = vmatprep.subr.mxu0 0.0
    %1666 = vmatpush1.msra.mxu0 %v1543
    %1667 = vmatprep.subr.mxu0 0.0
    %1668 = vmatpush1.msra.mxu0 %v1540
    %1669 = vmatprep.subr.mxu0 0.0
    %1670 = vmatpush1.msra.mxu0 %v1537
    %1671 = vmatprep.subr.mxu0 0.0
    %1672 = vmatpush1.msra.mxu0 %v1534
    %1673 = vmatprep.subr.mxu0 0.0
    %1674 = vmatpush1.msra.mxu0 %v1531
    %1675 = vmatprep.subr.mxu0 0.0
    %1676 = vmatpush1.msra.mxu0 %v1528
    %1677 = vmatprep.subr.mxu0 0.0
    %1678 = vmatpush2.msra.mxu0 0.0
    %1679 = vmatprep.subr.mxu0 0.0
    %1680 = vmatpush2.msra.mxu0 0.0
    %1681 = vmatprep.subr.mxu0 0.0
    %1682 = vmatpush2.msra.mxu0 0.0
    %1683 = vmatprep.subr.mxu0 0.0
    %1684 = vmatpush2.msra.mxu0 0.0
    %1685 = vmatprep.subr.mxu0 0.0
    %1686 = vmatpush2.msra.mxu0 0.0
    %1687 = vmatprep.subr.mxu0 0.0
    %1688 = vmatpush2.msra.mxu0 0.0
    %1689 = vmatprep.subr.mxu0 0.0
    %1690 = vmatpush2.msra.mxu0 0.0
    %1691 = vmatprep.subr.mxu0 0.0
    %1692 = vmatpush2.msra.mxu0 0.0
    %1693 = vmatprep.subr.mxu0 0.0
    %1694 = vmatpush2.msra.mxu0 0.0
    %1695 = vmatprep.subr.mxu0 0.0
    %1696 = vmatpush2.msra.mxu0 0.0
    %1697 = vmatprep.subr.mxu0 0.0
    %1698 = vmatpush2.msra.mxu0 0.0
    %1699 = vmatprep.subr.mxu0 0.0
    %1700 = vmatpush2.msra.mxu0 0.0
    %1701 = vmatprep.subr.mxu0 0.0
    %1702 = vmatpush2.msra.mxu0 0.0
    %1703 = vmatprep.subr.mxu0 0.0
    %1704 = vmatpush2.msra.mxu0 0.0
    %1705 = vmatprep.subr.mxu0 0.0
    %1706 = vmatpush2.msra.mxu0 0.0
    %1707 = vmatprep.subr.mxu0 0.0
    %1708 = vmatpush2.msra.mxu0 0.0
    %1709 = vmatprep.mubr.f32.mxu0 0.0
    %1710 = vmatmul.mubr.f32.gmra.mxu0 %v1525
    %v1711 = vpop.f32.mrf.mxu0
    %v1712 = vadd.f32 %v670, %v1711
    %v1713 = vpop.f32.mrf.mxu0
    %1714 = vdwg.mxu0
    %v1715 = vld [vmem:[#allocation15] sm:$0xff]
    %v1716 = vld [vmem:[#allocation15 + $0x8] sm:$0xff]
    %v1717 = vld [vmem:[#allocation15 + $0x10] sm:$0xff]
    %v1718 = vld [vmem:[#allocation15 + $0x18] sm:$0xff]
    %v1719 = vld [vmem:[#allocation15 + $0x20] sm:$0xff]
    %v1720 = vld [vmem:[#allocation15 + $0x28] sm:$0xff]
    %v1721 = vld [vmem:[#allocation15 + $0x30] sm:$0xff]
    %v1722 = vld [vmem:[#allocation15 + $0x38] sm:$0xff]
    %v1723 = vld [vmem:[#allocation15 + $0x40] sm:$0xff]
    %v1724 = vld [vmem:[#allocation15 + $0x48] sm:$0xff]
    %v1725 = vld [vmem:[#allocation15 + $0x50] sm:$0xff]
    %v1726 = vld [vmem:[#allocation15 + $0x58] sm:$0xff]
    %v1727 = vld [vmem:[#allocation15 + $0x60] sm:$0xff]
    %v1728 = vld [vmem:[#allocation15 + $0x68] sm:$0xff]
    %v1729 = vld [vmem:[#allocation15 + $0x70] sm:$0xff]
    %v1730 = vld [vmem:[#allocation15 + $0x78] sm:$0xff]
    %v1731 = vld [vmem:[#allocation15 + $0x80] sm:$0xff]
    %v1732 = vld [vmem:[#allocation15 + $0x88] sm:$0xff]
    %v1733 = vld [vmem:[#allocation15 + $0x90] sm:$0xff]
    %v1734 = vld [vmem:[#allocation15 + $0x98] sm:$0xff]
    %v1735 = vld [vmem:[#allocation15 + $0xa0] sm:$0xff]
    %v1736 = vld [vmem:[#allocation15 + $0xa8] sm:$0xff]
    %v1737 = vld [vmem:[#allocation15 + $0xb0] sm:$0xff]
    %v1738 = vld [vmem:[#allocation15 + $0xb8] sm:$0xff]
    %v1739 = vld [vmem:[#allocation15 + $0xc0] sm:$0xff]
    %v1740 = vld [vmem:[#allocation15 + $0xc8] sm:$0xff]
    %v1741 = vld [vmem:[#allocation15 + $0xd0] sm:$0xff]
    %v1742 = vld [vmem:[#allocation15 + $0xd8] sm:$0xff]
    %v1743 = vld [vmem:[#allocation15 + $0xe0] sm:$0xff]
    %v1744 = vld [vmem:[#allocation15 + $0xe8] sm:$0xff]
    %v1745 = vld [vmem:[#allocation15 + $0xf0] sm:$0xff]
    %v1746 = vld [vmem:[#allocation15 + $0xf8] sm:$0xff]
    %v1747 = vld [vmem:[#allocation15 + $0x100] sm:$0xff]
    %v1748 = vld [vmem:[#allocation15 + $0x108] sm:$0xff]
    %v1749 = vld [vmem:[#allocation15 + $0x110] sm:$0xff]
    %v1750 = vld [vmem:[#allocation15 + $0x118] sm:$0xff]
    %v1751 = vld [vmem:[#allocation15 + $0x120] sm:$0xff]
    %v1752 = vld [vmem:[#allocation15 + $0x128] sm:$0xff]
    %v1753 = vld [vmem:[#allocation15 + $0x130] sm:$0xff]
    %v1754 = vld [vmem:[#allocation15 + $0x138] sm:$0xff]
    %v1755 = vld [vmem:[#allocation15 + $0x140] sm:$0xff]
    %v1756 = vld [vmem:[#allocation15 + $0x148] sm:$0xff]
    %v1757 = vld [vmem:[#allocation15 + $0x150] sm:$0xff]
    %v1758 = vld [vmem:[#allocation15 + $0x158] sm:$0xff]
    %v1759 = vld [vmem:[#allocation15 + $0x160] sm:$0xff]
    %v1760 = vld [vmem:[#allocation15 + $0x168] sm:$0xff]
    %v1761 = vld [vmem:[#allocation15 + $0x170] sm:$0xff]
    %v1762 = vld [vmem:[#allocation15 + $0x178] sm:$0xff]
    %1763 = vmatprep.subr.mxu0 %v1761
    %1764 = vmatpush1.msra.mxu0 %v1760
    %1765 = vmatprep.subr.mxu0 %v1758
    %1766 = vmatpush1.msra.mxu0 %v1757
    %1767 = vmatprep.subr.mxu0 %v1755
    %1768 = vmatpush1.msra.mxu0 %v1754
    %1769 = vmatprep.subr.mxu0 %v1752
    %1770 = vmatpush1.msra.mxu0 %v1751
    %1771 = vmatprep.subr.mxu0 %v1749
    %1772 = vmatpush1.msra.mxu0 %v1748
    %1773 = vmatprep.subr.mxu0 %v1746
    %1774 = vmatpush1.msra.mxu0 %v1745
    %1775 = vmatprep.subr.mxu0 %v1743
    %1776 = vmatpush1.msra.mxu0 %v1742
    %1777 = vmatprep.subr.mxu0 %v1740
    %1778 = vmatpush1.msra.mxu0 %v1739
    %1779 = vmatprep.subr.mxu0 %v1737
    %1780 = vmatpush1.msra.mxu0 %v1736
    %1781 = vmatprep.subr.mxu0 %v1734
    %1782 = vmatpush1.msra.mxu0 %v1733
    %1783 = vmatprep.subr.mxu0 %v1731
    %1784 = vmatpush1.msra.mxu0 %v1730
    %1785 = vmatprep.subr.mxu0 %v1728
    %1786 = vmatpush1.msra.mxu0 %v1727
    %1787 = vmatprep.subr.mxu0 %v1725
    %1788 = vmatpush1.msra.mxu0 %v1724
    %1789 = vmatprep.subr.mxu0 %v1722
    %1790 = vmatpush1.msra.mxu0 %v1721
    %1791 = vmatprep.subr.mxu0 %v1719
    %1792 = vmatpush1.msra.mxu0 %v1718
    %1793 = vmatprep.subr.mxu0 %v1716
    %1794 = vmatpush1.msra.mxu0 %v1715
    %1795 = vmatprep.subr.mxu0 0.0
    %1796 = vmatpush2.msra.mxu0 0.0
    %1797 = vmatprep.subr.mxu0 0.0
    %1798 = vmatpush2.msra.mxu0 0.0
    %1799 = vmatprep.subr.mxu0 0.0
    %1800 = vmatpush2.msra.mxu0 0.0
    %1801 = vmatprep.subr.mxu0 0.0
    %1802 = vmatpush2.msra.mxu0 0.0
    %1803 = vmatprep.subr.mxu0 0.0
    %1804 = vmatpush2.msra.mxu0 0.0
    %1805 = vmatprep.subr.mxu0 0.0
    %1806 = vmatpush2.msra.mxu0 0.0
    %1807 = vmatprep.subr.mxu0 0.0
    %1808 = vmatpush2.msra.mxu0 0.0
    %1809 = vmatprep.subr.mxu0 0.0
    %1810 = vmatpush2.msra.mxu0 0.0
    %1811 = vmatprep.subr.mxu0 0.0
    %1812 = vmatpush2.msra.mxu0 0.0
    %1813 = vmatprep.subr.mxu0 0.0
    %1814 = vmatpush2.msra.mxu0 0.0
    %1815 = vmatprep.subr.mxu0 0.0
    %1816 = vmatpush2.msra.mxu0 0.0
    %1817 = vmatprep.subr.mxu0 0.0
    %1818 = vmatpush2.msra.mxu0 0.0
    %1819 = vmatprep.subr.mxu0 0.0
    %1820 = vmatpush2.msra.mxu0 0.0
    %1821 = vmatprep.subr.mxu0 0.0
    %1822 = vmatpush2.msra.mxu0 0.0
    %1823 = vmatprep.subr.mxu0 0.0
    %1824 = vmatpush2.msra.mxu0 0.0
    %1825 = vmatprep.subr.mxu0 0.0
    %1826 = vmatpush2.msra.mxu0 0.0
    %1827 = vmatprep.mubr.f32.mxu0 0.0
    %1828 = vmatmul.mubr.f32.gmra.mxu0 %v1305
    %v1829 = vpop.f32.mrf.mxu0
    %v1830 = vadd.f32 0.0, %v1829
    %v1831 = vpop.f32.mrf.mxu0
    %v1832 = vadd.f32 0.0, %v1831
    %1833 = vdwg.mxu0
    %1834 = vmatprep.subr.mxu0 0.0
    %1835 = vmatpush1.msra.mxu0 %v1762
    %1836 = vmatprep.subr.mxu0 0.0
    %1837 = vmatpush1.msra.mxu0 %v1759
    %1838 = vmatprep.subr.mxu0 0.0
    %1839 = vmatpush1.msra.mxu0 %v1756
    %1840 = vmatprep.subr.mxu0 0.0
    %1841 = vmatpush1.msra.mxu0 %v1753
    %1842 = vmatprep.subr.mxu0 0.0
    %1843 = vmatpush1.msra.mxu0 %v1750
    %1844 = vmatprep.subr.mxu0 0.0
    %1845 = vmatpush1.msra.mxu0 %v1747
    %1846 = vmatprep.subr.mxu0 0.0
    %1847 = vmatpush1.msra.mxu0 %v1744
    %1848 = vmatprep.subr.mxu0 0.0
    %1849 = vmatpush1.msra.mxu0 %v1741
    %1850 = vmatprep.subr.mxu0 0.0
    %1851 = vmatpush1.msra.mxu0 %v1738
    %1852 = vmatprep.subr.mxu0 0.0
    %1853 = vmatpush1.msra.mxu0 %v1735
    %1854 = vmatprep.subr.mxu0 0.0
    %1855 = vmatpush1.msra.mxu0 %v1732
    %1856 = vmatprep.subr.mxu0 0.0
    %1857 = vmatpush1.msra.mxu0 %v1729
    %1858 = vmatprep.subr.mxu0 0.0
    %1859 = vmatpush1.msra.mxu0 %v1726
    %1860 = vmatprep.subr.mxu0 0.0
    %1861 = vmatpush1.msra.mxu0 %v1723
    %1862 = vmatprep.subr.mxu0 0.0
    %1863 = vmatpush1.msra.mxu0 %v1720
    %1864 = vmatprep.subr.mxu0 0.0
    %1865 = vmatpush1.msra.mxu0 %v1717
    %1866 = vmatprep.subr.mxu0 0.0
    %1867 = vmatpush2.msra.mxu0 0.0
    %1868 = vmatprep.subr.mxu0 0.0
    %1869 = vmatpush2.msra.mxu0 0.0
    %1870 = vmatprep.subr.mxu0 0.0
    %1871 = vmatpush2.msra.mxu0 0.0
    %1872 = vmatprep.subr.mxu0 0.0
    %1873 = vmatpush2.msra.mxu0 0.0
    %1874 = vmatprep.subr.mxu0 0.0
    %1875 = vmatpush2.msra.mxu0 0.0
    %1876 = vmatprep.subr.mxu0 0.0
    %1877 = vmatpush2.msra.mxu0 0.0
    %1878 = vmatprep.subr.mxu0 0.0
    %1879 = vmatpush2.msra.mxu0 0.0
    %1880 = vmatprep.subr.mxu0 0.0
    %1881 = vmatpush2.msra.mxu0 0.0
    %1882 = vmatprep.subr.mxu0 0.0
    %1883 = vmatpush2.msra.mxu0 0.0
    %1884 = vmatprep.subr.mxu0 0.0
    %1885 = vmatpush2.msra.mxu0 0.0
    %1886 = vmatprep.subr.mxu0 0.0
    %1887 = vmatpush2.msra.mxu0 0.0
    %1888 = vmatprep.subr.mxu0 0.0
    %1889 = vmatpush2.msra.mxu0 0.0
    %1890 = vmatprep.subr.mxu0 0.0
    %1891 = vmatpush2.msra.mxu0 0.0
    %1892 = vmatprep.subr.mxu0 0.0
    %1893 = vmatpush2.msra.mxu0 0.0
    %1894 = vmatprep.subr.mxu0 0.0
    %1895 = vmatpush2.msra.mxu0 0.0
    %1896 = vmatprep.subr.mxu0 0.0
    %1897 = vmatpush2.msra.mxu0 0.0
    %1898 = vmatprep.mubr.f32.mxu0 0.0
    %1899 = vmatmul.mubr.f32.gmra.mxu0 %v1305
    %v1900 = vpop.f32.mrf.mxu0
    %v1901 = vadd.f32 0.0, %v1900
    %v1902 = vpop.f32.mrf.mxu0
    %1903 = vdwg.mxu0
    %v1904 = vadd.f32 %v1641, %v1830
    %v1905 = vxor.u32 %v1904, 2147483648
    %v1906 = vmul.f32 %v1905, 1.442695
    %v1907 = vpow.pop %v1906
    %v1908 = vadd.f32 %v1907, 1.0
    %v1909 = vrcp.pop %v1908
    %v1910 = vmul.f32 1.0, %v1909
    %v1911 = vadd.f32 %v1643, %v1832
    %v1912 = vxor.u32 %v1911, 2147483648
    %v1913 = vmul.f32 %v1912, 1.442695
    %v1914 = vpow.pop %v1913
    %v1915 = vadd.f32 %v1914, 1.0
    %v1916 = vrcp.pop %v1915
    %v1917 = vmul.f32 1.0, %v1916
    %v1918 = vadd.f32 %v1901, %v686
    %v1919 = vmul.f32 %v1910, %v1918
    %v1920 = vadd.f32 %v1712, %v1919
    %v1921 = vtanh.pop %v1920
    %v1922 = vsub.f32 %v1305, %v1921
    %v1923 = vmul.f32 %v1917, %v1922
    %v1924 = vadd.f32 %v1921, %v1923
    %s1925 = scalar_lea.vmem [#allocation17], 8
    %1926 = vst [vmem:[%s1925] sm:$0xff] %v1924
    %s1927 = smul.u32 2, 3
    %s1928 = smul.addr %s1927, 8
    %s1929 = scalar_lea.vmem [#allocation2], %s1928
    %v1930 = vld [vmem:[%s1929] sm:$0xff]
    %v1931 = vld [vmem:[%s1929 + $0x8] sm:$0xff]
    %v1932 = vld [vmem:[%s1929 + $0x10] sm:$0xff]
    %v1933 = vadd.f32 %v1930, %v583
    %v1934 = vadd.f32 %v1931, %v585
    %v1935 = vadd.f32 %v1932, %v654
    %v1936 = vld [vmem:[#allocation12] sm:$0xff]
    %v1937 = vld [vmem:[#allocation12 + $0x8] sm:$0xff]
    %v1938 = vld [vmem:[#allocation12 + $0x10] sm:$0xff]
    %v1939 = vld [vmem:[#allocation12 + $0x18] sm:$0xff]
    %v1940 = vld [vmem:[#allocation12 + $0x20] sm:$0xff]
    %v1941 = vld [vmem:[#allocation12 + $0x28] sm:$0xff]
    %v1942 = vld [vmem:[#allocation12 + $0x30] sm:$0xff]
    %v1943 = vld [vmem:[#allocation12 + $0x38] sm:$0xff]
    %v1944 = vld [vmem:[#allocation12 + $0x40] sm:$0xff]
    %v1945 = vld [vmem:[#allocation12 + $0x48] sm:$0xff]
    %v1946 = vld [vmem:[#allocation12 + $0x50] sm:$0xff]
    %v1947 = vld [vmem:[#allocation12 + $0x58] sm:$0xff]
    %v1948 = vld [vmem:[#allocation12 + $0x60] sm:$0xff]
    %v1949 = vld [vmem:[#allocation12 + $0x68] sm:$0xff]
    %v1950 = vld [vmem:[#allocation12 + $0x70] sm:$0xff]
    %v1951 = vld [vmem:[#allocation12 + $0x78] sm:$0xff]
    %v1952 = vld [vmem:[#allocation12 + $0x80] sm:$0xff]
    %v1953 = vld [vmem:[#allocation12 + $0x88] sm:$0xff]
    %v1954 = vld [vmem:[#allocation12 + $0x90] sm:$0xff]
    %v1955 = vld [vmem:[#allocation12 + $0x98] sm:$0xff]
    %v1956 = vld [vmem:[#allocation12 + $0xa0] sm:$0xff]
    %v1957 = vld [vmem:[#allocation12 + $0xa8] sm:$0xff]
    %v1958 = vld [vmem:[#allocation12 + $0xb0] sm:$0xff]
    %v1959 = vld [vmem:[#allocation12 + $0xb8] sm:$0xff]
    %v1960 = vld [vmem:[#allocation12 + $0xc0] sm:$0xff]
    %v1961 = vld [vmem:[#allocation12 + $0xc8] sm:$0xff]
    %v1962 = vld [vmem:[#allocation12 + $0xd0] sm:$0xff]
    %v1963 = vld [vmem:[#allocation12 + $0xd8] sm:$0xff]
    %v1964 = vld [vmem:[#allocation12 + $0xe0] sm:$0xff]
    %v1965 = vld [vmem:[#allocation12 + $0xe8] sm:$0xff]
    %v1966 = vld [vmem:[#allocation12 + $0xf0] sm:$0xff]
    %v1967 = vld [vmem:[#allocation12 + $0xf8] sm:$0xff]
    %v1968 = vld [vmem:[#allocation12 + $0x100] sm:$0xff]
    %v1969 = vld [vmem:[#allocation12 + $0x108] sm:$0xff]
    %v1970 = vld [vmem:[#allocation12 + $0x110] sm:$0xff]
    %v1971 = vld [vmem:[#allocation12 + $0x118] sm:$0xff]
    %v1972 = vld [vmem:[#allocation12 + $0x120] sm:$0xff]
    %v1973 = vld [vmem:[#allocation12 + $0x128] sm:$0xff]
    %v1974 = vld [vmem:[#allocation12 + $0x130] sm:$0xff]
    %v1975 = vld [vmem:[#allocation12 + $0x138] sm:$0xff]
    %v1976 = vld [vmem:[#allocation12 + $0x140] sm:$0xff]
    %v1977 = vld [vmem:[#allocation12 + $0x148] sm:$0xff]
    %v1978 = vld [vmem:[#allocation12 + $0x150] sm:$0xff]
    %v1979 = vld [vmem:[#allocation12 + $0x158] sm:$0xff]
    %v1980 = vld [vmem:[#allocation12 + $0x160] sm:$0xff]
    %v1981 = vld [vmem:[#allocation12 + $0x168] sm:$0xff]
    %v1982 = vld [vmem:[#allocation12 + $0x170] sm:$0xff]
    %v1983 = vld [vmem:[#allocation12 + $0x178] sm:$0xff]
    %1984 = vmatprep.subr.mxu0 %v1982
    %1985 = vmatpush1.msra.mxu0 %v1981
    %1986 = vmatprep.subr.mxu0 %v1979
    %1987 = vmatpush1.msra.mxu0 %v1978
    %1988 = vmatprep.subr.mxu0 %v1976
    %1989 = vmatpush1.msra.mxu0 %v1975
    %1990 = vmatprep.subr.mxu0 %v1973
    %1991 = vmatpush1.msra.mxu0 %v1972
    %1992 = vmatprep.subr.mxu0 %v1970
    %1993 = vmatpush1.msra.mxu0 %v1969
    %1994 = vmatprep.subr.mxu0 %v1967
    %1995 = vmatpush1.msra.mxu0 %v1966
    %1996 = vmatprep.subr.mxu0 %v1964
    %1997 = vmatpush1.msra.mxu0 %v1963
    %1998 = vmatprep.subr.mxu0 %v1961
    %1999 = vmatpush1.msra.mxu0 %v1960
    %2000 = vmatprep.subr.mxu0 %v1958
    %2001 = vmatpush1.msra.mxu0 %v1957
    %2002 = vmatprep.subr.mxu0 %v1955
    %2003 = vmatpush1.msra.mxu0 %v1954
    %2004 = vmatprep.subr.mxu0 %v1952
    %2005 = vmatpush1.msra.mxu0 %v1951
    %2006 = vmatprep.subr.mxu0 %v1949
    %2007 = vmatpush1.msra.mxu0 %v1948
    %2008 = vmatprep.subr.mxu0 %v1946
    %2009 = vmatpush1.msra.mxu0 %v1945
    %2010 = vmatprep.subr.mxu0 %v1943
    %2011 = vmatpush1.msra.mxu0 %v1942
    %2012 = vmatprep.subr.mxu0 %v1940
    %2013 = vmatpush1.msra.mxu0 %v1939
    %2014 = vmatprep.subr.mxu0 %v1937
    %2015 = vmatpush1.msra.mxu0 %v1936
    %2016 = vmatprep.subr.mxu0 0.0
    %2017 = vmatpush2.msra.mxu0 0.0
    %2018 = vmatprep.subr.mxu0 0.0
    %2019 = vmatpush2.msra.mxu0 0.0
    %2020 = vmatprep.subr.mxu0 0.0
    %2021 = vmatpush2.msra.mxu0 0.0
    %2022 = vmatprep.subr.mxu0 0.0
    %2023 = vmatpush2.msra.mxu0 0.0
    %2024 = vmatprep.subr.mxu0 0.0
    %2025 = vmatpush2.msra.mxu0 0.0
    %2026 = vmatprep.subr.mxu0 0.0
    %2027 = vmatpush2.msra.mxu0 0.0
    %2028 = vmatprep.subr.mxu0 0.0
    %2029 = vmatpush2.msra.mxu0 0.0
    %2030 = vmatprep.subr.mxu0 0.0
    %2031 = vmatpush2.msra.mxu0 0.0
    %2032 = vmatprep.subr.mxu0 0.0
    %2033 = vmatpush2.msra.mxu0 0.0
    %2034 = vmatprep.subr.mxu0 0.0
    %2035 = vmatpush2.msra.mxu0 0.0
    %2036 = vmatprep.subr.mxu0 0.0
    %2037 = vmatpush2.msra.mxu0 0.0
    %2038 = vmatprep.subr.mxu0 0.0
    %2039 = vmatpush2.msra.mxu0 0.0
    %2040 = vmatprep.subr.mxu0 0.0
    %2041 = vmatpush2.msra.mxu0 0.0
    %2042 = vmatprep.subr.mxu0 0.0
    %2043 = vmatpush2.msra.mxu0 0.0
    %2044 = vmatprep.subr.mxu0 0.0
    %2045 = vmatpush2.msra.mxu0 0.0
    %2046 = vmatprep.subr.mxu0 0.0
    %2047 = vmatpush2.msra.mxu0 0.0
    %2048 = vmatprep.mubr.f32.mxu0 0.0
    %2049 = vmatmul.mubr.f32.gmra.mxu0 %v1525
    %v2050 = vpop.f32.mrf.mxu0
    %v2051 = vadd.f32 0.0, %v2050
    %v2052 = vpop.f32.mrf.mxu0
    %v2053 = vadd.f32 0.0, %v2052
    %2054 = vdwg.mxu0
    %2055 = vmatprep.subr.mxu0 0.0
    %2056 = vmatpush1.msra.mxu0 %v1983
    %2057 = vmatprep.subr.mxu0 0.0
    %2058 = vmatpush1.msra.mxu0 %v1980
    %2059 = vmatprep.subr.mxu0 0.0
    %2060 = vmatpush1.msra.mxu0 %v1977
    %2061 = vmatprep.subr.mxu0 0.0
    %2062 = vmatpush1.msra.mxu0 %v1974
    %2063 = vmatprep.subr.mxu0 0.0
    %2064 = vmatpush1.msra.mxu0 %v1971
    %2065 = vmatprep.subr.mxu0 0.0
    %2066 = vmatpush1.msra.mxu0 %v1968
    %2067 = vmatprep.subr.mxu0 0.0
    %2068 = vmatpush1.msra.mxu0 %v1965
    %2069 = vmatprep.subr.mxu0 0.0
    %2070 = vmatpush1.msra.mxu0 %v1962
    %2071 = vmatprep.subr.mxu0 0.0
    %2072 = vmatpush1.msra.mxu0 %v1959
    %2073 = vmatprep.subr.mxu0 0.0
    %2074 = vmatpush1.msra.mxu0 %v1956
    %2075 = vmatprep.subr.mxu0 0.0
    %2076 = vmatpush1.msra.mxu0 %v1953
    %2077 = vmatprep.subr.mxu0 0.0
    %2078 = vmatpush1.msra.mxu0 %v1950
    %2079 = vmatprep.subr.mxu0 0.0
    %2080 = vmatpush1.msra.mxu0 %v1947
    %2081 = vmatprep.subr.mxu0 0.0
    %2082 = vmatpush1.msra.mxu0 %v1944
    %2083 = vmatprep.subr.mxu0 0.0
    %2084 = vmatpush1.msra.mxu0 %v1941
    %2085 = vmatprep.subr.mxu0 0.0
    %2086 = vmatpush1.msra.mxu0 %v1938
    %2087 = vmatprep.subr.mxu0 0.0
    %2088 = vmatpush2.msra.mxu0 0.0
    %2089 = vmatprep.subr.mxu0 0.0
    %2090 = vmatpush2.msra.mxu0 0.0
    %2091 = vmatprep.subr.mxu0 0.0
    %2092 = vmatpush2.msra.mxu0 0.0
    %2093 = vmatprep.subr.mxu0 0.0
    %2094 = vmatpush2.msra.mxu0 0.0
    %2095 = vmatprep.subr.mxu0 0.0
    %2096 = vmatpush2.msra.mxu0 0.0
    %2097 = vmatprep.subr.mxu0 0.0
    %2098 = vmatpush2.msra.mxu0 0.0
    %2099 = vmatprep.subr.mxu0 0.0
    %2100 = vmatpush2.msra.mxu0 0.0
    %2101 = vmatprep.subr.mxu0 0.0
    %2102 = vmatpush2.msra.mxu0 0.0
    %2103 = vmatprep.subr.mxu0 0.0
    %2104 = vmatpush2.msra.mxu0 0.0
    %2105 = vmatprep.subr.mxu0 0.0
    %2106 = vmatpush2.msra.mxu0 0.0
    %2107 = vmatprep.subr.mxu0 0.0
    %2108 = vmatpush2.msra.mxu0 0.0
    %2109 = vmatprep.subr.mxu0 0.0
    %2110 = vmatpush2.msra.mxu0 0.0
    %2111 = vmatprep.subr.mxu0 0.0
    %2112 = vmatpush2.msra.mxu0 0.0
    %2113 = vmatprep.subr.mxu0 0.0
    %2114 = vmatpush2.msra.mxu0 0.0
    %2115 = vmatprep.subr.mxu0 0.0
    %2116 = vmatpush2.msra.mxu0 0.0
    %2117 = vmatprep.subr.mxu0 0.0
    %2118 = vmatpush2.msra.mxu0 0.0
    %2119 = vmatprep.mubr.f32.mxu0 0.0
    %2120 = vmatmul.mubr.f32.gmra.mxu0 %v1525
    %v2121 = vpop.f32.mrf.mxu0
    %v2122 = vadd.f32 0.0, %v2121
    %v2123 = vpop.f32.mrf.mxu0
    %2124 = vdwg.mxu0
    %v2125 = vadd.f32 %v1933, %v2051
    %v2126 = vxor.u32 %v2125, 2147483648
    %v2127 = vmul.f32 %v2126, 1.442695
    %v2128 = vpow.pop %v2127
    %v2129 = vadd.f32 %v2128, 1.0
    %v2130 = vrcp.pop %v2129
    %v2131 = vmul.f32 1.0, %v2130
    %v2132 = vadd.f32 %v1934, %v2053
    %v2133 = vxor.u32 %v2132, 2147483648
    %v2134 = vmul.f32 %v2133, 1.442695
    %v2135 = vpow.pop %v2134
    %v2136 = vadd.f32 %v2135, 1.0
    %v2137 = vrcp.pop %v2136
    %v2138 = vmul.f32 1.0, %v2137
    %v2139 = vadd.f32 %v2122, %v679
    %v2140 = vmul.f32 %v2131, %v2139
    %v2141 = vadd.f32 %v1935, %v2140
    %v2142 = vtanh.pop %v2141
    %v2143 = vsub.f32 %v1525, %v2142
    %v2144 = vmul.f32 %v2138, %v2143
    %v2145 = vadd.f32 %v2142, %v2144
    %v2146 = vld [vmem:[#allocation14] sm:$0xff]
    %v2147 = vld [vmem:[#allocation14 + $0x8] sm:$0xff]
    %v2148 = vld [vmem:[#allocation14 + $0x10] sm:$0xff]
    %v2149 = vld [vmem:[#allocation14 + $0x18] sm:$0xff]
    %v2150 = vld [vmem:[#allocation14 + $0x20] sm:$0xff]
    %v2151 = vld [vmem:[#allocation14 + $0x28] sm:$0xff]
    %v2152 = vld [vmem:[#allocation14 + $0x30] sm:$0xff]
    %v2153 = vld [vmem:[#allocation14 + $0x38] sm:$0xff]
    %v2154 = vld [vmem:[#allocation14 + $0x40] sm:$0xff]
    %v2155 = vld [vmem:[#allocation14 + $0x48] sm:$0xff]
    %v2156 = vld [vmem:[#allocation14 + $0x50] sm:$0xff]
    %v2157 = vld [vmem:[#allocation14 + $0x58] sm:$0xff]
    %v2158 = vld [vmem:[#allocation14 + $0x60] sm:$0xff]
    %v2159 = vld [vmem:[#allocation14 + $0x68] sm:$0xff]
    %v2160 = vld [vmem:[#allocation14 + $0x70] sm:$0xff]
    %v2161 = vld [vmem:[#allocation14 + $0x78] sm:$0xff]
    %v2162 = vld [vmem:[#allocation14 + $0x80] sm:$0xff]
    %v2163 = vld [vmem:[#allocation14 + $0x88] sm:$0xff]
    %v2164 = vld [vmem:[#allocation14 + $0x90] sm:$0xff]
    %v2165 = vld [vmem:[#allocation14 + $0x98] sm:$0xff]
    %v2166 = vld [vmem:[#allocation14 + $0xa0] sm:$0xff]
    %v2167 = vld [vmem:[#allocation14 + $0xa8] sm:$0xff]
    %v2168 = vld [vmem:[#allocation14 + $0xb0] sm:$0xff]
    %v2169 = vld [vmem:[#allocation14 + $0xb8] sm:$0xff]
    %v2170 = vld [vmem:[#allocation14 + $0xc0] sm:$0xff]
    %v2171 = vld [vmem:[#allocation14 + $0xc8] sm:$0xff]
    %v2172 = vld [vmem:[#allocation14 + $0xd0] sm:$0xff]
    %v2173 = vld [vmem:[#allocation14 + $0xd8] sm:$0xff]
    %v2174 = vld [vmem:[#allocation14 + $0xe0] sm:$0xff]
    %v2175 = vld [vmem:[#allocation14 + $0xe8] sm:$0xff]
    %v2176 = vld [vmem:[#allocation14 + $0xf0] sm:$0xff]
    %v2177 = vld [vmem:[#allocation14 + $0xf8] sm:$0xff]
    %v2178 = vld [vmem:[#allocation14 + $0x100] sm:$0xff]
    %v2179 = vld [vmem:[#allocation14 + $0x108] sm:$0xff]
    %v2180 = vld [vmem:[#allocation14 + $0x110] sm:$0xff]
    %v2181 = vld [vmem:[#allocation14 + $0x118] sm:$0xff]
    %v2182 = vld [vmem:[#allocation14 + $0x120] sm:$0xff]
    %v2183 = vld [vmem:[#allocation14 + $0x128] sm:$0xff]
    %v2184 = vld [vmem:[#allocation14 + $0x130] sm:$0xff]
    %v2185 = vld [vmem:[#allocation14 + $0x138] sm:$0xff]
    %v2186 = vld [vmem:[#allocation14 + $0x140] sm:$0xff]
    %v2187 = vld [vmem:[#allocation14 + $0x148] sm:$0xff]
    %v2188 = vld [vmem:[#allocation14 + $0x150] sm:$0xff]
    %v2189 = vld [vmem:[#allocation14 + $0x158] sm:$0xff]
    %v2190 = vld [vmem:[#allocation14 + $0x160] sm:$0xff]
    %v2191 = vld [vmem:[#allocation14 + $0x168] sm:$0xff]
    %v2192 = vld [vmem:[#allocation14 + $0x170] sm:$0xff]
    %v2193 = vld [vmem:[#allocation14 + $0x178] sm:$0xff]
    %2194 = vmatprep.subr.mxu0 %v2192
    %2195 = vmatpush1.msra.mxu0 %v2191
    %2196 = vmatprep.subr.mxu0 %v2189
    %2197 = vmatpush1.msra.mxu0 %v2188
    %2198 = vmatprep.subr.mxu0 %v2186
    %2199 = vmatpush1.msra.mxu0 %v2185
    %2200 = vmatprep.subr.mxu0 %v2183
    %2201 = vmatpush1.msra.mxu0 %v2182
    %2202 = vmatprep.subr.mxu0 %v2180
    %2203 = vmatpush1.msra.mxu0 %v2179
    %2204 = vmatprep.subr.mxu0 %v2177
    %2205 = vmatpush1.msra.mxu0 %v2176
    %2206 = vmatprep.subr.mxu0 %v2174
    %2207 = vmatpush1.msra.mxu0 %v2173
    %2208 = vmatprep.subr.mxu0 %v2171
    %2209 = vmatpush1.msra.mxu0 %v2170
    %2210 = vmatprep.subr.mxu0 %v2168
    %2211 = vmatpush1.msra.mxu0 %v2167
    %2212 = vmatprep.subr.mxu0 %v2165
    %2213 = vmatpush1.msra.mxu0 %v2164
    %2214 = vmatprep.subr.mxu0 %v2162
    %2215 = vmatpush1.msra.mxu0 %v2161
    %2216 = vmatprep.subr.mxu0 %v2159
    %2217 = vmatpush1.msra.mxu0 %v2158
    %2218 = vmatprep.subr.mxu0 %v2156
    %2219 = vmatpush1.msra.mxu0 %v2155
    %2220 = vmatprep.subr.mxu0 %v2153
    %2221 = vmatpush1.msra.mxu0 %v2152
    %2222 = vmatprep.subr.mxu0 %v2150
    %2223 = vmatpush1.msra.mxu0 %v2149
    %2224 = vmatprep.subr.mxu0 %v2147
    %2225 = vmatpush1.msra.mxu0 %v2146
    %2226 = vmatprep.subr.mxu0 0.0
    %2227 = vmatpush2.msra.mxu0 0.0
    %2228 = vmatprep.subr.mxu0 0.0
    %2229 = vmatpush2.msra.mxu0 0.0
    %2230 = vmatprep.subr.mxu0 0.0
    %2231 = vmatpush2.msra.mxu0 0.0
    %2232 = vmatprep.subr.mxu0 0.0
    %2233 = vmatpush2.msra.mxu0 0.0
    %2234 = vmatprep.subr.mxu0 0.0
    %2235 = vmatpush2.msra.mxu0 0.0
    %2236 = vmatprep.subr.mxu0 0.0
    %2237 = vmatpush2.msra.mxu0 0.0
    %2238 = vmatprep.subr.mxu0 0.0
    %2239 = vmatpush2.msra.mxu0 0.0
    %2240 = vmatprep.subr.mxu0 0.0
    %2241 = vmatpush2.msra.mxu0 0.0
    %2242 = vmatprep.subr.mxu0 0.0
    %2243 = vmatpush2.msra.mxu0 0.0
    %2244 = vmatprep.subr.mxu0 0.0
    %2245 = vmatpush2.msra.mxu0 0.0
    %2246 = vmatprep.subr.mxu0 0.0
    %2247 = vmatpush2.msra.mxu0 0.0
    %2248 = vmatprep.subr.mxu0 0.0
    %2249 = vmatpush2.msra.mxu0 0.0
    %2250 = vmatprep.subr.mxu0 0.0
    %2251 = vmatpush2.msra.mxu0 0.0
    %2252 = vmatprep.subr.mxu0 0.0
    %2253 = vmatpush2.msra.mxu0 0.0
    %2254 = vmatprep.subr.mxu0 0.0
    %2255 = vmatpush2.msra.mxu0 0.0
    %2256 = vmatprep.subr.mxu0 0.0
    %2257 = vmatpush2.msra.mxu0 0.0
    %2258 = vmatprep.mubr.f32.mxu0 0.0
    %2259 = vmatmul.mubr.f32.gmra.mxu0 %v2145
    %v2260 = vpop.f32.mrf.mxu0
    %v2261 = vadd.f32 %v662, %v2260
    %v2262 = vpop.f32.mrf.mxu0
    %v2263 = vadd.f32 %v666, %v2262
    %2264 = vdwg.mxu0
    %2265 = vmatprep.subr.mxu0 0.0
    %2266 = vmatpush1.msra.mxu0 %v2193
    %2267 = vmatprep.subr.mxu0 0.0
    %2268 = vmatpush1.msra.mxu0 %v2190
    %2269 = vmatprep.subr.mxu0 0.0
    %2270 = vmatpush1.msra.mxu0 %v2187
    %2271 = vmatprep.subr.mxu0 0.0
    %2272 = vmatpush1.msra.mxu0 %v2184
    %2273 = vmatprep.subr.mxu0 0.0
    %2274 = vmatpush1.msra.mxu0 %v2181
    %2275 = vmatprep.subr.mxu0 0.0
    %2276 = vmatpush1.msra.mxu0 %v2178
    %2277 = vmatprep.subr.mxu0 0.0
    %2278 = vmatpush1.msra.mxu0 %v2175
    %2279 = vmatprep.subr.mxu0 0.0
    %2280 = vmatpush1.msra.mxu0 %v2172
    %2281 = vmatprep.subr.mxu0 0.0
    %2282 = vmatpush1.msra.mxu0 %v2169
    %2283 = vmatprep.subr.mxu0 0.0
    %2284 = vmatpush1.msra.mxu0 %v2166
    %2285 = vmatprep.subr.mxu0 0.0
    %2286 = vmatpush1.msra.mxu0 %v2163
    %2287 = vmatprep.subr.mxu0 0.0
    %2288 = vmatpush1.msra.mxu0 %v2160
    %2289 = vmatprep.subr.mxu0 0.0
    %2290 = vmatpush1.msra.mxu0 %v2157
    %2291 = vmatprep.subr.mxu0 0.0
    %2292 = vmatpush1.msra.mxu0 %v2154
    %2293 = vmatprep.subr.mxu0 0.0
    %2294 = vmatpush1.msra.mxu0 %v2151
    %2295 = vmatprep.subr.mxu0 0.0
    %2296 = vmatpush1.msra.mxu0 %v2148
    %2297 = vmatprep.subr.mxu0 0.0
    %2298 = vmatpush2.msra.mxu0 0.0
    %2299 = vmatprep.subr.mxu0 0.0
    %2300 = vmatpush2.msra.mxu0 0.0
    %2301 = vmatprep.subr.mxu0 0.0
    %2302 = vmatpush2.msra.mxu0 0.0
    %2303 = vmatprep.subr.mxu0 0.0
    %2304 = vmatpush2.msra.mxu0 0.0
    %2305 = vmatprep.subr.mxu0 0.0
    %2306 = vmatpush2.msra.mxu0 0.0
    %2307 = vmatprep.subr.mxu0 0.0
    %2308 = vmatpush2.msra.mxu0 0.0
    %2309 = vmatprep.subr.mxu0 0.0
    %2310 = vmatpush2.msra.mxu0 0.0
    %2311 = vmatprep.subr.mxu0 0.0
    %2312 = vmatpush2.msra.mxu0 0.0
    %2313 = vmatprep.subr.mxu0 0.0
    %2314 = vmatpush2.msra.mxu0 0.0
    %2315 = vmatprep.subr.mxu0 0.0
    %2316 = vmatpush2.msra.mxu0 0.0
    %2317 = vmatprep.subr.mxu0 0.0
    %2318 = vmatpush2.msra.mxu0 0.0
    %2319 = vmatprep.subr.mxu0 0.0
    %2320 = vmatpush2.msra.mxu0 0.0
    %2321 = vmatprep.subr.mxu0 0.0
    %2322 = vmatpush2.msra.mxu0 0.0
    %2323 = vmatprep.subr.mxu0 0.0
    %2324 = vmatpush2.msra.mxu0 0.0
    %2325 = vmatprep.subr.mxu0 0.0
    %2326 = vmatpush2.msra.mxu0 0.0
    %2327 = vmatprep.subr.mxu0 0.0
    %2328 = vmatpush2.msra.mxu0 0.0
    %2329 = vmatprep.mubr.f32.mxu0 0.0
    %2330 = vmatmul.mubr.f32.gmra.mxu0 %v2145
    %v2331 = vpop.f32.mrf.mxu0
    %v2332 = vadd.f32 %v670, %v2331
    %v2333 = vpop.f32.mrf.mxu0
    %2334 = vdwg.mxu0
    %v2335 = vld [vmem:[#allocation15] sm:$0xff]
    %v2336 = vld [vmem:[#allocation15 + $0x8] sm:$0xff]
    %v2337 = vld [vmem:[#allocation15 + $0x10] sm:$0xff]
    %v2338 = vld [vmem:[#allocation15 + $0x18] sm:$0xff]
    %v2339 = vld [vmem:[#allocation15 + $0x20] sm:$0xff]
    %v2340 = vld [vmem:[#allocation15 + $0x28] sm:$0xff]
    %v2341 = vld [vmem:[#allocation15 + $0x30] sm:$0xff]
    %v2342 = vld [vmem:[#allocation15 + $0x38] sm:$0xff]
    %v2343 = vld [vmem:[#allocation15 + $0x40] sm:$0xff]
    %v2344 = vld [vmem:[#allocation15 + $0x48] sm:$0xff]
    %v2345 = vld [vmem:[#allocation15 + $0x50] sm:$0xff]
    %v2346 = vld [vmem:[#allocation15 + $0x58] sm:$0xff]
    %v2347 = vld [vmem:[#allocation15 + $0x60] sm:$0xff]
    %v2348 = vld [vmem:[#allocation15 + $0x68] sm:$0xff]
    %v2349 = vld [vmem:[#allocation15 + $0x70] sm:$0xff]
    %v2350 = vld [vmem:[#allocation15 + $0x78] sm:$0xff]
    %v2351 = vld [vmem:[#allocation15 + $0x80] sm:$0xff]
    %v2352 = vld [vmem:[#allocation15 + $0x88] sm:$0xff]
    %v2353 = vld [vmem:[#allocation15 + $0x90] sm:$0xff]
    %v2354 = vld [vmem:[#allocation15 + $0x98] sm:$0xff]
    %v2355 = vld [vmem:[#allocation15 + $0xa0] sm:$0xff]
    %v2356 = vld [vmem:[#allocation15 + $0xa8] sm:$0xff]
    %v2357 = vld [vmem:[#allocation15 + $0xb0] sm:$0xff]
    %v2358 = vld [vmem:[#allocation15 + $0xb8] sm:$0xff]
    %v2359 = vld [vmem:[#allocation15 + $0xc0] sm:$0xff]
    %v2360 = vld [vmem:[#allocation15 + $0xc8] sm:$0xff]
    %v2361 = vld [vmem:[#allocation15 + $0xd0] sm:$0xff]
    %v2362 = vld [vmem:[#allocation15 + $0xd8] sm:$0xff]
    %v2363 = vld [vmem:[#allocation15 + $0xe0] sm:$0xff]
    %v2364 = vld [vmem:[#allocation15 + $0xe8] sm:$0xff]
    %v2365 = vld [vmem:[#allocation15 + $0xf0] sm:$0xff]
    %v2366 = vld [vmem:[#allocation15 + $0xf8] sm:$0xff]
    %v2367 = vld [vmem:[#allocation15 + $0x100] sm:$0xff]
    %v2368 = vld [vmem:[#allocation15 + $0x108] sm:$0xff]
    %v2369 = vld [vmem:[#allocation15 + $0x110] sm:$0xff]
    %v2370 = vld [vmem:[#allocation15 + $0x118] sm:$0xff]
    %v2371 = vld [vmem:[#allocation15 + $0x120] sm:$0xff]
    %v2372 = vld [vmem:[#allocation15 + $0x128] sm:$0xff]
    %v2373 = vld [vmem:[#allocation15 + $0x130] sm:$0xff]
    %v2374 = vld [vmem:[#allocation15 + $0x138] sm:$0xff]
    %v2375 = vld [vmem:[#allocation15 + $0x140] sm:$0xff]
    %v2376 = vld [vmem:[#allocation15 + $0x148] sm:$0xff]
    %v2377 = vld [vmem:[#allocation15 + $0x150] sm:$0xff]
    %v2378 = vld [vmem:[#allocation15 + $0x158] sm:$0xff]
    %v2379 = vld [vmem:[#allocation15 + $0x160] sm:$0xff]
    %v2380 = vld [vmem:[#allocation15 + $0x168] sm:$0xff]
    %v2381 = vld [vmem:[#allocation15 + $0x170] sm:$0xff]
    %v2382 = vld [vmem:[#allocation15 + $0x178] sm:$0xff]
    %2383 = vmatprep.subr.mxu0 %v2381
    %2384 = vmatpush1.msra.mxu0 %v2380
    %2385 = vmatprep.subr.mxu0 %v2378
    %2386 = vmatpush1.msra.mxu0 %v2377
    %2387 = vmatprep.subr.mxu0 %v2375
    %2388 = vmatpush1.msra.mxu0 %v2374
    %2389 = vmatprep.subr.mxu0 %v2372
    %2390 = vmatpush1.msra.mxu0 %v2371
    %2391 = vmatprep.subr.mxu0 %v2369
    %2392 = vmatpush1.msra.mxu0 %v2368
    %2393 = vmatprep.subr.mxu0 %v2366
    %2394 = vmatpush1.msra.mxu0 %v2365
    %2395 = vmatprep.subr.mxu0 %v2363
    %2396 = vmatpush1.msra.mxu0 %v2362
    %2397 = vmatprep.subr.mxu0 %v2360
    %2398 = vmatpush1.msra.mxu0 %v2359
    %2399 = vmatprep.subr.mxu0 %v2357
    %2400 = vmatpush1.msra.mxu0 %v2356
    %2401 = vmatprep.subr.mxu0 %v2354
    %2402 = vmatpush1.msra.mxu0 %v2353
    %2403 = vmatprep.subr.mxu0 %v2351
    %2404 = vmatpush1.msra.mxu0 %v2350
    %2405 = vmatprep.subr.mxu0 %v2348
    %2406 = vmatpush1.msra.mxu0 %v2347
    %2407 = vmatprep.subr.mxu0 %v2345
    %2408 = vmatpush1.msra.mxu0 %v2344
    %2409 = vmatprep.subr.mxu0 %v2342
    %2410 = vmatpush1.msra.mxu0 %v2341
    %2411 = vmatprep.subr.mxu0 %v2339
    %2412 = vmatpush1.msra.mxu0 %v2338
    %2413 = vmatprep.subr.mxu0 %v2336
    %2414 = vmatpush1.msra.mxu0 %v2335
    %2415 = vmatprep.subr.mxu0 0.0
    %2416 = vmatpush2.msra.mxu0 0.0
    %2417 = vmatprep.subr.mxu0 0.0
    %2418 = vmatpush2.msra.mxu0 0.0
    %2419 = vmatprep.subr.mxu0 0.0
    %2420 = vmatpush2.msra.mxu0 0.0
    %2421 = vmatprep.subr.mxu0 0.0
    %2422 = vmatpush2.msra.mxu0 0.0
    %2423 = vmatprep.subr.mxu0 0.0
    %2424 = vmatpush2.msra.mxu0 0.0
    %2425 = vmatprep.subr.mxu0 0.0
    %2426 = vmatpush2.msra.mxu0 0.0
    %2427 = vmatprep.subr.mxu0 0.0
    %2428 = vmatpush2.msra.mxu0 0.0
    %2429 = vmatprep.subr.mxu0 0.0
    %2430 = vmatpush2.msra.mxu0 0.0
    %2431 = vmatprep.subr.mxu0 0.0
    %2432 = vmatpush2.msra.mxu0 0.0
    %2433 = vmatprep.subr.mxu0 0.0
    %2434 = vmatpush2.msra.mxu0 0.0
    %2435 = vmatprep.subr.mxu0 0.0
    %2436 = vmatpush2.msra.mxu0 0.0
    %2437 = vmatprep.subr.mxu0 0.0
    %2438 = vmatpush2.msra.mxu0 0.0
    %2439 = vmatprep.subr.mxu0 0.0
    %2440 = vmatpush2.msra.mxu0 0.0
    %2441 = vmatprep.subr.mxu0 0.0
    %2442 = vmatpush2.msra.mxu0 0.0
    %2443 = vmatprep.subr.mxu0 0.0
    %2444 = vmatpush2.msra.mxu0 0.0
    %2445 = vmatprep.subr.mxu0 0.0
    %2446 = vmatpush2.msra.mxu0 0.0
    %2447 = vmatprep.mubr.f32.mxu0 0.0
    %2448 = vmatmul.mubr.f32.gmra.mxu0 %v1924
    %v2449 = vpop.f32.mrf.mxu0
    %v2450 = vadd.f32 0.0, %v2449
    %v2451 = vpop.f32.mrf.mxu0
    %v2452 = vadd.f32 0.0, %v2451
    %2453 = vdwg.mxu0
    %2454 = vmatprep.subr.mxu0 0.0
    %2455 = vmatpush1.msra.mxu0 %v2382
    %2456 = vmatprep.subr.mxu0 0.0
    %2457 = vmatpush1.msra.mxu0 %v2379
    %2458 = vmatprep.subr.mxu0 0.0
    %2459 = vmatpush1.msra.mxu0 %v2376
    %2460 = vmatprep.subr.mxu0 0.0
    %2461 = vmatpush1.msra.mxu0 %v2373
    %2462 = vmatprep.subr.mxu0 0.0
    %2463 = vmatpush1.msra.mxu0 %v2370
    %2464 = vmatprep.subr.mxu0 0.0
    %2465 = vmatpush1.msra.mxu0 %v2367
    %2466 = vmatprep.subr.mxu0 0.0
    %2467 = vmatpush1.msra.mxu0 %v2364
    %2468 = vmatprep.subr.mxu0 0.0
    %2469 = vmatpush1.msra.mxu0 %v2361
    %2470 = vmatprep.subr.mxu0 0.0
    %2471 = vmatpush1.msra.mxu0 %v2358
    %2472 = vmatprep.subr.mxu0 0.0
    %2473 = vmatpush1.msra.mxu0 %v2355
    %2474 = vmatprep.subr.mxu0 0.0
    %2475 = vmatpush1.msra.mxu0 %v2352
    %2476 = vmatprep.subr.mxu0 0.0
    %2477 = vmatpush1.msra.mxu0 %v2349
    %2478 = vmatprep.subr.mxu0 0.0
    %2479 = vmatpush1.msra.mxu0 %v2346
    %2480 = vmatprep.subr.mxu0 0.0
    %2481 = vmatpush1.msra.mxu0 %v2343
    %2482 = vmatprep.subr.mxu0 0.0
    %2483 = vmatpush1.msra.mxu0 %v2340
    %2484 = vmatprep.subr.mxu0 0.0
    %2485 = vmatpush1.msra.mxu0 %v2337
    %2486 = vmatprep.subr.mxu0 0.0
    %2487 = vmatpush2.msra.mxu0 0.0
    %2488 = vmatprep.subr.mxu0 0.0
    %2489 = vmatpush2.msra.mxu0 0.0
    %2490 = vmatprep.subr.mxu0 0.0
    %2491 = vmatpush2.msra.mxu0 0.0
    %2492 = vmatprep.subr.mxu0 0.0
    %2493 = vmatpush2.msra.mxu0 0.0
    %2494 = vmatprep.subr.mxu0 0.0
    %2495 = vmatpush2.msra.mxu0 0.0
    %2496 = vmatprep.subr.mxu0 0.0
    %2497 = vmatpush2.msra.mxu0 0.0
    %2498 = vmatprep.subr.mxu0 0.0
    %2499 = vmatpush2.msra.mxu0 0.0
    %2500 = vmatprep.subr.mxu0 0.0
    %2501 = vmatpush2.msra.mxu0 0.0
    %2502 = vmatprep.subr.mxu0 0.0
    %2503 = vmatpush2.msra.mxu0 0.0
    %2504 = vmatprep.subr.mxu0 0.0
    %2505 = vmatpush2.msra.mxu0 0.0
    %2506 = vmatprep.subr.mxu0 0.0
    %2507 = vmatpush2.msra.mxu0 0.0
    %2508 = vmatprep.subr.mxu0 0.0
    %2509 = vmatpush2.msra.mxu0 0.0
    %2510 = vmatprep.subr.mxu0 0.0
    %2511 = vmatpush2.msra.mxu0 0.0
    %2512 = vmatprep.subr.mxu0 0.0
    %2513 = vmatpush2.msra.mxu0 0.0
    %2514 = vmatprep.subr.mxu0 0.0
    %2515 = vmatpush2.msra.mxu0 0.0
    %2516 = vmatprep.subr.mxu0 0.0
    %2517 = vmatpush2.msra.mxu0 0.0
    %2518 = vmatprep.mubr.f32.mxu0 0.0
    %2519 = vmatmul.mubr.f32.gmra.mxu0 %v1924
    %v2520 = vpop.f32.mrf.mxu0
    %v2521 = vadd.f32 0.0, %v2520
    %v2522 = vpop.f32.mrf.mxu0
    %2523 = vdwg.mxu0
    %v2524 = vadd.f32 %v2261, %v2450
    %v2525 = vxor.u32 %v2524, 2147483648
    %v2526 = vmul.f32 %v2525, 1.442695
    %v2527 = vpow.pop %v2526
    %v2528 = vadd.f32 %v2527, 1.0
    %v2529 = vrcp.pop %v2528
    %v2530 = vmul.f32 1.0, %v2529
    %v2531 = vadd.f32 %v2263, %v2452
    %v2532 = vxor.u32 %v2531, 2147483648
    %v2533 = vmul.f32 %v2532, 1.442695
    %v2534 = vpow.pop %v2533
    %v2535 = vadd.f32 %v2534, 1.0
    %v2536 = vrcp.pop %v2535
    %v2537 = vmul.f32 1.0, %v2536
    %v2538 = vadd.f32 %v2521, %v686
    %v2539 = vmul.f32 %v2530, %v2538
    %v2540 = vadd.f32 %v2332, %v2539
    %v2541 = vtanh.pop %v2540
    %v2542 = vsub.f32 %v1924, %v2541
    %v2543 = vmul.f32 %v2537, %v2542
    %v2544 = vadd.f32 %v2541, %v2543
    %s2545 = scalar_lea.vmem [#allocation17], 16
    %2546 = vst [vmem:[%s2545] sm:$0xff] %v2544
    %s2547 = smul.u32 3, 3
    %s2548 = smul.addr %s2547, 8
    %s2549 = scalar_lea.vmem [#allocation2], %s2548
    %v2550 = vld [vmem:[%s2549] sm:$0xff]
    %v2551 = vld [vmem:[%s2549 + $0x8] sm:$0xff]
    %v2552 = vld [vmem:[%s2549 + $0x10] sm:$0xff]
    %v2553 = vadd.f32 %v2550, %v583
    %v2554 = vadd.f32 %v2551, %v585
    %v2555 = vadd.f32 %v2552, %v654
    %v2556 = vld [vmem:[#allocation12] sm:$0xff]
    %v2557 = vld [vmem:[#allocation12 + $0x8] sm:$0xff]
    %v2558 = vld [vmem:[#allocation12 + $0x10] sm:$0xff]
    %v2559 = vld [vmem:[#allocation12 + $0x18] sm:$0xff]
    %v2560 = vld [vmem:[#allocation12 + $0x20] sm:$0xff]
    %v2561 = vld [vmem:[#allocation12 + $0x28] sm:$0xff]
    %v2562 = vld [vmem:[#allocation12 + $0x30] sm:$0xff]
    %v2563 = vld [vmem:[#allocation12 + $0x38] sm:$0xff]
    %v2564 = vld [vmem:[#allocation12 + $0x40] sm:$0xff]
    %v2565 = vld [vmem:[#allocation12 + $0x48] sm:$0xff]
    %v2566 = vld [vmem:[#allocation12 + $0x50] sm:$0xff]
    %v2567 = vld [vmem:[#allocation12 + $0x58] sm:$0xff]
    %v2568 = vld [vmem:[#allocation12 + $0x60] sm:$0xff]
    %v2569 = vld [vmem:[#allocation12 + $0x68] sm:$0xff]
    %v2570 = vld [vmem:[#allocation12 + $0x70] sm:$0xff]
    %v2571 = vld [vmem:[#allocation12 + $0x78] sm:$0xff]
    %v2572 = vld [vmem:[#allocation12 + $0x80] sm:$0xff]
    %v2573 = vld [vmem:[#allocation12 + $0x88] sm:$0xff]
    %v2574 = vld [vmem:[#allocation12 + $0x90] sm:$0xff]
    %v2575 = vld [vmem:[#allocation12 + $0x98] sm:$0xff]
    %v2576 = vld [vmem:[#allocation12 + $0xa0] sm:$0xff]
    %v2577 = vld [vmem:[#allocation12 + $0xa8] sm:$0xff]
    %v2578 = vld [vmem:[#allocation12 + $0xb0] sm:$0xff]
    %v2579 = vld [vmem:[#allocation12 + $0xb8] sm:$0xff]
    %v2580 = vld [vmem:[#allocation12 + $0xc0] sm:$0xff]
    %v2581 = vld [vmem:[#allocation12 + $0xc8] sm:$0xff]
    %v2582 = vld [vmem:[#allocation12 + $0xd0] sm:$0xff]
    %v2583 = vld [vmem:[#allocation12 + $0xd8] sm:$0xff]
    %v2584 = vld [vmem:[#allocation12 + $0xe0] sm:$0xff]
    %v2585 = vld [vmem:[#allocation12 + $0xe8] sm:$0xff]
    %v2586 = vld [vmem:[#allocation12 + $0xf0] sm:$0xff]
    %v2587 = vld [vmem:[#allocation12 + $0xf8] sm:$0xff]
    %v2588 = vld [vmem:[#allocation12 + $0x100] sm:$0xff]
    %v2589 = vld [vmem:[#allocation12 + $0x108] sm:$0xff]
    %v2590 = vld [vmem:[#allocation12 + $0x110] sm:$0xff]
    %v2591 = vld [vmem:[#allocation12 + $0x118] sm:$0xff]
    %v2592 = vld [vmem:[#allocation12 + $0x120] sm:$0xff]
    %v2593 = vld [vmem:[#allocation12 + $0x128] sm:$0xff]
    %v2594 = vld [vmem:[#allocation12 + $0x130] sm:$0xff]
    %v2595 = vld [vmem:[#allocation12 + $0x138] sm:$0xff]
    %v2596 = vld [vmem:[#allocation12 + $0x140] sm:$0xff]
    %v2597 = vld [vmem:[#allocation12 + $0x148] sm:$0xff]
    %v2598 = vld [vmem:[#allocation12 + $0x150] sm:$0xff]
    %v2599 = vld [vmem:[#allocation12 + $0x158] sm:$0xff]
    %v2600 = vld [vmem:[#allocation12 + $0x160] sm:$0xff]
    %v2601 = vld [vmem:[#allocation12 + $0x168] sm:$0xff]
    %v2602 = vld [vmem:[#allocation12 + $0x170] sm:$0xff]
    %v2603 = vld [vmem:[#allocation12 + $0x178] sm:$0xff]
    %2604 = vmatprep.subr.mxu0 %v2602
    %2605 = vmatpush1.msra.mxu0 %v2601
    %2606 = vmatprep.subr.mxu0 %v2599
    %2607 = vmatpush1.msra.mxu0 %v2598
    %2608 = vmatprep.subr.mxu0 %v2596
    %2609 = vmatpush1.msra.mxu0 %v2595
    %2610 = vmatprep.subr.mxu0 %v2593
    %2611 = vmatpush1.msra.mxu0 %v2592
    %2612 = vmatprep.subr.mxu0 %v2590
    %2613 = vmatpush1.msra.mxu0 %v2589
    %2614 = vmatprep.subr.mxu0 %v2587
    %2615 = vmatpush1.msra.mxu0 %v2586
    %2616 = vmatprep.subr.mxu0 %v2584
    %2617 = vmatpush1.msra.mxu0 %v2583
    %2618 = vmatprep.subr.mxu0 %v2581
    %2619 = vmatpush1.msra.mxu0 %v2580
    %2620 = vmatprep.subr.mxu0 %v2578
    %2621 = vmatpush1.msra.mxu0 %v2577
    %2622 = vmatprep.subr.mxu0 %v2575
    %2623 = vmatpush1.msra.mxu0 %v2574
    %2624 = vmatprep.subr.mxu0 %v2572
    %2625 = vmatpush1.msra.mxu0 %v2571
    %2626 = vmatprep.subr.mxu0 %v2569
    %2627 = vmatpush1.msra.mxu0 %v2568
    %2628 = vmatprep.subr.mxu0 %v2566
    %2629 = vmatpush1.msra.mxu0 %v2565
    %2630 = vmatprep.subr.mxu0 %v2563
    %2631 = vmatpush1.msra.mxu0 %v2562
    %2632 = vmatprep.subr.mxu0 %v2560
    %2633 = vmatpush1.msra.mxu0 %v2559
    %2634 = vmatprep.subr.mxu0 %v2557
    %2635 = vmatpush1.msra.mxu0 %v2556
    %2636 = vmatprep.subr.mxu0 0.0
    %2637 = vmatpush2.msra.mxu0 0.0
    %2638 = vmatprep.subr.mxu0 0.0
    %2639 = vmatpush2.msra.mxu0 0.0
    %2640 = vmatprep.subr.mxu0 0.0
    %2641 = vmatpush2.msra.mxu0 0.0
    %2642 = vmatprep.subr.mxu0 0.0
    %2643 = vmatpush2.msra.mxu0 0.0
    %2644 = vmatprep.subr.mxu0 0.0
    %2645 = vmatpush2.msra.mxu0 0.0
    %2646 = vmatprep.subr.mxu0 0.0
    %2647 = vmatpush2.msra.mxu0 0.0
    %2648 = vmatprep.subr.mxu0 0.0
    %2649 = vmatpush2.msra.mxu0 0.0
    %2650 = vmatprep.subr.mxu0 0.0
    %2651 = vmatpush2.msra.mxu0 0.0
    %2652 = vmatprep.subr.mxu0 0.0
    %2653 = vmatpush2.msra.mxu0 0.0
    %2654 = vmatprep.subr.mxu0 0.0
    %2655 = vmatpush2.msra.mxu0 0.0
    %2656 = vmatprep.subr.mxu0 0.0
    %2657 = vmatpush2.msra.mxu0 0.0
    %2658 = vmatprep.subr.mxu0 0.0
    %2659 = vmatpush2.msra.mxu0 0.0
    %2660 = vmatprep.subr.mxu0 0.0
    %2661 = vmatpush2.msra.mxu0 0.0
    %2662 = vmatprep.subr.mxu0 0.0
    %2663 = vmatpush2.msra.mxu0 0.0
    %2664 = vmatprep.subr.mxu0 0.0
    %2665 = vmatpush2.msra.mxu0 0.0
    %2666 = vmatprep.subr.mxu0 0.0
    %2667 = vmatpush2.msra.mxu0 0.0
    %2668 = vmatprep.mubr.f32.mxu0 0.0
    %2669 = vmatmul.mubr.f32.gmra.mxu0 %v2145
    %v2670 = vpop.f32.mrf.mxu0
    %v2671 = vadd.f32 0.0, %v2670
    %v2672 = vpop.f32.mrf.mxu0
    %v2673 = vadd.f32 0.0, %v2672
    %2674 = vdwg.mxu0
    %2675 = vmatprep.subr.mxu0 0.0
    %2676 = vmatpush1.msra.mxu0 %v2603
    %2677 = vmatprep.subr.mxu0 0.0
    %2678 = vmatpush1.msra.mxu0 %v2600
    %2679 = vmatprep.subr.mxu0 0.0
    %2680 = vmatpush1.msra.mxu0 %v2597
    %2681 = vmatprep.subr.mxu0 0.0
    %2682 = vmatpush1.msra.mxu0 %v2594
    %2683 = vmatprep.subr.mxu0 0.0
    %2684 = vmatpush1.msra.mxu0 %v2591
    %2685 = vmatprep.subr.mxu0 0.0
    %2686 = vmatpush1.msra.mxu0 %v2588
    %2687 = vmatprep.subr.mxu0 0.0
    %2688 = vmatpush1.msra.mxu0 %v2585
    %2689 = vmatprep.subr.mxu0 0.0
    %2690 = vmatpush1.msra.mxu0 %v2582
    %2691 = vmatprep.subr.mxu0 0.0
    %2692 = vmatpush1.msra.mxu0 %v2579
    %2693 = vmatprep.subr.mxu0 0.0
    %2694 = vmatpush1.msra.mxu0 %v2576
    %2695 = vmatprep.subr.mxu0 0.0
    %2696 = vmatpush1.msra.mxu0 %v2573
    %2697 = vmatprep.subr.mxu0 0.0
    %2698 = vmatpush1.msra.mxu0 %v2570
    %2699 = vmatprep.subr.mxu0 0.0
    %2700 = vmatpush1.msra.mxu0 %v2567
    %2701 = vmatprep.subr.mxu0 0.0
    %2702 = vmatpush1.msra.mxu0 %v2564
    %2703 = vmatprep.subr.mxu0 0.0
    %2704 = vmatpush1.msra.mxu0 %v2561
    %2705 = vmatprep.subr.mxu0 0.0
    %2706 = vmatpush1.msra.mxu0 %v2558
    %2707 = vmatprep.subr.mxu0 0.0
    %2708 = vmatpush2.msra.mxu0 0.0
    %2709 = vmatprep.subr.mxu0 0.0
    %2710 = vmatpush2.msra.mxu0 0.0
    %2711 = vmatprep.subr.mxu0 0.0
    %2712 = vmatpush2.msra.mxu0 0.0
    %2713 = vmatprep.subr.mxu0 0.0
    %2714 = vmatpush2.msra.mxu0 0.0
    %2715 = vmatprep.subr.mxu0 0.0
    %2716 = vmatpush2.msra.mxu0 0.0
    %2717 = vmatprep.subr.mxu0 0.0
    %2718 = vmatpush2.msra.mxu0 0.0
    %2719 = vmatprep.subr.mxu0 0.0
    %2720 = vmatpush2.msra.mxu0 0.0
    %2721 = vmatprep.subr.mxu0 0.0
    %2722 = vmatpush2.msra.mxu0 0.0
    %2723 = vmatprep.subr.mxu0 0.0
    %2724 = vmatpush2.msra.mxu0 0.0
    %2725 = vmatprep.subr.mxu0 0.0
    %2726 = vmatpush2.msra.mxu0 0.0
    %2727 = vmatprep.subr.mxu0 0.0
    %2728 = vmatpush2.msra.mxu0 0.0
    %2729 = vmatprep.subr.mxu0 0.0
    %2730 = vmatpush2.msra.mxu0 0.0
    %2731 = vmatprep.subr.mxu0 0.0
    %2732 = vmatpush2.msra.mxu0 0.0
    %2733 = vmatprep.subr.mxu0 0.0
    %2734 = vmatpush2.msra.mxu0 0.0
    %2735 = vmatprep.subr.mxu0 0.0
    %2736 = vmatpush2.msra.mxu0 0.0
    %2737 = vmatprep.subr.mxu0 0.0
    %2738 = vmatpush2.msra.mxu0 0.0
    %2739 = vmatprep.mubr.f32.mxu0 0.0
    %2740 = vmatmul.mubr.f32.gmra.mxu0 %v2145
    %v2741 = vpop.f32.mrf.mxu0
    %v2742 = vadd.f32 0.0, %v2741
    %v2743 = vpop.f32.mrf.mxu0
    %2744 = vdwg.mxu0
    %v2745 = vadd.f32 %v2553, %v2671
    %v2746 = vxor.u32 %v2745, 2147483648
    %v2747 = vmul.f32 %v2746, 1.442695
    %v2748 = vpow.pop %v2747
    %v2749 = vadd.f32 %v2748, 1.0
    %v2750 = vrcp.pop %v2749
    %v2751 = vmul.f32 1.0, %v2750
    %v2752 = vadd.f32 %v2554, %v2673
    %v2753 = vxor.u32 %v2752, 2147483648
    %v2754 = vmul.f32 %v2753, 1.442695
    %v2755 = vpow.pop %v2754
    %v2756 = vadd.f32 %v2755, 1.0
    %v2757 = vrcp.pop %v2756
    %v2758 = vmul.f32 1.0, %v2757
    %v2759 = vadd.f32 %v2742, %v679
    %v2760 = vmul.f32 %v2751, %v2759
    %v2761 = vadd.f32 %v2555, %v2760
    %v2762 = vtanh.pop %v2761
    %v2763 = vsub.f32 %v2145, %v2762
    %v2764 = vmul.f32 %v2758, %v2763
    %v2765 = vadd.f32 %v2762, %v2764
    %v2766 = vld [vmem:[#allocation14] sm:$0xff]
    %v2767 = vld [vmem:[#allocation14 + $0x8] sm:$0xff]
    %v2768 = vld [vmem:[#allocation14 + $0x10] sm:$0xff]
    %v2769 = vld [vmem:[#allocation14 + $0x18] sm:$0xff]
    %v2770 = vld [vmem:[#allocation14 + $0x20] sm:$0xff]
    %v2771 = vld [vmem:[#allocation14 + $0x28] sm:$0xff]
    %v2772 = vld [vmem:[#allocation14 + $0x30] sm:$0xff]
    %v2773 = vld [vmem:[#allocation14 + $0x38] sm:$0xff]
    %v2774 = vld [vmem:[#allocation14 + $0x40] sm:$0xff]
    %v2775 = vld [vmem:[#allocation14 + $0x48] sm:$0xff]
    %v2776 = vld [vmem:[#allocation14 + $0x50] sm:$0xff]
    %v2777 = vld [vmem:[#allocation14 + $0x58] sm:$0xff]
    %v2778 = vld [vmem:[#allocation14 + $0x60] sm:$0xff]
    %v2779 = vld [vmem:[#allocation14 + $0x68] sm:$0xff]
    %v2780 = vld [vmem:[#allocation14 + $0x70] sm:$0xff]
    %v2781 = vld [vmem:[#allocation14 + $0x78] sm:$0xff]
    %v2782 = vld [vmem:[#allocation14 + $0x80] sm:$0xff]
    %v2783 = vld [vmem:[#allocation14 + $0x88] sm:$0xff]
    %v2784 = vld [vmem:[#allocation14 + $0x90] sm:$0xff]
    %v2785 = vld [vmem:[#allocation14 + $0x98] sm:$0xff]
    %v2786 = vld [vmem:[#allocation14 + $0xa0] sm:$0xff]
    %v2787 = vld [vmem:[#allocation14 + $0xa8] sm:$0xff]
    %v2788 = vld [vmem:[#allocation14 + $0xb0] sm:$0xff]
    %v2789 = vld [vmem:[#allocation14 + $0xb8] sm:$0xff]
    %v2790 = vld [vmem:[#allocation14 + $0xc0] sm:$0xff]
    %v2791 = vld [vmem:[#allocation14 + $0xc8] sm:$0xff]
    %v2792 = vld [vmem:[#allocation14 + $0xd0] sm:$0xff]
    %v2793 = vld [vmem:[#allocation14 + $0xd8] sm:$0xff]
    %v2794 = vld [vmem:[#allocation14 + $0xe0] sm:$0xff]
    %v2795 = vld [vmem:[#allocation14 + $0xe8] sm:$0xff]
    %v2796 = vld [vmem:[#allocation14 + $0xf0] sm:$0xff]
    %v2797 = vld [vmem:[#allocation14 + $0xf8] sm:$0xff]
    %v2798 = vld [vmem:[#allocation14 + $0x100] sm:$0xff]
    %v2799 = vld [vmem:[#allocation14 + $0x108] sm:$0xff]
    %v2800 = vld [vmem:[#allocation14 + $0x110] sm:$0xff]
    %v2801 = vld [vmem:[#allocation14 + $0x118] sm:$0xff]
    %v2802 = vld [vmem:[#allocation14 + $0x120] sm:$0xff]
    %v2803 = vld [vmem:[#allocation14 + $0x128] sm:$0xff]
    %v2804 = vld [vmem:[#allocation14 + $0x130] sm:$0xff]
    %v2805 = vld [vmem:[#allocation14 + $0x138] sm:$0xff]
    %v2806 = vld [vmem:[#allocation14 + $0x140] sm:$0xff]
    %v2807 = vld [vmem:[#allocation14 + $0x148] sm:$0xff]
    %v2808 = vld [vmem:[#allocation14 + $0x150] sm:$0xff]
    %v2809 = vld [vmem:[#allocation14 + $0x158] sm:$0xff]
    %v2810 = vld [vmem:[#allocation14 + $0x160] sm:$0xff]
    %v2811 = vld [vmem:[#allocation14 + $0x168] sm:$0xff]
    %v2812 = vld [vmem:[#allocation14 + $0x170] sm:$0xff]
    %v2813 = vld [vmem:[#allocation14 + $0x178] sm:$0xff]
    %2814 = vmatprep.subr.mxu0 %v2812
    %2815 = vmatpush1.msra.mxu0 %v2811
    %2816 = vmatprep.subr.mxu0 %v2809
    %2817 = vmatpush1.msra.mxu0 %v2808
    %2818 = vmatprep.subr.mxu0 %v2806
    %2819 = vmatpush1.msra.mxu0 %v2805
    %2820 = vmatprep.subr.mxu0 %v2803
    %2821 = vmatpush1.msra.mxu0 %v2802
    %2822 = vmatprep.subr.mxu0 %v2800
    %2823 = vmatpush1.msra.mxu0 %v2799
    %2824 = vmatprep.subr.mxu0 %v2797
    %2825 = vmatpush1.msra.mxu0 %v2796
    %2826 = vmatprep.subr.mxu0 %v2794
    %2827 = vmatpush1.msra.mxu0 %v2793
    %2828 = vmatprep.subr.mxu0 %v2791
    %2829 = vmatpush1.msra.mxu0 %v2790
    %2830 = vmatprep.subr.mxu0 %v2788
    %2831 = vmatpush1.msra.mxu0 %v2787
    %2832 = vmatprep.subr.mxu0 %v2785
    %2833 = vmatpush1.msra.mxu0 %v2784
    %2834 = vmatprep.subr.mxu0 %v2782
    %2835 = vmatpush1.msra.mxu0 %v2781
    %2836 = vmatprep.subr.mxu0 %v2779
    %2837 = vmatpush1.msra.mxu0 %v2778
    %2838 = vmatprep.subr.mxu0 %v2776
    %2839 = vmatpush1.msra.mxu0 %v2775
    %2840 = vmatprep.subr.mxu0 %v2773
    %2841 = vmatpush1.msra.mxu0 %v2772
    %2842 = vmatprep.subr.mxu0 %v2770
    %2843 = vmatpush1.msra.mxu0 %v2769
    %2844 = vmatprep.subr.mxu0 %v2767
    %2845 = vmatpush1.msra.mxu0 %v2766
    %2846 = vmatprep.subr.mxu0 0.0
    %2847 = vmatpush2.msra.mxu0 0.0
    %2848 = vmatprep.subr.mxu0 0.0
    %2849 = vmatpush2.msra.mxu0 0.0
    %2850 = vmatprep.subr.mxu0 0.0
    %2851 = vmatpush2.msra.mxu0 0.0
    %2852 = vmatprep.subr.mxu0 0.0
    %2853 = vmatpush2.msra.mxu0 0.0
    %2854 = vmatprep.subr.mxu0 0.0
    %2855 = vmatpush2.msra.mxu0 0.0
    %2856 = vmatprep.subr.mxu0 0.0
    %2857 = vmatpush2.msra.mxu0 0.0
    %2858 = vmatprep.subr.mxu0 0.0
    %2859 = vmatpush2.msra.mxu0 0.0
    %2860 = vmatprep.subr.mxu0 0.0
    %2861 = vmatpush2.msra.mxu0 0.0
    %2862 = vmatprep.subr.mxu0 0.0
    %2863 = vmatpush2.msra.mxu0 0.0
    %2864 = vmatprep.subr.mxu0 0.0
    %2865 = vmatpush2.msra.mxu0 0.0
    %2866 = vmatprep.subr.mxu0 0.0
    %2867 = vmatpush2.msra.mxu0 0.0
    %2868 = vmatprep.subr.mxu0 0.0
    %2869 = vmatpush2.msra.mxu0 0.0
    %2870 = vmatprep.subr.mxu0 0.0
    %2871 = vmatpush2.msra.mxu0 0.0
    %2872 = vmatprep.subr.mxu0 0.0
    %2873 = vmatpush2.msra.mxu0 0.0
    %2874 = vmatprep.subr.mxu0 0.0
    %2875 = vmatpush2.msra.mxu0 0.0
    %2876 = vmatprep.subr.mxu0 0.0
    %2877 = vmatpush2.msra.mxu0 0.0
    %2878 = vmatprep.mubr.f32.mxu0 0.0
    %2879 = vmatmul.mubr.f32.gmra.mxu0 %v2765
    %v2880 = vpop.f32.mrf.mxu0
    %v2881 = vadd.f32 %v662, %v2880
    %v2882 = vpop.f32.mrf.mxu0
    %v2883 = vadd.f32 %v666, %v2882
    %2884 = vdwg.mxu0
    %2885 = vmatprep.subr.mxu0 0.0
    %2886 = vmatpush1.msra.mxu0 %v2813
    %2887 = vmatprep.subr.mxu0 0.0
    %2888 = vmatpush1.msra.mxu0 %v2810
    %2889 = vmatprep.subr.mxu0 0.0
    %2890 = vmatpush1.msra.mxu0 %v2807
    %2891 = vmatprep.subr.mxu0 0.0
    %2892 = vmatpush1.msra.mxu0 %v2804
    %2893 = vmatprep.subr.mxu0 0.0
    %2894 = vmatpush1.msra.mxu0 %v2801
    %2895 = vmatprep.subr.mxu0 0.0
    %2896 = vmatpush1.msra.mxu0 %v2798
    %2897 = vmatprep.subr.mxu0 0.0
    %2898 = vmatpush1.msra.mxu0 %v2795
    %2899 = vmatprep.subr.mxu0 0.0
    %2900 = vmatpush1.msra.mxu0 %v2792
    %2901 = vmatprep.subr.mxu0 0.0
    %2902 = vmatpush1.msra.mxu0 %v2789
    %2903 = vmatprep.subr.mxu0 0.0
    %2904 = vmatpush1.msra.mxu0 %v2786
    %2905 = vmatprep.subr.mxu0 0.0
    %2906 = vmatpush1.msra.mxu0 %v2783
    %2907 = vmatprep.subr.mxu0 0.0
    %2908 = vmatpush1.msra.mxu0 %v2780
    %2909 = vmatprep.subr.mxu0 0.0
    %2910 = vmatpush1.msra.mxu0 %v2777
    %2911 = vmatprep.subr.mxu0 0.0
    %2912 = vmatpush1.msra.mxu0 %v2774
    %2913 = vmatprep.subr.mxu0 0.0
    %2914 = vmatpush1.msra.mxu0 %v2771
    %2915 = vmatprep.subr.mxu0 0.0
    %2916 = vmatpush1.msra.mxu0 %v2768
    %2917 = vmatprep.subr.mxu0 0.0
    %2918 = vmatpush2.msra.mxu0 0.0
    %2919 = vmatprep.subr.mxu0 0.0
    %2920 = vmatpush2.msra.mxu0 0.0
    %2921 = vmatprep.subr.mxu0 0.0
    %2922 = vmatpush2.msra.mxu0 0.0
    %2923 = vmatprep.subr.mxu0 0.0
    %2924 = vmatpush2.msra.mxu0 0.0
    %2925 = vmatprep.subr.mxu0 0.0
    %2926 = vmatpush2.msra.mxu0 0.0
    %2927 = vmatprep.subr.mxu0 0.0
    %2928 = vmatpush2.msra.mxu0 0.0
    %2929 = vmatprep.subr.mxu0 0.0
    %2930 = vmatpush2.msra.mxu0 0.0
    %2931 = vmatprep.subr.mxu0 0.0
    %2932 = vmatpush2.msra.mxu0 0.0
    %2933 = vmatprep.subr.mxu0 0.0
    %2934 = vmatpush2.msra.mxu0 0.0
    %2935 = vmatprep.subr.mxu0 0.0
    %2936 = vmatpush2.msra.mxu0 0.0
    %2937 = vmatprep.subr.mxu0 0.0
    %2938 = vmatpush2.msra.mxu0 0.0
    %2939 = vmatprep.subr.mxu0 0.0
    %2940 = vmatpush2.msra.mxu0 0.0
    %2941 = vmatprep.subr.mxu0 0.0
    %2942 = vmatpush2.msra.mxu0 0.0
    %2943 = vmatprep.subr.mxu0 0.0
    %2944 = vmatpush2.msra.mxu0 0.0
    %2945 = vmatprep.subr.mxu0 0.0
    %2946 = vmatpush2.msra.mxu0 0.0
    %2947 = vmatprep.subr.mxu0 0.0
    %2948 = vmatpush2.msra.mxu0 0.0
    %2949 = vmatprep.mubr.f32.mxu0 0.0
    %2950 = vmatmul.mubr.f32.gmra.mxu0 %v2765
    %v2951 = vpop.f32.mrf.mxu0
    %v2952 = vadd.f32 %v670, %v2951
    %v2953 = vpop.f32.mrf.mxu0
    %2954 = vdwg.mxu0
    %v2955 = vld [vmem:[#allocation15] sm:$0xff]
    %v2956 = vld [vmem:[#allocation15 + $0x8] sm:$0xff]
    %v2957 = vld [vmem:[#allocation15 + $0x10] sm:$0xff]
    %v2958 = vld [vmem:[#allocation15 + $0x18] sm:$0xff]
    %v2959 = vld [vmem:[#allocation15 + $0x20] sm:$0xff]
    %v2960 = vld [vmem:[#allocation15 + $0x28] sm:$0xff]
    %v2961 = vld [vmem:[#allocation15 + $0x30] sm:$0xff]
    %v2962 = vld [vmem:[#allocation15 + $0x38] sm:$0xff]
    %v2963 = vld [vmem:[#allocation15 + $0x40] sm:$0xff]
    %v2964 = vld [vmem:[#allocation15 + $0x48] sm:$0xff]
    %v2965 = vld [vmem:[#allocation15 + $0x50] sm:$0xff]
    %v2966 = vld [vmem:[#allocation15 + $0x58] sm:$0xff]
    %v2967 = vld [vmem:[#allocation15 + $0x60] sm:$0xff]
    %v2968 = vld [vmem:[#allocation15 + $0x68] sm:$0xff]
    %v2969 = vld [vmem:[#allocation15 + $0x70] sm:$0xff]
    %v2970 = vld [vmem:[#allocation15 + $0x78] sm:$0xff]
    %v2971 = vld [vmem:[#allocation15 + $0x80] sm:$0xff]
    %v2972 = vld [vmem:[#allocation15 + $0x88] sm:$0xff]
    %v2973 = vld [vmem:[#allocation15 + $0x90] sm:$0xff]
    %v2974 = vld [vmem:[#allocation15 + $0x98] sm:$0xff]
    %v2975 = vld [vmem:[#allocation15 + $0xa0] sm:$0xff]
    %v2976 = vld [vmem:[#allocation15 + $0xa8] sm:$0xff]
    %v2977 = vld [vmem:[#allocation15 + $0xb0] sm:$0xff]
    %v2978 = vld [vmem:[#allocation15 + $0xb8] sm:$0xff]
    %v2979 = vld [vmem:[#allocation15 + $0xc0] sm:$0xff]
    %v2980 = vld [vmem:[#allocation15 + $0xc8] sm:$0xff]
    %v2981 = vld [vmem:[#allocation15 + $0xd0] sm:$0xff]
    %v2982 = vld [vmem:[#allocation15 + $0xd8] sm:$0xff]
    %v2983 = vld [vmem:[#allocation15 + $0xe0] sm:$0xff]
    %v2984 = vld [vmem:[#allocation15 + $0xe8] sm:$0xff]
    %v2985 = vld [vmem:[#allocation15 + $0xf0] sm:$0xff]
    %v2986 = vld [vmem:[#allocation15 + $0xf8] sm:$0xff]
    %v2987 = vld [vmem:[#allocation15 + $0x100] sm:$0xff]
    %v2988 = vld [vmem:[#allocation15 + $0x108] sm:$0xff]
    %v2989 = vld [vmem:[#allocation15 + $0x110] sm:$0xff]
    %v2990 = vld [vmem:[#allocation15 + $0x118] sm:$0xff]
    %v2991 = vld [vmem:[#allocation15 + $0x120] sm:$0xff]
    %v2992 = vld [vmem:[#allocation15 + $0x128] sm:$0xff]
    %v2993 = vld [vmem:[#allocation15 + $0x130] sm:$0xff]
    %v2994 = vld [vmem:[#allocation15 + $0x138] sm:$0xff]
    %v2995 = vld [vmem:[#allocation15 + $0x140] sm:$0xff]
    %v2996 = vld [vmem:[#allocation15 + $0x148] sm:$0xff]
    %v2997 = vld [vmem:[#allocation15 + $0x150] sm:$0xff]
    %v2998 = vld [vmem:[#allocation15 + $0x158] sm:$0xff]
    %v2999 = vld [vmem:[#allocation15 + $0x160] sm:$0xff]
    %v3000 = vld [vmem:[#allocation15 + $0x168] sm:$0xff]
    %v3001 = vld [vmem:[#allocation15 + $0x170] sm:$0xff]
    %v3002 = vld [vmem:[#allocation15 + $0x178] sm:$0xff]
    %3003 = vmatprep.subr.mxu0 %v3001
    %3004 = vmatpush1.msra.mxu0 %v3000
    %3005 = vmatprep.subr.mxu0 %v2998
    %3006 = vmatpush1.msra.mxu0 %v2997
    %3007 = vmatprep.subr.mxu0 %v2995
    %3008 = vmatpush1.msra.mxu0 %v2994
    %3009 = vmatprep.subr.mxu0 %v2992
    %3010 = vmatpush1.msra.mxu0 %v2991
    %3011 = vmatprep.subr.mxu0 %v2989
    %3012 = vmatpush1.msra.mxu0 %v2988
    %3013 = vmatprep.subr.mxu0 %v2986
    %3014 = vmatpush1.msra.mxu0 %v2985
    %3015 = vmatprep.subr.mxu0 %v2983
    %3016 = vmatpush1.msra.mxu0 %v2982
    %3017 = vmatprep.subr.mxu0 %v2980
    %3018 = vmatpush1.msra.mxu0 %v2979
    %3019 = vmatprep.subr.mxu0 %v2977
    %3020 = vmatpush1.msra.mxu0 %v2976
    %3021 = vmatprep.subr.mxu0 %v2974
    %3022 = vmatpush1.msra.mxu0 %v2973
    %3023 = vmatprep.subr.mxu0 %v2971
    %3024 = vmatpush1.msra.mxu0 %v2970
    %3025 = vmatprep.subr.mxu0 %v2968
    %3026 = vmatpush1.msra.mxu0 %v2967
    %3027 = vmatprep.subr.mxu0 %v2965
    %3028 = vmatpush1.msra.mxu0 %v2964
    %3029 = vmatprep.subr.mxu0 %v2962
    %3030 = vmatpush1.msra.mxu0 %v2961
    %3031 = vmatprep.subr.mxu0 %v2959
    %3032 = vmatpush1.msra.mxu0 %v2958
    %3033 = vmatprep.subr.mxu0 %v2956
    %3034 = vmatpush1.msra.mxu0 %v2955
    %3035 = vmatprep.subr.mxu0 0.0
    %3036 = vmatpush2.msra.mxu0 0.0
    %3037 = vmatprep.subr.mxu0 0.0
    %3038 = vmatpush2.msra.mxu0 0.0
    %3039 = vmatprep.subr.mxu0 0.0
    %3040 = vmatpush2.msra.mxu0 0.0
    %3041 = vmatprep.subr.mxu0 0.0
    %3042 = vmatpush2.msra.mxu0 0.0
    %3043 = vmatprep.subr.mxu0 0.0
    %3044 = vmatpush2.msra.mxu0 0.0
    %3045 = vmatprep.subr.mxu0 0.0
    %3046 = vmatpush2.msra.mxu0 0.0
    %3047 = vmatprep.subr.mxu0 0.0
    %3048 = vmatpush2.msra.mxu0 0.0
    %3049 = vmatprep.subr.mxu0 0.0
    %3050 = vmatpush2.msra.mxu0 0.0
    %3051 = vmatprep.subr.mxu0 0.0
    %3052 = vmatpush2.msra.mxu0 0.0
    %3053 = vmatprep.subr.mxu0 0.0
    %3054 = vmatpush2.msra.mxu0 0.0
    %3055 = vmatprep.subr.mxu0 0.0
    %3056 = vmatpush2.msra.mxu0 0.0
    %3057 = vmatprep.subr.mxu0 0.0
    %3058 = vmatpush2.msra.mxu0 0.0
    %3059 = vmatprep.subr.mxu0 0.0
    %3060 = vmatpush2.msra.mxu0 0.0
    %3061 = vmatprep.subr.mxu0 0.0
    %3062 = vmatpush2.msra.mxu0 0.0
    %3063 = vmatprep.subr.mxu0 0.0
    %3064 = vmatpush2.msra.mxu0 0.0
    %3065 = vmatprep.subr.mxu0 0.0
    %3066 = vmatpush2.msra.mxu0 0.0
    %3067 = vmatprep.mubr.f32.mxu0 0.0
    %3068 = vmatmul.mubr.f32.gmra.mxu0 %v2544
    %v3069 = vpop.f32.mrf.mxu0
    %v3070 = vadd.f32 0.0, %v3069
    %v3071 = vpop.f32.mrf.mxu0
    %v3072 = vadd.f32 0.0, %v3071
    %3073 = vdwg.mxu0
    %3074 = vmatprep.subr.mxu0 0.0
    %3075 = vmatpush1.msra.mxu0 %v3002
    %3076 = vmatprep.subr.mxu0 0.0
    %3077 = vmatpush1.msra.mxu0 %v2999
    %3078 = vmatprep.subr.mxu0 0.0
    %3079 = vmatpush1.msra.mxu0 %v2996
    %3080 = vmatprep.subr.mxu0 0.0
    %3081 = vmatpush1.msra.mxu0 %v2993
    %3082 = vmatprep.subr.mxu0 0.0
    %3083 = vmatpush1.msra.mxu0 %v2990
    %3084 = vmatprep.subr.mxu0 0.0
    %3085 = vmatpush1.msra.mxu0 %v2987
    %3086 = vmatprep.subr.mxu0 0.0
    %3087 = vmatpush1.msra.mxu0 %v2984
    %3088 = vmatprep.subr.mxu0 0.0
    %3089 = vmatpush1.msra.mxu0 %v2981
    %3090 = vmatprep.subr.mxu0 0.0
    %3091 = vmatpush1.msra.mxu0 %v2978
    %3092 = vmatprep.subr.mxu0 0.0
    %3093 = vmatpush1.msra.mxu0 %v2975
    %3094 = vmatprep.subr.mxu0 0.0
    %3095 = vmatpush1.msra.mxu0 %v2972
    %3096 = vmatprep.subr.mxu0 0.0
    %3097 = vmatpush1.msra.mxu0 %v2969
    %3098 = vmatprep.subr.mxu0 0.0
    %3099 = vmatpush1.msra.mxu0 %v2966
    %3100 = vmatprep.subr.mxu0 0.0
    %3101 = vmatpush1.msra.mxu0 %v2963
    %3102 = vmatprep.subr.mxu0 0.0
    %3103 = vmatpush1.msra.mxu0 %v2960
    %3104 = vmatprep.subr.mxu0 0.0
    %3105 = vmatpush1.msra.mxu0 %v2957
    %3106 = vmatprep.subr.mxu0 0.0
    %3107 = vmatpush2.msra.mxu0 0.0
    %3108 = vmatprep.subr.mxu0 0.0
    %3109 = vmatpush2.msra.mxu0 0.0
    %3110 = vmatprep.subr.mxu0 0.0
    %3111 = vmatpush2.msra.mxu0 0.0
    %3112 = vmatprep.subr.mxu0 0.0
    %3113 = vmatpush2.msra.mxu0 0.0
    %3114 = vmatprep.subr.mxu0 0.0
    %3115 = vmatpush2.msra.mxu0 0.0
    %3116 = vmatprep.subr.mxu0 0.0
    %3117 = vmatpush2.msra.mxu0 0.0
    %3118 = vmatprep.subr.mxu0 0.0
    %3119 = vmatpush2.msra.mxu0 0.0
    %3120 = vmatprep.subr.mxu0 0.0
    %3121 = vmatpush2.msra.mxu0 0.0
    %3122 = vmatprep.subr.mxu0 0.0
    %3123 = vmatpush2.msra.mxu0 0.0
    %3124 = vmatprep.subr.mxu0 0.0
    %3125 = vmatpush2.msra.mxu0 0.0
    %3126 = vmatprep.subr.mxu0 0.0
    %3127 = vmatpush2.msra.mxu0 0.0
    %3128 = vmatprep.subr.mxu0 0.0
    %3129 = vmatpush2.msra.mxu0 0.0
    %3130 = vmatprep.subr.mxu0 0.0
    %3131 = vmatpush2.msra.mxu0 0.0
    %3132 = vmatprep.subr.mxu0 0.0
    %3133 = vmatpush2.msra.mxu0 0.0
    %3134 = vmatprep.subr.mxu0 0.0
    %3135 = vmatpush2.msra.mxu0 0.0
    %3136 = vmatprep.subr.mxu0 0.0
    %3137 = vmatpush2.msra.mxu0 0.0
    %3138 = vmatprep.mubr.f32.mxu0 0.0
    %3139 = vmatmul.mubr.f32.gmra.mxu0 %v2544
    %v3140 = vpop.f32.mrf.mxu0
    %v3141 = vadd.f32 0.0, %v3140
    %v3142 = vpop.f32.mrf.mxu0
    %3143 = vdwg.mxu0
    %v3144 = vadd.f32 %v2881, %v3070
    %v3145 = vxor.u32 %v3144, 2147483648
    %v3146 = vmul.f32 %v3145, 1.442695
    %v3147 = vpow.pop %v3146
    %v3148 = vadd.f32 %v3147, 1.0
    %v3149 = vrcp.pop %v3148
    %v3150 = vmul.f32 1.0, %v3149
    %v3151 = vadd.f32 %v2883, %v3072
    %v3152 = vxor.u32 %v3151, 2147483648
    %v3153 = vmul.f32 %v3152, 1.442695
    %v3154 = vpow.pop %v3153
    %v3155 = vadd.f32 %v3154, 1.0
    %v3156 = vrcp.pop %v3155
    %v3157 = vmul.f32 1.0, %v3156
    %v3158 = vadd.f32 %v3141, %v686
    %v3159 = vmul.f32 %v3150, %v3158
    %v3160 = vadd.f32 %v2952, %v3159
    %v3161 = vtanh.pop %v3160
    %v3162 = vsub.f32 %v2544, %v3161
    %v3163 = vmul.f32 %v3157, %v3162
    %v3164 = vadd.f32 %v3161, %v3163
    %s3165 = scalar_lea.vmem [#allocation17], 24
    %3166 = vst [vmem:[%s3165] sm:$0xff] %v3164
    %s3167 = smul.u32 4, 3
    %s3168 = smul.addr %s3167, 8
    %s3169 = scalar_lea.vmem [#allocation2], %s3168
    %v3170 = vld [vmem:[%s3169] sm:$0xff]
    %v3171 = vld [vmem:[%s3169 + $0x8] sm:$0xff]
    %v3172 = vld [vmem:[%s3169 + $0x10] sm:$0xff]
    %v3173 = vadd.f32 %v3170, %v583
    %v3174 = vadd.f32 %v3171, %v585
    %v3175 = vadd.f32 %v3172, %v654
    %v3176 = vld [vmem:[#allocation12] sm:$0xff]
    %v3177 = vld [vmem:[#allocation12 + $0x8] sm:$0xff]
    %v3178 = vld [vmem:[#allocation12 + $0x10] sm:$0xff]
    %v3179 = vld [vmem:[#allocation12 + $0x18] sm:$0xff]
    %v3180 = vld [vmem:[#allocation12 + $0x20] sm:$0xff]
    %v3181 = vld [vmem:[#allocation12 + $0x28] sm:$0xff]
    %v3182 = vld [vmem:[#allocation12 + $0x30] sm:$0xff]
    %v3183 = vld [vmem:[#allocation12 + $0x38] sm:$0xff]
    %v3184 = vld [vmem:[#allocation12 + $0x40] sm:$0xff]
    %v3185 = vld [vmem:[#allocation12 + $0x48] sm:$0xff]
    %v3186 = vld [vmem:[#allocation12 + $0x50] sm:$0xff]
    %v3187 = vld [vmem:[#allocation12 + $0x58] sm:$0xff]
    %v3188 = vld [vmem:[#allocation12 + $0x60] sm:$0xff]
    %v3189 = vld [vmem:[#allocation12 + $0x68] sm:$0xff]
    %v3190 = vld [vmem:[#allocation12 + $0x70] sm:$0xff]
    %v3191 = vld [vmem:[#allocation12 + $0x78] sm:$0xff]
    %v3192 = vld [vmem:[#allocation12 + $0x80] sm:$0xff]
    %v3193 = vld [vmem:[#allocation12 + $0x88] sm:$0xff]
    %v3194 = vld [vmem:[#allocation12 + $0x90] sm:$0xff]
    %v3195 = vld [vmem:[#allocation12 + $0x98] sm:$0xff]
    %v3196 = vld [vmem:[#allocation12 + $0xa0] sm:$0xff]
    %v3197 = vld [vmem:[#allocation12 + $0xa8] sm:$0xff]
    %v3198 = vld [vmem:[#allocation12 + $0xb0] sm:$0xff]
    %v3199 = vld [vmem:[#allocation12 + $0xb8] sm:$0xff]
    %v3200 = vld [vmem:[#allocation12 + $0xc0] sm:$0xff]
    %v3201 = vld [vmem:[#allocation12 + $0xc8] sm:$0xff]
    %v3202 = vld [vmem:[#allocation12 + $0xd0] sm:$0xff]
    %v3203 = vld [vmem:[#allocation12 + $0xd8] sm:$0xff]
    %v3204 = vld [vmem:[#allocation12 + $0xe0] sm:$0xff]
    %v3205 = vld [vmem:[#allocation12 + $0xe8] sm:$0xff]
    %v3206 = vld [vmem:[#allocation12 + $0xf0] sm:$0xff]
    %v3207 = vld [vmem:[#allocation12 + $0xf8] sm:$0xff]
    %v3208 = vld [vmem:[#allocation12 + $0x100] sm:$0xff]
    %v3209 = vld [vmem:[#allocation12 + $0x108] sm:$0xff]
    %v3210 = vld [vmem:[#allocation12 + $0x110] sm:$0xff]
    %v3211 = vld [vmem:[#allocation12 + $0x118] sm:$0xff]
    %v3212 = vld [vmem:[#allocation12 + $0x120] sm:$0xff]
    %v3213 = vld [vmem:[#allocation12 + $0x128] sm:$0xff]
    %v3214 = vld [vmem:[#allocation12 + $0x130] sm:$0xff]
    %v3215 = vld [vmem:[#allocation12 + $0x138] sm:$0xff]
    %v3216 = vld [vmem:[#allocation12 + $0x140] sm:$0xff]
    %v3217 = vld [vmem:[#allocation12 + $0x148] sm:$0xff]
    %v3218 = vld [vmem:[#allocation12 + $0x150] sm:$0xff]
    %v3219 = vld [vmem:[#allocation12 + $0x158] sm:$0xff]
    %v3220 = vld [vmem:[#allocation12 + $0x160] sm:$0xff]
    %v3221 = vld [vmem:[#allocation12 + $0x168] sm:$0xff]
    %v3222 = vld [vmem:[#allocation12 + $0x170] sm:$0xff]
    %v3223 = vld [vmem:[#allocation12 + $0x178] sm:$0xff]
    %3224 = vmatprep.subr.mxu0 %v3222
    %3225 = vmatpush1.msra.mxu0 %v3221
    %3226 = vmatprep.subr.mxu0 %v3219
    %3227 = vmatpush1.msra.mxu0 %v3218
    %3228 = vmatprep.subr.mxu0 %v3216
    %3229 = vmatpush1.msra.mxu0 %v3215
    %3230 = vmatprep.subr.mxu0 %v3213
    %3231 = vmatpush1.msra.mxu0 %v3212
    %3232 = vmatprep.subr.mxu0 %v3210
    %3233 = vmatpush1.msra.mxu0 %v3209
    %3234 = vmatprep.subr.mxu0 %v3207
    %3235 = vmatpush1.msra.mxu0 %v3206
    %3236 = vmatprep.subr.mxu0 %v3204
    %3237 = vmatpush1.msra.mxu0 %v3203
    %3238 = vmatprep.subr.mxu0 %v3201
    %3239 = vmatpush1.msra.mxu0 %v3200
    %3240 = vmatprep.subr.mxu0 %v3198
    %3241 = vmatpush1.msra.mxu0 %v3197
    %3242 = vmatprep.subr.mxu0 %v3195
    %3243 = vmatpush1.msra.mxu0 %v3194
    %3244 = vmatprep.subr.mxu0 %v3192
    %3245 = vmatpush1.msra.mxu0 %v3191
    %3246 = vmatprep.subr.mxu0 %v3189
    %3247 = vmatpush1.msra.mxu0 %v3188
    %3248 = vmatprep.subr.mxu0 %v3186
    %3249 = vmatpush1.msra.mxu0 %v3185
    %3250 = vmatprep.subr.mxu0 %v3183
    %3251 = vmatpush1.msra.mxu0 %v3182
    %3252 = vmatprep.subr.mxu0 %v3180
    %3253 = vmatpush1.msra.mxu0 %v3179
    %3254 = vmatprep.subr.mxu0 %v3177
    %3255 = vmatpush1.msra.mxu0 %v3176
    %3256 = vmatprep.subr.mxu0 0.0
    %3257 = vmatpush2.msra.mxu0 0.0
    %3258 = vmatprep.subr.mxu0 0.0
    %3259 = vmatpush2.msra.mxu0 0.0
    %3260 = vmatprep.subr.mxu0 0.0
    %3261 = vmatpush2.msra.mxu0 0.0
    %3262 = vmatprep.subr.mxu0 0.0
    %3263 = vmatpush2.msra.mxu0 0.0
    %3264 = vmatprep.subr.mxu0 0.0
    %3265 = vmatpush2.msra.mxu0 0.0
    %3266 = vmatprep.subr.mxu0 0.0
    %3267 = vmatpush2.msra.mxu0 0.0
    %3268 = vmatprep.subr.mxu0 0.0
    %3269 = vmatpush2.msra.mxu0 0.0
    %3270 = vmatprep.subr.mxu0 0.0
    %3271 = vmatpush2.msra.mxu0 0.0
    %3272 = vmatprep.subr.mxu0 0.0
    %3273 = vmatpush2.msra.mxu0 0.0
    %3274 = vmatprep.subr.mxu0 0.0
    %3275 = vmatpush2.msra.mxu0 0.0
    %3276 = vmatprep.subr.mxu0 0.0
    %3277 = vmatpush2.msra.mxu0 0.0
    %3278 = vmatprep.subr.mxu0 0.0
    %3279 = vmatpush2.msra.mxu0 0.0
    %3280 = vmatprep.subr.mxu0 0.0
    %3281 = vmatpush2.msra.mxu0 0.0
    %3282 = vmatprep.subr.mxu0 0.0
    %3283 = vmatpush2.msra.mxu0 0.0
    %3284 = vmatprep.subr.mxu0 0.0
    %3285 = vmatpush2.msra.mxu0 0.0
    %3286 = vmatprep.subr.mxu0 0.0
    %3287 = vmatpush2.msra.mxu0 0.0
    %3288 = vmatprep.mubr.f32.mxu0 0.0
    %3289 = vmatmul.mubr.f32.gmra.mxu0 %v2765
    %v3290 = vpop.f32.mrf.mxu0
    %v3291 = vadd.f32 0.0, %v3290
    %v3292 = vpop.f32.mrf.mxu0
    %v3293 = vadd.f32 0.0, %v3292
    %3294 = vdwg.mxu0
    %3295 = vmatprep.subr.mxu0 0.0
    %3296 = vmatpush1.msra.mxu0 %v3223
    %3297 = vmatprep.subr.mxu0 0.0
    %3298 = vmatpush1.msra.mxu0 %v3220
    %3299 = vmatprep.subr.mxu0 0.0
    %3300 = vmatpush1.msra.mxu0 %v3217
    %3301 = vmatprep.subr.mxu0 0.0
    %3302 = vmatpush1.msra.mxu0 %v3214
    %3303 = vmatprep.subr.mxu0 0.0
    %3304 = vmatpush1.msra.mxu0 %v3211
    %3305 = vmatprep.subr.mxu0 0.0
    %3306 = vmatpush1.msra.mxu0 %v3208
    %3307 = vmatprep.subr.mxu0 0.0
    %3308 = vmatpush1.msra.mxu0 %v3205
    %3309 = vmatprep.subr.mxu0 0.0
    %3310 = vmatpush1.msra.mxu0 %v3202
    %3311 = vmatprep.subr.mxu0 0.0
    %3312 = vmatpush1.msra.mxu0 %v3199
    %3313 = vmatprep.subr.mxu0 0.0
    %3314 = vmatpush1.msra.mxu0 %v3196
    %3315 = vmatprep.subr.mxu0 0.0
    %3316 = vmatpush1.msra.mxu0 %v3193
    %3317 = vmatprep.subr.mxu0 0.0
    %3318 = vmatpush1.msra.mxu0 %v3190
    %3319 = vmatprep.subr.mxu0 0.0
    %3320 = vmatpush1.msra.mxu0 %v3187
    %3321 = vmatprep.subr.mxu0 0.0
    %3322 = vmatpush1.msra.mxu0 %v3184
    %3323 = vmatprep.subr.mxu0 0.0
    %3324 = vmatpush1.msra.mxu0 %v3181
    %3325 = vmatprep.subr.mxu0 0.0
    %3326 = vmatpush1.msra.mxu0 %v3178
    %3327 = vmatprep.subr.mxu0 0.0
    %3328 = vmatpush2.msra.mxu0 0.0
    %3329 = vmatprep.subr.mxu0 0.0
    %3330 = vmatpush2.msra.mxu0 0.0
    %3331 = vmatprep.subr.mxu0 0.0
    %3332 = vmatpush2.msra.mxu0 0.0
    %3333 = vmatprep.subr.mxu0 0.0
    %3334 = vmatpush2.msra.mxu0 0.0
    %3335 = vmatprep.subr.mxu0 0.0
    %3336 = vmatpush2.msra.mxu0 0.0
    %3337 = vmatprep.subr.mxu0 0.0
    %3338 = vmatpush2.msra.mxu0 0.0
    %3339 = vmatprep.subr.mxu0 0.0
    %3340 = vmatpush2.msra.mxu0 0.0
    %3341 = vmatprep.subr.mxu0 0.0
    %3342 = vmatpush2.msra.mxu0 0.0
    %3343 = vmatprep.subr.mxu0 0.0
    %3344 = vmatpush2.msra.mxu0 0.0
    %3345 = vmatprep.subr.mxu0 0.0
    %3346 = vmatpush2.msra.mxu0 0.0
    %3347 = vmatprep.subr.mxu0 0.0
    %3348 = vmatpush2.msra.mxu0 0.0
    %3349 = vmatprep.subr.mxu0 0.0
    %3350 = vmatpush2.msra.mxu0 0.0
    %3351 = vmatprep.subr.mxu0 0.0
    %3352 = vmatpush2.msra.mxu0 0.0
    %3353 = vmatprep.subr.mxu0 0.0
    %3354 = vmatpush2.msra.mxu0 0.0
    %3355 = vmatprep.subr.mxu0 0.0
    %3356 = vmatpush2.msra.mxu0 0.0
    %3357 = vmatprep.subr.mxu0 0.0
    %3358 = vmatpush2.msra.mxu0 0.0
    %3359 = vmatprep.mubr.f32.mxu0 0.0
    %3360 = vmatmul.mubr.f32.gmra.mxu0 %v2765
    %v3361 = vpop.f32.mrf.mxu0
    %v3362 = vadd.f32 0.0, %v3361
    %v3363 = vpop.f32.mrf.mxu0
    %3364 = vdwg.mxu0
    %v3365 = vadd.f32 %v3173, %v3291
    %v3366 = vxor.u32 %v3365, 2147483648
    %v3367 = vmul.f32 %v3366, 1.442695
    %v3368 = vpow.pop %v3367
    %v3369 = vadd.f32 %v3368, 1.0
    %v3370 = vrcp.pop %v3369
    %v3371 = vmul.f32 1.0, %v3370
    %v3372 = vadd.f32 %v3174, %v3293
    %v3373 = vxor.u32 %v3372, 2147483648
    %v3374 = vmul.f32 %v3373, 1.442695
    %v3375 = vpow.pop %v3374
    %v3376 = vadd.f32 %v3375, 1.0
    %v3377 = vrcp.pop %v3376
    %v3378 = vmul.f32 1.0, %v3377
    %v3379 = vadd.f32 %v3362, %v679
    %v3380 = vmul.f32 %v3371, %v3379
    %v3381 = vadd.f32 %v3175, %v3380
    %v3382 = vtanh.pop %v3381
    %v3383 = vsub.f32 %v2765, %v3382
    %v3384 = vmul.f32 %v3378, %v3383
    %v3385 = vadd.f32 %v3382, %v3384
    %v3386 = vld [vmem:[#allocation14] sm:$0xff]
    %v3387 = vld [vmem:[#allocation14 + $0x8] sm:$0xff]
    %v3388 = vld [vmem:[#allocation14 + $0x10] sm:$0xff]
    %v3389 = vld [vmem:[#allocation14 + $0x18] sm:$0xff]
    %v3390 = vld [vmem:[#allocation14 + $0x20] sm:$0xff]
    %v3391 = vld [vmem:[#allocation14 + $0x28] sm:$0xff]
    %v3392 = vld [vmem:[#allocation14 + $0x30] sm:$0xff]
    %v3393 = vld [vmem:[#allocation14 + $0x38] sm:$0xff]
    %v3394 = vld [vmem:[#allocation14 + $0x40] sm:$0xff]
    %v3395 = vld [vmem:[#allocation14 + $0x48] sm:$0xff]
    %v3396 = vld [vmem:[#allocation14 + $0x50] sm:$0xff]
    %v3397 = vld [vmem:[#allocation14 + $0x58] sm:$0xff]
    %v3398 = vld [vmem:[#allocation14 + $0x60] sm:$0xff]
    %v3399 = vld [vmem:[#allocation14 + $0x68] sm:$0xff]
    %v3400 = vld [vmem:[#allocation14 + $0x70] sm:$0xff]
    %v3401 = vld [vmem:[#allocation14 + $0x78] sm:$0xff]
    %v3402 = vld [vmem:[#allocation14 + $0x80] sm:$0xff]
    %v3403 = vld [vmem:[#allocation14 + $0x88] sm:$0xff]
    %v3404 = vld [vmem:[#allocation14 + $0x90] sm:$0xff]
    %v3405 = vld [vmem:[#allocation14 + $0x98] sm:$0xff]
    %v3406 = vld [vmem:[#allocation14 + $0xa0] sm:$0xff]
    %v3407 = vld [vmem:[#allocation14 + $0xa8] sm:$0xff]
    %v3408 = vld [vmem:[#allocation14 + $0xb0] sm:$0xff]
    %v3409 = vld [vmem:[#allocation14 + $0xb8] sm:$0xff]
    %v3410 = vld [vmem:[#allocation14 + $0xc0] sm:$0xff]
    %v3411 = vld [vmem:[#allocation14 + $0xc8] sm:$0xff]
    %v3412 = vld [vmem:[#allocation14 + $0xd0] sm:$0xff]
    %v3413 = vld [vmem:[#allocation14 + $0xd8] sm:$0xff]
    %v3414 = vld [vmem:[#allocation14 + $0xe0] sm:$0xff]
    %v3415 = vld [vmem:[#allocation14 + $0xe8] sm:$0xff]
    %v3416 = vld [vmem:[#allocation14 + $0xf0] sm:$0xff]
    %v3417 = vld [vmem:[#allocation14 + $0xf8] sm:$0xff]
    %v3418 = vld [vmem:[#allocation14 + $0x100] sm:$0xff]
    %v3419 = vld [vmem:[#allocation14 + $0x108] sm:$0xff]
    %v3420 = vld [vmem:[#allocation14 + $0x110] sm:$0xff]
    %v3421 = vld [vmem:[#allocation14 + $0x118] sm:$0xff]
    %v3422 = vld [vmem:[#allocation14 + $0x120] sm:$0xff]
    %v3423 = vld [vmem:[#allocation14 + $0x128] sm:$0xff]
    %v3424 = vld [vmem:[#allocation14 + $0x130] sm:$0xff]
    %v3425 = vld [vmem:[#allocation14 + $0x138] sm:$0xff]
    %v3426 = vld [vmem:[#allocation14 + $0x140] sm:$0xff]
    %v3427 = vld [vmem:[#allocation14 + $0x148] sm:$0xff]
    %v3428 = vld [vmem:[#allocation14 + $0x150] sm:$0xff]
    %v3429 = vld [vmem:[#allocation14 + $0x158] sm:$0xff]
    %v3430 = vld [vmem:[#allocation14 + $0x160] sm:$0xff]
    %v3431 = vld [vmem:[#allocation14 + $0x168] sm:$0xff]
    %v3432 = vld [vmem:[#allocation14 + $0x170] sm:$0xff]
    %v3433 = vld [vmem:[#allocation14 + $0x178] sm:$0xff]
    %3434 = vmatprep.subr.mxu0 %v3432
    %3435 = vmatpush1.msra.mxu0 %v3431
    %3436 = vmatprep.subr.mxu0 %v3429
    %3437 = vmatpush1.msra.mxu0 %v3428
    %3438 = vmatprep.subr.mxu0 %v3426
    %3439 = vmatpush1.msra.mxu0 %v3425
    %3440 = vmatprep.subr.mxu0 %v3423
    %3441 = vmatpush1.msra.mxu0 %v3422
    %3442 = vmatprep.subr.mxu0 %v3420
    %3443 = vmatpush1.msra.mxu0 %v3419
    %3444 = vmatprep.subr.mxu0 %v3417
    %3445 = vmatpush1.msra.mxu0 %v3416
    %3446 = vmatprep.subr.mxu0 %v3414
    %3447 = vmatpush1.msra.mxu0 %v3413
    %3448 = vmatprep.subr.mxu0 %v3411
    %3449 = vmatpush1.msra.mxu0 %v3410
    %3450 = vmatprep.subr.mxu0 %v3408
    %3451 = vmatpush1.msra.mxu0 %v3407
    %3452 = vmatprep.subr.mxu0 %v3405
    %3453 = vmatpush1.msra.mxu0 %v3404
    %3454 = vmatprep.subr.mxu0 %v3402
    %3455 = vmatpush1.msra.mxu0 %v3401
    %3456 = vmatprep.subr.mxu0 %v3399
    %3457 = vmatpush1.msra.mxu0 %v3398
    %3458 = vmatprep.subr.mxu0 %v3396
    %3459 = vmatpush1.msra.mxu0 %v3395
    %3460 = vmatprep.subr.mxu0 %v3393
    %3461 = vmatpush1.msra.mxu0 %v3392
    %3462 = vmatprep.subr.mxu0 %v3390
    %3463 = vmatpush1.msra.mxu0 %v3389
    %3464 = vmatprep.subr.mxu0 %v3387
    %3465 = vmatpush1.msra.mxu0 %v3386
    %3466 = vmatprep.subr.mxu0 0.0
    %3467 = vmatpush2.msra.mxu0 0.0
    %3468 = vmatprep.subr.mxu0 0.0
    %3469 = vmatpush2.msra.mxu0 0.0
    %3470 = vmatprep.subr.mxu0 0.0
    %3471 = vmatpush2.msra.mxu0 0.0
    %3472 = vmatprep.subr.mxu0 0.0
    %3473 = vmatpush2.msra.mxu0 0.0
    %3474 = vmatprep.subr.mxu0 0.0
    %3475 = vmatpush2.msra.mxu0 0.0
    %3476 = vmatprep.subr.mxu0 0.0
    %3477 = vmatpush2.msra.mxu0 0.0
    %3478 = vmatprep.subr.mxu0 0.0
    %3479 = vmatpush2.msra.mxu0 0.0
    %3480 = vmatprep.subr.mxu0 0.0
    %3481 = vmatpush2.msra.mxu0 0.0
    %3482 = vmatprep.subr.mxu0 0.0
    %3483 = vmatpush2.msra.mxu0 0.0
    %3484 = vmatprep.subr.mxu0 0.0
    %3485 = vmatpush2.msra.mxu0 0.0
    %3486 = vmatprep.subr.mxu0 0.0
    %3487 = vmatpush2.msra.mxu0 0.0
    %3488 = vmatprep.subr.mxu0 0.0
    %3489 = vmatpush2.msra.mxu0 0.0
    %3490 = vmatprep.subr.mxu0 0.0
    %3491 = vmatpush2.msra.mxu0 0.0
    %3492 = vmatprep.subr.mxu0 0.0
    %3493 = vmatpush2.msra.mxu0 0.0
    %3494 = vmatprep.subr.mxu0 0.0
    %3495 = vmatpush2.msra.mxu0 0.0
    %3496 = vmatprep.subr.mxu0 0.0
    %3497 = vmatpush2.msra.mxu0 0.0
    %3498 = vmatprep.mubr.f32.mxu0 0.0
    %3499 = vmatmul.mubr.f32.gmra.mxu0 %v3385
    %v3500 = vpop.f32.mrf.mxu0
    %v3501 = vadd.f32 %v662, %v3500
    %v3502 = vpop.f32.mrf.mxu0
    %v3503 = vadd.f32 %v666, %v3502
    %3504 = vdwg.mxu0
    %3505 = vmatprep.subr.mxu0 0.0
    %3506 = vmatpush1.msra.mxu0 %v3433
    %3507 = vmatprep.subr.mxu0 0.0
    %3508 = vmatpush1.msra.mxu0 %v3430
    %3509 = vmatprep.subr.mxu0 0.0
    %3510 = vmatpush1.msra.mxu0 %v3427
    %3511 = vmatprep.subr.mxu0 0.0
    %3512 = vmatpush1.msra.mxu0 %v3424
    %3513 = vmatprep.subr.mxu0 0.0
    %3514 = vmatpush1.msra.mxu0 %v3421
    %3515 = vmatprep.subr.mxu0 0.0
    %3516 = vmatpush1.msra.mxu0 %v3418
    %3517 = vmatprep.subr.mxu0 0.0
    %3518 = vmatpush1.msra.mxu0 %v3415
    %3519 = vmatprep.subr.mxu0 0.0
    %3520 = vmatpush1.msra.mxu0 %v3412
    %3521 = vmatprep.subr.mxu0 0.0
    %3522 = vmatpush1.msra.mxu0 %v3409
    %3523 = vmatprep.subr.mxu0 0.0
    %3524 = vmatpush1.msra.mxu0 %v3406
    %3525 = vmatprep.subr.mxu0 0.0
    %3526 = vmatpush1.msra.mxu0 %v3403
    %3527 = vmatprep.subr.mxu0 0.0
    %3528 = vmatpush1.msra.mxu0 %v3400
    %3529 = vmatprep.subr.mxu0 0.0
    %3530 = vmatpush1.msra.mxu0 %v3397
    %3531 = vmatprep.subr.mxu0 0.0
    %3532 = vmatpush1.msra.mxu0 %v3394
    %3533 = vmatprep.subr.mxu0 0.0
    %3534 = vmatpush1.msra.mxu0 %v3391
    %3535 = vmatprep.subr.mxu0 0.0
    %3536 = vmatpush1.msra.mxu0 %v3388
    %3537 = vmatprep.subr.mxu0 0.0
    %3538 = vmatpush2.msra.mxu0 0.0
    %3539 = vmatprep.subr.mxu0 0.0
    %3540 = vmatpush2.msra.mxu0 0.0
    %3541 = vmatprep.subr.mxu0 0.0
    %3542 = vmatpush2.msra.mxu0 0.0
    %3543 = vmatprep.subr.mxu0 0.0
    %3544 = vmatpush2.msra.mxu0 0.0
    %3545 = vmatprep.subr.mxu0 0.0
    %3546 = vmatpush2.msra.mxu0 0.0
    %3547 = vmatprep.subr.mxu0 0.0
    %3548 = vmatpush2.msra.mxu0 0.0
    %3549 = vmatprep.subr.mxu0 0.0
    %3550 = vmatpush2.msra.mxu0 0.0
    %3551 = vmatprep.subr.mxu0 0.0
    %3552 = vmatpush2.msra.mxu0 0.0
    %3553 = vmatprep.subr.mxu0 0.0
    %3554 = vmatpush2.msra.mxu0 0.0
    %3555 = vmatprep.subr.mxu0 0.0
    %3556 = vmatpush2.msra.mxu0 0.0
    %3557 = vmatprep.subr.mxu0 0.0
    %3558 = vmatpush2.msra.mxu0 0.0
    %3559 = vmatprep.subr.mxu0 0.0
    %3560 = vmatpush2.msra.mxu0 0.0
    %3561 = vmatprep.subr.mxu0 0.0
    %3562 = vmatpush2.msra.mxu0 0.0
    %3563 = vmatprep.subr.mxu0 0.0
    %3564 = vmatpush2.msra.mxu0 0.0
    %3565 = vmatprep.subr.mxu0 0.0
    %3566 = vmatpush2.msra.mxu0 0.0
    %3567 = vmatprep.subr.mxu0 0.0
    %3568 = vmatpush2.msra.mxu0 0.0
    %3569 = vmatprep.mubr.f32.mxu0 0.0
    %3570 = vmatmul.mubr.f32.gmra.mxu0 %v3385
    %v3571 = vpop.f32.mrf.mxu0
    %v3572 = vadd.f32 %v670, %v3571
    %v3573 = vpop.f32.mrf.mxu0
    %3574 = vdwg.mxu0
    %v3575 = vld [vmem:[#allocation15] sm:$0xff]
    %v3576 = vld [vmem:[#allocation15 + $0x8] sm:$0xff]
    %v3577 = vld [vmem:[#allocation15 + $0x10] sm:$0xff]
    %v3578 = vld [vmem:[#allocation15 + $0x18] sm:$0xff]
    %v3579 = vld [vmem:[#allocation15 + $0x20] sm:$0xff]
    %v3580 = vld [vmem:[#allocation15 + $0x28] sm:$0xff]
    %v3581 = vld [vmem:[#allocation15 + $0x30] sm:$0xff]
    %v3582 = vld [vmem:[#allocation15 + $0x38] sm:$0xff]
    %v3583 = vld [vmem:[#allocation15 + $0x40] sm:$0xff]
    %v3584 = vld [vmem:[#allocation15 + $0x48] sm:$0xff]
    %v3585 = vld [vmem:[#allocation15 + $0x50] sm:$0xff]
    %v3586 = vld [vmem:[#allocation15 + $0x58] sm:$0xff]
    %v3587 = vld [vmem:[#allocation15 + $0x60] sm:$0xff]
    %v3588 = vld [vmem:[#allocation15 + $0x68] sm:$0xff]
    %v3589 = vld [vmem:[#allocation15 + $0x70] sm:$0xff]
    %v3590 = vld [vmem:[#allocation15 + $0x78] sm:$0xff]
    %v3591 = vld [vmem:[#allocation15 + $0x80] sm:$0xff]
    %v3592 = vld [vmem:[#allocation15 + $0x88] sm:$0xff]
    %v3593 = vld [vmem:[#allocation15 + $0x90] sm:$0xff]
    %v3594 = vld [vmem:[#allocation15 + $0x98] sm:$0xff]
    %v3595 = vld [vmem:[#allocation15 + $0xa0] sm:$0xff]
    %v3596 = vld [vmem:[#allocation15 + $0xa8] sm:$0xff]
    %v3597 = vld [vmem:[#allocation15 + $0xb0] sm:$0xff]
    %v3598 = vld [vmem:[#allocation15 + $0xb8] sm:$0xff]
    %v3599 = vld [vmem:[#allocation15 + $0xc0] sm:$0xff]
    %v3600 = vld [vmem:[#allocation15 + $0xc8] sm:$0xff]
    %v3601 = vld [vmem:[#allocation15 + $0xd0] sm:$0xff]
    %v3602 = vld [vmem:[#allocation15 + $0xd8] sm:$0xff]
    %v3603 = vld [vmem:[#allocation15 + $0xe0] sm:$0xff]
    %v3604 = vld [vmem:[#allocation15 + $0xe8] sm:$0xff]
    %v3605 = vld [vmem:[#allocation15 + $0xf0] sm:$0xff]
    %v3606 = vld [vmem:[#allocation15 + $0xf8] sm:$0xff]
    %v3607 = vld [vmem:[#allocation15 + $0x100] sm:$0xff]
    %v3608 = vld [vmem:[#allocation15 + $0x108] sm:$0xff]
    %v3609 = vld [vmem:[#allocation15 + $0x110] sm:$0xff]
    %v3610 = vld [vmem:[#allocation15 + $0x118] sm:$0xff]
    %v3611 = vld [vmem:[#allocation15 + $0x120] sm:$0xff]
    %v3612 = vld [vmem:[#allocation15 + $0x128] sm:$0xff]
    %v3613 = vld [vmem:[#allocation15 + $0x130] sm:$0xff]
    %v3614 = vld [vmem:[#allocation15 + $0x138] sm:$0xff]
    %v3615 = vld [vmem:[#allocation15 + $0x140] sm:$0xff]
    %v3616 = vld [vmem:[#allocation15 + $0x148] sm:$0xff]
    %v3617 = vld [vmem:[#allocation15 + $0x150] sm:$0xff]
    %v3618 = vld [vmem:[#allocation15 + $0x158] sm:$0xff]
    %v3619 = vld [vmem:[#allocation15 + $0x160] sm:$0xff]
    %v3620 = vld [vmem:[#allocation15 + $0x168] sm:$0xff]
    %v3621 = vld [vmem:[#allocation15 + $0x170] sm:$0xff]
    %v3622 = vld [vmem:[#allocation15 + $0x178] sm:$0xff]
    %3623 = vmatprep.subr.mxu0 %v3621
    %3624 = vmatpush1.msra.mxu0 %v3620
    %3625 = vmatprep.subr.mxu0 %v3618
    %3626 = vmatpush1.msra.mxu0 %v3617
    %3627 = vmatprep.subr.mxu0 %v3615
    %3628 = vmatpush1.msra.mxu0 %v3614
    %3629 = vmatprep.subr.mxu0 %v3612
    %3630 = vmatpush1.msra.mxu0 %v3611
    %3631 = vmatprep.subr.mxu0 %v3609
    %3632 = vmatpush1.msra.mxu0 %v3608
    %3633 = vmatprep.subr.mxu0 %v3606
    %3634 = vmatpush1.msra.mxu0 %v3605
    %3635 = vmatprep.subr.mxu0 %v3603
    %3636 = vmatpush1.msra.mxu0 %v3602
    %3637 = vmatprep.subr.mxu0 %v3600
    %3638 = vmatpush1.msra.mxu0 %v3599
    %3639 = vmatprep.subr.mxu0 %v3597
    %3640 = vmatpush1.msra.mxu0 %v3596
    %3641 = vmatprep.subr.mxu0 %v3594
    %3642 = vmatpush1.msra.mxu0 %v3593
    %3643 = vmatprep.subr.mxu0 %v3591
    %3644 = vmatpush1.msra.mxu0 %v3590
    %3645 = vmatprep.subr.mxu0 %v3588
    %3646 = vmatpush1.msra.mxu0 %v3587
    %3647 = vmatprep.subr.mxu0 %v3585
    %3648 = vmatpush1.msra.mxu0 %v3584
    %3649 = vmatprep.subr.mxu0 %v3582
    %3650 = vmatpush1.msra.mxu0 %v3581
    %3651 = vmatprep.subr.mxu0 %v3579
    %3652 = vmatpush1.msra.mxu0 %v3578
    %3653 = vmatprep.subr.mxu0 %v3576
    %3654 = vmatpush1.msra.mxu0 %v3575
    %3655 = vmatprep.subr.mxu0 0.0
    %3656 = vmatpush2.msra.mxu0 0.0
    %3657 = vmatprep.subr.mxu0 0.0
    %3658 = vmatpush2.msra.mxu0 0.0
    %3659 = vmatprep.subr.mxu0 0.0
    %3660 = vmatpush2.msra.mxu0 0.0
    %3661 = vmatprep.subr.mxu0 0.0
    %3662 = vmatpush2.msra.mxu0 0.0
    %3663 = vmatprep.subr.mxu0 0.0
    %3664 = vmatpush2.msra.mxu0 0.0
    %3665 = vmatprep.subr.mxu0 0.0
    %3666 = vmatpush2.msra.mxu0 0.0
    %3667 = vmatprep.subr.mxu0 0.0
    %3668 = vmatpush2.msra.mxu0 0.0
    %3669 = vmatprep.subr.mxu0 0.0
    %3670 = vmatpush2.msra.mxu0 0.0
    %3671 = vmatprep.subr.mxu0 0.0
    %3672 = vmatpush2.msra.mxu0 0.0
    %3673 = vmatprep.subr.mxu0 0.0
    %3674 = vmatpush2.msra.mxu0 0.0
    %3675 = vmatprep.subr.mxu0 0.0
    %3676 = vmatpush2.msra.mxu0 0.0
    %3677 = vmatprep.subr.mxu0 0.0
    %3678 = vmatpush2.msra.mxu0 0.0
    %3679 = vmatprep.subr.mxu0 0.0
    %3680 = vmatpush2.msra.mxu0 0.0
    %3681 = vmatprep.subr.mxu0 0.0
    %3682 = vmatpush2.msra.mxu0 0.0
    %3683 = vmatprep.subr.mxu0 0.0
    %3684 = vmatpush2.msra.mxu0 0.0
    %3685 = vmatprep.subr.mxu0 0.0
    %3686 = vmatpush2.msra.mxu0 0.0
    %3687 = vmatprep.mubr.f32.mxu0 0.0
    %3688 = vmatmul.mubr.f32.gmra.mxu0 %v3164
    %v3689 = vpop.f32.mrf.mxu0
    %v3690 = vadd.f32 0.0, %v3689
    %v3691 = vpop.f32.mrf.mxu0
    %v3692 = vadd.f32 0.0, %v3691
    %3693 = vdwg.mxu0
    %3694 = vmatprep.subr.mxu0 0.0
    %3695 = vmatpush1.msra.mxu0 %v3622
    %3696 = vmatprep.subr.mxu0 0.0
    %3697 = vmatpush1.msra.mxu0 %v3619
    %3698 = vmatprep.subr.mxu0 0.0
    %3699 = vmatpush1.msra.mxu0 %v3616
    %3700 = vmatprep.subr.mxu0 0.0
    %3701 = vmatpush1.msra.mxu0 %v3613
    %3702 = vmatprep.subr.mxu0 0.0
    %3703 = vmatpush1.msra.mxu0 %v3610
    %3704 = vmatprep.subr.mxu0 0.0
    %3705 = vmatpush1.msra.mxu0 %v3607
    %3706 = vmatprep.subr.mxu0 0.0
    %3707 = vmatpush1.msra.mxu0 %v3604
    %3708 = vmatprep.subr.mxu0 0.0
    %3709 = vmatpush1.msra.mxu0 %v3601
    %3710 = vmatprep.subr.mxu0 0.0
    %3711 = vmatpush1.msra.mxu0 %v3598
    %3712 = vmatprep.subr.mxu0 0.0
    %3713 = vmatpush1.msra.mxu0 %v3595
    %3714 = vmatprep.subr.mxu0 0.0
    %3715 = vmatpush1.msra.mxu0 %v3592
    %3716 = vmatprep.subr.mxu0 0.0
    %3717 = vmatpush1.msra.mxu0 %v3589
    %3718 = vmatprep.subr.mxu0 0.0
    %3719 = vmatpush1.msra.mxu0 %v3586
    %3720 = vmatprep.subr.mxu0 0.0
    %3721 = vmatpush1.msra.mxu0 %v3583
    %3722 = vmatprep.subr.mxu0 0.0
    %3723 = vmatpush1.msra.mxu0 %v3580
    %3724 = vmatprep.subr.mxu0 0.0
    %3725 = vmatpush1.msra.mxu0 %v3577
    %3726 = vmatprep.subr.mxu0 0.0
    %3727 = vmatpush2.msra.mxu0 0.0
    %3728 = vmatprep.subr.mxu0 0.0
    %3729 = vmatpush2.msra.mxu0 0.0
    %3730 = vmatprep.subr.mxu0 0.0
    %3731 = vmatpush2.msra.mxu0 0.0
    %3732 = vmatprep.subr.mxu0 0.0
    %3733 = vmatpush2.msra.mxu0 0.0
    %3734 = vmatprep.subr.mxu0 0.0
    %3735 = vmatpush2.msra.mxu0 0.0
    %3736 = vmatprep.subr.mxu0 0.0
    %3737 = vmatpush2.msra.mxu0 0.0
    %3738 = vmatprep.subr.mxu0 0.0
    %3739 = vmatpush2.msra.mxu0 0.0
    %3740 = vmatprep.subr.mxu0 0.0
    %3741 = vmatpush2.msra.mxu0 0.0
    %3742 = vmatprep.subr.mxu0 0.0
    %3743 = vmatpush2.msra.mxu0 0.0
    %3744 = vmatprep.subr.mxu0 0.0
    %3745 = vmatpush2.msra.mxu0 0.0
    %3746 = vmatprep.subr.mxu0 0.0
    %3747 = vmatpush2.msra.mxu0 0.0
    %3748 = vmatprep.subr.mxu0 0.0
    %3749 = vmatpush2.msra.mxu0 0.0
    %3750 = vmatprep.subr.mxu0 0.0
    %3751 = vmatpush2.msra.mxu0 0.0
    %3752 = vmatprep.subr.mxu0 0.0
    %3753 = vmatpush2.msra.mxu0 0.0
    %3754 = vmatprep.subr.mxu0 0.0
    %3755 = vmatpush2.msra.mxu0 0.0
    %3756 = vmatprep.subr.mxu0 0.0
    %3757 = vmatpush2.msra.mxu0 0.0
    %3758 = vmatprep.mubr.f32.mxu0 0.0
    %3759 = vmatmul.mubr.f32.gmra.mxu0 %v3164
    %v3760 = vpop.f32.mrf.mxu0
    %v3761 = vadd.f32 0.0, %v3760
    %v3762 = vpop.f32.mrf.mxu0
    %3763 = vdwg.mxu0
    %v3764 = vadd.f32 %v3501, %v3690
    %v3765 = vxor.u32 %v3764, 2147483648
    %v3766 = vmul.f32 %v3765, 1.442695
    %v3767 = vpow.pop %v3766
    %v3768 = vadd.f32 %v3767, 1.0
    %v3769 = vrcp.pop %v3768
    %v3770 = vmul.f32 1.0, %v3769
    %v3771 = vadd.f32 %v3503, %v3692
    %v3772 = vxor.u32 %v3771, 2147483648
    %v3773 = vmul.f32 %v3772, 1.442695
    %v3774 = vpow.pop %v3773
    %v3775 = vadd.f32 %v3774, 1.0
    %v3776 = vrcp.pop %v3775
    %v3777 = vmul.f32 1.0, %v3776
    %v3778 = vadd.f32 %v3761, %v686
    %v3779 = vmul.f32 %v3770, %v3778
    %v3780 = vadd.f32 %v3572, %v3779
    %v3781 = vtanh.pop %v3780
    %v3782 = vsub.f32 %v3164, %v3781
    %v3783 = vmul.f32 %v3777, %v3782
    %v3784 = vadd.f32 %v3781, %v3783
    %s3785 = scalar_lea.vmem [#allocation17], 32
    %3786 = vst [vmem:[%s3785] sm:$0xff] %v3784
    %s3787 = smul.u32 5, 3
    %s3788 = smul.addr %s3787, 8
    %s3789 = scalar_lea.vmem [#allocation2], %s3788
    %v3790 = vld [vmem:[%s3789] sm:$0xff]
    %v3791 = vld [vmem:[%s3789 + $0x8] sm:$0xff]
    %v3792 = vld [vmem:[%s3789 + $0x10] sm:$0xff]
    %v3793 = vadd.f32 %v3790, %v583
    %v3794 = vadd.f32 %v3791, %v585
    %v3795 = vadd.f32 %v3792, %v654
    %v3796 = vld [vmem:[#allocation12] sm:$0xff]
    %v3797 = vld [vmem:[#allocation12 + $0x8] sm:$0xff]
    %v3798 = vld [vmem:[#allocation12 + $0x10] sm:$0xff]
    %v3799 = vld [vmem:[#allocation12 + $0x18] sm:$0xff]
    %v3800 = vld [vmem:[#allocation12 + $0x20] sm:$0xff]
    %v3801 = vld [vmem:[#allocation12 + $0x28] sm:$0xff]
    %v3802 = vld [vmem:[#allocation12 + $0x30] sm:$0xff]
    %v3803 = vld [vmem:[#allocation12 + $0x38] sm:$0xff]
    %v3804 = vld [vmem:[#allocation12 + $0x40] sm:$0xff]
    %v3805 = vld [vmem:[#allocation12 + $0x48] sm:$0xff]
    %v3806 = vld [vmem:[#allocation12 + $0x50] sm:$0xff]
    %v3807 = vld [vmem:[#allocation12 + $0x58] sm:$0xff]
    %v3808 = vld [vmem:[#allocation12 + $0x60] sm:$0xff]
    %v3809 = vld [vmem:[#allocation12 + $0x68] sm:$0xff]
    %v3810 = vld [vmem:[#allocation12 + $0x70] sm:$0xff]
    %v3811 = vld [vmem:[#allocation12 + $0x78] sm:$0xff]
    %v3812 = vld [vmem:[#allocation12 + $0x80] sm:$0xff]
    %v3813 = vld [vmem:[#allocation12 + $0x88] sm:$0xff]
    %v3814 = vld [vmem:[#allocation12 + $0x90] sm:$0xff]
    %v3815 = vld [vmem:[#allocation12 + $0x98] sm:$0xff]
    %v3816 = vld [vmem:[#allocation12 + $0xa0] sm:$0xff]
    %v3817 = vld [vmem:[#allocation12 + $0xa8] sm:$0xff]
    %v3818 = vld [vmem:[#allocation12 + $0xb0] sm:$0xff]
    %v3819 = vld [vmem:[#allocation12 + $0xb8] sm:$0xff]
    %v3820 = vld [vmem:[#allocation12 + $0xc0] sm:$0xff]
    %v3821 = vld [vmem:[#allocation12 + $0xc8] sm:$0xff]
    %v3822 = vld [vmem:[#allocation12 + $0xd0] sm:$0xff]
    %v3823 = vld [vmem:[#allocation12 + $0xd8] sm:$0xff]
    %v3824 = vld [vmem:[#allocation12 + $0xe0] sm:$0xff]
    %v3825 = vld [vmem:[#allocation12 + $0xe8] sm:$0xff]
    %v3826 = vld [vmem:[#allocation12 + $0xf0] sm:$0xff]
    %v3827 = vld [vmem:[#allocation12 + $0xf8] sm:$0xff]
    %v3828 = vld [vmem:[#allocation12 + $0x100] sm:$0xff]
    %v3829 = vld [vmem:[#allocation12 + $0x108] sm:$0xff]
    %v3830 = vld [vmem:[#allocation12 + $0x110] sm:$0xff]
    %v3831 = vld [vmem:[#allocation12 + $0x118] sm:$0xff]
    %v3832 = vld [vmem:[#allocation12 + $0x120] sm:$0xff]
    %v3833 = vld [vmem:[#allocation12 + $0x128] sm:$0xff]
    %v3834 = vld [vmem:[#allocation12 + $0x130] sm:$0xff]
    %v3835 = vld [vmem:[#allocation12 + $0x138] sm:$0xff]
    %v3836 = vld [vmem:[#allocation12 + $0x140] sm:$0xff]
    %v3837 = vld [vmem:[#allocation12 + $0x148] sm:$0xff]
    %v3838 = vld [vmem:[#allocation12 + $0x150] sm:$0xff]
    %v3839 = vld [vmem:[#allocation12 + $0x158] sm:$0xff]
    %v3840 = vld [vmem:[#allocation12 + $0x160] sm:$0xff]
    %v3841 = vld [vmem:[#allocation12 + $0x168] sm:$0xff]
    %v3842 = vld [vmem:[#allocation12 + $0x170] sm:$0xff]
    %v3843 = vld [vmem:[#allocation12 + $0x178] sm:$0xff]
    %3844 = vmatprep.subr.mxu0 %v3842
    %3845 = vmatpush1.msra.mxu0 %v3841
    %3846 = vmatprep.subr.mxu0 %v3839
    %3847 = vmatpush1.msra.mxu0 %v3838
    %3848 = vmatprep.subr.mxu0 %v3836
    %3849 = vmatpush1.msra.mxu0 %v3835
    %3850 = vmatprep.subr.mxu0 %v3833
    %3851 = vmatpush1.msra.mxu0 %v3832
    %3852 = vmatprep.subr.mxu0 %v3830
    %3853 = vmatpush1.msra.mxu0 %v3829
    %3854 = vmatprep.subr.mxu0 %v3827
    %3855 = vmatpush1.msra.mxu0 %v3826
    %3856 = vmatprep.subr.mxu0 %v3824
    %3857 = vmatpush1.msra.mxu0 %v3823
    %3858 = vmatprep.subr.mxu0 %v3821
    %3859 = vmatpush1.msra.mxu0 %v3820
    %3860 = vmatprep.subr.mxu0 %v3818
    %3861 = vmatpush1.msra.mxu0 %v3817
    %3862 = vmatprep.subr.mxu0 %v3815
    %3863 = vmatpush1.msra.mxu0 %v3814
    %3864 = vmatprep.subr.mxu0 %v3812
    %3865 = vmatpush1.msra.mxu0 %v3811
    %3866 = vmatprep.subr.mxu0 %v3809
    %3867 = vmatpush1.msra.mxu0 %v3808
    %3868 = vmatprep.subr.mxu0 %v3806
    %3869 = vmatpush1.msra.mxu0 %v3805
    %3870 = vmatprep.subr.mxu0 %v3803
    %3871 = vmatpush1.msra.mxu0 %v3802
    %3872 = vmatprep.subr.mxu0 %v3800
    %3873 = vmatpush1.msra.mxu0 %v3799
    %3874 = vmatprep.subr.mxu0 %v3797
    %3875 = vmatpush1.msra.mxu0 %v3796
    %3876 = vmatprep.subr.mxu0 0.0
    %3877 = vmatpush2.msra.mxu0 0.0
    %3878 = vmatprep.subr.mxu0 0.0
    %3879 = vmatpush2.msra.mxu0 0.0
    %3880 = vmatprep.subr.mxu0 0.0
    %3881 = vmatpush2.msra.mxu0 0.0
    %3882 = vmatprep.subr.mxu0 0.0
    %3883 = vmatpush2.msra.mxu0 0.0
    %3884 = vmatprep.subr.mxu0 0.0
    %3885 = vmatpush2.msra.mxu0 0.0
    %3886 = vmatprep.subr.mxu0 0.0
    %3887 = vmatpush2.msra.mxu0 0.0
    %3888 = vmatprep.subr.mxu0 0.0
    %3889 = vmatpush2.msra.mxu0 0.0
    %3890 = vmatprep.subr.mxu0 0.0
    %3891 = vmatpush2.msra.mxu0 0.0
    %3892 = vmatprep.subr.mxu0 0.0
    %3893 = vmatpush2.msra.mxu0 0.0
    %3894 = vmatprep.subr.mxu0 0.0
    %3895 = vmatpush2.msra.mxu0 0.0
    %3896 = vmatprep.subr.mxu0 0.0
    %3897 = vmatpush2.msra.mxu0 0.0
    %3898 = vmatprep.subr.mxu0 0.0
    %3899 = vmatpush2.msra.mxu0 0.0
    %3900 = vmatprep.subr.mxu0 0.0
    %3901 = vmatpush2.msra.mxu0 0.0
    %3902 = vmatprep.subr.mxu0 0.0
    %3903 = vmatpush2.msra.mxu0 0.0
    %3904 = vmatprep.subr.mxu0 0.0
    %3905 = vmatpush2.msra.mxu0 0.0
    %3906 = vmatprep.subr.mxu0 0.0
    %3907 = vmatpush2.msra.mxu0 0.0
    %3908 = vmatprep.mubr.f32.mxu0 0.0
    %3909 = vmatmul.mubr.f32.gmra.mxu0 %v3385
    %v3910 = vpop.f32.mrf.mxu0
    %v3911 = vadd.f32 0.0, %v3910
    %v3912 = vpop.f32.mrf.mxu0
    %v3913 = vadd.f32 0.0, %v3912
    %3914 = vdwg.mxu0
    %3915 = vmatprep.subr.mxu0 0.0
    %3916 = vmatpush1.msra.mxu0 %v3843
    %3917 = vmatprep.subr.mxu0 0.0
    %3918 = vmatpush1.msra.mxu0 %v3840
    %3919 = vmatprep.subr.mxu0 0.0
    %3920 = vmatpush1.msra.mxu0 %v3837
    %3921 = vmatprep.subr.mxu0 0.0
    %3922 = vmatpush1.msra.mxu0 %v3834
    %3923 = vmatprep.subr.mxu0 0.0
    %3924 = vmatpush1.msra.mxu0 %v3831
    %3925 = vmatprep.subr.mxu0 0.0
    %3926 = vmatpush1.msra.mxu0 %v3828
    %3927 = vmatprep.subr.mxu0 0.0
    %3928 = vmatpush1.msra.mxu0 %v3825
    %3929 = vmatprep.subr.mxu0 0.0
    %3930 = vmatpush1.msra.mxu0 %v3822
    %3931 = vmatprep.subr.mxu0 0.0
    %3932 = vmatpush1.msra.mxu0 %v3819
    %3933 = vmatprep.subr.mxu0 0.0
    %3934 = vmatpush1.msra.mxu0 %v3816
    %3935 = vmatprep.subr.mxu0 0.0
    %3936 = vmatpush1.msra.mxu0 %v3813
    %3937 = vmatprep.subr.mxu0 0.0
    %3938 = vmatpush1.msra.mxu0 %v3810
    %3939 = vmatprep.subr.mxu0 0.0
    %3940 = vmatpush1.msra.mxu0 %v3807
    %3941 = vmatprep.subr.mxu0 0.0
    %3942 = vmatpush1.msra.mxu0 %v3804
    %3943 = vmatprep.subr.mxu0 0.0
    %3944 = vmatpush1.msra.mxu0 %v3801
    %3945 = vmatprep.subr.mxu0 0.0
    %3946 = vmatpush1.msra.mxu0 %v3798
    %3947 = vmatprep.subr.mxu0 0.0
    %3948 = vmatpush2.msra.mxu0 0.0
    %3949 = vmatprep.subr.mxu0 0.0
    %3950 = vmatpush2.msra.mxu0 0.0
    %3951 = vmatprep.subr.mxu0 0.0
    %3952 = vmatpush2.msra.mxu0 0.0
    %3953 = vmatprep.subr.mxu0 0.0
    %3954 = vmatpush2.msra.mxu0 0.0
    %3955 = vmatprep.subr.mxu0 0.0
    %3956 = vmatpush2.msra.mxu0 0.0
    %3957 = vmatprep.subr.mxu0 0.0
    %3958 = vmatpush2.msra.mxu0 0.0
    %3959 = vmatprep.subr.mxu0 0.0
    %3960 = vmatpush2.msra.mxu0 0.0
    %3961 = vmatprep.subr.mxu0 0.0
    %3962 = vmatpush2.msra.mxu0 0.0
    %3963 = vmatprep.subr.mxu0 0.0
    %3964 = vmatpush2.msra.mxu0 0.0
    %3965 = vmatprep.subr.mxu0 0.0
    %3966 = vmatpush2.msra.mxu0 0.0
    %3967 = vmatprep.subr.mxu0 0.0
    %3968 = vmatpush2.msra.mxu0 0.0
    %3969 = vmatprep.subr.mxu0 0.0
    %3970 = vmatpush2.msra.mxu0 0.0
    %3971 = vmatprep.subr.mxu0 0.0
    %3972 = vmatpush2.msra.mxu0 0.0
    %3973 = vmatprep.subr.mxu0 0.0
    %3974 = vmatpush2.msra.mxu0 0.0
    %3975 = vmatprep.subr.mxu0 0.0
    %3976 = vmatpush2.msra.mxu0 0.0
    %3977 = vmatprep.subr.mxu0 0.0
    %3978 = vmatpush2.msra.mxu0 0.0
    %3979 = vmatprep.mubr.f32.mxu0 0.0
    %3980 = vmatmul.mubr.f32.gmra.mxu0 %v3385
    %v3981 = vpop.f32.mrf.mxu0
    %v3982 = vadd.f32 0.0, %v3981
    %v3983 = vpop.f32.mrf.mxu0
    %3984 = vdwg.mxu0
    %v3985 = vadd.f32 %v3793, %v3911
    %v3986 = vxor.u32 %v3985, 2147483648
    %v3987 = vmul.f32 %v3986, 1.442695
    %v3988 = vpow.pop %v3987
    %v3989 = vadd.f32 %v3988, 1.0
    %v3990 = vrcp.pop %v3989
    %v3991 = vmul.f32 1.0, %v3990
    %v3992 = vadd.f32 %v3794, %v3913
    %v3993 = vxor.u32 %v3992, 2147483648
    %v3994 = vmul.f32 %v3993, 1.442695
    %v3995 = vpow.pop %v3994
    %v3996 = vadd.f32 %v3995, 1.0
    %v3997 = vrcp.pop %v3996
    %v3998 = vmul.f32 1.0, %v3997
    %v3999 = vadd.f32 %v3982, %v679
    %v4000 = vmul.f32 %v3991, %v3999
    %v4001 = vadd.f32 %v3795, %v4000
    %v4002 = vtanh.pop %v4001
    %v4003 = vsub.f32 %v3385, %v4002
    %v4004 = vmul.f32 %v3998, %v4003
    %v4005 = vadd.f32 %v4002, %v4004
    %v4006 = vld [vmem:[#allocation14] sm:$0xff]
    %v4007 = vld [vmem:[#allocation14 + $0x8] sm:$0xff]
    %v4008 = vld [vmem:[#allocation14 + $0x10] sm:$0xff]
    %v4009 = vld [vmem:[#allocation14 + $0x18] sm:$0xff]
    %v4010 = vld [vmem:[#allocation14 + $0x20] sm:$0xff]
    %v4011 = vld [vmem:[#allocation14 + $0x28] sm:$0xff]
    %v4012 = vld [vmem:[#allocation14 + $0x30] sm:$0xff]
    %v4013 = vld [vmem:[#allocation14 + $0x38] sm:$0xff]
    %v4014 = vld [vmem:[#allocation14 + $0x40] sm:$0xff]
    %v4015 = vld [vmem:[#allocation14 + $0x48] sm:$0xff]
    %v4016 = vld [vmem:[#allocation14 + $0x50] sm:$0xff]
    %v4017 = vld [vmem:[#allocation14 + $0x58] sm:$0xff]
    %v4018 = vld [vmem:[#allocation14 + $0x60] sm:$0xff]
    %v4019 = vld [vmem:[#allocation14 + $0x68] sm:$0xff]
    %v4020 = vld [vmem:[#allocation14 + $0x70] sm:$0xff]
    %v4021 = vld [vmem:[#allocation14 + $0x78] sm:$0xff]
    %v4022 = vld [vmem:[#allocation14 + $0x80] sm:$0xff]
    %v4023 = vld [vmem:[#allocation14 + $0x88] sm:$0xff]
    %v4024 = vld [vmem:[#allocation14 + $0x90] sm:$0xff]
    %v4025 = vld [vmem:[#allocation14 + $0x98] sm:$0xff]
    %v4026 = vld [vmem:[#allocation14 + $0xa0] sm:$0xff]
    %v4027 = vld [vmem:[#allocation14 + $0xa8] sm:$0xff]
    %v4028 = vld [vmem:[#allocation14 + $0xb0] sm:$0xff]
    %v4029 = vld [vmem:[#allocation14 + $0xb8] sm:$0xff]
    %v4030 = vld [vmem:[#allocation14 + $0xc0] sm:$0xff]
    %v4031 = vld [vmem:[#allocation14 + $0xc8] sm:$0xff]
    %v4032 = vld [vmem:[#allocation14 + $0xd0] sm:$0xff]
    %v4033 = vld [vmem:[#allocation14 + $0xd8] sm:$0xff]
    %v4034 = vld [vmem:[#allocation14 + $0xe0] sm:$0xff]
    %v4035 = vld [vmem:[#allocation14 + $0xe8] sm:$0xff]
    %v4036 = vld [vmem:[#allocation14 + $0xf0] sm:$0xff]
    %v4037 = vld [vmem:[#allocation14 + $0xf8] sm:$0xff]
    %v4038 = vld [vmem:[#allocation14 + $0x100] sm:$0xff]
    %v4039 = vld [vmem:[#allocation14 + $0x108] sm:$0xff]
    %v4040 = vld [vmem:[#allocation14 + $0x110] sm:$0xff]
    %v4041 = vld [vmem:[#allocation14 + $0x118] sm:$0xff]
    %v4042 = vld [vmem:[#allocation14 + $0x120] sm:$0xff]
    %v4043 = vld [vmem:[#allocation14 + $0x128] sm:$0xff]
    %v4044 = vld [vmem:[#allocation14 + $0x130] sm:$0xff]
    %v4045 = vld [vmem:[#allocation14 + $0x138] sm:$0xff]
    %v4046 = vld [vmem:[#allocation14 + $0x140] sm:$0xff]
    %v4047 = vld [vmem:[#allocation14 + $0x148] sm:$0xff]
    %v4048 = vld [vmem:[#allocation14 + $0x150] sm:$0xff]
    %v4049 = vld [vmem:[#allocation14 + $0x158] sm:$0xff]
    %v4050 = vld [vmem:[#allocation14 + $0x160] sm:$0xff]
    %v4051 = vld [vmem:[#allocation14 + $0x168] sm:$0xff]
    %v4052 = vld [vmem:[#allocation14 + $0x170] sm:$0xff]
    %v4053 = vld [vmem:[#allocation14 + $0x178] sm:$0xff]
    %4054 = vmatprep.subr.mxu0 %v4052
    %4055 = vmatpush1.msra.mxu0 %v4051
    %4056 = vmatprep.subr.mxu0 %v4049
    %4057 = vmatpush1.msra.mxu0 %v4048
    %4058 = vmatprep.subr.mxu0 %v4046
    %4059 = vmatpush1.msra.mxu0 %v4045
    %4060 = vmatprep.subr.mxu0 %v4043
    %4061 = vmatpush1.msra.mxu0 %v4042
    %4062 = vmatprep.subr.mxu0 %v4040
    %4063 = vmatpush1.msra.mxu0 %v4039
    %4064 = vmatprep.subr.mxu0 %v4037
    %4065 = vmatpush1.msra.mxu0 %v4036
    %4066 = vmatprep.subr.mxu0 %v4034
    %4067 = vmatpush1.msra.mxu0 %v4033
    %4068 = vmatprep.subr.mxu0 %v4031
    %4069 = vmatpush1.msra.mxu0 %v4030
    %4070 = vmatprep.subr.mxu0 %v4028
    %4071 = vmatpush1.msra.mxu0 %v4027
    %4072 = vmatprep.subr.mxu0 %v4025
    %4073 = vmatpush1.msra.mxu0 %v4024
    %4074 = vmatprep.subr.mxu0 %v4022
    %4075 = vmatpush1.msra.mxu0 %v4021
    %4076 = vmatprep.subr.mxu0 %v4019
    %4077 = vmatpush1.msra.mxu0 %v4018
    %4078 = vmatprep.subr.mxu0 %v4016
    %4079 = vmatpush1.msra.mxu0 %v4015
    %4080 = vmatprep.subr.mxu0 %v4013
    %4081 = vmatpush1.msra.mxu0 %v4012
    %4082 = vmatprep.subr.mxu0 %v4010
    %4083 = vmatpush1.msra.mxu0 %v4009
    %4084 = vmatprep.subr.mxu0 %v4007
    %4085 = vmatpush1.msra.mxu0 %v4006
    %4086 = vmatprep.subr.mxu0 0.0
    %4087 = vmatpush2.msra.mxu0 0.0
    %4088 = vmatprep.subr.mxu0 0.0
    %4089 = vmatpush2.msra.mxu0 0.0
    %4090 = vmatprep.subr.mxu0 0.0
    %4091 = vmatpush2.msra.mxu0 0.0
    %4092 = vmatprep.subr.mxu0 0.0
    %4093 = vmatpush2.msra.mxu0 0.0
    %4094 = vmatprep.subr.mxu0 0.0
    %4095 = vmatpush2.msra.mxu0 0.0
    %4096 = vmatprep.subr.mxu0 0.0
    %4097 = vmatpush2.msra.mxu0 0.0
    %4098 = vmatprep.subr.mxu0 0.0
    %4099 = vmatpush2.msra.mxu0 0.0
    %4100 = vmatprep.subr.mxu0 0.0
    %4101 = vmatpush2.msra.mxu0 0.0
    %4102 = vmatprep.subr.mxu0 0.0
    %4103 = vmatpush2.msra.mxu0 0.0
    %4104 = vmatprep.subr.mxu0 0.0
    %4105 = vmatpush2.msra.mxu0 0.0
    %4106 = vmatprep.subr.mxu0 0.0
    %4107 = vmatpush2.msra.mxu0 0.0
    %4108 = vmatprep.subr.mxu0 0.0
    %4109 = vmatpush2.msra.mxu0 0.0
    %4110 = vmatprep.subr.mxu0 0.0
    %4111 = vmatpush2.msra.mxu0 0.0
    %4112 = vmatprep.subr.mxu0 0.0
    %4113 = vmatpush2.msra.mxu0 0.0
    %4114 = vmatprep.subr.mxu0 0.0
    %4115 = vmatpush2.msra.mxu0 0.0
    %4116 = vmatprep.subr.mxu0 0.0
    %4117 = vmatpush2.msra.mxu0 0.0
    %4118 = vmatprep.mubr.f32.mxu0 0.0
    %4119 = vmatmul.mubr.f32.gmra.mxu0 %v4005
    %v4120 = vpop.f32.mrf.mxu0
    %v4121 = vadd.f32 %v662, %v4120
    %v4122 = vpop.f32.mrf.mxu0
    %v4123 = vadd.f32 %v666, %v4122
    %4124 = vdwg.mxu0
    %4125 = vmatprep.subr.mxu0 0.0
    %4126 = vmatpush1.msra.mxu0 %v4053
    %4127 = vmatprep.subr.mxu0 0.0
    %4128 = vmatpush1.msra.mxu0 %v4050
    %4129 = vmatprep.subr.mxu0 0.0
    %4130 = vmatpush1.msra.mxu0 %v4047
    %4131 = vmatprep.subr.mxu0 0.0
    %4132 = vmatpush1.msra.mxu0 %v4044
    %4133 = vmatprep.subr.mxu0 0.0
    %4134 = vmatpush1.msra.mxu0 %v4041
    %4135 = vmatprep.subr.mxu0 0.0
    %4136 = vmatpush1.msra.mxu0 %v4038
    %4137 = vmatprep.subr.mxu0 0.0
    %4138 = vmatpush1.msra.mxu0 %v4035
    %4139 = vmatprep.subr.mxu0 0.0
    %4140 = vmatpush1.msra.mxu0 %v4032
    %4141 = vmatprep.subr.mxu0 0.0
    %4142 = vmatpush1.msra.mxu0 %v4029
    %4143 = vmatprep.subr.mxu0 0.0
    %4144 = vmatpush1.msra.mxu0 %v4026
    %4145 = vmatprep.subr.mxu0 0.0
    %4146 = vmatpush1.msra.mxu0 %v4023
    %4147 = vmatprep.subr.mxu0 0.0
    %4148 = vmatpush1.msra.mxu0 %v4020
    %4149 = vmatprep.subr.mxu0 0.0
    %4150 = vmatpush1.msra.mxu0 %v4017
    %4151 = vmatprep.subr.mxu0 0.0
    %4152 = vmatpush1.msra.mxu0 %v4014
    %4153 = vmatprep.subr.mxu0 0.0
    %4154 = vmatpush1.msra.mxu0 %v4011
    %4155 = vmatprep.subr.mxu0 0.0
    %4156 = vmatpush1.msra.mxu0 %v4008
    %4157 = vmatprep.subr.mxu0 0.0
    %4158 = vmatpush2.msra.mxu0 0.0
    %4159 = vmatprep.subr.mxu0 0.0
    %4160 = vmatpush2.msra.mxu0 0.0
    %4161 = vmatprep.subr.mxu0 0.0
    %4162 = vmatpush2.msra.mxu0 0.0
    %4163 = vmatprep.subr.mxu0 0.0
    %4164 = vmatpush2.msra.mxu0 0.0
    %4165 = vmatprep.subr.mxu0 0.0
    %4166 = vmatpush2.msra.mxu0 0.0
    %4167 = vmatprep.subr.mxu0 0.0
    %4168 = vmatpush2.msra.mxu0 0.0
    %4169 = vmatprep.subr.mxu0 0.0
    %4170 = vmatpush2.msra.mxu0 0.0
    %4171 = vmatprep.subr.mxu0 0.0
    %4172 = vmatpush2.msra.mxu0 0.0
    %4173 = vmatprep.subr.mxu0 0.0
    %4174 = vmatpush2.msra.mxu0 0.0
    %4175 = vmatprep.subr.mxu0 0.0
    %4176 = vmatpush2.msra.mxu0 0.0
    %4177 = vmatprep.subr.mxu0 0.0
    %4178 = vmatpush2.msra.mxu0 0.0
    %4179 = vmatprep.subr.mxu0 0.0
    %4180 = vmatpush2.msra.mxu0 0.0
    %4181 = vmatprep.subr.mxu0 0.0
    %4182 = vmatpush2.msra.mxu0 0.0
    %4183 = vmatprep.subr.mxu0 0.0
    %4184 = vmatpush2.msra.mxu0 0.0
    %4185 = vmatprep.subr.mxu0 0.0
    %4186 = vmatpush2.msra.mxu0 0.0
    %4187 = vmatprep.subr.mxu0 0.0
    %4188 = vmatpush2.msra.mxu0 0.0
    %4189 = vmatprep.mubr.f32.mxu0 0.0
    %4190 = vmatmul.mubr.f32.gmra.mxu0 %v4005
    %v4191 = vpop.f32.mrf.mxu0
    %v4192 = vadd.f32 %v670, %v4191
    %v4193 = vpop.f32.mrf.mxu0
    %4194 = vdwg.mxu0
    %v4195 = vld [vmem:[#allocation15] sm:$0xff]
    %v4196 = vld [vmem:[#allocation15 + $0x8] sm:$0xff]
    %v4197 = vld [vmem:[#allocation15 + $0x10] sm:$0xff]
    %v4198 = vld [vmem:[#allocation15 + $0x18] sm:$0xff]
    %v4199 = vld [vmem:[#allocation15 + $0x20] sm:$0xff]
    %v4200 = vld [vmem:[#allocation15 + $0x28] sm:$0xff]
    %v4201 = vld [vmem:[#allocation15 + $0x30] sm:$0xff]
    %v4202 = vld [vmem:[#allocation15 + $0x38] sm:$0xff]
    %v4203 = vld [vmem:[#allocation15 + $0x40] sm:$0xff]
    %v4204 = vld [vmem:[#allocation15 + $0x48] sm:$0xff]
    %v4205 = vld [vmem:[#allocation15 + $0x50] sm:$0xff]
    %v4206 = vld [vmem:[#allocation15 + $0x58] sm:$0xff]
    %v4207 = vld [vmem:[#allocation15 + $0x60] sm:$0xff]
    %v4208 = vld [vmem:[#allocation15 + $0x68] sm:$0xff]
    %v4209 = vld [vmem:[#allocation15 + $0x70] sm:$0xff]
    %v4210 = vld [vmem:[#allocation15 + $0x78] sm:$0xff]
    %v4211 = vld [vmem:[#allocation15 + $0x80] sm:$0xff]
    %v4212 = vld [vmem:[#allocation15 + $0x88] sm:$0xff]
    %v4213 = vld [vmem:[#allocation15 + $0x90] sm:$0xff]
    %v4214 = vld [vmem:[#allocation15 + $0x98] sm:$0xff]
    %v4215 = vld [vmem:[#allocation15 + $0xa0] sm:$0xff]
    %v4216 = vld [vmem:[#allocation15 + $0xa8] sm:$0xff]
    %v4217 = vld [vmem:[#allocation15 + $0xb0] sm:$0xff]
    %v4218 = vld [vmem:[#allocation15 + $0xb8] sm:$0xff]
    %v4219 = vld [vmem:[#allocation15 + $0xc0] sm:$0xff]
    %v4220 = vld [vmem:[#allocation15 + $0xc8] sm:$0xff]
    %v4221 = vld [vmem:[#allocation15 + $0xd0] sm:$0xff]
    %v4222 = vld [vmem:[#allocation15 + $0xd8] sm:$0xff]
    %v4223 = vld [vmem:[#allocation15 + $0xe0] sm:$0xff]
    %v4224 = vld [vmem:[#allocation15 + $0xe8] sm:$0xff]
    %v4225 = vld [vmem:[#allocation15 + $0xf0] sm:$0xff]
    %v4226 = vld [vmem:[#allocation15 + $0xf8] sm:$0xff]
    %v4227 = vld [vmem:[#allocation15 + $0x100] sm:$0xff]
    %v4228 = vld [vmem:[#allocation15 + $0x108] sm:$0xff]
    %v4229 = vld [vmem:[#allocation15 + $0x110] sm:$0xff]
    %v4230 = vld [vmem:[#allocation15 + $0x118] sm:$0xff]
    %v4231 = vld [vmem:[#allocation15 + $0x120] sm:$0xff]
    %v4232 = vld [vmem:[#allocation15 + $0x128] sm:$0xff]
    %v4233 = vld [vmem:[#allocation15 + $0x130] sm:$0xff]
    %v4234 = vld [vmem:[#allocation15 + $0x138] sm:$0xff]
    %v4235 = vld [vmem:[#allocation15 + $0x140] sm:$0xff]
    %v4236 = vld [vmem:[#allocation15 + $0x148] sm:$0xff]
    %v4237 = vld [vmem:[#allocation15 + $0x150] sm:$0xff]
    %v4238 = vld [vmem:[#allocation15 + $0x158] sm:$0xff]
    %v4239 = vld [vmem:[#allocation15 + $0x160] sm:$0xff]
    %v4240 = vld [vmem:[#allocation15 + $0x168] sm:$0xff]
    %v4241 = vld [vmem:[#allocation15 + $0x170] sm:$0xff]
    %v4242 = vld [vmem:[#allocation15 + $0x178] sm:$0xff]
    %4243 = vmatprep.subr.mxu0 %v4241
    %4244 = vmatpush1.msra.mxu0 %v4240
    %4245 = vmatprep.subr.mxu0 %v4238
    %4246 = vmatpush1.msra.mxu0 %v4237
    %4247 = vmatprep.subr.mxu0 %v4235
    %4248 = vmatpush1.msra.mxu0 %v4234
    %4249 = vmatprep.subr.mxu0 %v4232
    %4250 = vmatpush1.msra.mxu0 %v4231
    %4251 = vmatprep.subr.mxu0 %v4229
    %4252 = vmatpush1.msra.mxu0 %v4228
    %4253 = vmatprep.subr.mxu0 %v4226
    %4254 = vmatpush1.msra.mxu0 %v4225
    %4255 = vmatprep.subr.mxu0 %v4223
    %4256 = vmatpush1.msra.mxu0 %v4222
    %4257 = vmatprep.subr.mxu0 %v4220
    %4258 = vmatpush1.msra.mxu0 %v4219
    %4259 = vmatprep.subr.mxu0 %v4217
    %4260 = vmatpush1.msra.mxu0 %v4216
    %4261 = vmatprep.subr.mxu0 %v4214
    %4262 = vmatpush1.msra.mxu0 %v4213
    %4263 = vmatprep.subr.mxu0 %v4211
    %4264 = vmatpush1.msra.mxu0 %v4210
    %4265 = vmatprep.subr.mxu0 %v4208
    %4266 = vmatpush1.msra.mxu0 %v4207
    %4267 = vmatprep.subr.mxu0 %v4205
    %4268 = vmatpush1.msra.mxu0 %v4204
    %4269 = vmatprep.subr.mxu0 %v4202
    %4270 = vmatpush1.msra.mxu0 %v4201
    %4271 = vmatprep.subr.mxu0 %v4199
    %4272 = vmatpush1.msra.mxu0 %v4198
    %4273 = vmatprep.subr.mxu0 %v4196
    %4274 = vmatpush1.msra.mxu0 %v4195
    %4275 = vmatprep.subr.mxu0 0.0
    %4276 = vmatpush2.msra.mxu0 0.0
    %4277 = vmatprep.subr.mxu0 0.0
    %4278 = vmatpush2.msra.mxu0 0.0
    %4279 = vmatprep.subr.mxu0 0.0
    %4280 = vmatpush2.msra.mxu0 0.0
    %4281 = vmatprep.subr.mxu0 0.0
    %4282 = vmatpush2.msra.mxu0 0.0
    %4283 = vmatprep.subr.mxu0 0.0
    %4284 = vmatpush2.msra.mxu0 0.0
    %4285 = vmatprep.subr.mxu0 0.0
    %4286 = vmatpush2.msra.mxu0 0.0
    %4287 = vmatprep.subr.mxu0 0.0
    %4288 = vmatpush2.msra.mxu0 0.0
    %4289 = vmatprep.subr.mxu0 0.0
    %4290 = vmatpush2.msra.mxu0 0.0
    %4291 = vmatprep.subr.mxu0 0.0
    %4292 = vmatpush2.msra.mxu0 0.0
    %4293 = vmatprep.subr.mxu0 0.0
    %4294 = vmatpush2.msra.mxu0 0.0
    %4295 = vmatprep.subr.mxu0 0.0
    %4296 = vmatpush2.msra.mxu0 0.0
    %4297 = vmatprep.subr.mxu0 0.0
    %4298 = vmatpush2.msra.mxu0 0.0
    %4299 = vmatprep.subr.mxu0 0.0
    %4300 = vmatpush2.msra.mxu0 0.0
    %4301 = vmatprep.subr.mxu0 0.0
    %4302 = vmatpush2.msra.mxu0 0.0
    %4303 = vmatprep.subr.mxu0 0.0
    %4304 = vmatpush2.msra.mxu0 0.0
    %4305 = vmatprep.subr.mxu0 0.0
    %4306 = vmatpush2.msra.mxu0 0.0
    %4307 = vmatprep.mubr.f32.mxu0 0.0
    %4308 = vmatmul.mubr.f32.gmra.mxu0 %v3784
    %v4309 = vpop.f32.mrf.mxu0
    %v4310 = vadd.f32 0.0, %v4309
    %v4311 = vpop.f32.mrf.mxu0
    %v4312 = vadd.f32 0.0, %v4311
    %4313 = vdwg.mxu0
    %4314 = vmatprep.subr.mxu0 0.0
    %4315 = vmatpush1.msra.mxu0 %v4242
    %4316 = vmatprep.subr.mxu0 0.0
    %4317 = vmatpush1.msra.mxu0 %v4239
    %4318 = vmatprep.subr.mxu0 0.0
    %4319 = vmatpush1.msra.mxu0 %v4236
    %4320 = vmatprep.subr.mxu0 0.0
    %4321 = vmatpush1.msra.mxu0 %v4233
    %4322 = vmatprep.subr.mxu0 0.0
    %4323 = vmatpush1.msra.mxu0 %v4230
    %4324 = vmatprep.subr.mxu0 0.0
    %4325 = vmatpush1.msra.mxu0 %v4227
    %4326 = vmatprep.subr.mxu0 0.0
    %4327 = vmatpush1.msra.mxu0 %v4224
    %4328 = vmatprep.subr.mxu0 0.0
    %4329 = vmatpush1.msra.mxu0 %v4221
    %4330 = vmatprep.subr.mxu0 0.0
    %4331 = vmatpush1.msra.mxu0 %v4218
    %4332 = vmatprep.subr.mxu0 0.0
    %4333 = vmatpush1.msra.mxu0 %v4215
    %4334 = vmatprep.subr.mxu0 0.0
    %4335 = vmatpush1.msra.mxu0 %v4212
    %4336 = vmatprep.subr.mxu0 0.0
    %4337 = vmatpush1.msra.mxu0 %v4209
    %4338 = vmatprep.subr.mxu0 0.0
    %4339 = vmatpush1.msra.mxu0 %v4206
    %4340 = vmatprep.subr.mxu0 0.0
    %4341 = vmatpush1.msra.mxu0 %v4203
    %4342 = vmatprep.subr.mxu0 0.0
    %4343 = vmatpush1.msra.mxu0 %v4200
    %4344 = vmatprep.subr.mxu0 0.0
    %4345 = vmatpush1.msra.mxu0 %v4197
    %4346 = vmatprep.subr.mxu0 0.0
    %4347 = vmatpush2.msra.mxu0 0.0
    %4348 = vmatprep.subr.mxu0 0.0
    %4349 = vmatpush2.msra.mxu0 0.0
    %4350 = vmatprep.subr.mxu0 0.0
    %4351 = vmatpush2.msra.mxu0 0.0
    %4352 = vmatprep.subr.mxu0 0.0
    %4353 = vmatpush2.msra.mxu0 0.0
    %4354 = vmatprep.subr.mxu0 0.0
    %4355 = vmatpush2.msra.mxu0 0.0
    %4356 = vmatprep.subr.mxu0 0.0
    %4357 = vmatpush2.msra.mxu0 0.0
    %4358 = vmatprep.subr.mxu0 0.0
    %4359 = vmatpush2.msra.mxu0 0.0
    %4360 = vmatprep.subr.mxu0 0.0
    %4361 = vmatpush2.msra.mxu0 0.0
    %4362 = vmatprep.subr.mxu0 0.0
    %4363 = vmatpush2.msra.mxu0 0.0
    %4364 = vmatprep.subr.mxu0 0.0
    %4365 = vmatpush2.msra.mxu0 0.0
    %4366 = vmatprep.subr.mxu0 0.0
    %4367 = vmatpush2.msra.mxu0 0.0
    %4368 = vmatprep.subr.mxu0 0.0
    %4369 = vmatpush2.msra.mxu0 0.0
    %4370 = vmatprep.subr.mxu0 0.0
    %4371 = vmatpush2.msra.mxu0 0.0
    %4372 = vmatprep.subr.mxu0 0.0
    %4373 = vmatpush2.msra.mxu0 0.0
    %4374 = vmatprep.subr.mxu0 0.0
    %4375 = vmatpush2.msra.mxu0 0.0
    %4376 = vmatprep.subr.mxu0 0.0
    %4377 = vmatpush2.msra.mxu0 0.0
    %4378 = vmatprep.mubr.f32.mxu0 0.0
    %4379 = vmatmul.mubr.f32.gmra.mxu0 %v3784
    %v4380 = vpop.f32.mrf.mxu0
    %v4381 = vadd.f32 0.0, %v4380
    %v4382 = vpop.f32.mrf.mxu0
    %4383 = vdwg.mxu0
    %v4384 = vadd.f32 %v4121, %v4310
    %v4385 = vxor.u32 %v4384, 2147483648
    %v4386 = vmul.f32 %v4385, 1.442695
    %v4387 = vpow.pop %v4386
    %v4388 = vadd.f32 %v4387, 1.0
    %v4389 = vrcp.pop %v4388
    %v4390 = vmul.f32 1.0, %v4389
    %v4391 = vadd.f32 %v4123, %v4312
    %v4392 = vxor.u32 %v4391, 2147483648
    %v4393 = vmul.f32 %v4392, 1.442695
    %v4394 = vpow.pop %v4393
    %v4395 = vadd.f32 %v4394, 1.0
    %v4396 = vrcp.pop %v4395
    %v4397 = vmul.f32 1.0, %v4396
    %v4398 = vadd.f32 %v4381, %v686
    %v4399 = vmul.f32 %v4390, %v4398
    %v4400 = vadd.f32 %v4192, %v4399
    %v4401 = vtanh.pop %v4400
    %v4402 = vsub.f32 %v3784, %v4401
    %v4403 = vmul.f32 %v4397, %v4402
    %v4404 = vadd.f32 %v4401, %v4403
    %s4405 = scalar_lea.vmem [#allocation17], 40
    %4406 = vst [vmem:[%s4405] sm:$0xff] %v4404
    %s4407 = smul.u32 6, 3
    %s4408 = smul.addr %s4407, 8
    %s4409 = scalar_lea.vmem [#allocation2], %s4408
    %v4410 = vld [vmem:[%s4409] sm:$0xff]
    %v4411 = vld [vmem:[%s4409 + $0x8] sm:$0xff]
    %v4412 = vld [vmem:[%s4409 + $0x10] sm:$0xff]
    %v4413 = vadd.f32 %v4410, %v583
    %v4414 = vadd.f32 %v4411, %v585
    %v4415 = vadd.f32 %v4412, %v654
    %v4416 = vld [vmem:[#allocation12] sm:$0xff]
    %v4417 = vld [vmem:[#allocation12 + $0x8] sm:$0xff]
    %v4418 = vld [vmem:[#allocation12 + $0x10] sm:$0xff]
    %v4419 = vld [vmem:[#allocation12 + $0x18] sm:$0xff]
    %v4420 = vld [vmem:[#allocation12 + $0x20] sm:$0xff]
    %v4421 = vld [vmem:[#allocation12 + $0x28] sm:$0xff]
    %v4422 = vld [vmem:[#allocation12 + $0x30] sm:$0xff]
    %v4423 = vld [vmem:[#allocation12 + $0x38] sm:$0xff]
    %v4424 = vld [vmem:[#allocation12 + $0x40] sm:$0xff]
    %v4425 = vld [vmem:[#allocation12 + $0x48] sm:$0xff]
    %v4426 = vld [vmem:[#allocation12 + $0x50] sm:$0xff]
    %v4427 = vld [vmem:[#allocation12 + $0x58] sm:$0xff]
    %v4428 = vld [vmem:[#allocation12 + $0x60] sm:$0xff]
    %v4429 = vld [vmem:[#allocation12 + $0x68] sm:$0xff]
    %v4430 = vld [vmem:[#allocation12 + $0x70] sm:$0xff]
    %v4431 = vld [vmem:[#allocation12 + $0x78] sm:$0xff]
    %v4432 = vld [vmem:[#allocation12 + $0x80] sm:$0xff]
    %v4433 = vld [vmem:[#allocation12 + $0x88] sm:$0xff]
    %v4434 = vld [vmem:[#allocation12 + $0x90] sm:$0xff]
    %v4435 = vld [vmem:[#allocation12 + $0x98] sm:$0xff]
    %v4436 = vld [vmem:[#allocation12 + $0xa0] sm:$0xff]
    %v4437 = vld [vmem:[#allocation12 + $0xa8] sm:$0xff]
    %v4438 = vld [vmem:[#allocation12 + $0xb0] sm:$0xff]
    %v4439 = vld [vmem:[#allocation12 + $0xb8] sm:$0xff]
    %v4440 = vld [vmem:[#allocation12 + $0xc0] sm:$0xff]
    %v4441 = vld [vmem:[#allocation12 + $0xc8] sm:$0xff]
    %v4442 = vld [vmem:[#allocation12 + $0xd0] sm:$0xff]
    %v4443 = vld [vmem:[#allocation12 + $0xd8] sm:$0xff]
    %v4444 = vld [vmem:[#allocation12 + $0xe0] sm:$0xff]
    %v4445 = vld [vmem:[#allocation12 + $0xe8] sm:$0xff]
    %v4446 = vld [vmem:[#allocation12 + $0xf0] sm:$0xff]
    %v4447 = vld [vmem:[#allocation12 + $0xf8] sm:$0xff]
    %v4448 = vld [vmem:[#allocation12 + $0x100] sm:$0xff]
    %v4449 = vld [vmem:[#allocation12 + $0x108] sm:$0xff]
    %v4450 = vld [vmem:[#allocation12 + $0x110] sm:$0xff]
    %v4451 = vld [vmem:[#allocation12 + $0x118] sm:$0xff]
    %v4452 = vld [vmem:[#allocation12 + $0x120] sm:$0xff]
    %v4453 = vld [vmem:[#allocation12 + $0x128] sm:$0xff]
    %v4454 = vld [vmem:[#allocation12 + $0x130] sm:$0xff]
    %v4455 = vld [vmem:[#allocation12 + $0x138] sm:$0xff]
    %v4456 = vld [vmem:[#allocation12 + $0x140] sm:$0xff]
    %v4457 = vld [vmem:[#allocation12 + $0x148] sm:$0xff]
    %v4458 = vld [vmem:[#allocation12 + $0x150] sm:$0xff]
    %v4459 = vld [vmem:[#allocation12 + $0x158] sm:$0xff]
    %v4460 = vld [vmem:[#allocation12 + $0x160] sm:$0xff]
    %v4461 = vld [vmem:[#allocation12 + $0x168] sm:$0xff]
    %v4462 = vld [vmem:[#allocation12 + $0x170] sm:$0xff]
    %v4463 = vld [vmem:[#allocation12 + $0x178] sm:$0xff]
    %4464 = vmatprep.subr.mxu0 %v4462
    %4465 = vmatpush1.msra.mxu0 %v4461
    %4466 = vmatprep.subr.mxu0 %v4459
    %4467 = vmatpush1.msra.mxu0 %v4458
    %4468 = vmatprep.subr.mxu0 %v4456
    %4469 = vmatpush1.msra.mxu0 %v4455
    %4470 = vmatprep.subr.mxu0 %v4453
    %4471 = vmatpush1.msra.mxu0 %v4452
    %4472 = vmatprep.subr.mxu0 %v4450
    %4473 = vmatpush1.msra.mxu0 %v4449
    %4474 = vmatprep.subr.mxu0 %v4447
    %4475 = vmatpush1.msra.mxu0 %v4446
    %4476 = vmatprep.subr.mxu0 %v4444
    %4477 = vmatpush1.msra.mxu0 %v4443
    %4478 = vmatprep.subr.mxu0 %v4441
    %4479 = vmatpush1.msra.mxu0 %v4440
    %4480 = vmatprep.subr.mxu0 %v4438
    %4481 = vmatpush1.msra.mxu0 %v4437
    %4482 = vmatprep.subr.mxu0 %v4435
    %4483 = vmatpush1.msra.mxu0 %v4434
    %4484 = vmatprep.subr.mxu0 %v4432
    %4485 = vmatpush1.msra.mxu0 %v4431
    %4486 = vmatprep.subr.mxu0 %v4429
    %4487 = vmatpush1.msra.mxu0 %v4428
    %4488 = vmatprep.subr.mxu0 %v4426
    %4489 = vmatpush1.msra.mxu0 %v4425
    %4490 = vmatprep.subr.mxu0 %v4423
    %4491 = vmatpush1.msra.mxu0 %v4422
    %4492 = vmatprep.subr.mxu0 %v4420
    %4493 = vmatpush1.msra.mxu0 %v4419
    %4494 = vmatprep.subr.mxu0 %v4417
    %4495 = vmatpush1.msra.mxu0 %v4416
    %4496 = vmatprep.subr.mxu0 0.0
    %4497 = vmatpush2.msra.mxu0 0.0
    %4498 = vmatprep.subr.mxu0 0.0
    %4499 = vmatpush2.msra.mxu0 0.0
    %4500 = vmatprep.subr.mxu0 0.0
    %4501 = vmatpush2.msra.mxu0 0.0
    %4502 = vmatprep.subr.mxu0 0.0
    %4503 = vmatpush2.msra.mxu0 0.0
    %4504 = vmatprep.subr.mxu0 0.0
    %4505 = vmatpush2.msra.mxu0 0.0
    %4506 = vmatprep.subr.mxu0 0.0
    %4507 = vmatpush2.msra.mxu0 0.0
    %4508 = vmatprep.subr.mxu0 0.0
    %4509 = vmatpush2.msra.mxu0 0.0
    %4510 = vmatprep.subr.mxu0 0.0
    %4511 = vmatpush2.msra.mxu0 0.0
    %4512 = vmatprep.subr.mxu0 0.0
    %4513 = vmatpush2.msra.mxu0 0.0
    %4514 = vmatprep.subr.mxu0 0.0
    %4515 = vmatpush2.msra.mxu0 0.0
    %4516 = vmatprep.subr.mxu0 0.0
    %4517 = vmatpush2.msra.mxu0 0.0
    %4518 = vmatprep.subr.mxu0 0.0
    %4519 = vmatpush2.msra.mxu0 0.0
    %4520 = vmatprep.subr.mxu0 0.0
    %4521 = vmatpush2.msra.mxu0 0.0
    %4522 = vmatprep.subr.mxu0 0.0
    %4523 = vmatpush2.msra.mxu0 0.0
    %4524 = vmatprep.subr.mxu0 0.0
    %4525 = vmatpush2.msra.mxu0 0.0
    %4526 = vmatprep.subr.mxu0 0.0
    %4527 = vmatpush2.msra.mxu0 0.0
    %4528 = vmatprep.mubr.f32.mxu0 0.0
    %4529 = vmatmul.mubr.f32.gmra.mxu0 %v4005
    %v4530 = vpop.f32.mrf.mxu0
    %v4531 = vadd.f32 0.0, %v4530
    %v4532 = vpop.f32.mrf.mxu0
    %v4533 = vadd.f32 0.0, %v4532
    %4534 = vdwg.mxu0
    %4535 = vmatprep.subr.mxu0 0.0
    %4536 = vmatpush1.msra.mxu0 %v4463
    %4537 = vmatprep.subr.mxu0 0.0
    %4538 = vmatpush1.msra.mxu0 %v4460
    %4539 = vmatprep.subr.mxu0 0.0
    %4540 = vmatpush1.msra.mxu0 %v4457
    %4541 = vmatprep.subr.mxu0 0.0
    %4542 = vmatpush1.msra.mxu0 %v4454
    %4543 = vmatprep.subr.mxu0 0.0
    %4544 = vmatpush1.msra.mxu0 %v4451
    %4545 = vmatprep.subr.mxu0 0.0
    %4546 = vmatpush1.msra.mxu0 %v4448
    %4547 = vmatprep.subr.mxu0 0.0
    %4548 = vmatpush1.msra.mxu0 %v4445
    %4549 = vmatprep.subr.mxu0 0.0
    %4550 = vmatpush1.msra.mxu0 %v4442
    %4551 = vmatprep.subr.mxu0 0.0
    %4552 = vmatpush1.msra.mxu0 %v4439
    %4553 = vmatprep.subr.mxu0 0.0
    %4554 = vmatpush1.msra.mxu0 %v4436
    %4555 = vmatprep.subr.mxu0 0.0
    %4556 = vmatpush1.msra.mxu0 %v4433
    %4557 = vmatprep.subr.mxu0 0.0
    %4558 = vmatpush1.msra.mxu0 %v4430
    %4559 = vmatprep.subr.mxu0 0.0
    %4560 = vmatpush1.msra.mxu0 %v4427
    %4561 = vmatprep.subr.mxu0 0.0
    %4562 = vmatpush1.msra.mxu0 %v4424
    %4563 = vmatprep.subr.mxu0 0.0
    %4564 = vmatpush1.msra.mxu0 %v4421
    %4565 = vmatprep.subr.mxu0 0.0
    %4566 = vmatpush1.msra.mxu0 %v4418
    %4567 = vmatprep.subr.mxu0 0.0
    %4568 = vmatpush2.msra.mxu0 0.0
    %4569 = vmatprep.subr.mxu0 0.0
    %4570 = vmatpush2.msra.mxu0 0.0
    %4571 = vmatprep.subr.mxu0 0.0
    %4572 = vmatpush2.msra.mxu0 0.0
    %4573 = vmatprep.subr.mxu0 0.0
    %4574 = vmatpush2.msra.mxu0 0.0
    %4575 = vmatprep.subr.mxu0 0.0
    %4576 = vmatpush2.msra.mxu0 0.0
    %4577 = vmatprep.subr.mxu0 0.0
    %4578 = vmatpush2.msra.mxu0 0.0
    %4579 = vmatprep.subr.mxu0 0.0
    %4580 = vmatpush2.msra.mxu0 0.0
    %4581 = vmatprep.subr.mxu0 0.0
    %4582 = vmatpush2.msra.mxu0 0.0
    %4583 = vmatprep.subr.mxu0 0.0
    %4584 = vmatpush2.msra.mxu0 0.0
    %4585 = vmatprep.subr.mxu0 0.0
    %4586 = vmatpush2.msra.mxu0 0.0
    %4587 = vmatprep.subr.mxu0 0.0
    %4588 = vmatpush2.msra.mxu0 0.0
    %4589 = vmatprep.subr.mxu0 0.0
    %4590 = vmatpush2.msra.mxu0 0.0
    %4591 = vmatprep.subr.mxu0 0.0
    %4592 = vmatpush2.msra.mxu0 0.0
    %4593 = vmatprep.subr.mxu0 0.0
    %4594 = vmatpush2.msra.mxu0 0.0
    %4595 = vmatprep.subr.mxu0 0.0
    %4596 = vmatpush2.msra.mxu0 0.0
    %4597 = vmatprep.subr.mxu0 0.0
    %4598 = vmatpush2.msra.mxu0 0.0
    %4599 = vmatprep.mubr.f32.mxu0 0.0
    %4600 = vmatmul.mubr.f32.gmra.mxu0 %v4005
    %v4601 = vpop.f32.mrf.mxu0
    %v4602 = vadd.f32 0.0, %v4601
    %v4603 = vpop.f32.mrf.mxu0
    %4604 = vdwg.mxu0
    %v4605 = vadd.f32 %v4413, %v4531
    %v4606 = vxor.u32 %v4605, 2147483648
    %v4607 = vmul.f32 %v4606, 1.442695
    %v4608 = vpow.pop %v4607
    %v4609 = vadd.f32 %v4608, 1.0
    %v4610 = vrcp.pop %v4609
    %v4611 = vmul.f32 1.0, %v4610
    %v4612 = vadd.f32 %v4414, %v4533
    %v4613 = vxor.u32 %v4612, 2147483648
    %v4614 = vmul.f32 %v4613, 1.442695
    %v4615 = vpow.pop %v4614
    %v4616 = vadd.f32 %v4615, 1.0
    %v4617 = vrcp.pop %v4616
    %v4618 = vmul.f32 1.0, %v4617
    %v4619 = vadd.f32 %v4602, %v679
    %v4620 = vmul.f32 %v4611, %v4619
    %v4621 = vadd.f32 %v4415, %v4620
    %v4622 = vtanh.pop %v4621
    %v4623 = vsub.f32 %v4005, %v4622
    %v4624 = vmul.f32 %v4618, %v4623
    %v4625 = vadd.f32 %v4622, %v4624
    %v4626 = vld [vmem:[#allocation14] sm:$0xff]
    %v4627 = vld [vmem:[#allocation14 + $0x8] sm:$0xff]
    %v4628 = vld [vmem:[#allocation14 + $0x10] sm:$0xff]
    %v4629 = vld [vmem:[#allocation14 + $0x18] sm:$0xff]
    %v4630 = vld [vmem:[#allocation14 + $0x20] sm:$0xff]
    %v4631 = vld [vmem:[#allocation14 + $0x28] sm:$0xff]
    %v4632 = vld [vmem:[#allocation14 + $0x30] sm:$0xff]
    %v4633 = vld [vmem:[#allocation14 + $0x38] sm:$0xff]
    %v4634 = vld [vmem:[#allocation14 + $0x40] sm:$0xff]
    %v4635 = vld [vmem:[#allocation14 + $0x48] sm:$0xff]
    %v4636 = vld [vmem:[#allocation14 + $0x50] sm:$0xff]
    %v4637 = vld [vmem:[#allocation14 + $0x58] sm:$0xff]
    %v4638 = vld [vmem:[#allocation14 + $0x60] sm:$0xff]
    %v4639 = vld [vmem:[#allocation14 + $0x68] sm:$0xff]
    %v4640 = vld [vmem:[#allocation14 + $0x70] sm:$0xff]
    %v4641 = vld [vmem:[#allocation14 + $0x78] sm:$0xff]
    %v4642 = vld [vmem:[#allocation14 + $0x80] sm:$0xff]
    %v4643 = vld [vmem:[#allocation14 + $0x88] sm:$0xff]
    %v4644 = vld [vmem:[#allocation14 + $0x90] sm:$0xff]
    %v4645 = vld [vmem:[#allocation14 + $0x98] sm:$0xff]
    %v4646 = vld [vmem:[#allocation14 + $0xa0] sm:$0xff]
    %v4647 = vld [vmem:[#allocation14 + $0xa8] sm:$0xff]
    %v4648 = vld [vmem:[#allocation14 + $0xb0] sm:$0xff]
    %v4649 = vld [vmem:[#allocation14 + $0xb8] sm:$0xff]
    %v4650 = vld [vmem:[#allocation14 + $0xc0] sm:$0xff]
    %v4651 = vld [vmem:[#allocation14 + $0xc8] sm:$0xff]
    %v4652 = vld [vmem:[#allocation14 + $0xd0] sm:$0xff]
    %v4653 = vld [vmem:[#allocation14 + $0xd8] sm:$0xff]
    %v4654 = vld [vmem:[#allocation14 + $0xe0] sm:$0xff]
    %v4655 = vld [vmem:[#allocation14 + $0xe8] sm:$0xff]
    %v4656 = vld [vmem:[#allocation14 + $0xf0] sm:$0xff]
    %v4657 = vld [vmem:[#allocation14 + $0xf8] sm:$0xff]
    %v4658 = vld [vmem:[#allocation14 + $0x100] sm:$0xff]
    %v4659 = vld [vmem:[#allocation14 + $0x108] sm:$0xff]
    %v4660 = vld [vmem:[#allocation14 + $0x110] sm:$0xff]
    %v4661 = vld [vmem:[#allocation14 + $0x118] sm:$0xff]
    %v4662 = vld [vmem:[#allocation14 + $0x120] sm:$0xff]
    %v4663 = vld [vmem:[#allocation14 + $0x128] sm:$0xff]
    %v4664 = vld [vmem:[#allocation14 + $0x130] sm:$0xff]
    %v4665 = vld [vmem:[#allocation14 + $0x138] sm:$0xff]
    %v4666 = vld [vmem:[#allocation14 + $0x140] sm:$0xff]
    %v4667 = vld [vmem:[#allocation14 + $0x148] sm:$0xff]
    %v4668 = vld [vmem:[#allocation14 + $0x150] sm:$0xff]
    %v4669 = vld [vmem:[#allocation14 + $0x158] sm:$0xff]
    %v4670 = vld [vmem:[#allocation14 + $0x160] sm:$0xff]
    %v4671 = vld [vmem:[#allocation14 + $0x168] sm:$0xff]
    %v4672 = vld [vmem:[#allocation14 + $0x170] sm:$0xff]
    %v4673 = vld [vmem:[#allocation14 + $0x178] sm:$0xff]
    %4674 = vmatprep.subr.mxu0 %v4672
    %4675 = vmatpush1.msra.mxu0 %v4671
    %4676 = vmatprep.subr.mxu0 %v4669
    %4677 = vmatpush1.msra.mxu0 %v4668
    %4678 = vmatprep.subr.mxu0 %v4666
    %4679 = vmatpush1.msra.mxu0 %v4665
    %4680 = vmatprep.subr.mxu0 %v4663
    %4681 = vmatpush1.msra.mxu0 %v4662
    %4682 = vmatprep.subr.mxu0 %v4660
    %4683 = vmatpush1.msra.mxu0 %v4659
    %4684 = vmatprep.subr.mxu0 %v4657
    %4685 = vmatpush1.msra.mxu0 %v4656
    %4686 = vmatprep.subr.mxu0 %v4654
    %4687 = vmatpush1.msra.mxu0 %v4653
    %4688 = vmatprep.subr.mxu0 %v4651
    %4689 = vmatpush1.msra.mxu0 %v4650
    %4690 = vmatprep.subr.mxu0 %v4648
    %4691 = vmatpush1.msra.mxu0 %v4647
    %4692 = vmatprep.subr.mxu0 %v4645
    %4693 = vmatpush1.msra.mxu0 %v4644
    %4694 = vmatprep.subr.mxu0 %v4642
    %4695 = vmatpush1.msra.mxu0 %v4641
    %4696 = vmatprep.subr.mxu0 %v4639
    %4697 = vmatpush1.msra.mxu0 %v4638
    %4698 = vmatprep.subr.mxu0 %v4636
    %4699 = vmatpush1.msra.mxu0 %v4635
    %4700 = vmatprep.subr.mxu0 %v4633
    %4701 = vmatpush1.msra.mxu0 %v4632
    %4702 = vmatprep.subr.mxu0 %v4630
    %4703 = vmatpush1.msra.mxu0 %v4629
    %4704 = vmatprep.subr.mxu0 %v4627
    %4705 = vmatpush1.msra.mxu0 %v4626
    %4706 = vmatprep.subr.mxu0 0.0
    %4707 = vmatpush2.msra.mxu0 0.0
    %4708 = vmatprep.subr.mxu0 0.0
    %4709 = vmatpush2.msra.mxu0 0.0
    %4710 = vmatprep.subr.mxu0 0.0
    %4711 = vmatpush2.msra.mxu0 0.0
    %4712 = vmatprep.subr.mxu0 0.0
    %4713 = vmatpush2.msra.mxu0 0.0
    %4714 = vmatprep.subr.mxu0 0.0
    %4715 = vmatpush2.msra.mxu0 0.0
    %4716 = vmatprep.subr.mxu0 0.0
    %4717 = vmatpush2.msra.mxu0 0.0
    %4718 = vmatprep.subr.mxu0 0.0
    %4719 = vmatpush2.msra.mxu0 0.0
    %4720 = vmatprep.subr.mxu0 0.0
    %4721 = vmatpush2.msra.mxu0 0.0
    %4722 = vmatprep.subr.mxu0 0.0
    %4723 = vmatpush2.msra.mxu0 0.0
    %4724 = vmatprep.subr.mxu0 0.0
    %4725 = vmatpush2.msra.mxu0 0.0
    %4726 = vmatprep.subr.mxu0 0.0
    %4727 = vmatpush2.msra.mxu0 0.0
    %4728 = vmatprep.subr.mxu0 0.0
    %4729 = vmatpush2.msra.mxu0 0.0
    %4730 = vmatprep.subr.mxu0 0.0
    %4731 = vmatpush2.msra.mxu0 0.0
    %4732 = vmatprep.subr.mxu0 0.0
    %4733 = vmatpush2.msra.mxu0 0.0
    %4734 = vmatprep.subr.mxu0 0.0
    %4735 = vmatpush2.msra.mxu0 0.0
    %4736 = vmatprep.subr.mxu0 0.0
    %4737 = vmatpush2.msra.mxu0 0.0
    %4738 = vmatprep.mubr.f32.mxu0 0.0
    %4739 = vmatmul.mubr.f32.gmra.mxu0 %v4625
    %v4740 = vpop.f32.mrf.mxu0
    %v4741 = vadd.f32 %v662, %v4740
    %v4742 = vpop.f32.mrf.mxu0
    %v4743 = vadd.f32 %v666, %v4742
    %4744 = vdwg.mxu0
    %4745 = vmatprep.subr.mxu0 0.0
    %4746 = vmatpush1.msra.mxu0 %v4673
    %4747 = vmatprep.subr.mxu0 0.0
    %4748 = vmatpush1.msra.mxu0 %v4670
    %4749 = vmatprep.subr.mxu0 0.0
    %4750 = vmatpush1.msra.mxu0 %v4667
    %4751 = vmatprep.subr.mxu0 0.0
    %4752 = vmatpush1.msra.mxu0 %v4664
    %4753 = vmatprep.subr.mxu0 0.0
    %4754 = vmatpush1.msra.mxu0 %v4661
    %4755 = vmatprep.subr.mxu0 0.0
    %4756 = vmatpush1.msra.mxu0 %v4658
    %4757 = vmatprep.subr.mxu0 0.0
    %4758 = vmatpush1.msra.mxu0 %v4655
    %4759 = vmatprep.subr.mxu0 0.0
    %4760 = vmatpush1.msra.mxu0 %v4652
    %4761 = vmatprep.subr.mxu0 0.0
    %4762 = vmatpush1.msra.mxu0 %v4649
    %4763 = vmatprep.subr.mxu0 0.0
    %4764 = vmatpush1.msra.mxu0 %v4646
    %4765 = vmatprep.subr.mxu0 0.0
    %4766 = vmatpush1.msra.mxu0 %v4643
    %4767 = vmatprep.subr.mxu0 0.0
    %4768 = vmatpush1.msra.mxu0 %v4640
    %4769 = vmatprep.subr.mxu0 0.0
    %4770 = vmatpush1.msra.mxu0 %v4637
    %4771 = vmatprep.subr.mxu0 0.0
    %4772 = vmatpush1.msra.mxu0 %v4634
    %4773 = vmatprep.subr.mxu0 0.0
    %4774 = vmatpush1.msra.mxu0 %v4631
    %4775 = vmatprep.subr.mxu0 0.0
    %4776 = vmatpush1.msra.mxu0 %v4628
    %4777 = vmatprep.subr.mxu0 0.0
    %4778 = vmatpush2.msra.mxu0 0.0
    %4779 = vmatprep.subr.mxu0 0.0
    %4780 = vmatpush2.msra.mxu0 0.0
    %4781 = vmatprep.subr.mxu0 0.0
    %4782 = vmatpush2.msra.mxu0 0.0
    %4783 = vmatprep.subr.mxu0 0.0
    %4784 = vmatpush2.msra.mxu0 0.0
    %4785 = vmatprep.subr.mxu0 0.0
    %4786 = vmatpush2.msra.mxu0 0.0
    %4787 = vmatprep.subr.mxu0 0.0
    %4788 = vmatpush2.msra.mxu0 0.0
    %4789 = vmatprep.subr.mxu0 0.0
    %4790 = vmatpush2.msra.mxu0 0.0
    %4791 = vmatprep.subr.mxu0 0.0
    %4792 = vmatpush2.msra.mxu0 0.0
    %4793 = vmatprep.subr.mxu0 0.0
    %4794 = vmatpush2.msra.mxu0 0.0
    %4795 = vmatprep.subr.mxu0 0.0
    %4796 = vmatpush2.msra.mxu0 0.0
    %4797 = vmatprep.subr.mxu0 0.0
    %4798 = vmatpush2.msra.mxu0 0.0
    %4799 = vmatprep.subr.mxu0 0.0
    %4800 = vmatpush2.msra.mxu0 0.0
    %4801 = vmatprep.subr.mxu0 0.0
    %4802 = vmatpush2.msra.mxu0 0.0
    %4803 = vmatprep.subr.mxu0 0.0
    %4804 = vmatpush2.msra.mxu0 0.0
    %4805 = vmatprep.subr.mxu0 0.0
    %4806 = vmatpush2.msra.mxu0 0.0
    %4807 = vmatprep.subr.mxu0 0.0
    %4808 = vmatpush2.msra.mxu0 0.0
    %4809 = vmatprep.mubr.f32.mxu0 0.0
    %4810 = vmatmul.mubr.f32.gmra.mxu0 %v4625
    %v4811 = vpop.f32.mrf.mxu0
    %v4812 = vadd.f32 %v670, %v4811
    %v4813 = vpop.f32.mrf.mxu0
    %4814 = vdwg.mxu0
    %v4815 = vld [vmem:[#allocation15] sm:$0xff]
    %v4816 = vld [vmem:[#allocation15 + $0x8] sm:$0xff]
    %v4817 = vld [vmem:[#allocation15 + $0x10] sm:$0xff]
    %v4818 = vld [vmem:[#allocation15 + $0x18] sm:$0xff]
    %v4819 = vld [vmem:[#allocation15 + $0x20] sm:$0xff]
    %v4820 = vld [vmem:[#allocation15 + $0x28] sm:$0xff]
    %v4821 = vld [vmem:[#allocation15 + $0x30] sm:$0xff]
    %v4822 = vld [vmem:[#allocation15 + $0x38] sm:$0xff]
    %v4823 = vld [vmem:[#allocation15 + $0x40] sm:$0xff]
    %v4824 = vld [vmem:[#allocation15 + $0x48] sm:$0xff]
    %v4825 = vld [vmem:[#allocation15 + $0x50] sm:$0xff]
    %v4826 = vld [vmem:[#allocation15 + $0x58] sm:$0xff]
    %v4827 = vld [vmem:[#allocation15 + $0x60] sm:$0xff]
    %v4828 = vld [vmem:[#allocation15 + $0x68] sm:$0xff]
    %v4829 = vld [vmem:[#allocation15 + $0x70] sm:$0xff]
    %v4830 = vld [vmem:[#allocation15 + $0x78] sm:$0xff]
    %v4831 = vld [vmem:[#allocation15 + $0x80] sm:$0xff]
    %v4832 = vld [vmem:[#allocation15 + $0x88] sm:$0xff]
    %v4833 = vld [vmem:[#allocation15 + $0x90] sm:$0xff]
    %v4834 = vld [vmem:[#allocation15 + $0x98] sm:$0xff]
    %v4835 = vld [vmem:[#allocation15 + $0xa0] sm:$0xff]
    %v4836 = vld [vmem:[#allocation15 + $0xa8] sm:$0xff]
    %v4837 = vld [vmem:[#allocation15 + $0xb0] sm:$0xff]
    %v4838 = vld [vmem:[#allocation15 + $0xb8] sm:$0xff]
    %v4839 = vld [vmem:[#allocation15 + $0xc0] sm:$0xff]
    %v4840 = vld [vmem:[#allocation15 + $0xc8] sm:$0xff]
    %v4841 = vld [vmem:[#allocation15 + $0xd0] sm:$0xff]
    %v4842 = vld [vmem:[#allocation15 + $0xd8] sm:$0xff]
    %v4843 = vld [vmem:[#allocation15 + $0xe0] sm:$0xff]
    %v4844 = vld [vmem:[#allocation15 + $0xe8] sm:$0xff]
    %v4845 = vld [vmem:[#allocation15 + $0xf0] sm:$0xff]
    %v4846 = vld [vmem:[#allocation15 + $0xf8] sm:$0xff]
    %v4847 = vld [vmem:[#allocation15 + $0x100] sm:$0xff]
    %v4848 = vld [vmem:[#allocation15 + $0x108] sm:$0xff]
    %v4849 = vld [vmem:[#allocation15 + $0x110] sm:$0xff]
    %v4850 = vld [vmem:[#allocation15 + $0x118] sm:$0xff]
    %v4851 = vld [vmem:[#allocation15 + $0x120] sm:$0xff]
    %v4852 = vld [vmem:[#allocation15 + $0x128] sm:$0xff]
    %v4853 = vld [vmem:[#allocation15 + $0x130] sm:$0xff]
    %v4854 = vld [vmem:[#allocation15 + $0x138] sm:$0xff]
    %v4855 = vld [vmem:[#allocation15 + $0x140] sm:$0xff]
    %v4856 = vld [vmem:[#allocation15 + $0x148] sm:$0xff]
    %v4857 = vld [vmem:[#allocation15 + $0x150] sm:$0xff]
    %v4858 = vld [vmem:[#allocation15 + $0x158] sm:$0xff]
    %v4859 = vld [vmem:[#allocation15 + $0x160] sm:$0xff]
    %v4860 = vld [vmem:[#allocation15 + $0x168] sm:$0xff]
    %v4861 = vld [vmem:[#allocation15 + $0x170] sm:$0xff]
    %v4862 = vld [vmem:[#allocation15 + $0x178] sm:$0xff]
    %4863 = vmatprep.subr.mxu0 %v4861
    %4864 = vmatpush1.msra.mxu0 %v4860
    %4865 = vmatprep.subr.mxu0 %v4858
    %4866 = vmatpush1.msra.mxu0 %v4857
    %4867 = vmatprep.subr.mxu0 %v4855
    %4868 = vmatpush1.msra.mxu0 %v4854
    %4869 = vmatprep.subr.mxu0 %v4852
    %4870 = vmatpush1.msra.mxu0 %v4851
    %4871 = vmatprep.subr.mxu0 %v4849
    %4872 = vmatpush1.msra.mxu0 %v4848
    %4873 = vmatprep.subr.mxu0 %v4846
    %4874 = vmatpush1.msra.mxu0 %v4845
    %4875 = vmatprep.subr.mxu0 %v4843
    %4876 = vmatpush1.msra.mxu0 %v4842
    %4877 = vmatprep.subr.mxu0 %v4840
    %4878 = vmatpush1.msra.mxu0 %v4839
    %4879 = vmatprep.subr.mxu0 %v4837
    %4880 = vmatpush1.msra.mxu0 %v4836
    %4881 = vmatprep.subr.mxu0 %v4834
    %4882 = vmatpush1.msra.mxu0 %v4833
    %4883 = vmatprep.subr.mxu0 %v4831
    %4884 = vmatpush1.msra.mxu0 %v4830
    %4885 = vmatprep.subr.mxu0 %v4828
    %4886 = vmatpush1.msra.mxu0 %v4827
    %4887 = vmatprep.subr.mxu0 %v4825
    %4888 = vmatpush1.msra.mxu0 %v4824
    %4889 = vmatprep.subr.mxu0 %v4822
    %4890 = vmatpush1.msra.mxu0 %v4821
    %4891 = vmatprep.subr.mxu0 %v4819
    %4892 = vmatpush1.msra.mxu0 %v4818
    %4893 = vmatprep.subr.mxu0 %v4816
    %4894 = vmatpush1.msra.mxu0 %v4815
    %4895 = vmatprep.subr.mxu0 0.0
    %4896 = vmatpush2.msra.mxu0 0.0
    %4897 = vmatprep.subr.mxu0 0.0
    %4898 = vmatpush2.msra.mxu0 0.0
    %4899 = vmatprep.subr.mxu0 0.0
    %4900 = vmatpush2.msra.mxu0 0.0
    %4901 = vmatprep.subr.mxu0 0.0
    %4902 = vmatpush2.msra.mxu0 0.0
    %4903 = vmatprep.subr.mxu0 0.0
    %4904 = vmatpush2.msra.mxu0 0.0
    %4905 = vmatprep.subr.mxu0 0.0
    %4906 = vmatpush2.msra.mxu0 0.0
    %4907 = vmatprep.subr.mxu0 0.0
    %4908 = vmatpush2.msra.mxu0 0.0
    %4909 = vmatprep.subr.mxu0 0.0
    %4910 = vmatpush2.msra.mxu0 0.0
    %4911 = vmatprep.subr.mxu0 0.0
    %4912 = vmatpush2.msra.mxu0 0.0
    %4913 = vmatprep.subr.mxu0 0.0
    %4914 = vmatpush2.msra.mxu0 0.0
    %4915 = vmatprep.subr.mxu0 0.0
    %4916 = vmatpush2.msra.mxu0 0.0
    %4917 = vmatprep.subr.mxu0 0.0
    %4918 = vmatpush2.msra.mxu0 0.0
    %4919 = vmatprep.subr.mxu0 0.0
    %4920 = vmatpush2.msra.mxu0 0.0
    %4921 = vmatprep.subr.mxu0 0.0
    %4922 = vmatpush2.msra.mxu0 0.0
    %4923 = vmatprep.subr.mxu0 0.0
    %4924 = vmatpush2.msra.mxu0 0.0
    %4925 = vmatprep.subr.mxu0 0.0
    %4926 = vmatpush2.msra.mxu0 0.0
    %4927 = vmatprep.mubr.f32.mxu0 0.0
    %4928 = vmatmul.mubr.f32.gmra.mxu0 %v4404
    %v4929 = vpop.f32.mrf.mxu0
    %v4930 = vadd.f32 0.0, %v4929
    %v4931 = vpop.f32.mrf.mxu0
    %v4932 = vadd.f32 0.0, %v4931
    %4933 = vdwg.mxu0
    %4934 = vmatprep.subr.mxu0 0.0
    %4935 = vmatpush1.msra.mxu0 %v4862
    %4936 = vmatprep.subr.mxu0 0.0
    %4937 = vmatpush1.msra.mxu0 %v4859
    %4938 = vmatprep.subr.mxu0 0.0
    %4939 = vmatpush1.msra.mxu0 %v4856
    %4940 = vmatprep.subr.mxu0 0.0
    %4941 = vmatpush1.msra.mxu0 %v4853
    %4942 = vmatprep.subr.mxu0 0.0
    %4943 = vmatpush1.msra.mxu0 %v4850
    %4944 = vmatprep.subr.mxu0 0.0
    %4945 = vmatpush1.msra.mxu0 %v4847
    %4946 = vmatprep.subr.mxu0 0.0
    %4947 = vmatpush1.msra.mxu0 %v4844
    %4948 = vmatprep.subr.mxu0 0.0
    %4949 = vmatpush1.msra.mxu0 %v4841
    %4950 = vmatprep.subr.mxu0 0.0
    %4951 = vmatpush1.msra.mxu0 %v4838
    %4952 = vmatprep.subr.mxu0 0.0
    %4953 = vmatpush1.msra.mxu0 %v4835
    %4954 = vmatprep.subr.mxu0 0.0
    %4955 = vmatpush1.msra.mxu0 %v4832
    %4956 = vmatprep.subr.mxu0 0.0
    %4957 = vmatpush1.msra.mxu0 %v4829
    %4958 = vmatprep.subr.mxu0 0.0
    %4959 = vmatpush1.msra.mxu0 %v4826
    %4960 = vmatprep.subr.mxu0 0.0
    %4961 = vmatpush1.msra.mxu0 %v4823
    %4962 = vmatprep.subr.mxu0 0.0
    %4963 = vmatpush1.msra.mxu0 %v4820
    %4964 = vmatprep.subr.mxu0 0.0
    %4965 = vmatpush1.msra.mxu0 %v4817
    %4966 = vmatprep.subr.mxu0 0.0
    %4967 = vmatpush2.msra.mxu0 0.0
    %4968 = vmatprep.subr.mxu0 0.0
    %4969 = vmatpush2.msra.mxu0 0.0
    %4970 = vmatprep.subr.mxu0 0.0
    %4971 = vmatpush2.msra.mxu0 0.0
    %4972 = vmatprep.subr.mxu0 0.0
    %4973 = vmatpush2.msra.mxu0 0.0
    %4974 = vmatprep.subr.mxu0 0.0
    %4975 = vmatpush2.msra.mxu0 0.0
    %4976 = vmatprep.subr.mxu0 0.0
    %4977 = vmatpush2.msra.mxu0 0.0
    %4978 = vmatprep.subr.mxu0 0.0
    %4979 = vmatpush2.msra.mxu0 0.0
    %4980 = vmatprep.subr.mxu0 0.0
    %4981 = vmatpush2.msra.mxu0 0.0
    %4982 = vmatprep.subr.mxu0 0.0
    %4983 = vmatpush2.msra.mxu0 0.0
    %4984 = vmatprep.subr.mxu0 0.0
    %4985 = vmatpush2.msra.mxu0 0.0
    %4986 = vmatprep.subr.mxu0 0.0
    %4987 = vmatpush2.msra.mxu0 0.0
    %4988 = vmatprep.subr.mxu0 0.0
    %4989 = vmatpush2.msra.mxu0 0.0
    %4990 = vmatprep.subr.mxu0 0.0
    %4991 = vmatpush2.msra.mxu0 0.0
    %4992 = vmatprep.subr.mxu0 0.0
    %4993 = vmatpush2.msra.mxu0 0.0
    %4994 = vmatprep.subr.mxu0 0.0
    %4995 = vmatpush2.msra.mxu0 0.0
    %4996 = vmatprep.subr.mxu0 0.0
    %4997 = vmatpush2.msra.mxu0 0.0
    %4998 = vmatprep.mubr.f32.mxu0 0.0
    %4999 = vmatmul.mubr.f32.gmra.mxu0 %v4404
    %v5000 = vpop.f32.mrf.mxu0
    %v5001 = vadd.f32 0.0, %v5000
    %v5002 = vpop.f32.mrf.mxu0
    %5003 = vdwg.mxu0
    %v5004 = vadd.f32 %v4741, %v4930
    %v5005 = vxor.u32 %v5004, 2147483648
    %v5006 = vmul.f32 %v5005, 1.442695
    %v5007 = vpow.pop %v5006
    %v5008 = vadd.f32 %v5007, 1.0
    %v5009 = vrcp.pop %v5008
    %v5010 = vmul.f32 1.0, %v5009
    %v5011 = vadd.f32 %v4743, %v4932
    %v5012 = vxor.u32 %v5011, 2147483648
    %v5013 = vmul.f32 %v5012, 1.442695
    %v5014 = vpow.pop %v5013
    %v5015 = vadd.f32 %v5014, 1.0
    %v5016 = vrcp.pop %v5015
    %v5017 = vmul.f32 1.0, %v5016
    %v5018 = vadd.f32 %v5001, %v686
    %v5019 = vmul.f32 %v5010, %v5018
    %v5020 = vadd.f32 %v4812, %v5019
    %v5021 = vtanh.pop %v5020
    %v5022 = vsub.f32 %v4404, %v5021
    %v5023 = vmul.f32 %v5017, %v5022
    %v5024 = vadd.f32 %v5021, %v5023
    %s5025 = scalar_lea.vmem [#allocation17], 48
    %5026 = vst [vmem:[%s5025] sm:$0xff] %v5024
    %s5027 = smul.u32 7, 3
    %s5028 = smul.addr %s5027, 8
    %s5029 = scalar_lea.vmem [#allocation2], %s5028
    %v5030 = vld [vmem:[%s5029] sm:$0xff]
    %v5031 = vld [vmem:[%s5029 + $0x8] sm:$0xff]
    %v5032 = vld [vmem:[%s5029 + $0x10] sm:$0xff]
    %v5033 = vadd.f32 %v5030, %v583
    %v5034 = vadd.f32 %v5031, %v585
    %v5035 = vadd.f32 %v5032, %v654
    %v5036 = vld [vmem:[#allocation12] sm:$0xff]
    %v5037 = vld [vmem:[#allocation12 + $0x8] sm:$0xff]
    %v5038 = vld [vmem:[#allocation12 + $0x10] sm:$0xff]
    %v5039 = vld [vmem:[#allocation12 + $0x18] sm:$0xff]
    %v5040 = vld [vmem:[#allocation12 + $0x20] sm:$0xff]
    %v5041 = vld [vmem:[#allocation12 + $0x28] sm:$0xff]
    %v5042 = vld [vmem:[#allocation12 + $0x30] sm:$0xff]
    %v5043 = vld [vmem:[#allocation12 + $0x38] sm:$0xff]
    %v5044 = vld [vmem:[#allocation12 + $0x40] sm:$0xff]
    %v5045 = vld [vmem:[#allocation12 + $0x48] sm:$0xff]
    %v5046 = vld [vmem:[#allocation12 + $0x50] sm:$0xff]
    %v5047 = vld [vmem:[#allocation12 + $0x58] sm:$0xff]
    %v5048 = vld [vmem:[#allocation12 + $0x60] sm:$0xff]
    %v5049 = vld [vmem:[#allocation12 + $0x68] sm:$0xff]
    %v5050 = vld [vmem:[#allocation12 + $0x70] sm:$0xff]
    %v5051 = vld [vmem:[#allocation12 + $0x78] sm:$0xff]
    %v5052 = vld [vmem:[#allocation12 + $0x80] sm:$0xff]
    %v5053 = vld [vmem:[#allocation12 + $0x88] sm:$0xff]
    %v5054 = vld [vmem:[#allocation12 + $0x90] sm:$0xff]
    %v5055 = vld [vmem:[#allocation12 + $0x98] sm:$0xff]
    %v5056 = vld [vmem:[#allocation12 + $0xa0] sm:$0xff]
    %v5057 = vld [vmem:[#allocation12 + $0xa8] sm:$0xff]
    %v5058 = vld [vmem:[#allocation12 + $0xb0] sm:$0xff]
    %v5059 = vld [vmem:[#allocation12 + $0xb8] sm:$0xff]
    %v5060 = vld [vmem:[#allocation12 + $0xc0] sm:$0xff]
    %v5061 = vld [vmem:[#allocation12 + $0xc8] sm:$0xff]
    %v5062 = vld [vmem:[#allocation12 + $0xd0] sm:$0xff]
    %v5063 = vld [vmem:[#allocation12 + $0xd8] sm:$0xff]
    %v5064 = vld [vmem:[#allocation12 + $0xe0] sm:$0xff]
    %v5065 = vld [vmem:[#allocation12 + $0xe8] sm:$0xff]
    %v5066 = vld [vmem:[#allocation12 + $0xf0] sm:$0xff]
    %v5067 = vld [vmem:[#allocation12 + $0xf8] sm:$0xff]
    %v5068 = vld [vmem:[#allocation12 + $0x100] sm:$0xff]
    %v5069 = vld [vmem:[#allocation12 + $0x108] sm:$0xff]
    %v5070 = vld [vmem:[#allocation12 + $0x110] sm:$0xff]
    %v5071 = vld [vmem:[#allocation12 + $0x118] sm:$0xff]
    %v5072 = vld [vmem:[#allocation12 + $0x120] sm:$0xff]
    %v5073 = vld [vmem:[#allocation12 + $0x128] sm:$0xff]
    %v5074 = vld [vmem:[#allocation12 + $0x130] sm:$0xff]
    %v5075 = vld [vmem:[#allocation12 + $0x138] sm:$0xff]
    %v5076 = vld [vmem:[#allocation12 + $0x140] sm:$0xff]
    %v5077 = vld [vmem:[#allocation12 + $0x148] sm:$0xff]
    %v5078 = vld [vmem:[#allocation12 + $0x150] sm:$0xff]
    %v5079 = vld [vmem:[#allocation12 + $0x158] sm:$0xff]
    %v5080 = vld [vmem:[#allocation12 + $0x160] sm:$0xff]
    %v5081 = vld [vmem:[#allocation12 + $0x168] sm:$0xff]
    %v5082 = vld [vmem:[#allocation12 + $0x170] sm:$0xff]
    %v5083 = vld [vmem:[#allocation12 + $0x178] sm:$0xff]
    %5084 = vmatprep.subr.mxu0 %v5082
    %5085 = vmatpush1.msra.mxu0 %v5081
    %5086 = vmatprep.subr.mxu0 %v5079
    %5087 = vmatpush1.msra.mxu0 %v5078
    %5088 = vmatprep.subr.mxu0 %v5076
    %5089 = vmatpush1.msra.mxu0 %v5075
    %5090 = vmatprep.subr.mxu0 %v5073
    %5091 = vmatpush1.msra.mxu0 %v5072
    %5092 = vmatprep.subr.mxu0 %v5070
    %5093 = vmatpush1.msra.mxu0 %v5069
    %5094 = vmatprep.subr.mxu0 %v5067
    %5095 = vmatpush1.msra.mxu0 %v5066
    %5096 = vmatprep.subr.mxu0 %v5064
    %5097 = vmatpush1.msra.mxu0 %v5063
    %5098 = vmatprep.subr.mxu0 %v5061
    %5099 = vmatpush1.msra.mxu0 %v5060
    %5100 = vmatprep.subr.mxu0 %v5058
    %5101 = vmatpush1.msra.mxu0 %v5057
    %5102 = vmatprep.subr.mxu0 %v5055
    %5103 = vmatpush1.msra.mxu0 %v5054
    %5104 = vmatprep.subr.mxu0 %v5052
    %5105 = vmatpush1.msra.mxu0 %v5051
    %5106 = vmatprep.subr.mxu0 %v5049
    %5107 = vmatpush1.msra.mxu0 %v5048
    %5108 = vmatprep.subr.mxu0 %v5046
    %5109 = vmatpush1.msra.mxu0 %v5045
    %5110 = vmatprep.subr.mxu0 %v5043
    %5111 = vmatpush1.msra.mxu0 %v5042
    %5112 = vmatprep.subr.mxu0 %v5040
    %5113 = vmatpush1.msra.mxu0 %v5039
    %5114 = vmatprep.subr.mxu0 %v5037
    %5115 = vmatpush1.msra.mxu0 %v5036
    %5116 = vmatprep.subr.mxu0 0.0
    %5117 = vmatpush2.msra.mxu0 0.0
    %5118 = vmatprep.subr.mxu0 0.0
    %5119 = vmatpush2.msra.mxu0 0.0
    %5120 = vmatprep.subr.mxu0 0.0
    %5121 = vmatpush2.msra.mxu0 0.0
    %5122 = vmatprep.subr.mxu0 0.0
    %5123 = vmatpush2.msra.mxu0 0.0
    %5124 = vmatprep.subr.mxu0 0.0
    %5125 = vmatpush2.msra.mxu0 0.0
    %5126 = vmatprep.subr.mxu0 0.0
    %5127 = vmatpush2.msra.mxu0 0.0
    %5128 = vmatprep.subr.mxu0 0.0
    %5129 = vmatpush2.msra.mxu0 0.0
    %5130 = vmatprep.subr.mxu0 0.0
    %5131 = vmatpush2.msra.mxu0 0.0
    %5132 = vmatprep.subr.mxu0 0.0
    %5133 = vmatpush2.msra.mxu0 0.0
    %5134 = vmatprep.subr.mxu0 0.0
    %5135 = vmatpush2.msra.mxu0 0.0
    %5136 = vmatprep.subr.mxu0 0.0
    %5137 = vmatpush2.msra.mxu0 0.0
    %5138 = vmatprep.subr.mxu0 0.0
    %5139 = vmatpush2.msra.mxu0 0.0
    %5140 = vmatprep.subr.mxu0 0.0
    %5141 = vmatpush2.msra.mxu0 0.0
    %5142 = vmatprep.subr.mxu0 0.0
    %5143 = vmatpush2.msra.mxu0 0.0
    %5144 = vmatprep.subr.mxu0 0.0
    %5145 = vmatpush2.msra.mxu0 0.0
    %5146 = vmatprep.subr.mxu0 0.0
    %5147 = vmatpush2.msra.mxu0 0.0
    %5148 = vmatprep.mubr.f32.mxu0 0.0
    %5149 = vmatmul.mubr.f32.gmra.mxu0 %v4625
    %v5150 = vpop.f32.mrf.mxu0
    %v5151 = vadd.f32 0.0, %v5150
    %v5152 = vpop.f32.mrf.mxu0
    %v5153 = vadd.f32 0.0, %v5152
    %5154 = vdwg.mxu0
    %5155 = vmatprep.subr.mxu0 0.0
    %5156 = vmatpush1.msra.mxu0 %v5083
    %5157 = vmatprep.subr.mxu0 0.0
    %5158 = vmatpush1.msra.mxu0 %v5080
    %5159 = vmatprep.subr.mxu0 0.0
    %5160 = vmatpush1.msra.mxu0 %v5077
    %5161 = vmatprep.subr.mxu0 0.0
    %5162 = vmatpush1.msra.mxu0 %v5074
    %5163 = vmatprep.subr.mxu0 0.0
    %5164 = vmatpush1.msra.mxu0 %v5071
    %5165 = vmatprep.subr.mxu0 0.0
    %5166 = vmatpush1.msra.mxu0 %v5068
    %5167 = vmatprep.subr.mxu0 0.0
    %5168 = vmatpush1.msra.mxu0 %v5065
    %5169 = vmatprep.subr.mxu0 0.0
    %5170 = vmatpush1.msra.mxu0 %v5062
    %5171 = vmatprep.subr.mxu0 0.0
    %5172 = vmatpush1.msra.mxu0 %v5059
    %5173 = vmatprep.subr.mxu0 0.0
    %5174 = vmatpush1.msra.mxu0 %v5056
    %5175 = vmatprep.subr.mxu0 0.0
    %5176 = vmatpush1.msra.mxu0 %v5053
    %5177 = vmatprep.subr.mxu0 0.0
    %5178 = vmatpush1.msra.mxu0 %v5050
    %5179 = vmatprep.subr.mxu0 0.0
    %5180 = vmatpush1.msra.mxu0 %v5047
    %5181 = vmatprep.subr.mxu0 0.0
    %5182 = vmatpush1.msra.mxu0 %v5044
    %5183 = vmatprep.subr.mxu0 0.0
    %5184 = vmatpush1.msra.mxu0 %v5041
    %5185 = vmatprep.subr.mxu0 0.0
    %5186 = vmatpush1.msra.mxu0 %v5038
    %5187 = vmatprep.subr.mxu0 0.0
    %5188 = vmatpush2.msra.mxu0 0.0
    %5189 = vmatprep.subr.mxu0 0.0
    %5190 = vmatpush2.msra.mxu0 0.0
    %5191 = vmatprep.subr.mxu0 0.0
    %5192 = vmatpush2.msra.mxu0 0.0
    %5193 = vmatprep.subr.mxu0 0.0
    %5194 = vmatpush2.msra.mxu0 0.0
    %5195 = vmatprep.subr.mxu0 0.0
    %5196 = vmatpush2.msra.mxu0 0.0
    %5197 = vmatprep.subr.mxu0 0.0
    %5198 = vmatpush2.msra.mxu0 0.0
    %5199 = vmatprep.subr.mxu0 0.0
    %5200 = vmatpush2.msra.mxu0 0.0
    %5201 = vmatprep.subr.mxu0 0.0
    %5202 = vmatpush2.msra.mxu0 0.0
    %5203 = vmatprep.subr.mxu0 0.0
    %5204 = vmatpush2.msra.mxu0 0.0
    %5205 = vmatprep.subr.mxu0 0.0
    %5206 = vmatpush2.msra.mxu0 0.0
    %5207 = vmatprep.subr.mxu0 0.0
    %5208 = vmatpush2.msra.mxu0 0.0
    %5209 = vmatprep.subr.mxu0 0.0
    %5210 = vmatpush2.msra.mxu0 0.0
    %5211 = vmatprep.subr.mxu0 0.0
    %5212 = vmatpush2.msra.mxu0 0.0
    %5213 = vmatprep.subr.mxu0 0.0
    %5214 = vmatpush2.msra.mxu0 0.0
    %5215 = vmatprep.subr.mxu0 0.0
    %5216 = vmatpush2.msra.mxu0 0.0
    %5217 = vmatprep.subr.mxu0 0.0
    %5218 = vmatpush2.msra.mxu0 0.0
    %5219 = vmatprep.mubr.f32.mxu0 0.0
    %5220 = vmatmul.mubr.f32.gmra.mxu0 %v4625
    %v5221 = vpop.f32.mrf.mxu0
    %v5222 = vadd.f32 0.0, %v5221
    %v5223 = vpop.f32.mrf.mxu0
    %5224 = vdwg.mxu0
    %v5225 = vadd.f32 %v5033, %v5151
    %v5226 = vxor.u32 %v5225, 2147483648
    %v5227 = vmul.f32 %v5226, 1.442695
    %v5228 = vpow.pop %v5227
    %v5229 = vadd.f32 %v5228, 1.0
    %v5230 = vrcp.pop %v5229
    %v5231 = vmul.f32 1.0, %v5230
    %v5232 = vadd.f32 %v5034, %v5153
    %v5233 = vxor.u32 %v5232, 2147483648
    %v5234 = vmul.f32 %v5233, 1.442695
    %v5235 = vpow.pop %v5234
    %v5236 = vadd.f32 %v5235, 1.0
    %v5237 = vrcp.pop %v5236
    %v5238 = vmul.f32 1.0, %v5237
    %v5239 = vadd.f32 %v5222, %v679
    %v5240 = vmul.f32 %v5231, %v5239
    %v5241 = vadd.f32 %v5035, %v5240
    %v5242 = vtanh.pop %v5241
    %v5243 = vsub.f32 %v4625, %v5242
    %v5244 = vmul.f32 %v5238, %v5243
    %v5245 = vadd.f32 %v5242, %v5244
    %v5246 = vld [vmem:[#allocation14] sm:$0xff]
    %v5247 = vld [vmem:[#allocation14 + $0x8] sm:$0xff]
    %v5248 = vld [vmem:[#allocation14 + $0x10] sm:$0xff]
    %v5249 = vld [vmem:[#allocation14 + $0x18] sm:$0xff]
    %v5250 = vld [vmem:[#allocation14 + $0x20] sm:$0xff]
    %v5251 = vld [vmem:[#allocation14 + $0x28] sm:$0xff]
    %v5252 = vld [vmem:[#allocation14 + $0x30] sm:$0xff]
    %v5253 = vld [vmem:[#allocation14 + $0x38] sm:$0xff]
    %v5254 = vld [vmem:[#allocation14 + $0x40] sm:$0xff]
    %v5255 = vld [vmem:[#allocation14 + $0x48] sm:$0xff]
    %v5256 = vld [vmem:[#allocation14 + $0x50] sm:$0xff]
    %v5257 = vld [vmem:[#allocation14 + $0x58] sm:$0xff]
    %v5258 = vld [vmem:[#allocation14 + $0x60] sm:$0xff]
    %v5259 = vld [vmem:[#allocation14 + $0x68] sm:$0xff]
    %v5260 = vld [vmem:[#allocation14 + $0x70] sm:$0xff]
    %v5261 = vld [vmem:[#allocation14 + $0x78] sm:$0xff]
    %v5262 = vld [vmem:[#allocation14 + $0x80] sm:$0xff]
    %v5263 = vld [vmem:[#allocation14 + $0x88] sm:$0xff]
    %v5264 = vld [vmem:[#allocation14 + $0x90] sm:$0xff]
    %v5265 = vld [vmem:[#allocation14 + $0x98] sm:$0xff]
    %v5266 = vld [vmem:[#allocation14 + $0xa0] sm:$0xff]
    %v5267 = vld [vmem:[#allocation14 + $0xa8] sm:$0xff]
    %v5268 = vld [vmem:[#allocation14 + $0xb0] sm:$0xff]
    %v5269 = vld [vmem:[#allocation14 + $0xb8] sm:$0xff]
    %v5270 = vld [vmem:[#allocation14 + $0xc0] sm:$0xff]
    %v5271 = vld [vmem:[#allocation14 + $0xc8] sm:$0xff]
    %v5272 = vld [vmem:[#allocation14 + $0xd0] sm:$0xff]
    %v5273 = vld [vmem:[#allocation14 + $0xd8] sm:$0xff]
    %v5274 = vld [vmem:[#allocation14 + $0xe0] sm:$0xff]
    %v5275 = vld [vmem:[#allocation14 + $0xe8] sm:$0xff]
    %v5276 = vld [vmem:[#allocation14 + $0xf0] sm:$0xff]
    %v5277 = vld [vmem:[#allocation14 + $0xf8] sm:$0xff]
    %v5278 = vld [vmem:[#allocation14 + $0x100] sm:$0xff]
    %v5279 = vld [vmem:[#allocation14 + $0x108] sm:$0xff]
    %v5280 = vld [vmem:[#allocation14 + $0x110] sm:$0xff]
    %v5281 = vld [vmem:[#allocation14 + $0x118] sm:$0xff]
    %v5282 = vld [vmem:[#allocation14 + $0x120] sm:$0xff]
    %v5283 = vld [vmem:[#allocation14 + $0x128] sm:$0xff]
    %v5284 = vld [vmem:[#allocation14 + $0x130] sm:$0xff]
    %v5285 = vld [vmem:[#allocation14 + $0x138] sm:$0xff]
    %v5286 = vld [vmem:[#allocation14 + $0x140] sm:$0xff]
    %v5287 = vld [vmem:[#allocation14 + $0x148] sm:$0xff]
    %v5288 = vld [vmem:[#allocation14 + $0x150] sm:$0xff]
    %v5289 = vld [vmem:[#allocation14 + $0x158] sm:$0xff]
    %v5290 = vld [vmem:[#allocation14 + $0x160] sm:$0xff]
    %v5291 = vld [vmem:[#allocation14 + $0x168] sm:$0xff]
    %v5292 = vld [vmem:[#allocation14 + $0x170] sm:$0xff]
    %v5293 = vld [vmem:[#allocation14 + $0x178] sm:$0xff]
    %5294 = vmatprep.subr.mxu0 %v5292
    %5295 = vmatpush1.msra.mxu0 %v5291
    %5296 = vmatprep.subr.mxu0 %v5289
    %5297 = vmatpush1.msra.mxu0 %v5288
    %5298 = vmatprep.subr.mxu0 %v5286
    %5299 = vmatpush1.msra.mxu0 %v5285
    %5300 = vmatprep.subr.mxu0 %v5283
    %5301 = vmatpush1.msra.mxu0 %v5282
    %5302 = vmatprep.subr.mxu0 %v5280
    %5303 = vmatpush1.msra.mxu0 %v5279
    %5304 = vmatprep.subr.mxu0 %v5277
    %5305 = vmatpush1.msra.mxu0 %v5276
    %5306 = vmatprep.subr.mxu0 %v5274
    %5307 = vmatpush1.msra.mxu0 %v5273
    %5308 = vmatprep.subr.mxu0 %v5271
    %5309 = vmatpush1.msra.mxu0 %v5270
    %5310 = vmatprep.subr.mxu0 %v5268
    %5311 = vmatpush1.msra.mxu0 %v5267
    %5312 = vmatprep.subr.mxu0 %v5265
    %5313 = vmatpush1.msra.mxu0 %v5264
    %5314 = vmatprep.subr.mxu0 %v5262
    %5315 = vmatpush1.msra.mxu0 %v5261
    %5316 = vmatprep.subr.mxu0 %v5259
    %5317 = vmatpush1.msra.mxu0 %v5258
    %5318 = vmatprep.subr.mxu0 %v5256
    %5319 = vmatpush1.msra.mxu0 %v5255
    %5320 = vmatprep.subr.mxu0 %v5253
    %5321 = vmatpush1.msra.mxu0 %v5252
    %5322 = vmatprep.subr.mxu0 %v5250
    %5323 = vmatpush1.msra.mxu0 %v5249
    %5324 = vmatprep.subr.mxu0 %v5247
    %5325 = vmatpush1.msra.mxu0 %v5246
    %5326 = vmatprep.subr.mxu0 0.0
    %5327 = vmatpush2.msra.mxu0 0.0
    %5328 = vmatprep.subr.mxu0 0.0
    %5329 = vmatpush2.msra.mxu0 0.0
    %5330 = vmatprep.subr.mxu0 0.0
    %5331 = vmatpush2.msra.mxu0 0.0
    %5332 = vmatprep.subr.mxu0 0.0
    %5333 = vmatpush2.msra.mxu0 0.0
    %5334 = vmatprep.subr.mxu0 0.0
    %5335 = vmatpush2.msra.mxu0 0.0
    %5336 = vmatprep.subr.mxu0 0.0
    %5337 = vmatpush2.msra.mxu0 0.0
    %5338 = vmatprep.subr.mxu0 0.0
    %5339 = vmatpush2.msra.mxu0 0.0
    %5340 = vmatprep.subr.mxu0 0.0
    %5341 = vmatpush2.msra.mxu0 0.0
    %5342 = vmatprep.subr.mxu0 0.0
    %5343 = vmatpush2.msra.mxu0 0.0
    %5344 = vmatprep.subr.mxu0 0.0
    %5345 = vmatpush2.msra.mxu0 0.0
    %5346 = vmatprep.subr.mxu0 0.0
    %5347 = vmatpush2.msra.mxu0 0.0
    %5348 = vmatprep.subr.mxu0 0.0
    %5349 = vmatpush2.msra.mxu0 0.0
    %5350 = vmatprep.subr.mxu0 0.0
    %5351 = vmatpush2.msra.mxu0 0.0
    %5352 = vmatprep.subr.mxu0 0.0
    %5353 = vmatpush2.msra.mxu0 0.0
    %5354 = vmatprep.subr.mxu0 0.0
    %5355 = vmatpush2.msra.mxu0 0.0
    %5356 = vmatprep.subr.mxu0 0.0
    %5357 = vmatpush2.msra.mxu0 0.0
    %5358 = vmatprep.mubr.f32.mxu0 0.0
    %5359 = vmatmul.mubr.f32.gmra.mxu0 %v5245
    %v5360 = vpop.f32.mrf.mxu0
    %v5361 = vadd.f32 %v662, %v5360
    %v5362 = vpop.f32.mrf.mxu0
    %v5363 = vadd.f32 %v666, %v5362
    %5364 = vdwg.mxu0
    %5365 = vmatprep.subr.mxu0 0.0
    %5366 = vmatpush1.msra.mxu0 %v5293
    %5367 = vmatprep.subr.mxu0 0.0
    %5368 = vmatpush1.msra.mxu0 %v5290
    %5369 = vmatprep.subr.mxu0 0.0
    %5370 = vmatpush1.msra.mxu0 %v5287
    %5371 = vmatprep.subr.mxu0 0.0
    %5372 = vmatpush1.msra.mxu0 %v5284
    %5373 = vmatprep.subr.mxu0 0.0
    %5374 = vmatpush1.msra.mxu0 %v5281
    %5375 = vmatprep.subr.mxu0 0.0
    %5376 = vmatpush1.msra.mxu0 %v5278
    %5377 = vmatprep.subr.mxu0 0.0
    %5378 = vmatpush1.msra.mxu0 %v5275
    %5379 = vmatprep.subr.mxu0 0.0
    %5380 = vmatpush1.msra.mxu0 %v5272
    %5381 = vmatprep.subr.mxu0 0.0
    %5382 = vmatpush1.msra.mxu0 %v5269
    %5383 = vmatprep.subr.mxu0 0.0
    %5384 = vmatpush1.msra.mxu0 %v5266
    %5385 = vmatprep.subr.mxu0 0.0
    %5386 = vmatpush1.msra.mxu0 %v5263
    %5387 = vmatprep.subr.mxu0 0.0
    %5388 = vmatpush1.msra.mxu0 %v5260
    %5389 = vmatprep.subr.mxu0 0.0
    %5390 = vmatpush1.msra.mxu0 %v5257
    %5391 = vmatprep.subr.mxu0 0.0
    %5392 = vmatpush1.msra.mxu0 %v5254
    %5393 = vmatprep.subr.mxu0 0.0
    %5394 = vmatpush1.msra.mxu0 %v5251
    %5395 = vmatprep.subr.mxu0 0.0
    %5396 = vmatpush1.msra.mxu0 %v5248
    %5397 = vmatprep.subr.mxu0 0.0
    %5398 = vmatpush2.msra.mxu0 0.0
    %5399 = vmatprep.subr.mxu0 0.0
    %5400 = vmatpush2.msra.mxu0 0.0
    %5401 = vmatprep.subr.mxu0 0.0
    %5402 = vmatpush2.msra.mxu0 0.0
    %5403 = vmatprep.subr.mxu0 0.0
    %5404 = vmatpush2.msra.mxu0 0.0
    %5405 = vmatprep.subr.mxu0 0.0
    %5406 = vmatpush2.msra.mxu0 0.0
    %5407 = vmatprep.subr.mxu0 0.0
    %5408 = vmatpush2.msra.mxu0 0.0
    %5409 = vmatprep.subr.mxu0 0.0
    %5410 = vmatpush2.msra.mxu0 0.0
    %5411 = vmatprep.subr.mxu0 0.0
    %5412 = vmatpush2.msra.mxu0 0.0
    %5413 = vmatprep.subr.mxu0 0.0
    %5414 = vmatpush2.msra.mxu0 0.0
    %5415 = vmatprep.subr.mxu0 0.0
    %5416 = vmatpush2.msra.mxu0 0.0
    %5417 = vmatprep.subr.mxu0 0.0
    %5418 = vmatpush2.msra.mxu0 0.0
    %5419 = vmatprep.subr.mxu0 0.0
    %5420 = vmatpush2.msra.mxu0 0.0
    %5421 = vmatprep.subr.mxu0 0.0
    %5422 = vmatpush2.msra.mxu0 0.0
    %5423 = vmatprep.subr.mxu0 0.0
    %5424 = vmatpush2.msra.mxu0 0.0
    %5425 = vmatprep.subr.mxu0 0.0
    %5426 = vmatpush2.msra.mxu0 0.0
    %5427 = vmatprep.subr.mxu0 0.0
    %5428 = vmatpush2.msra.mxu0 0.0
    %5429 = vmatprep.mubr.f32.mxu0 0.0
    %5430 = vmatmul.mubr.f32.gmra.mxu0 %v5245
    %v5431 = vpop.f32.mrf.mxu0
    %v5432 = vadd.f32 %v670, %v5431
    %v5433 = vpop.f32.mrf.mxu0
    %5434 = vdwg.mxu0
    %v5435 = vld [vmem:[#allocation15] sm:$0xff]
    %v5436 = vld [vmem:[#allocation15 + $0x8] sm:$0xff]
    %v5437 = vld [vmem:[#allocation15 + $0x10] sm:$0xff]
    %v5438 = vld [vmem:[#allocation15 + $0x18] sm:$0xff]
    %v5439 = vld [vmem:[#allocation15 + $0x20] sm:$0xff]
    %v5440 = vld [vmem:[#allocation15 + $0x28] sm:$0xff]
    %v5441 = vld [vmem:[#allocation15 + $0x30] sm:$0xff]
    %v5442 = vld [vmem:[#allocation15 + $0x38] sm:$0xff]
    %v5443 = vld [vmem:[#allocation15 + $0x40] sm:$0xff]
    %v5444 = vld [vmem:[#allocation15 + $0x48] sm:$0xff]
    %v5445 = vld [vmem:[#allocation15 + $0x50] sm:$0xff]
    %v5446 = vld [vmem:[#allocation15 + $0x58] sm:$0xff]
    %v5447 = vld [vmem:[#allocation15 + $0x60] sm:$0xff]
    %v5448 = vld [vmem:[#allocation15 + $0x68] sm:$0xff]
    %v5449 = vld [vmem:[#allocation15 + $0x70] sm:$0xff]
    %v5450 = vld [vmem:[#allocation15 + $0x78] sm:$0xff]
    %v5451 = vld [vmem:[#allocation15 + $0x80] sm:$0xff]
    %v5452 = vld [vmem:[#allocation15 + $0x88] sm:$0xff]
    %v5453 = vld [vmem:[#allocation15 + $0x90] sm:$0xff]
    %v5454 = vld [vmem:[#allocation15 + $0x98] sm:$0xff]
    %v5455 = vld [vmem:[#allocation15 + $0xa0] sm:$0xff]
    %v5456 = vld [vmem:[#allocation15 + $0xa8] sm:$0xff]
    %v5457 = vld [vmem:[#allocation15 + $0xb0] sm:$0xff]
    %v5458 = vld [vmem:[#allocation15 + $0xb8] sm:$0xff]
    %v5459 = vld [vmem:[#allocation15 + $0xc0] sm:$0xff]
    %v5460 = vld [vmem:[#allocation15 + $0xc8] sm:$0xff]
    %v5461 = vld [vmem:[#allocation15 + $0xd0] sm:$0xff]
    %v5462 = vld [vmem:[#allocation15 + $0xd8] sm:$0xff]
    %v5463 = vld [vmem:[#allocation15 + $0xe0] sm:$0xff]
    %v5464 = vld [vmem:[#allocation15 + $0xe8] sm:$0xff]
    %v5465 = vld [vmem:[#allocation15 + $0xf0] sm:$0xff]
    %v5466 = vld [vmem:[#allocation15 + $0xf8] sm:$0xff]
    %v5467 = vld [vmem:[#allocation15 + $0x100] sm:$0xff]
    %v5468 = vld [vmem:[#allocation15 + $0x108] sm:$0xff]
    %v5469 = vld [vmem:[#allocation15 + $0x110] sm:$0xff]
    %v5470 = vld [vmem:[#allocation15 + $0x118] sm:$0xff]
    %v5471 = vld [vmem:[#allocation15 + $0x120] sm:$0xff]
    %v5472 = vld [vmem:[#allocation15 + $0x128] sm:$0xff]
    %v5473 = vld [vmem:[#allocation15 + $0x130] sm:$0xff]
    %v5474 = vld [vmem:[#allocation15 + $0x138] sm:$0xff]
    %v5475 = vld [vmem:[#allocation15 + $0x140] sm:$0xff]
    %v5476 = vld [vmem:[#allocation15 + $0x148] sm:$0xff]
    %v5477 = vld [vmem:[#allocation15 + $0x150] sm:$0xff]
    %v5478 = vld [vmem:[#allocation15 + $0x158] sm:$0xff]
    %v5479 = vld [vmem:[#allocation15 + $0x160] sm:$0xff]
    %v5480 = vld [vmem:[#allocation15 + $0x168] sm:$0xff]
    %v5481 = vld [vmem:[#allocation15 + $0x170] sm:$0xff]
    %v5482 = vld [vmem:[#allocation15 + $0x178] sm:$0xff]
    %5483 = vmatprep.subr.mxu0 %v5481
    %5484 = vmatpush1.msra.mxu0 %v5480
    %5485 = vmatprep.subr.mxu0 %v5478
    %5486 = vmatpush1.msra.mxu0 %v5477
    %5487 = vmatprep.subr.mxu0 %v5475
    %5488 = vmatpush1.msra.mxu0 %v5474
    %5489 = vmatprep.subr.mxu0 %v5472
    %5490 = vmatpush1.msra.mxu0 %v5471
    %5491 = vmatprep.subr.mxu0 %v5469
    %5492 = vmatpush1.msra.mxu0 %v5468
    %5493 = vmatprep.subr.mxu0 %v5466
    %5494 = vmatpush1.msra.mxu0 %v5465
    %5495 = vmatprep.subr.mxu0 %v5463
    %5496 = vmatpush1.msra.mxu0 %v5462
    %5497 = vmatprep.subr.mxu0 %v5460
    %5498 = vmatpush1.msra.mxu0 %v5459
    %5499 = vmatprep.subr.mxu0 %v5457
    %5500 = vmatpush1.msra.mxu0 %v5456
    %5501 = vmatprep.subr.mxu0 %v5454
    %5502 = vmatpush1.msra.mxu0 %v5453
    %5503 = vmatprep.subr.mxu0 %v5451
    %5504 = vmatpush1.msra.mxu0 %v5450
    %5505 = vmatprep.subr.mxu0 %v5448
    %5506 = vmatpush1.msra.mxu0 %v5447
    %5507 = vmatprep.subr.mxu0 %v5445
    %5508 = vmatpush1.msra.mxu0 %v5444
    %5509 = vmatprep.subr.mxu0 %v5442
    %5510 = vmatpush1.msra.mxu0 %v5441
    %5511 = vmatprep.subr.mxu0 %v5439
    %5512 = vmatpush1.msra.mxu0 %v5438
    %5513 = vmatprep.subr.mxu0 %v5436
    %5514 = vmatpush1.msra.mxu0 %v5435
    %5515 = vmatprep.subr.mxu0 0.0
    %5516 = vmatpush2.msra.mxu0 0.0
    %5517 = vmatprep.subr.mxu0 0.0
    %5518 = vmatpush2.msra.mxu0 0.0
    %5519 = vmatprep.subr.mxu0 0.0
    %5520 = vmatpush2.msra.mxu0 0.0
    %5521 = vmatprep.subr.mxu0 0.0
    %5522 = vmatpush2.msra.mxu0 0.0
    %5523 = vmatprep.subr.mxu0 0.0
    %5524 = vmatpush2.msra.mxu0 0.0
    %5525 = vmatprep.subr.mxu0 0.0
    %5526 = vmatpush2.msra.mxu0 0.0
    %5527 = vmatprep.subr.mxu0 0.0
    %5528 = vmatpush2.msra.mxu0 0.0
    %5529 = vmatprep.subr.mxu0 0.0
    %5530 = vmatpush2.msra.mxu0 0.0
    %5531 = vmatprep.subr.mxu0 0.0
    %5532 = vmatpush2.msra.mxu0 0.0
    %5533 = vmatprep.subr.mxu0 0.0
    %5534 = vmatpush2.msra.mxu0 0.0
    %5535 = vmatprep.subr.mxu0 0.0
    %5536 = vmatpush2.msra.mxu0 0.0
    %5537 = vmatprep.subr.mxu0 0.0
    %5538 = vmatpush2.msra.mxu0 0.0
    %5539 = vmatprep.subr.mxu0 0.0
    %5540 = vmatpush2.msra.mxu0 0.0
    %5541 = vmatprep.subr.mxu0 0.0
    %5542 = vmatpush2.msra.mxu0 0.0
    %5543 = vmatprep.subr.mxu0 0.0
    %5544 = vmatpush2.msra.mxu0 0.0
    %5545 = vmatprep.subr.mxu0 0.0
    %5546 = vmatpush2.msra.mxu0 0.0
    %5547 = vmatprep.mubr.f32.mxu0 0.0
    %5548 = vmatmul.mubr.f32.gmra.mxu0 %v5024
    %v5549 = vpop.f32.mrf.mxu0
    %v5550 = vadd.f32 0.0, %v5549
    %v5551 = vpop.f32.mrf.mxu0
    %v5552 = vadd.f32 0.0, %v5551
    %5553 = vdwg.mxu0
    %5554 = vmatprep.subr.mxu0 0.0
    %5555 = vmatpush1.msra.mxu0 %v5482
    %5556 = vmatprep.subr.mxu0 0.0
    %5557 = vmatpush1.msra.mxu0 %v5479
    %5558 = vmatprep.subr.mxu0 0.0
    %5559 = vmatpush1.msra.mxu0 %v5476
    %5560 = vmatprep.subr.mxu0 0.0
    %5561 = vmatpush1.msra.mxu0 %v5473
    %5562 = vmatprep.subr.mxu0 0.0
    %5563 = vmatpush1.msra.mxu0 %v5470
    %5564 = vmatprep.subr.mxu0 0.0
    %5565 = vmatpush1.msra.mxu0 %v5467
    %5566 = vmatprep.subr.mxu0 0.0
    %5567 = vmatpush1.msra.mxu0 %v5464
    %5568 = vmatprep.subr.mxu0 0.0
    %5569 = vmatpush1.msra.mxu0 %v5461
    %5570 = vmatprep.subr.mxu0 0.0
    %5571 = vmatpush1.msra.mxu0 %v5458
    %5572 = vmatprep.subr.mxu0 0.0
    %5573 = vmatpush1.msra.mxu0 %v5455
    %5574 = vmatprep.subr.mxu0 0.0
    %5575 = vmatpush1.msra.mxu0 %v5452
    %5576 = vmatprep.subr.mxu0 0.0
    %5577 = vmatpush1.msra.mxu0 %v5449
    %5578 = vmatprep.subr.mxu0 0.0
    %5579 = vmatpush1.msra.mxu0 %v5446
    %5580 = vmatprep.subr.mxu0 0.0
    %5581 = vmatpush1.msra.mxu0 %v5443
    %5582 = vmatprep.subr.mxu0 0.0
    %5583 = vmatpush1.msra.mxu0 %v5440
    %5584 = vmatprep.subr.mxu0 0.0
    %5585 = vmatpush1.msra.mxu0 %v5437
    %5586 = vmatprep.subr.mxu0 0.0
    %5587 = vmatpush2.msra.mxu0 0.0
    %5588 = vmatprep.subr.mxu0 0.0
    %5589 = vmatpush2.msra.mxu0 0.0
    %5590 = vmatprep.subr.mxu0 0.0
    %5591 = vmatpush2.msra.mxu0 0.0
    %5592 = vmatprep.subr.mxu0 0.0
    %5593 = vmatpush2.msra.mxu0 0.0
    %5594 = vmatprep.subr.mxu0 0.0
    %5595 = vmatpush2.msra.mxu0 0.0
    %5596 = vmatprep.subr.mxu0 0.0
    %5597 = vmatpush2.msra.mxu0 0.0
    %5598 = vmatprep.subr.mxu0 0.0
    %5599 = vmatpush2.msra.mxu0 0.0
    %5600 = vmatprep.subr.mxu0 0.0
    %5601 = vmatpush2.msra.mxu0 0.0
    %5602 = vmatprep.subr.mxu0 0.0
    %5603 = vmatpush2.msra.mxu0 0.0
    %5604 = vmatprep.subr.mxu0 0.0
    %5605 = vmatpush2.msra.mxu0 0.0
    %5606 = vmatprep.subr.mxu0 0.0
    %5607 = vmatpush2.msra.mxu0 0.0
    %5608 = vmatprep.subr.mxu0 0.0
    %5609 = vmatpush2.msra.mxu0 0.0
    %5610 = vmatprep.subr.mxu0 0.0
    %5611 = vmatpush2.msra.mxu0 0.0
    %5612 = vmatprep.subr.mxu0 0.0
    %5613 = vmatpush2.msra.mxu0 0.0
    %5614 = vmatprep.subr.mxu0 0.0
    %5615 = vmatpush2.msra.mxu0 0.0
    %5616 = vmatprep.subr.mxu0 0.0
    %5617 = vmatpush2.msra.mxu0 0.0
    %5618 = vmatprep.mubr.f32.mxu0 0.0
    %5619 = vmatmul.mubr.f32.gmra.mxu0 %v5024
    %v5620 = vpop.f32.mrf.mxu0
    %v5621 = vadd.f32 0.0, %v5620
    %v5622 = vpop.f32.mrf.mxu0
    %5623 = vdwg.mxu0
    %v5624 = vadd.f32 %v5361, %v5550
    %v5625 = vxor.u32 %v5624, 2147483648
    %v5626 = vmul.f32 %v5625, 1.442695
    %v5627 = vpow.pop %v5626
    %v5628 = vadd.f32 %v5627, 1.0
    %v5629 = vrcp.pop %v5628
    %v5630 = vmul.f32 1.0, %v5629
    %v5631 = vadd.f32 %v5363, %v5552
    %v5632 = vxor.u32 %v5631, 2147483648
    %v5633 = vmul.f32 %v5632, 1.442695
    %v5634 = vpow.pop %v5633
    %v5635 = vadd.f32 %v5634, 1.0
    %v5636 = vrcp.pop %v5635
    %v5637 = vmul.f32 1.0, %v5636
    %v5638 = vadd.f32 %v5621, %v686
    %v5639 = vmul.f32 %v5630, %v5638
    %v5640 = vadd.f32 %v5432, %v5639
    %v5641 = vtanh.pop %v5640
    %v5642 = vsub.f32 %v5024, %v5641
    %v5643 = vmul.f32 %v5637, %v5642
    %v5644 = vadd.f32 %v5641, %v5643
    %5645 = vst [vmem:[#allocation17 + $0x38] sm:$0xff] %v5644
    %5646 = vst [vmem:[#allocation18] sm:$0xff] %v5245
    %s5647 = scalar_lea.vmem [#allocation18], 8
    %5648 = vst [vmem:[%s5647] sm:$0xff] %v5644
    // Predicated region
    $region82: #{tpu_custom_call.1} parent=1 // pred_check
      _
    $region83: #{tpu_custom_call.1} parent=1 // pred_check_branch
      %5650 = sbr.rel (0) target = $region85
    $region84: #{tpu_custom_call.1} parent=1 // pred_region
      %s5652 = ssub.s32 1024, 1024
      %5653 = vsyncadd [#allocation5], %s5652
      %s5654 = sshll.u32 [#allocation17], 4
      %s5655 = int_to_ptr.vmem [resolvable:$true] %s5654
      %5660 = dma.vmem_to_hbm [thread:$0]  %s5655, 1024, %s12, [#allocation5], 128, 128, 8
    $region85: #{tpu_custom_call.1} parent=1 // pred_fallthru
      _
    // Predicated region
    $region86: #{tpu_custom_call.1} parent=1 // pred_check
      _
    $region87: #{tpu_custom_call.1} parent=1 // pred_check_branch
      %5662 = sbr.rel (0) target = $region89
    $region88: #{tpu_custom_call.1} parent=1 // pred_region
      %s5664 = ssub.s32 256, 256
      %5665 = vsyncadd [#allocation19], %s5664
      %s5666 = sshll.u32 [#allocation18], 4
      %s5667 = int_to_ptr.vmem [resolvable:$true] %s5666
      %5672 = dma.vmem_to_hbm [thread:$0]  %s5667, 256, %s13, [#allocation19], 128, 128, 8
    $region89: #{tpu_custom_call.1} parent=1 // pred_fallthru
      _
    // Predicated region
    $region90: #{tpu_custom_call.1} parent=1 // pred_check
      _
    $region91: #{tpu_custom_call.1} parent=1 // pred_check_branch
      %5674 = sbr.rel (0) target = $region93
    $region92: #{tpu_custom_call.1} parent=1 // pred_region
      %5675 = dma.done [#allocation5], 1024
    $region93: #{tpu_custom_call.1} parent=1 // pred_fallthru
      _
    // Predicated region
    $region94: #{tpu_custom_call.1} parent=1 // pred_check
      _
    $region95: #{tpu_custom_call.1} parent=1 // pred_check_branch
      %5677 = sbr.rel (0) target = $region97
    $region96: #{tpu_custom_call.1} parent=1 // pred_region
      %5678 = dma.done [#allocation19], 256
    $region97: #{tpu_custom_call.1} parent=1 // pred_fallthru
      _
    %5679 = vsyncpa [#allocation4], 1
    %5680 = vsyncpa [#allocation7], 1
    %5681 = vsyncpa [#allocation10], 1
    %5682 = vsyncpa [#allocation13], 1
    %5683 = vsyncpa [#allocation16], 1
    %5684 = vsyncpa [#allocation5], 1
    %5685 = vsyncpa [#allocation19], 1

</llo_original>
